<compile_context>
chip_gen: v7x
topology: tpu7x:2x2x1
jax: 0.10.0
libtpu: 0.0.40
codegen_flags: <defaults>
</compile_context>

<pallas_src>
import functools

import jax
import jax.numpy as jnp
from jax.experimental import pallas as pl
from jax.experimental.pallas import tpu as pltpu


def _fullspec(shape):
    """Full-array block (no tiling); legal for any dims when block == array."""
    shape = tuple(shape)
    return pl.BlockSpec(shape, lambda *_: (0,) * len(shape))


# ---------------------------------------------------------------------------
# Fused Pallas kernels
# ---------------------------------------------------------------------------
def _head_kernel(zT_ref, fcw_ref, fcb_ref, w1_ref, g_ref, b_ref, o_ref):
    """fc + ReLU + pixel_norm + deconv1(1x1 input) + BN1 + ReLU + pixel_norm.

    zT:(Zin,B) f32  fcw:(Zd,Zin)  fcb:(Zd,1)  w1:(16*C1,Zd)  g,b:(C1,1)
    o:(16, C1, B)  -- (spatial position h*4+w, channel, batch), channel-major.
    """
    h = jnp.dot(fcw_ref[...], zT_ref[...], preferred_element_type=jnp.float32)
    h = h + fcb_ref[...]
    h = jnp.maximum(h, 0.0)                                         # ReLU
    h = h * jax.lax.rsqrt(jnp.mean(h * h, axis=0, keepdims=True) + 1e-10)

    P, C1, B = o_ref.shape
    # Single MXU matmul for all 16 output positions of deconv1.
    y_all = jnp.dot(w1_ref[...], h, preferred_element_type=jnp.float32)  # (P*C1,B)

    # Training-mode BN statistics per channel over (positions, batch).
    s = jnp.zeros((C1, 1), jnp.float32)
    ss = jnp.zeros((C1, 1), jnp.float32)
    for p in range(P):                                              # 16 static slices
        y = y_all[p * C1:(p + 1) * C1]
        s = s + jnp.sum(y, axis=1, keepdims=True)
        ss = ss + jnp.sum(y * y, axis=1, keepdims=True)
    inv_cnt = 1.0 / float(P * B)
    mean = s * inv_cnt
    var = ss * inv_cnt - mean * mean                                # E[x^2]-mean^2
    scale = g_ref[...] * jax.lax.rsqrt(var + 1e-5)
    shift = b_ref[...] - mean * scale

    for p in range(P):
        y = y_all[p * C1:(p + 1) * C1]
        z = jnp.maximum(y * scale + shift, 0.0)                     # BN + ReLU
        z = z * jax.lax.rsqrt(jnp.mean(z * z, axis=0, keepdims=True) + 1e-10)
        o_ref[p] = z.astype(o_ref.dtype)                            # pixel_norm


def _deconv_bn_kernel(cols_ref, w_ref, g_ref, b_ref, o_ref):
    """4-phase ConvTranspose2d(k=4,s=2,p=1) + BN + ReLU + pixel_norm.

    cols:(4,K,M) bf16  w:(4,C,K) bf16  g,b:(C,1) f32  o:(4,C,M)  (channel-major)
    """
    P, C, M = o_ref.shape
    ys = []
    s = jnp.zeros((C, 1), jnp.float32)
    ss = jnp.zeros((C, 1), jnp.float32)
    for p in range(P):
        y = jnp.dot(w_ref[p], cols_ref[p], preferred_element_type=jnp.float32)
        ys.append(y)
        s = s + jnp.sum(y, axis=1, keepdims=True)
        ss = ss + jnp.sum(y * y, axis=1, keepdims=True)
    inv_cnt = 1.0 / float(P * M)
    mean = s * inv_cnt
    var = ss * inv_cnt - mean * mean
    scale = g_ref[...] * jax.lax.rsqrt(var + 1e-5)
    shift = b_ref[...] - mean * scale
    for p in range(P):
        z = jnp.maximum(ys[p] * scale + shift, 0.0)
        z = z * jax.lax.rsqrt(jnp.mean(z * z, axis=0, keepdims=True) + 1e-10)
        o_ref[p] = z.astype(o_ref.dtype)


def _deconv_tanh_kernel(cols_ref, w_ref, o_ref):
    """4-phase ConvTranspose2d(k=4,s=2,p=1) + Tanh (channel-major, lane-dense)."""
    P = o_ref.shape[0]
    for p in range(P):
        y = jnp.dot(w_ref[p], cols_ref[p], preferred_element_type=jnp.float32)
        o_ref[p] = jnp.tanh(y).astype(o_ref.dtype)


# ---------------------------------------------------------------------------
# Phase-decomposed ConvTranspose2d lowering (thin JAX glue around the kernels)
# ---------------------------------------------------------------------------
def _im2col_phases(x_nhwc):
    """(N,H,W,C) -> (4, 4*C, N*H*W).  Phase p=ph*2+pw; K ordered (dh,dw,ci)."""
    N, H, W, C = x_nhwc.shape
    xp = jnp.pad(x_nhwc, ((0, 0), (1, 1), (1, 1), (0, 0)))
    shifts = jnp.stack([xp[:, a:a + H, b:b + W, :]
                        for a in range(3) for b in range(3)], axis=0)  # (9,N,H,W,C)
    shifts = jnp.transpose(shifts, (0, 4, 1, 2, 3)).reshape(9, C, N * H * W)
    phases = []
    for ph in range(2):
        for pw in range(2):
            taps = [shifts[(ph + dh) * 3 + (pw + dw)]
                    for dh in range(2) for dw in range(2)]
            phases.append(jnp.concatenate(taps, axis=0))               # (4*C, M)
    return jnp.stack(phases, axis=0)                                   # (4,4*C,M)


def _phase_weights(w):
    """torch ConvTranspose2d weight (Cin,Cout,4,4) -> (4, Cout, 4*Cin)."""
    mats = []
    for ph in range(2):
        for pw in range(2):
            taps = []
            for dh in range(2):
                for dw in range(2):
                    kh = (3 if ph == 0 else 2) - 2 * dh
                    kw = (3 if pw == 0 else 2) - 2 * dw
                    taps.append(w[:, :, kh, kw].T)                     # (Cout,Cin)
            mats.append(jnp.concatenate(taps, axis=1))                 # (Cout,4Cin)
    return jnp.stack(mats, axis=0)


def head_layer(z_in, fc_w, fc_b, w1, gamma, beta):
    """fc -> relu -> pixel_norm -> deconv1 -> BN1 -> relu -> pixel_norm."""
    B = z_in.shape[0]
    Zd = fc_w.shape[0]
    C1 = w1.shape[1]
    zT = z_in.T.astype(jnp.float32)                                    # (Zin,B)
    # (Zd,C1,4,4) -> (hw, C1, Zd) -> (16*C1, Zd): one matmul covers all positions.
    w1m = jnp.transpose(w1, (2, 3, 1, 0)).reshape(16 * C1, Zd)
    o = pl.pallas_call(
        _head_kernel,
        out_shape=jax.ShapeDtypeStruct((16, C1, B), jnp.bfloat16),
        grid=(1,),
        in_specs=[_fullspec(zT.shape), _fullspec(fc_w.shape),
                  _fullspec((Zd, 1)), _fullspec(w1m.shape),
                  _fullspec((C1, 1)), _fullspec((C1, 1))],
        out_specs=_fullspec((16, C1, B)),
        compiler_params=pltpu.CompilerParams(dimension_semantics=("arbitrary",)),
    )(zT, fc_w.astype(jnp.float32), fc_b.reshape(Zd, 1).astype(jnp.float32),
      w1m.astype(jnp.float32), gamma.reshape(C1, 1).astype(jnp.float32),
      beta.reshape(C1, 1).astype(jnp.float32))
    # (p=h*4+w, C1, B) -> (B, 4, 4, C1)
    return jnp.transpose(o.reshape(4, 4, C1, B), (3, 0, 1, 2))


def deconv_bn_relu_pixelnorm(x_nhwc, w, gamma, beta):
    N, H, W, Cin = x_nhwc.shape
    Cout = w.shape[1]
    M = N * H * W
    cols = _im2col_phases(x_nhwc).astype(jnp.bfloat16)                 # (4,4Cin,M)
    wph = _phase_weights(w).astype(jnp.bfloat16)                       # (4,Cout,4Cin)
    o = pl.pallas_call(
        _deconv_bn_kernel,
        out_shape=jax.ShapeDtypeStruct((4, Cout, M), jnp.bfloat16),
        grid=(1,),
        in_specs=[_fullspec(cols.shape), _fullspec(wph.shape),
                  _fullspec((Cout, 1)), _fullspec((Cout, 1))],
        out_specs=_fullspec((4, Cout, M)),
        compiler_params=pltpu.CompilerParams(dimension_semantics=("arbitrary",)),
    )(cols, wph, gamma.reshape(Cout, 1).astype(jnp.float32),
      beta.reshape(Cout, 1).astype(jnp.float32))
    # interleave phases: (ph,pw,C,N,H,W) -> (N, 2H, 2W, C)
    o = o.reshape(2, 2, Cout, N, H, W)
    return jnp.transpose(o, (3, 4, 0, 5, 1, 2)).reshape(N, 2 * H, 2 * W, Cout)


def deconv_tanh_nchw(x_nhwc, w):
    N, H, W, Cin = x_nhwc.shape
    Cout = w.shape[1]
    M = N * H * W
    cols = _im2col_phases(x_nhwc).astype(jnp.bfloat16)
    wph = _phase_weights(w).astype(jnp.bfloat16)
    o = pl.pallas_call(
        _deconv_tanh_kernel,
        out_shape=jax.ShapeDtypeStruct((4, Cout, M), jnp.float32),
        grid=(1,),
        in_specs=[_fullspec(cols.shape), _fullspec(wph.shape)],
        out_specs=_fullspec((4, Cout, M)),
        compiler_params=pltpu.CompilerParams(dimension_semantics=("arbitrary",)),
    )(cols, wph)
    # (ph,pw,C,N,H,W) -> NCHW (N, C, 2H, 2W) -> flatten like torch .view
    o = o.reshape(2, 2, Cout, N, H, W)
    out = jnp.transpose(o, (3, 2, 4, 0, 5, 1)).reshape(N, Cout, 2 * H, 2 * W)
    return out.reshape(N, Cout * 2 * H * 2 * W)


# ---------------------------------------------------------------------------
# Full generator forward
# ---------------------------------------------------------------------------
def generator_forward(params, z, y, z_dim=10, num_classes=10):
    y_onehot = jax.nn.one_hot(y, num_classes, dtype=jnp.float32)
    z_in = jnp.concatenate([z.astype(jnp.float32), y_onehot], axis=1)  # (B, z+nc)

    # fc + relu + pixel_norm + deconv1(k4,s1,p0) + BN1 + relu + pixel_norm
    x = head_layer(z_in, params["fc_w"], params["fc_b"], params["w1"],
                   params["g1"], params["b1"])                         # (B,4,4,4md)
    # deconv2 (k4,s2,p1) + BN2 + relu + pixel_norm
    x = deconv_bn_relu_pixelnorm(x, params["w2"], params["g2"], params["b2"])
    # deconv3 (k4,s2,p1) + BN3 + relu + pixel_norm
    x = deconv_bn_relu_pixelnorm(x, params["w3"], params["g3"], params["b3"])
    # deconv4 (k4,s2,p1) + tanh, flattened NCHW like torch
    return deconv_tanh_nchw(x, params["w4"])                           # (B, 3072)
    # TODO(synk): BatchNorm running-stat buffer updates (training side effect)
    # are not reproduced; forward uses batch statistics exactly like train mode.


# ---------------------------------------------------------------------------
# Deterministic parameter init (shapes from the module's __init__)
# ---------------------------------------------------------------------------
def init_params(key, z_dim=10, model_dim=16, num_classes=10):
    ks = jax.random.split(key, 6)

    def nrm(k, shape, scale=0.05):
        return scale * jax.random.normal(k, shape, dtype=jnp.float32)

    return {
        # torch Linear weight is (out_features, in_features)
        "fc_w": nrm(ks[0], (z_dim, z_dim + num_classes)),
        "fc_b": nrm(ks[1], (z_dim,)),
        # torch ConvTranspose2d weight is (Cin, Cout, kH, kW); bias=False in spec
        "w1": nrm(ks[2], (z_dim, model_dim * 4, 4, 4)),
        "w2": nrm(ks[3], (model_dim * 4, model_dim * 2, 4, 4)),
        "w3": nrm(ks[4], (model_dim * 2, model_dim, 4, 4)),
        "w4": nrm(ks[5], (model_dim, 3, 4, 4)),
        # BatchNorm default init: gamma = 1, beta = 0
        "g1": jnp.ones((model_dim * 4,), jnp.float32),
        "b1": jnp.zeros((model_dim * 4,), jnp.float32),
        "g2": jnp.ones((model_dim * 2,), jnp.float32),
        "b2": jnp.zeros((model_dim * 2,), jnp.float32),
        "g3": jnp.ones((model_dim,), jnp.float32),
        "b3": jnp.zeros((model_dim,), jnp.float32),
    }


if __name__ == "__main__":
    z_dim, model_dim, num_classes, batch = 10, 16, 10, 2
    key = jax.random.PRNGKey(0)
    kp, kz, ky = jax.random.split(key, 3)
    params = init_params(kp, z_dim=z_dim, model_dim=model_dim,
                         num_classes=num_classes)
    z = jax.random.normal(kz, (batch, z_dim), dtype=jnp.float32)
    y = jax.random.randint(ky, (batch,), 0, num_classes)

    fwd = jax.jit(functools.partial(generator_forward,
                                    z_dim=z_dim, num_classes=num_classes))
    out = fwd(params, z, y)
    jax.block_until_ready(out)
    assert out.shape == (batch, 3 * 32 * 32), out.shape
    assert bool(jnp.all(jnp.isfinite(out)))
    print("KERNEL_OK")
</pallas_src>

<mosaic_0001>
module attributes {stable_mosaic.version = 11 : i64} {
  func.func @_head_kernel(%arg0: i32, %arg1: memref<20x2xf32, #tpu.memory_space<vmem>>, %arg2: memref<10x20xf32, #tpu.memory_space<vmem>>, %arg3: memref<10x1xf32, #tpu.memory_space<vmem>>, %arg4: memref<1024x10xf32, #tpu.memory_space<vmem>>, %arg5: memref<64x1xf32, #tpu.memory_space<vmem>>, %arg6: memref<64x1xf32, #tpu.memory_space<vmem>>, %arg7: memref<16x64x2xbf16, #tpu.memory_space<vmem>>) attributes {dimension_semantics = [#tpu.dimension_semantics<arbitrary>], iteration_bounds = array<i64: 1>, scalar_prefetch = 0 : i64, scratch_operands = 0 : i64, tpu.core_type = #tpu.core_type<tc>, window_params = [{pipeline_mode = #tpu.pipeline_mode<synchronous>, transform_indices = @transform_0, window_bounds = array<i64: 20, 2>}, {pipeline_mode = #tpu.pipeline_mode<synchronous>, transform_indices = @transform_1, window_bounds = array<i64: 10, 20>}, {pipeline_mode = #tpu.pipeline_mode<synchronous>, transform_indices = @transform_2, window_bounds = array<i64: 10, 1>}, {pipeline_mode = #tpu.pipeline_mode<synchronous>, transform_indices = @transform_3, window_bounds = array<i64: 1024, 10>}, {pipeline_mode = #tpu.pipeline_mode<synchronous>, transform_indices = @transform_4, window_bounds = array<i64: 64, 1>}, {pipeline_mode = #tpu.pipeline_mode<synchronous>, transform_indices = @transform_5, window_bounds = array<i64: 64, 1>}, {pipeline_mode = #tpu.pipeline_mode<synchronous>, transform_indices = @transform_6, window_bounds = array<i64: 16, 64, 2>}]} {
    %c0 = arith.constant 0 : index
    %c0_0 = arith.constant 0 : index
    %0 = vector.load %arg2[%c0, %c0_0] : memref<10x20xf32, #tpu.memory_space<vmem>>, vector<10x20xf32>
    %c0_1 = arith.constant 0 : index
    %c0_2 = arith.constant 0 : index
    %1 = vector.load %arg1[%c0_1, %c0_2] : memref<20x2xf32, #tpu.memory_space<vmem>>, vector<20x2xf32>
    %cst = arith.constant dense<0.000000e+00> : vector<10x2xf32>
    %2 = tpu.matmul %0, %1, %cst {dimension_numbers = #tpu.dot_dimension_numbers<[1], [0], [0], [1], [0, 0, 1, 1], [], []>} : vector<10x20xf32>, vector<20x2xf32>, vector<10x2xf32> -> vector<10x2xf32>
    %c0_3 = arith.constant 0 : index
    %c0_4 = arith.constant 0 : index
    %3 = vector.load %arg3[%c0_3, %c0_4] : memref<10x1xf32, #tpu.memory_space<vmem>>, vector<10x1xf32>
    %4 = vector.broadcast %3 : vector<10x1xf32> to vector<10x2xf32>
    %5 = arith.addf %2, %4 : vector<10x2xf32>
    %cst_5 = arith.constant 0.000000e+00 : f32
    %6 = vector.broadcast %cst_5 : f32 to vector<10x2xf32>
    %7 = arith.maximumf %5, %6 : vector<10x2xf32>
    %8 = arith.mulf %7, %7 : vector<10x2xf32>
    %cst_6 = arith.constant dense<0.000000e+00> : vector<2xf32>
    %9 = vector.multi_reduction <add>, %8, %cst_6 [0] : vector<10x2xf32> to vector<2xf32>
    %10 = vector.shape_cast %9 : vector<2xf32> to vector<1x2xf32>
    %cst_7 = arith.constant 1.000000e+01 : f32
    %11 = vector.broadcast %cst_7 : f32 to vector<1x2xf32>
    %12 = arith.divf %10, %11 : vector<1x2xf32>
    %cst_8 = arith.constant 1.000000e-10 : f32
    %13 = vector.broadcast %cst_8 : f32 to vector<1x2xf32>
    %14 = arith.addf %12, %13 : vector<1x2xf32>
    %15 = math.rsqrt %14 : vector<1x2xf32>
    %16 = vector.broadcast %15 : vector<1x2xf32> to vector<10x2xf32>
    %17 = arith.mulf %7, %16 : vector<10x2xf32>
    %c0_9 = arith.constant 0 : index
    %c0_10 = arith.constant 0 : index
    %18 = vector.load %arg4[%c0_9, %c0_10] : memref<1024x10xf32, #tpu.memory_space<vmem>>, vector<1024x10xf32>
    %cst_11 = arith.constant dense<0.000000e+00> : vector<1024x2xf32>
    %19 = tpu.matmul %18, %17, %cst_11 {dimension_numbers = #tpu.dot_dimension_numbers<[1], [0], [0], [1], [0, 0, 1, 1], [], []>} : vector<1024x10xf32>, vector<10x2xf32>, vector<1024x2xf32> -> vector<1024x2xf32>
    %cst_12 = arith.constant 0.000000e+00 : f32
    %20 = vector.broadcast %cst_12 : f32 to vector<64x1xf32>
    %cst_13 = arith.constant 0.000000e+00 : f32
    %21 = vector.broadcast %cst_13 : f32 to vector<64x1xf32>
    %22 = vector.extract_strided_slice %19 {offsets = [0, 0], sizes = [64, 2], strides = [1, 1]} : vector<1024x2xf32> to vector<64x2xf32>
    %cst_14 = arith.constant dense<0.000000e+00> : vector<64xf32>
    %23 = vector.multi_reduction <add>, %22, %cst_14 [1] : vector<64x2xf32> to vector<64xf32>
    %24 = vector.shape_cast %23 : vector<64xf32> to vector<64x1xf32>
    %25 = arith.addf %20, %24 : vector<64x1xf32>
    %26 = arith.mulf %22, %22 : vector<64x2xf32>
    %cst_15 = arith.constant dense<0.000000e+00> : vector<64xf32>
    %27 = vector.multi_reduction <add>, %26, %cst_15 [1] : vector<64x2xf32> to vector<64xf32>
    %28 = vector.shape_cast %27 : vector<64xf32> to vector<64x1xf32>
    %29 = arith.addf %21, %28 : vector<64x1xf32>
    %30 = vector.extract_strided_slice %19 {offsets = [64, 0], sizes = [64, 2], strides = [1, 1]} : vector<1024x2xf32> to vector<64x2xf32>
    %cst_16 = arith.constant dense<0.000000e+00> : vector<64xf32>
    %31 = vector.multi_reduction <add>, %30, %cst_16 [1] : vector<64x2xf32> to vector<64xf32>
    %32 = vector.shape_cast %31 : vector<64xf32> to vector<64x1xf32>
    %33 = arith.addf %25, %32 : vector<64x1xf32>
    %34 = arith.mulf %30, %30 : vector<64x2xf32>
    %cst_17 = arith.constant dense<0.000000e+00> : vector<64xf32>
    %35 = vector.multi_reduction <add>, %34, %cst_17 [1] : vector<64x2xf32> to vector<64xf32>
    %36 = vector.shape_cast %35 : vector<64xf32> to vector<64x1xf32>
    %37 = arith.addf %29, %36 : vector<64x1xf32>
    %38 = vector.extract_strided_slice %19 {offsets = [128, 0], sizes = [64, 2], strides = [1, 1]} : vector<1024x2xf32> to vector<64x2xf32>
    %cst_18 = arith.constant dense<0.000000e+00> : vector<64xf32>
    %39 = vector.multi_reduction <add>, %38, %cst_18 [1] : vector<64x2xf32> to vector<64xf32>
    %40 = vector.shape_cast %39 : vector<64xf32> to vector<64x1xf32>
    %41 = arith.addf %33, %40 : vector<64x1xf32>
    %42 = arith.mulf %38, %38 : vector<64x2xf32>
    %cst_19 = arith.constant dense<0.000000e+00> : vector<64xf32>
    %43 = vector.multi_reduction <add>, %42, %cst_19 [1] : vector<64x2xf32> to vector<64xf32>
    %44 = vector.shape_cast %43 : vector<64xf32> to vector<64x1xf32>
    %45 = arith.addf %37, %44 : vector<64x1xf32>
    %46 = vector.extract_strided_slice %19 {offsets = [192, 0], sizes = [64, 2], strides = [1, 1]} : vector<1024x2xf32> to vector<64x2xf32>
    %cst_20 = arith.constant dense<0.000000e+00> : vector<64xf32>
    %47 = vector.multi_reduction <add>, %46, %cst_20 [1] : vector<64x2xf32> to vector<64xf32>
    %48 = vector.shape_cast %47 : vector<64xf32> to vector<64x1xf32>
    %49 = arith.addf %41, %48 : vector<64x1xf32>
    %50 = arith.mulf %46, %46 : vector<64x2xf32>
    %cst_21 = arith.constant dense<0.000000e+00> : vector<64xf32>
    %51 = vector.multi_reduction <add>, %50, %cst_21 [1] : vector<64x2xf32> to vector<64xf32>
    %52 = vector.shape_cast %51 : vector<64xf32> to vector<64x1xf32>
    %53 = arith.addf %45, %52 : vector<64x1xf32>
    %54 = vector.extract_strided_slice %19 {offsets = [256, 0], sizes = [64, 2], strides = [1, 1]} : vector<1024x2xf32> to vector<64x2xf32>
    %cst_22 = arith.constant dense<0.000000e+00> : vector<64xf32>
    %55 = vector.multi_reduction <add>, %54, %cst_22 [1] : vector<64x2xf32> to vector<64xf32>
    %56 = vector.shape_cast %55 : vector<64xf32> to vector<64x1xf32>
    %57 = arith.addf %49, %56 : vector<64x1xf32>
    %58 = arith.mulf %54, %54 : vector<64x2xf32>
    %cst_23 = arith.constant dense<0.000000e+00> : vector<64xf32>
    %59 = vector.multi_reduction <add>, %58, %cst_23 [1] : vector<64x2xf32> to vector<64xf32>
    %60 = vector.shape_cast %59 : vector<64xf32> to vector<64x1xf32>
    %61 = arith.addf %53, %60 : vector<64x1xf32>
    %62 = vector.extract_strided_slice %19 {offsets = [320, 0], sizes = [64, 2], strides = [1, 1]} : vector<1024x2xf32> to vector<64x2xf32>
    %cst_24 = arith.constant dense<0.000000e+00> : vector<64xf32>
    %63 = vector.multi_reduction <add>, %62, %cst_24 [1] : vector<64x2xf32> to vector<64xf32>
    %64 = vector.shape_cast %63 : vector<64xf32> to vector<64x1xf32>
    %65 = arith.addf %57, %64 : vector<64x1xf32>
    %66 = arith.mulf %62, %62 : vector<64x2xf32>
    %cst_25 = arith.constant dense<0.000000e+00> : vector<64xf32>
    %67 = vector.multi_reduction <add>, %66, %cst_25 [1] : vector<64x2xf32> to vector<64xf32>
    %68 = vector.shape_cast %67 : vector<64xf32> to vector<64x1xf32>
    %69 = arith.addf %61, %68 : vector<64x1xf32>
    %70 = vector.extract_strided_slice %19 {offsets = [384, 0], sizes = [64, 2], strides = [1, 1]} : vector<1024x2xf32> to vector<64x2xf32>
    %cst_26 = arith.constant dense<0.000000e+00> : vector<64xf32>
    %71 = vector.multi_reduction <add>, %70, %cst_26 [1] : vector<64x2xf32> to vector<64xf32>
    %72 = vector.shape_cast %71 : vector<64xf32> to vector<64x1xf32>
    %73 = arith.addf %65, %72 : vector<64x1xf32>
    %74 = arith.mulf %70, %70 : vector<64x2xf32>
    %cst_27 = arith.constant dense<0.000000e+00> : vector<64xf32>
    %75 = vector.multi_reduction <add>, %74, %cst_27 [1] : vector<64x2xf32> to vector<64xf32>
    %76 = vector.shape_cast %75 : vector<64xf32> to vector<64x1xf32>
    %77 = arith.addf %69, %76 : vector<64x1xf32>
    %78 = vector.extract_strided_slice %19 {offsets = [448, 0], sizes = [64, 2], strides = [1, 1]} : vector<1024x2xf32> to vector<64x2xf32>
    %cst_28 = arith.constant dense<0.000000e+00> : vector<64xf32>
    %79 = vector.multi_reduction <add>, %78, %cst_28 [1] : vector<64x2xf32> to vector<64xf32>
    %80 = vector.shape_cast %79 : vector<64xf32> to vector<64x1xf32>
    %81 = arith.addf %73, %80 : vector<64x1xf32>
    %82 = arith.mulf %78, %78 : vector<64x2xf32>
    %cst_29 = arith.constant dense<0.000000e+00> : vector<64xf32>
    %83 = vector.multi_reduction <add>, %82, %cst_29 [1] : vector<64x2xf32> to vector<64xf32>
    %84 = vector.shape_cast %83 : vector<64xf32> to vector<64x1xf32>
    %85 = arith.addf %77, %84 : vector<64x1xf32>
    %86 = vector.extract_strided_slice %19 {offsets = [512, 0], sizes = [64, 2], strides = [1, 1]} : vector<1024x2xf32> to vector<64x2xf32>
    %cst_30 = arith.constant dense<0.000000e+00> : vector<64xf32>
    %87 = vector.multi_reduction <add>, %86, %cst_30 [1] : vector<64x2xf32> to vector<64xf32>
    %88 = vector.shape_cast %87 : vector<64xf32> to vector<64x1xf32>
    %89 = arith.addf %81, %88 : vector<64x1xf32>
    %90 = arith.mulf %86, %86 : vector<64x2xf32>
    %cst_31 = arith.constant dense<0.000000e+00> : vector<64xf32>
    %91 = vector.multi_reduction <add>, %90, %cst_31 [1] : vector<64x2xf32> to vector<64xf32>
    %92 = vector.shape_cast %91 : vector<64xf32> to vector<64x1xf32>
    %93 = arith.addf %85, %92 : vector<64x1xf32>
    %94 = vector.extract_strided_slice %19 {offsets = [576, 0], sizes = [64, 2], strides = [1, 1]} : vector<1024x2xf32> to vector<64x2xf32>
    %cst_32 = arith.constant dense<0.000000e+00> : vector<64xf32>
    %95 = vector.multi_reduction <add>, %94, %cst_32 [1] : vector<64x2xf32> to vector<64xf32>
    %96 = vector.shape_cast %95 : vector<64xf32> to vector<64x1xf32>
    %97 = arith.addf %89, %96 : vector<64x1xf32>
    %98 = arith.mulf %94, %94 : vector<64x2xf32>
    %cst_33 = arith.constant dense<0.000000e+00> : vector<64xf32>
    %99 = vector.multi_reduction <add>, %98, %cst_33 [1] : vector<64x2xf32> to vector<64xf32>
    %100 = vector.shape_cast %99 : vector<64xf32> to vector<64x1xf32>
    %101 = arith.addf %93, %100 : vector<64x1xf32>
    %102 = vector.extract_strided_slice %19 {offsets = [640, 0], sizes = [64, 2], strides = [1, 1]} : vector<1024x2xf32> to vector<64x2xf32>
    %cst_34 = arith.constant dense<0.000000e+00> : vector<64xf32>
    %103 = vector.multi_reduction <add>, %102, %cst_34 [1] : vector<64x2xf32> to vector<64xf32>
    %104 = vector.shape_cast %103 : vector<64xf32> to vector<64x1xf32>
    %105 = arith.addf %97, %104 : vector<64x1xf32>
    %106 = arith.mulf %102, %102 : vector<64x2xf32>
    %cst_35 = arith.constant dense<0.000000e+00> : vector<64xf32>
    %107 = vector.multi_reduction <add>, %106, %cst_35 [1] : vector<64x2xf32> to vector<64xf32>
    %108 = vector.shape_cast %107 : vector<64xf32> to vector<64x1xf32>
    %109 = arith.addf %101, %108 : vector<64x1xf32>
    %110 = vector.extract_strided_slice %19 {offsets = [704, 0], sizes = [64, 2], strides = [1, 1]} : vector<1024x2xf32> to vector<64x2xf32>
    %cst_36 = arith.constant dense<0.000000e+00> : vector<64xf32>
    %111 = vector.multi_reduction <add>, %110, %cst_36 [1] : vector<64x2xf32> to vector<64xf32>
    %112 = vector.shape_cast %111 : vector<64xf32> to vector<64x1xf32>
    %113 = arith.addf %105, %112 : vector<64x1xf32>
    %114 = arith.mulf %110, %110 : vector<64x2xf32>
    %cst_37 = arith.constant dense<0.000000e+00> : vector<64xf32>
    %115 = vector.multi_reduction <add>, %114, %cst_37 [1] : vector<64x2xf32> to vector<64xf32>
    %116 = vector.shape_cast %115 : vector<64xf32> to vector<64x1xf32>
    %117 = arith.addf %109, %116 : vector<64x1xf32>
    %118 = vector.extract_strided_slice %19 {offsets = [768, 0], sizes = [64, 2], strides = [1, 1]} : vector<1024x2xf32> to vector<64x2xf32>
    %cst_38 = arith.constant dense<0.000000e+00> : vector<64xf32>
    %119 = vector.multi_reduction <add>, %118, %cst_38 [1] : vector<64x2xf32> to vector<64xf32>
    %120 = vector.shape_cast %119 : vector<64xf32> to vector<64x1xf32>
    %121 = arith.addf %113, %120 : vector<64x1xf32>
    %122 = arith.mulf %118, %118 : vector<64x2xf32>
    %cst_39 = arith.constant dense<0.000000e+00> : vector<64xf32>
    %123 = vector.multi_reduction <add>, %122, %cst_39 [1] : vector<64x2xf32> to vector<64xf32>
    %124 = vector.shape_cast %123 : vector<64xf32> to vector<64x1xf32>
    %125 = arith.addf %117, %124 : vector<64x1xf32>
    %126 = vector.extract_strided_slice %19 {offsets = [832, 0], sizes = [64, 2], strides = [1, 1]} : vector<1024x2xf32> to vector<64x2xf32>
    %cst_40 = arith.constant dense<0.000000e+00> : vector<64xf32>
    %127 = vector.multi_reduction <add>, %126, %cst_40 [1] : vector<64x2xf32> to vector<64xf32>
    %128 = vector.shape_cast %127 : vector<64xf32> to vector<64x1xf32>
    %129 = arith.addf %121, %128 : vector<64x1xf32>
    %130 = arith.mulf %126, %126 : vector<64x2xf32>
    %cst_41 = arith.constant dense<0.000000e+00> : vector<64xf32>
    %131 = vector.multi_reduction <add>, %130, %cst_41 [1] : vector<64x2xf32> to vector<64xf32>
    %132 = vector.shape_cast %131 : vector<64xf32> to vector<64x1xf32>
    %133 = arith.addf %125, %132 : vector<64x1xf32>
    %134 = vector.extract_strided_slice %19 {offsets = [896, 0], sizes = [64, 2], strides = [1, 1]} : vector<1024x2xf32> to vector<64x2xf32>
    %cst_42 = arith.constant dense<0.000000e+00> : vector<64xf32>
    %135 = vector.multi_reduction <add>, %134, %cst_42 [1] : vector<64x2xf32> to vector<64xf32>
    %136 = vector.shape_cast %135 : vector<64xf32> to vector<64x1xf32>
    %137 = arith.addf %129, %136 : vector<64x1xf32>
    %138 = arith.mulf %134, %134 : vector<64x2xf32>
    %cst_43 = arith.constant dense<0.000000e+00> : vector<64xf32>
    %139 = vector.multi_reduction <add>, %138, %cst_43 [1] : vector<64x2xf32> to vector<64xf32>
    %140 = vector.shape_cast %139 : vector<64xf32> to vector<64x1xf32>
    %141 = arith.addf %133, %140 : vector<64x1xf32>
    %142 = vector.extract_strided_slice %19 {offsets = [960, 0], sizes = [64, 2], strides = [1, 1]} : vector<1024x2xf32> to vector<64x2xf32>
    %cst_44 = arith.constant dense<0.000000e+00> : vector<64xf32>
    %143 = vector.multi_reduction <add>, %142, %cst_44 [1] : vector<64x2xf32> to vector<64xf32>
    %144 = vector.shape_cast %143 : vector<64xf32> to vector<64x1xf32>
    %145 = arith.addf %137, %144 : vector<64x1xf32>
    %146 = arith.mulf %142, %142 : vector<64x2xf32>
    %cst_45 = arith.constant dense<0.000000e+00> : vector<64xf32>
    %147 = vector.multi_reduction <add>, %146, %cst_45 [1] : vector<64x2xf32> to vector<64xf32>
    %148 = vector.shape_cast %147 : vector<64xf32> to vector<64x1xf32>
    %149 = arith.addf %141, %148 : vector<64x1xf32>
    %cst_46 = arith.constant 3.125000e-02 : f32
    %150 = vector.broadcast %cst_46 : f32 to vector<64x1xf32>
    %151 = arith.mulf %145, %150 : vector<64x1xf32>
    %cst_47 = arith.constant 3.125000e-02 : f32
    %152 = vector.broadcast %cst_47 : f32 to vector<64x1xf32>
    %153 = arith.mulf %149, %152 : vector<64x1xf32>
    %154 = arith.mulf %151, %151 : vector<64x1xf32>
    %155 = arith.subf %153, %154 : vector<64x1xf32>
    %c0_48 = arith.constant 0 : index
    %c0_49 = arith.constant 0 : index
    %156 = vector.load %arg5[%c0_48, %c0_49] : memref<64x1xf32, #tpu.memory_space<vmem>>, vector<64x1xf32>
    %cst_50 = arith.constant 9.99999974E-6 : f32
    %157 = vector.broadcast %cst_50 : f32 to vector<64x1xf32>
    %158 = arith.addf %155, %157 : vector<64x1xf32>
    %159 = math.rsqrt %158 : vector<64x1xf32>
    %160 = arith.mulf %156, %159 : vector<64x1xf32>
    %c0_51 = arith.constant 0 : index
    %c0_52 = arith.constant 0 : index
    %161 = vector.load %arg6[%c0_51, %c0_52] : memref<64x1xf32, #tpu.memory_space<vmem>>, vector<64x1xf32>
    %162 = arith.mulf %151, %160 : vector<64x1xf32>
    %163 = arith.subf %161, %162 : vector<64x1xf32>
    %164 = vector.extract_strided_slice %19 {offsets = [0, 0], sizes = [64, 2], strides = [1, 1]} : vector<1024x2xf32> to vector<64x2xf32>
    %165 = vector.broadcast %160 : vector<64x1xf32> to vector<64x2xf32>
    %166 = arith.mulf %164, %165 : vector<64x2xf32>
    %167 = vector.broadcast %163 : vector<64x1xf32> to vector<64x2xf32>
    %168 = arith.addf %166, %167 : vector<64x2xf32>
    %cst_53 = arith.constant 0.000000e+00 : f32
    %169 = vector.broadcast %cst_53 : f32 to vector<64x2xf32>
    %170 = arith.maximumf %168, %169 : vector<64x2xf32>
    %171 = arith.mulf %170, %170 : vector<64x2xf32>
    %cst_54 = arith.constant dense<0.000000e+00> : vector<2xf32>
    %172 = vector.multi_reduction <add>, %171, %cst_54 [0] : vector<64x2xf32> to vector<2xf32>
    %173 = vector.shape_cast %172 : vector<2xf32> to vector<1x2xf32>
    %cst_55 = arith.constant 6.400000e+01 : f32
    %174 = vector.broadcast %cst_55 : f32 to vector<1x2xf32>
    %175 = arith.divf %173, %174 : vector<1x2xf32>
    %cst_56 = arith.constant 1.000000e-10 : f32
    %176 = vector.broadcast %cst_56 : f32 to vector<1x2xf32>
    %177 = arith.addf %175, %176 : vector<1x2xf32>
    %178 = math.rsqrt %177 : vector<1x2xf32>
    %179 = vector.broadcast %178 : vector<1x2xf32> to vector<64x2xf32>
    %180 = arith.mulf %170, %179 : vector<64x2xf32>
    %181 = arith.truncf %180 : vector<64x2xf32> to vector<64x2xbf16>
    %c0_57 = arith.constant 0 : index
    %c0_58 = arith.constant 0 : index
    %c0_59 = arith.constant 0 : index
    %182 = vector.load %arg7[%c0_57, %c0_58, %c0_59] : memref<16x64x2xbf16, #tpu.memory_space<vmem>>, vector<1x64x2xbf16>
    %183 = vector.shape_cast %182 : vector<1x64x2xbf16> to vector<64x2xbf16>
    %184 = vector.shape_cast %181 : vector<64x2xbf16> to vector<1x64x2xbf16>
    tpu.vector_store %arg7[%c0_57, %c0_58, %c0_59], %184 {strides = array<i32>} : memref<16x64x2xbf16, #tpu.memory_space<vmem>>, vector<1x64x2xbf16>,
    %185 = vector.extract_strided_slice %19 {offsets = [64, 0], sizes = [64, 2], strides = [1, 1]} : vector<1024x2xf32> to vector<64x2xf32>
    %186 = vector.broadcast %160 : vector<64x1xf32> to vector<64x2xf32>
    %187 = arith.mulf %185, %186 : vector<64x2xf32>
    %188 = vector.broadcast %163 : vector<64x1xf32> to vector<64x2xf32>
    %189 = arith.addf %187, %188 : vector<64x2xf32>
    %cst_60 = arith.constant 0.000000e+00 : f32
    %190 = vector.broadcast %cst_60 : f32 to vector<64x2xf32>
    %191 = arith.maximumf %189, %190 : vector<64x2xf32>
    %192 = arith.mulf %191, %191 : vector<64x2xf32>
    %cst_61 = arith.constant dense<0.000000e+00> : vector<2xf32>
    %193 = vector.multi_reduction <add>, %192, %cst_61 [0] : vector<64x2xf32> to vector<2xf32>
    %194 = vector.shape_cast %193 : vector<2xf32> to vector<1x2xf32>
    %cst_62 = arith.constant 6.400000e+01 : f32
    %195 = vector.broadcast %cst_62 : f32 to vector<1x2xf32>
    %196 = arith.divf %194, %195 : vector<1x2xf32>
    %cst_63 = arith.constant 1.000000e-10 : f32
    %197 = vector.broadcast %cst_63 : f32 to vector<1x2xf32>
    %198 = arith.addf %196, %197 : vector<1x2xf32>
    %199 = math.rsqrt %198 : vector<1x2xf32>
    %200 = vector.broadcast %199 : vector<1x2xf32> to vector<64x2xf32>
    %201 = arith.mulf %191, %200 : vector<64x2xf32>
    %202 = arith.truncf %201 : vector<64x2xf32> to vector<64x2xbf16>
    %c1 = arith.constant 1 : index
    %c0_64 = arith.constant 0 : index
    %c0_65 = arith.constant 0 : index
    %203 = vector.load %arg7[%c1, %c0_64, %c0_65] : memref<16x64x2xbf16, #tpu.memory_space<vmem>>, vector<1x64x2xbf16>
    %204 = vector.shape_cast %203 : vector<1x64x2xbf16> to vector<64x2xbf16>
    %205 = vector.shape_cast %202 : vector<64x2xbf16> to vector<1x64x2xbf16>
    tpu.vector_store %arg7[%c1, %c0_64, %c0_65], %205 {strides = array<i32>} : memref<16x64x2xbf16, #tpu.memory_space<vmem>>, vector<1x64x2xbf16>,
    %206 = vector.extract_strided_slice %19 {offsets = [128, 0], sizes = [64, 2], strides = [1, 1]} : vector<1024x2xf32> to vector<64x2xf32>
    %207 = vector.broadcast %160 : vector<64x1xf32> to vector<64x2xf32>
    %208 = arith.mulf %206, %207 : vector<64x2xf32>
    %209 = vector.broadcast %163 : vector<64x1xf32> to vector<64x2xf32>
    %210 = arith.addf %208, %209 : vector<64x2xf32>
    %cst_66 = arith.constant 0.000000e+00 : f32
    %211 = vector.broadcast %cst_66 : f32 to vector<64x2xf32>
    %212 = arith.maximumf %210, %211 : vector<64x2xf32>
    %213 = arith.mulf %212, %212 : vector<64x2xf32>
    %cst_67 = arith.constant dense<0.000000e+00> : vector<2xf32>
    %214 = vector.multi_reduction <add>, %213, %cst_67 [0] : vector<64x2xf32> to vector<2xf32>
    %215 = vector.shape_cast %214 : vector<2xf32> to vector<1x2xf32>
    %cst_68 = arith.constant 6.400000e+01 : f32
    %216 = vector.broadcast %cst_68 : f32 to vector<1x2xf32>
    %217 = arith.divf %215, %216 : vector<1x2xf32>
    %cst_69 = arith.constant 1.000000e-10 : f32
    %218 = vector.broadcast %cst_69 : f32 to vector<1x2xf32>
    %219 = arith.addf %217, %218 : vector<1x2xf32>
    %220 = math.rsqrt %219 : vector<1x2xf32>
    %221 = vector.broadcast %220 : vector<1x2xf32> to vector<64x2xf32>
    %222 = arith.mulf %212, %221 : vector<64x2xf32>
    %223 = arith.truncf %222 : vector<64x2xf32> to vector<64x2xbf16>
    %c2 = arith.constant 2 : index
    %c0_70 = arith.constant 0 : index
    %c0_71 = arith.constant 0 : index
    %224 = vector.load %arg7[%c2, %c0_70, %c0_71] : memref<16x64x2xbf16, #tpu.memory_space<vmem>>, vector<1x64x2xbf16>
    %225 = vector.shape_cast %224 : vector<1x64x2xbf16> to vector<64x2xbf16>
    %226 = vector.shape_cast %223 : vector<64x2xbf16> to vector<1x64x2xbf16>
    tpu.vector_store %arg7[%c2, %c0_70, %c0_71], %226 {strides = array<i32>} : memref<16x64x2xbf16, #tpu.memory_space<vmem>>, vector<1x64x2xbf16>,
    %227 = vector.extract_strided_slice %19 {offsets = [192, 0], sizes = [64, 2], strides = [1, 1]} : vector<1024x2xf32> to vector<64x2xf32>
    %228 = vector.broadcast %160 : vector<64x1xf32> to vector<64x2xf32>
    %229 = arith.mulf %227, %228 : vector<64x2xf32>
    %230 = vector.broadcast %163 : vector<64x1xf32> to vector<64x2xf32>
    %231 = arith.addf %229, %230 : vector<64x2xf32>
    %cst_72 = arith.constant 0.000000e+00 : f32
    %232 = vector.broadcast %cst_72 : f32 to vector<64x2xf32>
    %233 = arith.maximumf %231, %232 : vector<64x2xf32>
    %234 = arith.mulf %233, %233 : vector<64x2xf32>
    %cst_73 = arith.constant dense<0.000000e+00> : vector<2xf32>
    %235 = vector.multi_reduction <add>, %234, %cst_73 [0] : vector<64x2xf32> to vector<2xf32>
    %236 = vector.shape_cast %235 : vector<2xf32> to vector<1x2xf32>
    %cst_74 = arith.constant 6.400000e+01 : f32
    %237 = vector.broadcast %cst_74 : f32 to vector<1x2xf32>
    %238 = arith.divf %236, %237 : vector<1x2xf32>
    %cst_75 = arith.constant 1.000000e-10 : f32
    %239 = vector.broadcast %cst_75 : f32 to vector<1x2xf32>
    %240 = arith.addf %238, %239 : vector<1x2xf32>
    %241 = math.rsqrt %240 : vector<1x2xf32>
    %242 = vector.broadcast %241 : vector<1x2xf32> to vector<64x2xf32>
    %243 = arith.mulf %233, %242 : vector<64x2xf32>
    %244 = arith.truncf %243 : vector<64x2xf32> to vector<64x2xbf16>
    %c3 = arith.constant 3 : index
    %c0_76 = arith.constant 0 : index
    %c0_77 = arith.constant 0 : index
    %245 = vector.load %arg7[%c3, %c0_76, %c0_77] : memref<16x64x2xbf16, #tpu.memory_space<vmem>>, vector<1x64x2xbf16>
    %246 = vector.shape_cast %245 : vector<1x64x2xbf16> to vector<64x2xbf16>
    %247 = vector.shape_cast %244 : vector<64x2xbf16> to vector<1x64x2xbf16>
    tpu.vector_store %arg7[%c3, %c0_76, %c0_77], %247 {strides = array<i32>} : memref<16x64x2xbf16, #tpu.memory_space<vmem>>, vector<1x64x2xbf16>,
    %248 = vector.extract_strided_slice %19 {offsets = [256, 0], sizes = [64, 2], strides = [1, 1]} : vector<1024x2xf32> to vector<64x2xf32>
    %249 = vector.broadcast %160 : vector<64x1xf32> to vector<64x2xf32>
    %250 = arith.mulf %248, %249 : vector<64x2xf32>
    %251 = vector.broadcast %163 : vector<64x1xf32> to vector<64x2xf32>
    %252 = arith.addf %250, %251 : vector<64x2xf32>
    %cst_78 = arith.constant 0.000000e+00 : f32
    %253 = vector.broadcast %cst_78 : f32 to vector<64x2xf32>
    %254 = arith.maximumf %252, %253 : vector<64x2xf32>
    %255 = arith.mulf %254, %254 : vector<64x2xf32>
    %cst_79 = arith.constant dense<0.000000e+00> : vector<2xf32>
    %256 = vector.multi_reduction <add>, %255, %cst_79 [0] : vector<64x2xf32> to vector<2xf32>
    %257 = vector.shape_cast %256 : vector<2xf32> to vector<1x2xf32>
    %cst_80 = arith.constant 6.400000e+01 : f32
    %258 = vector.broadcast %cst_80 : f32 to vector<1x2xf32>
    %259 = arith.divf %257, %258 : vector<1x2xf32>
    %cst_81 = arith.constant 1.000000e-10 : f32
    %260 = vector.broadcast %cst_81 : f32 to vector<1x2xf32>
    %261 = arith.addf %259, %260 : vector<1x2xf32>
    %262 = math.rsqrt %261 : vector<1x2xf32>
    %263 = vector.broadcast %262 : vector<1x2xf32> to vector<64x2xf32>
    %264 = arith.mulf %254, %263 : vector<64x2xf32>
    %265 = arith.truncf %264 : vector<64x2xf32> to vector<64x2xbf16>
    %c4 = arith.constant 4 : index
    %c0_82 = arith.constant 0 : index
    %c0_83 = arith.constant 0 : index
    %266 = vector.load %arg7[%c4, %c0_82, %c0_83] : memref<16x64x2xbf16, #tpu.memory_space<vmem>>, vector<1x64x2xbf16>
    %267 = vector.shape_cast %266 : vector<1x64x2xbf16> to vector<64x2xbf16>
    %268 = vector.shape_cast %265 : vector<64x2xbf16> to vector<1x64x2xbf16>
    tpu.vector_store %arg7[%c4, %c0_82, %c0_83], %268 {strides = array<i32>} : memref<16x64x2xbf16, #tpu.memory_space<vmem>>, vector<1x64x2xbf16>,
    %269 = vector.extract_strided_slice %19 {offsets = [320, 0], sizes = [64, 2], strides = [1, 1]} : vector<1024x2xf32> to vector<64x2xf32>
    %270 = vector.broadcast %160 : vector<64x1xf32> to vector<64x2xf32>
    %271 = arith.mulf %269, %270 : vector<64x2xf32>
    %272 = vector.broadcast %163 : vector<64x1xf32> to vector<64x2xf32>
    %273 = arith.addf %271, %272 : vector<64x2xf32>
    %cst_84 = arith.constant 0.000000e+00 : f32
    %274 = vector.broadcast %cst_84 : f32 to vector<64x2xf32>
    %275 = arith.maximumf %273, %274 : vector<64x2xf32>
    %276 = arith.mulf %275, %275 : vector<64x2xf32>
    %cst_85 = arith.constant dense<0.000000e+00> : vector<2xf32>
    %277 = vector.multi_reduction <add>, %276, %cst_85 [0] : vector<64x2xf32> to vector<2xf32>
    %278 = vector.shape_cast %277 : vector<2xf32> to vector<1x2xf32>
    %cst_86 = arith.constant 6.400000e+01 : f32
    %279 = vector.broadcast %cst_86 : f32 to vector<1x2xf32>
    %280 = arith.divf %278, %279 : vector<1x2xf32>
    %cst_87 = arith.constant 1.000000e-10 : f32
    %281 = vector.broadcast %cst_87 : f32 to vector<1x2xf32>
    %282 = arith.addf %280, %281 : vector<1x2xf32>
    %283 = math.rsqrt %282 : vector<1x2xf32>
    %284 = vector.broadcast %283 : vector<1x2xf32> to vector<64x2xf32>
    %285 = arith.mulf %275, %284 : vector<64x2xf32>
    %286 = arith.truncf %285 : vector<64x2xf32> to vector<64x2xbf16>
    %c5 = arith.constant 5 : index
    %c0_88 = arith.constant 0 : index
    %c0_89 = arith.constant 0 : index
    %287 = vector.load %arg7[%c5, %c0_88, %c0_89] : memref<16x64x2xbf16, #tpu.memory_space<vmem>>, vector<1x64x2xbf16>
    %288 = vector.shape_cast %287 : vector<1x64x2xbf16> to vector<64x2xbf16>
    %289 = vector.shape_cast %286 : vector<64x2xbf16> to vector<1x64x2xbf16>
    tpu.vector_store %arg7[%c5, %c0_88, %c0_89], %289 {strides = array<i32>} : memref<16x64x2xbf16, #tpu.memory_space<vmem>>, vector<1x64x2xbf16>,
    %290 = vector.extract_strided_slice %19 {offsets = [384, 0], sizes = [64, 2], strides = [1, 1]} : vector<1024x2xf32> to vector<64x2xf32>
    %291 = vector.broadcast %160 : vector<64x1xf32> to vector<64x2xf32>
    %292 = arith.mulf %290, %291 : vector<64x2xf32>
    %293 = vector.broadcast %163 : vector<64x1xf32> to vector<64x2xf32>
    %294 = arith.addf %292, %293 : vector<64x2xf32>
    %cst_90 = arith.constant 0.000000e+00 : f32
    %295 = vector.broadcast %cst_90 : f32 to vector<64x2xf32>
    %296 = arith.maximumf %294, %295 : vector<64x2xf32>
    %297 = arith.mulf %296, %296 : vector<64x2xf32>
    %cst_91 = arith.constant dense<0.000000e+00> : vector<2xf32>
    %298 = vector.multi_reduction <add>, %297, %cst_91 [0] : vector<64x2xf32> to vector<2xf32>
    %299 = vector.shape_cast %298 : vector<2xf32> to vector<1x2xf32>
    %cst_92 = arith.constant 6.400000e+01 : f32
    %300 = vector.broadcast %cst_92 : f32 to vector<1x2xf32>
    %301 = arith.divf %299, %300 : vector<1x2xf32>
    %cst_93 = arith.constant 1.000000e-10 : f32
    %302 = vector.broadcast %cst_93 : f32 to vector<1x2xf32>
    %303 = arith.addf %301, %302 : vector<1x2xf32>
    %304 = math.rsqrt %303 : vector<1x2xf32>
    %305 = vector.broadcast %304 : vector<1x2xf32> to vector<64x2xf32>
    %306 = arith.mulf %296, %305 : vector<64x2xf32>
    %307 = arith.truncf %306 : vector<64x2xf32> to vector<64x2xbf16>
    %c6 = arith.constant 6 : index
    %c0_94 = arith.constant 0 : index
    %c0_95 = arith.constant 0 : index
    %308 = vector.load %arg7[%c6, %c0_94, %c0_95] : memref<16x64x2xbf16, #tpu.memory_space<vmem>>, vector<1x64x2xbf16>
    %309 = vector.shape_cast %308 : vector<1x64x2xbf16> to vector<64x2xbf16>
    %310 = vector.shape_cast %307 : vector<64x2xbf16> to vector<1x64x2xbf16>
    tpu.vector_store %arg7[%c6, %c0_94, %c0_95], %310 {strides = array<i32>} : memref<16x64x2xbf16, #tpu.memory_space<vmem>>, vector<1x64x2xbf16>,
    %311 = vector.extract_strided_slice %19 {offsets = [448, 0], sizes = [64, 2], strides = [1, 1]} : vector<1024x2xf32> to vector<64x2xf32>
    %312 = vector.broadcast %160 : vector<64x1xf32> to vector<64x2xf32>
    %313 = arith.mulf %311, %312 : vector<64x2xf32>
    %314 = vector.broadcast %163 : vector<64x1xf32> to vector<64x2xf32>
    %315 = arith.addf %313, %314 : vector<64x2xf32>
    %cst_96 = arith.constant 0.000000e+00 : f32
    %316 = vector.broadcast %cst_96 : f32 to vector<64x2xf32>
    %317 = arith.maximumf %315, %316 : vector<64x2xf32>
    %318 = arith.mulf %317, %317 : vector<64x2xf32>
    %cst_97 = arith.constant dense<0.000000e+00> : vector<2xf32>
    %319 = vector.multi_reduction <add>, %318, %cst_97 [0] : vector<64x2xf32> to vector<2xf32>
    %320 = vector.shape_cast %319 : vector<2xf32> to vector<1x2xf32>
    %cst_98 = arith.constant 6.400000e+01 : f32
    %321 = vector.broadcast %cst_98 : f32 to vector<1x2xf32>
    %322 = arith.divf %320, %321 : vector<1x2xf32>
    %cst_99 = arith.constant 1.000000e-10 : f32
    %323 = vector.broadcast %cst_99 : f32 to vector<1x2xf32>
    %324 = arith.addf %322, %323 : vector<1x2xf32>
    %325 = math.rsqrt %324 : vector<1x2xf32>
    %326 = vector.broadcast %325 : vector<1x2xf32> to vector<64x2xf32>
    %327 = arith.mulf %317, %326 : vector<64x2xf32>
    %328 = arith.truncf %327 : vector<64x2xf32> to vector<64x2xbf16>
    %c7 = arith.constant 7 : index
    %c0_100 = arith.constant 0 : index
    %c0_101 = arith.constant 0 : index
    %329 = vector.load %arg7[%c7, %c0_100, %c0_101] : memref<16x64x2xbf16, #tpu.memory_space<vmem>>, vector<1x64x2xbf16>
    %330 = vector.shape_cast %329 : vector<1x64x2xbf16> to vector<64x2xbf16>
    %331 = vector.shape_cast %328 : vector<64x2xbf16> to vector<1x64x2xbf16>
    tpu.vector_store %arg7[%c7, %c0_100, %c0_101], %331 {strides = array<i32>} : memref<16x64x2xbf16, #tpu.memory_space<vmem>>, vector<1x64x2xbf16>,
    %332 = vector.extract_strided_slice %19 {offsets = [512, 0], sizes = [64, 2], strides = [1, 1]} : vector<1024x2xf32> to vector<64x2xf32>
    %333 = vector.broadcast %160 : vector<64x1xf32> to vector<64x2xf32>
    %334 = arith.mulf %332, %333 : vector<64x2xf32>
    %335 = vector.broadcast %163 : vector<64x1xf32> to vector<64x2xf32>
    %336 = arith.addf %334, %335 : vector<64x2xf32>
    %cst_102 = arith.constant 0.000000e+00 : f32
    %337 = vector.broadcast %cst_102 : f32 to vector<64x2xf32>
    %338 = arith.maximumf %336, %337 : vector<64x2xf32>
    %339 = arith.mulf %338, %338 : vector<64x2xf32>
    %cst_103 = arith.constant dense<0.000000e+00> : vector<2xf32>
    %340 = vector.multi_reduction <add>, %339, %cst_103 [0] : vector<64x2xf32> to vector<2xf32>
    %341 = vector.shape_cast %340 : vector<2xf32> to vector<1x2xf32>
    %cst_104 = arith.constant 6.400000e+01 : f32
    %342 = vector.broadcast %cst_104 : f32 to vector<1x2xf32>
    %343 = arith.divf %341, %342 : vector<1x2xf32>
    %cst_105 = arith.constant 1.000000e-10 : f32
    %344 = vector.broadcast %cst_105 : f32 to vector<1x2xf32>
    %345 = arith.addf %343, %344 : vector<1x2xf32>
    %346 = math.rsqrt %345 : vector<1x2xf32>
    %347 = vector.broadcast %346 : vector<1x2xf32> to vector<64x2xf32>
    %348 = arith.mulf %338, %347 : vector<64x2xf32>
    %349 = arith.truncf %348 : vector<64x2xf32> to vector<64x2xbf16>
    %c8 = arith.constant 8 : index
    %c0_106 = arith.constant 0 : index
    %c0_107 = arith.constant 0 : index
    %350 = vector.load %arg7[%c8, %c0_106, %c0_107] : memref<16x64x2xbf16, #tpu.memory_space<vmem>>, vector<1x64x2xbf16>
    %351 = vector.shape_cast %350 : vector<1x64x2xbf16> to vector<64x2xbf16>
    %352 = vector.shape_cast %349 : vector<64x2xbf16> to vector<1x64x2xbf16>
    tpu.vector_store %arg7[%c8, %c0_106, %c0_107], %352 {strides = array<i32>} : memref<16x64x2xbf16, #tpu.memory_space<vmem>>, vector<1x64x2xbf16>,
    %353 = vector.extract_strided_slice %19 {offsets = [576, 0], sizes = [64, 2], strides = [1, 1]} : vector<1024x2xf32> to vector<64x2xf32>
    %354 = vector.broadcast %160 : vector<64x1xf32> to vector<64x2xf32>
    %355 = arith.mulf %353, %354 : vector<64x2xf32>
    %356 = vector.broadcast %163 : vector<64x1xf32> to vector<64x2xf32>
    %357 = arith.addf %355, %356 : vector<64x2xf32>
    %cst_108 = arith.constant 0.000000e+00 : f32
    %358 = vector.broadcast %cst_108 : f32 to vector<64x2xf32>
    %359 = arith.maximumf %357, %358 : vector<64x2xf32>
    %360 = arith.mulf %359, %359 : vector<64x2xf32>
    %cst_109 = arith.constant dense<0.000000e+00> : vector<2xf32>
    %361 = vector.multi_reduction <add>, %360, %cst_109 [0] : vector<64x2xf32> to vector<2xf32>
    %362 = vector.shape_cast %361 : vector<2xf32> to vector<1x2xf32>
    %cst_110 = arith.constant 6.400000e+01 : f32
    %363 = vector.broadcast %cst_110 : f32 to vector<1x2xf32>
    %364 = arith.divf %362, %363 : vector<1x2xf32>
    %cst_111 = arith.constant 1.000000e-10 : f32
    %365 = vector.broadcast %cst_111 : f32 to vector<1x2xf32>
    %366 = arith.addf %364, %365 : vector<1x2xf32>
    %367 = math.rsqrt %366 : vector<1x2xf32>
    %368 = vector.broadcast %367 : vector<1x2xf32> to vector<64x2xf32>
    %369 = arith.mulf %359, %368 : vector<64x2xf32>
    %370 = arith.truncf %369 : vector<64x2xf32> to vector<64x2xbf16>
    %c9 = arith.constant 9 : index
    %c0_112 = arith.constant 0 : index
    %c0_113 = arith.constant 0 : index
    %371 = vector.load %arg7[%c9, %c0_112, %c0_113] : memref<16x64x2xbf16, #tpu.memory_space<vmem>>, vector<1x64x2xbf16>
    %372 = vector.shape_cast %371 : vector<1x64x2xbf16> to vector<64x2xbf16>
    %373 = vector.shape_cast %370 : vector<64x2xbf16> to vector<1x64x2xbf16>
    tpu.vector_store %arg7[%c9, %c0_112, %c0_113], %373 {strides = array<i32>} : memref<16x64x2xbf16, #tpu.memory_space<vmem>>, vector<1x64x2xbf16>,
    %374 = vector.extract_strided_slice %19 {offsets = [640, 0], sizes = [64, 2], strides = [1, 1]} : vector<1024x2xf32> to vector<64x2xf32>
    %375 = vector.broadcast %160 : vector<64x1xf32> to vector<64x2xf32>
    %376 = arith.mulf %374, %375 : vector<64x2xf32>
    %377 = vector.broadcast %163 : vector<64x1xf32> to vector<64x2xf32>
    %378 = arith.addf %376, %377 : vector<64x2xf32>
    %cst_114 = arith.constant 0.000000e+00 : f32
    %379 = vector.broadcast %cst_114 : f32 to vector<64x2xf32>
    %380 = arith.maximumf %378, %379 : vector<64x2xf32>
    %381 = arith.mulf %380, %380 : vector<64x2xf32>
    %cst_115 = arith.constant dense<0.000000e+00> : vector<2xf32>
    %382 = vector.multi_reduction <add>, %381, %cst_115 [0] : vector<64x2xf32> to vector<2xf32>
    %383 = vector.shape_cast %382 : vector<2xf32> to vector<1x2xf32>
    %cst_116 = arith.constant 6.400000e+01 : f32
    %384 = vector.broadcast %cst_116 : f32 to vector<1x2xf32>
    %385 = arith.divf %383, %384 : vector<1x2xf32>
    %cst_117 = arith.constant 1.000000e-10 : f32
    %386 = vector.broadcast %cst_117 : f32 to vector<1x2xf32>
    %387 = arith.addf %385, %386 : vector<1x2xf32>
    %388 = math.rsqrt %387 : vector<1x2xf32>
    %389 = vector.broadcast %388 : vector<1x2xf32> to vector<64x2xf32>
    %390 = arith.mulf %380, %389 : vector<64x2xf32>
    %391 = arith.truncf %390 : vector<64x2xf32> to vector<64x2xbf16>
    %c10 = arith.constant 10 : index
    %c0_118 = arith.constant 0 : index
    %c0_119 = arith.constant 0 : index
    %392 = vector.load %arg7[%c10, %c0_118, %c0_119] : memref<16x64x2xbf16, #tpu.memory_space<vmem>>, vector<1x64x2xbf16>
    %393 = vector.shape_cast %392 : vector<1x64x2xbf16> to vector<64x2xbf16>
    %394 = vector.shape_cast %391 : vector<64x2xbf16> to vector<1x64x2xbf16>
    tpu.vector_store %arg7[%c10, %c0_118, %c0_119], %394 {strides = array<i32>} : memref<16x64x2xbf16, #tpu.memory_space<vmem>>, vector<1x64x2xbf16>,
    %395 = vector.extract_strided_slice %19 {offsets = [704, 0], sizes = [64, 2], strides = [1, 1]} : vector<1024x2xf32> to vector<64x2xf32>
    %396 = vector.broadcast %160 : vector<64x1xf32> to vector<64x2xf32>
    %397 = arith.mulf %395, %396 : vector<64x2xf32>
    %398 = vector.broadcast %163 : vector<64x1xf32> to vector<64x2xf32>
    %399 = arith.addf %397, %398 : vector<64x2xf32>
    %cst_120 = arith.constant 0.000000e+00 : f32
    %400 = vector.broadcast %cst_120 : f32 to vector<64x2xf32>
    %401 = arith.maximumf %399, %400 : vector<64x2xf32>
    %402 = arith.mulf %401, %401 : vector<64x2xf32>
    %cst_121 = arith.constant dense<0.000000e+00> : vector<2xf32>
    %403 = vector.multi_reduction <add>, %402, %cst_121 [0] : vector<64x2xf32> to vector<2xf32>
    %404 = vector.shape_cast %403 : vector<2xf32> to vector<1x2xf32>
    %cst_122 = arith.constant 6.400000e+01 : f32
    %405 = vector.broadcast %cst_122 : f32 to vector<1x2xf32>
    %406 = arith.divf %404, %405 : vector<1x2xf32>
    %cst_123 = arith.constant 1.000000e-10 : f32
    %407 = vector.broadcast %cst_123 : f32 to vector<1x2xf32>
    %408 = arith.addf %406, %407 : vector<1x2xf32>
    %409 = math.rsqrt %408 : vector<1x2xf32>
    %410 = vector.broadcast %409 : vector<1x2xf32> to vector<64x2xf32>
    %411 = arith.mulf %401, %410 : vector<64x2xf32>
    %412 = arith.truncf %411 : vector<64x2xf32> to vector<64x2xbf16>
    %c11 = arith.constant 11 : index
    %c0_124 = arith.constant 0 : index
    %c0_125 = arith.constant 0 : index
    %413 = vector.load %arg7[%c11, %c0_124, %c0_125] : memref<16x64x2xbf16, #tpu.memory_space<vmem>>, vector<1x64x2xbf16>
    %414 = vector.shape_cast %413 : vector<1x64x2xbf16> to vector<64x2xbf16>
    %415 = vector.shape_cast %412 : vector<64x2xbf16> to vector<1x64x2xbf16>
    tpu.vector_store %arg7[%c11, %c0_124, %c0_125], %415 {strides = array<i32>} : memref<16x64x2xbf16, #tpu.memory_space<vmem>>, vector<1x64x2xbf16>,
    %416 = vector.extract_strided_slice %19 {offsets = [768, 0], sizes = [64, 2], strides = [1, 1]} : vector<1024x2xf32> to vector<64x2xf32>
    %417 = vector.broadcast %160 : vector<64x1xf32> to vector<64x2xf32>
    %418 = arith.mulf %416, %417 : vector<64x2xf32>
    %419 = vector.broadcast %163 : vector<64x1xf32> to vector<64x2xf32>
    %420 = arith.addf %418, %419 : vector<64x2xf32>
    %cst_126 = arith.constant 0.000000e+00 : f32
    %421 = vector.broadcast %cst_126 : f32 to vector<64x2xf32>
    %422 = arith.maximumf %420, %421 : vector<64x2xf32>
    %423 = arith.mulf %422, %422 : vector<64x2xf32>
    %cst_127 = arith.constant dense<0.000000e+00> : vector<2xf32>
    %424 = vector.multi_reduction <add>, %423, %cst_127 [0] : vector<64x2xf32> to vector<2xf32>
    %425 = vector.shape_cast %424 : vector<2xf32> to vector<1x2xf32>
    %cst_128 = arith.constant 6.400000e+01 : f32
    %426 = vector.broadcast %cst_128 : f32 to vector<1x2xf32>
    %427 = arith.divf %425, %426 : vector<1x2xf32>
    %cst_129 = arith.constant 1.000000e-10 : f32
    %428 = vector.broadcast %cst_129 : f32 to vector<1x2xf32>
    %429 = arith.addf %427, %428 : vector<1x2xf32>
    %430 = math.rsqrt %429 : vector<1x2xf32>
    %431 = vector.broadcast %430 : vector<1x2xf32> to vector<64x2xf32>
    %432 = arith.mulf %422, %431 : vector<64x2xf32>
    %433 = arith.truncf %432 : vector<64x2xf32> to vector<64x2xbf16>
    %c12 = arith.constant 12 : index
    %c0_130 = arith.constant 0 : index
    %c0_131 = arith.constant 0 : index
    %434 = vector.load %arg7[%c12, %c0_130, %c0_131] : memref<16x64x2xbf16, #tpu.memory_space<vmem>>, vector<1x64x2xbf16>
    %435 = vector.shape_cast %434 : vector<1x64x2xbf16> to vector<64x2xbf16>
    %436 = vector.shape_cast %433 : vector<64x2xbf16> to vector<1x64x2xbf16>
    tpu.vector_store %arg7[%c12, %c0_130, %c0_131], %436 {strides = array<i32>} : memref<16x64x2xbf16, #tpu.memory_space<vmem>>, vector<1x64x2xbf16>,
    %437 = vector.extract_strided_slice %19 {offsets = [832, 0], sizes = [64, 2], strides = [1, 1]} : vector<1024x2xf32> to vector<64x2xf32>
    %438 = vector.broadcast %160 : vector<64x1xf32> to vector<64x2xf32>
    %439 = arith.mulf %437, %438 : vector<64x2xf32>
    %440 = vector.broadcast %163 : vector<64x1xf32> to vector<64x2xf32>
    %441 = arith.addf %439, %440 : vector<64x2xf32>
    %cst_132 = arith.constant 0.000000e+00 : f32
    %442 = vector.broadcast %cst_132 : f32 to vector<64x2xf32>
    %443 = arith.maximumf %441, %442 : vector<64x2xf32>
    %444 = arith.mulf %443, %443 : vector<64x2xf32>
    %cst_133 = arith.constant dense<0.000000e+00> : vector<2xf32>
    %445 = vector.multi_reduction <add>, %444, %cst_133 [0] : vector<64x2xf32> to vector<2xf32>
    %446 = vector.shape_cast %445 : vector<2xf32> to vector<1x2xf32>
    %cst_134 = arith.constant 6.400000e+01 : f32
    %447 = vector.broadcast %cst_134 : f32 to vector<1x2xf32>
    %448 = arith.divf %446, %447 : vector<1x2xf32>
    %cst_135 = arith.constant 1.000000e-10 : f32
    %449 = vector.broadcast %cst_135 : f32 to vector<1x2xf32>
    %450 = arith.addf %448, %449 : vector<1x2xf32>
    %451 = math.rsqrt %450 : vector<1x2xf32>
    %452 = vector.broadcast %451 : vector<1x2xf32> to vector<64x2xf32>
    %453 = arith.mulf %443, %452 : vector<64x2xf32>
    %454 = arith.truncf %453 : vector<64x2xf32> to vector<64x2xbf16>
    %c13 = arith.constant 13 : index
    %c0_136 = arith.constant 0 : index
    %c0_137 = arith.constant 0 : index
    %455 = vector.load %arg7[%c13, %c0_136, %c0_137] : memref<16x64x2xbf16, #tpu.memory_space<vmem>>, vector<1x64x2xbf16>
    %456 = vector.shape_cast %455 : vector<1x64x2xbf16> to vector<64x2xbf16>
    %457 = vector.shape_cast %454 : vector<64x2xbf16> to vector<1x64x2xbf16>
    tpu.vector_store %arg7[%c13, %c0_136, %c0_137], %457 {strides = array<i32>} : memref<16x64x2xbf16, #tpu.memory_space<vmem>>, vector<1x64x2xbf16>,
    %458 = vector.extract_strided_slice %19 {offsets = [896, 0], sizes = [64, 2], strides = [1, 1]} : vector<1024x2xf32> to vector<64x2xf32>
    %459 = vector.broadcast %160 : vector<64x1xf32> to vector<64x2xf32>
    %460 = arith.mulf %458, %459 : vector<64x2xf32>
    %461 = vector.broadcast %163 : vector<64x1xf32> to vector<64x2xf32>
    %462 = arith.addf %460, %461 : vector<64x2xf32>
    %cst_138 = arith.constant 0.000000e+00 : f32
    %463 = vector.broadcast %cst_138 : f32 to vector<64x2xf32>
    %464 = arith.maximumf %462, %463 : vector<64x2xf32>
    %465 = arith.mulf %464, %464 : vector<64x2xf32>
    %cst_139 = arith.constant dense<0.000000e+00> : vector<2xf32>
    %466 = vector.multi_reduction <add>, %465, %cst_139 [0] : vector<64x2xf32> to vector<2xf32>
    %467 = vector.shape_cast %466 : vector<2xf32> to vector<1x2xf32>
    %cst_140 = arith.constant 6.400000e+01 : f32
    %468 = vector.broadcast %cst_140 : f32 to vector<1x2xf32>
    %469 = arith.divf %467, %468 : vector<1x2xf32>
    %cst_141 = arith.constant 1.000000e-10 : f32
    %470 = vector.broadcast %cst_141 : f32 to vector<1x2xf32>
    %471 = arith.addf %469, %470 : vector<1x2xf32>
    %472 = math.rsqrt %471 : vector<1x2xf32>
    %473 = vector.broadcast %472 : vector<1x2xf32> to vector<64x2xf32>
    %474 = arith.mulf %464, %473 : vector<64x2xf32>
    %475 = arith.truncf %474 : vector<64x2xf32> to vector<64x2xbf16>
    %c14 = arith.constant 14 : index
    %c0_142 = arith.constant 0 : index
    %c0_143 = arith.constant 0 : index
    %476 = vector.load %arg7[%c14, %c0_142, %c0_143] : memref<16x64x2xbf16, #tpu.memory_space<vmem>>, vector<1x64x2xbf16>
    %477 = vector.shape_cast %476 : vector<1x64x2xbf16> to vector<64x2xbf16>
    %478 = vector.shape_cast %475 : vector<64x2xbf16> to vector<1x64x2xbf16>
    tpu.vector_store %arg7[%c14, %c0_142, %c0_143], %478 {strides = array<i32>} : memref<16x64x2xbf16, #tpu.memory_space<vmem>>, vector<1x64x2xbf16>,
    %479 = vector.extract_strided_slice %19 {offsets = [960, 0], sizes = [64, 2], strides = [1, 1]} : vector<1024x2xf32> to vector<64x2xf32>
    %480 = vector.broadcast %160 : vector<64x1xf32> to vector<64x2xf32>
    %481 = arith.mulf %479, %480 : vector<64x2xf32>
    %482 = vector.broadcast %163 : vector<64x1xf32> to vector<64x2xf32>
    %483 = arith.addf %481, %482 : vector<64x2xf32>
    %cst_144 = arith.constant 0.000000e+00 : f32
    %484 = vector.broadcast %cst_144 : f32 to vector<64x2xf32>
    %485 = arith.maximumf %483, %484 : vector<64x2xf32>
    %486 = arith.mulf %485, %485 : vector<64x2xf32>
    %cst_145 = arith.constant dense<0.000000e+00> : vector<2xf32>
    %487 = vector.multi_reduction <add>, %486, %cst_145 [0] : vector<64x2xf32> to vector<2xf32>
    %488 = vector.shape_cast %487 : vector<2xf32> to vector<1x2xf32>
    %cst_146 = arith.constant 6.400000e+01 : f32
    %489 = vector.broadcast %cst_146 : f32 to vector<1x2xf32>
    %490 = arith.divf %488, %489 : vector<1x2xf32>
    %cst_147 = arith.constant 1.000000e-10 : f32
    %491 = vector.broadcast %cst_147 : f32 to vector<1x2xf32>
    %492 = arith.addf %490, %491 : vector<1x2xf32>
    %493 = math.rsqrt %492 : vector<1x2xf32>
    %494 = vector.broadcast %493 : vector<1x2xf32> to vector<64x2xf32>
    %495 = arith.mulf %485, %494 : vector<64x2xf32>
    %496 = arith.truncf %495 : vector<64x2xf32> to vector<64x2xbf16>
    %c15 = arith.constant 15 : index
    %c0_148 = arith.constant 0 : index
    %c0_149 = arith.constant 0 : index
    %497 = vector.load %arg7[%c15, %c0_148, %c0_149] : memref<16x64x2xbf16, #tpu.memory_space<vmem>>, vector<1x64x2xbf16>
    %498 = vector.shape_cast %497 : vector<1x64x2xbf16> to vector<64x2xbf16>
    %499 = vector.shape_cast %496 : vector<64x2xbf16> to vector<1x64x2xbf16>
    tpu.vector_store %arg7[%c15, %c0_148, %c0_149], %499 {strides = array<i32>} : memref<16x64x2xbf16, #tpu.memory_space<vmem>>, vector<1x64x2xbf16>,
    return
  }
  func.func @transform_0(%arg0: i32) -> (i32, i32) {
    %c0_i32 = arith.constant 0 : i32
    %c0_i32_0 = arith.constant 0 : i32
    %c0_i32_1 = arith.constant 0 : i32
    return %c0_i32, %c0_i32_0 : i32, i32
  }
  func.func @transform_1(%arg0: i32) -> (i32, i32) {
    %c0_i32 = arith.constant 0 : i32
    %c0_i32_0 = arith.constant 0 : i32
    %c0_i32_1 = arith.constant 0 : i32
    return %c0_i32, %c0_i32_0 : i32, i32
  }
  func.func @transform_2(%arg0: i32) -> (i32, i32) {
    %c0_i32 = arith.constant 0 : i32
    %c0_i32_0 = arith.constant 0 : i32
    %c0_i32_1 = arith.constant 0 : i32
    return %c0_i32, %c0_i32_0 : i32, i32
  }
  func.func @transform_3(%arg0: i32) -> (i32, i32) {
    %c0_i32 = arith.constant 0 : i32
    %c0_i32_0 = arith.constant 0 : i32
    %c0_i32_1 = arith.constant 0 : i32
    return %c0_i32, %c0_i32_0 : i32, i32
  }
  func.func @transform_4(%arg0: i32) -> (i32, i32) {
    %c0_i32 = arith.constant 0 : i32
    %c0_i32_0 = arith.constant 0 : i32
    %c0_i32_1 = arith.constant 0 : i32
    return %c0_i32, %c0_i32_0 : i32, i32
  }
  func.func @transform_5(%arg0: i32) -> (i32, i32) {
    %c0_i32 = arith.constant 0 : i32
    %c0_i32_0 = arith.constant 0 : i32
    %c0_i32_1 = arith.constant 0 : i32
    return %c0_i32, %c0_i32_0 : i32, i32
  }
  func.func @transform_6(%arg0: i32) -> (i32, i32, i32) {
    %c0_i32 = arith.constant 0 : i32
    %c0_i32_0 = arith.constant 0 : i32
    %c0_i32_1 = arith.constant 0 : i32
    %c0_i32_2 = arith.constant 0 : i32
    return %c0_i32, %c0_i32_0, %c0_i32_1 : i32, i32, i32
  }
}

module attributes {stable_mosaic.version = 11 : i64} {
  func.func @_deconv_bn_kernel(%arg0: i32, %arg1: memref<4x256x32xbf16, #tpu.memory_space<vmem>>, %arg2: memref<4x32x256xbf16, #tpu.memory_space<vmem>>, %arg3: memref<32x1xf32, #tpu.memory_space<vmem>>, %arg4: memref<32x1xf32, #tpu.memory_space<vmem>>, %arg5: memref<4x32x32xbf16, #tpu.memory_space<vmem>>) attributes {dimension_semantics = [#tpu.dimension_semantics<arbitrary>], iteration_bounds = array<i64: 1>, scalar_prefetch = 0 : i64, scratch_operands = 0 : i64, tpu.core_type = #tpu.core_type<tc>, window_params = [{pipeline_mode = #tpu.pipeline_mode<synchronous>, transform_indices = @transform_0, window_bounds = array<i64: 4, 256, 32>}, {pipeline_mode = #tpu.pipeline_mode<synchronous>, transform_indices = @transform_1, window_bounds = array<i64: 4, 32, 256>}, {pipeline_mode = #tpu.pipeline_mode<synchronous>, transform_indices = @transform_2, window_bounds = array<i64: 32, 1>}, {pipeline_mode = #tpu.pipeline_mode<synchronous>, transform_indices = @transform_3, window_bounds = array<i64: 32, 1>}, {pipeline_mode = #tpu.pipeline_mode<synchronous>, transform_indices = @transform_4, window_bounds = array<i64: 4, 32, 32>}]} {
    %cst = arith.constant 0.000000e+00 : f32
    %0 = vector.broadcast %cst : f32 to vector<32x1xf32>
    %cst_0 = arith.constant 0.000000e+00 : f32
    %1 = vector.broadcast %cst_0 : f32 to vector<32x1xf32>
    %c0 = arith.constant 0 : index
    %c0_1 = arith.constant 0 : index
    %c0_2 = arith.constant 0 : index
    %2 = vector.load %arg2[%c0, %c0_1, %c0_2] : memref<4x32x256xbf16, #tpu.memory_space<vmem>>, vector<1x32x256xbf16>
    %3 = vector.shape_cast %2 : vector<1x32x256xbf16> to vector<32x256xbf16>
    %c0_3 = arith.constant 0 : index
    %c0_4 = arith.constant 0 : index
    %c0_5 = arith.constant 0 : index
    %4 = vector.load %arg1[%c0_3, %c0_4, %c0_5] : memref<4x256x32xbf16, #tpu.memory_space<vmem>>, vector<1x256x32xbf16>
    %5 = vector.shape_cast %4 : vector<1x256x32xbf16> to vector<256x32xbf16>
    %cst_6 = arith.constant dense<0.000000e+00> : vector<32x32xf32>
    %6 = tpu.matmul %3, %5, %cst_6 {dimension_numbers = #tpu.dot_dimension_numbers<[1], [0], [0], [1], [0, 0, 1, 1], [], []>} : vector<32x256xbf16>, vector<256x32xbf16>, vector<32x32xf32> -> vector<32x32xf32>
    %cst_7 = arith.constant dense<0.000000e+00> : vector<32xf32>
    %7 = vector.multi_reduction <add>, %6, %cst_7 [1] : vector<32x32xf32> to vector<32xf32>
    %8 = vector.shape_cast %7 : vector<32xf32> to vector<32x1xf32>
    %9 = arith.addf %0, %8 : vector<32x1xf32>
    %10 = arith.mulf %6, %6 : vector<32x32xf32>
    %cst_8 = arith.constant dense<0.000000e+00> : vector<32xf32>
    %11 = vector.multi_reduction <add>, %10, %cst_8 [1] : vector<32x32xf32> to vector<32xf32>
    %12 = vector.shape_cast %11 : vector<32xf32> to vector<32x1xf32>
    %13 = arith.addf %1, %12 : vector<32x1xf32>
    %c1 = arith.constant 1 : index
    %c0_9 = arith.constant 0 : index
    %c0_10 = arith.constant 0 : index
    %14 = vector.load %arg2[%c1, %c0_9, %c0_10] : memref<4x32x256xbf16, #tpu.memory_space<vmem>>, vector<1x32x256xbf16>
    %15 = vector.shape_cast %14 : vector<1x32x256xbf16> to vector<32x256xbf16>
    %c1_11 = arith.constant 1 : index
    %c0_12 = arith.constant 0 : index
    %c0_13 = arith.constant 0 : index
    %16 = vector.load %arg1[%c1_11, %c0_12, %c0_13] : memref<4x256x32xbf16, #tpu.memory_space<vmem>>, vector<1x256x32xbf16>
    %17 = vector.shape_cast %16 : vector<1x256x32xbf16> to vector<256x32xbf16>
    %cst_14 = arith.constant dense<0.000000e+00> : vector<32x32xf32>
    %18 = tpu.matmul %15, %17, %cst_14 {dimension_numbers = #tpu.dot_dimension_numbers<[1], [0], [0], [1], [0, 0, 1, 1], [], []>} : vector<32x256xbf16>, vector<256x32xbf16>, vector<32x32xf32> -> vector<32x32xf32>
    %cst_15 = arith.constant dense<0.000000e+00> : vector<32xf32>
    %19 = vector.multi_reduction <add>, %18, %cst_15 [1] : vector<32x32xf32> to vector<32xf32>
    %20 = vector.shape_cast %19 : vector<32xf32> to vector<32x1xf32>
    %21 = arith.addf %9, %20 : vector<32x1xf32>
    %22 = arith.mulf %18, %18 : vector<32x32xf32>
    %cst_16 = arith.constant dense<0.000000e+00> : vector<32xf32>
    %23 = vector.multi_reduction <add>, %22, %cst_16 [1] : vector<32x32xf32> to vector<32xf32>
    %24 = vector.shape_cast %23 : vector<32xf32> to vector<32x1xf32>
    %25 = arith.addf %13, %24 : vector<32x1xf32>
    %c2 = arith.constant 2 : index
    %c0_17 = arith.constant 0 : index
    %c0_18 = arith.constant 0 : index
    %26 = vector.load %arg2[%c2, %c0_17, %c0_18] : memref<4x32x256xbf16, #tpu.memory_space<vmem>>, vector<1x32x256xbf16>
    %27 = vector.shape_cast %26 : vector<1x32x256xbf16> to vector<32x256xbf16>
    %c2_19 = arith.constant 2 : index
    %c0_20 = arith.constant 0 : index
    %c0_21 = arith.constant 0 : index
    %28 = vector.load %arg1[%c2_19, %c0_20, %c0_21] : memref<4x256x32xbf16, #tpu.memory_space<vmem>>, vector<1x256x32xbf16>
    %29 = vector.shape_cast %28 : vector<1x256x32xbf16> to vector<256x32xbf16>
    %cst_22 = arith.constant dense<0.000000e+00> : vector<32x32xf32>
    %30 = tpu.matmul %27, %29, %cst_22 {dimension_numbers = #tpu.dot_dimension_numbers<[1], [0], [0], [1], [0, 0, 1, 1], [], []>} : vector<32x256xbf16>, vector<256x32xbf16>, vector<32x32xf32> -> vector<32x32xf32>
    %cst_23 = arith.constant dense<0.000000e+00> : vector<32xf32>
    %31 = vector.multi_reduction <add>, %30, %cst_23 [1] : vector<32x32xf32> to vector<32xf32>
    %32 = vector.shape_cast %31 : vector<32xf32> to vector<32x1xf32>
    %33 = arith.addf %21, %32 : vector<32x1xf32>
    %34 = arith.mulf %30, %30 : vector<32x32xf32>
    %cst_24 = arith.constant dense<0.000000e+00> : vector<32xf32>
    %35 = vector.multi_reduction <add>, %34, %cst_24 [1] : vector<32x32xf32> to vector<32xf32>
    %36 = vector.shape_cast %35 : vector<32xf32> to vector<32x1xf32>
    %37 = arith.addf %25, %36 : vector<32x1xf32>
    %c3 = arith.constant 3 : index
    %c0_25 = arith.constant 0 : index
    %c0_26 = arith.constant 0 : index
    %38 = vector.load %arg2[%c3, %c0_25, %c0_26] : memref<4x32x256xbf16, #tpu.memory_space<vmem>>, vector<1x32x256xbf16>
    %39 = vector.shape_cast %38 : vector<1x32x256xbf16> to vector<32x256xbf16>
    %c3_27 = arith.constant 3 : index
    %c0_28 = arith.constant 0 : index
    %c0_29 = arith.constant 0 : index
    %40 = vector.load %arg1[%c3_27, %c0_28, %c0_29] : memref<4x256x32xbf16, #tpu.memory_space<vmem>>, vector<1x256x32xbf16>
    %41 = vector.shape_cast %40 : vector<1x256x32xbf16> to vector<256x32xbf16>
    %cst_30 = arith.constant dense<0.000000e+00> : vector<32x32xf32>
    %42 = tpu.matmul %39, %41, %cst_30 {dimension_numbers = #tpu.dot_dimension_numbers<[1], [0], [0], [1], [0, 0, 1, 1], [], []>} : vector<32x256xbf16>, vector<256x32xbf16>, vector<32x32xf32> -> vector<32x32xf32>
    %cst_31 = arith.constant dense<0.000000e+00> : vector<32xf32>
    %43 = vector.multi_reduction <add>, %42, %cst_31 [1] : vector<32x32xf32> to vector<32xf32>
    %44 = vector.shape_cast %43 : vector<32xf32> to vector<32x1xf32>
    %45 = arith.addf %33, %44 : vector<32x1xf32>
    %46 = arith.mulf %42, %42 : vector<32x32xf32>
    %cst_32 = arith.constant dense<0.000000e+00> : vector<32xf32>
    %47 = vector.multi_reduction <add>, %46, %cst_32 [1] : vector<32x32xf32> to vector<32xf32>
    %48 = vector.shape_cast %47 : vector<32xf32> to vector<32x1xf32>
    %49 = arith.addf %37, %48 : vector<32x1xf32>
    %cst_33 = arith.constant 7.812500e-03 : f32
    %50 = vector.broadcast %cst_33 : f32 to vector<32x1xf32>
    %51 = arith.mulf %45, %50 : vector<32x1xf32>
    %cst_34 = arith.constant 7.812500e-03 : f32
    %52 = vector.broadcast %cst_34 : f32 to vector<32x1xf32>
    %53 = arith.mulf %49, %52 : vector<32x1xf32>
    %54 = arith.mulf %51, %51 : vector<32x1xf32>
    %55 = arith.subf %53, %54 : vector<32x1xf32>
    %c0_35 = arith.constant 0 : index
    %c0_36 = arith.constant 0 : index
    %56 = vector.load %arg3[%c0_35, %c0_36] : memref<32x1xf32, #tpu.memory_space<vmem>>, vector<32x1xf32>
    %cst_37 = arith.constant 9.99999974E-6 : f32
    %57 = vector.broadcast %cst_37 : f32 to vector<32x1xf32>
    %58 = arith.addf %55, %57 : vector<32x1xf32>
    %59 = math.rsqrt %58 : vector<32x1xf32>
    %60 = arith.mulf %56, %59 : vector<32x1xf32>
    %c0_38 = arith.constant 0 : index
    %c0_39 = arith.constant 0 : index
    %61 = vector.load %arg4[%c0_38, %c0_39] : memref<32x1xf32, #tpu.memory_space<vmem>>, vector<32x1xf32>
    %62 = arith.mulf %51, %60 : vector<32x1xf32>
    %63 = arith.subf %61, %62 : vector<32x1xf32>
    %64 = vector.broadcast %60 : vector<32x1xf32> to vector<32x32xf32>
    %65 = arith.mulf %6, %64 : vector<32x32xf32>
    %66 = vector.broadcast %63 : vector<32x1xf32> to vector<32x32xf32>
    %67 = arith.addf %65, %66 : vector<32x32xf32>
    %cst_40 = arith.constant 0.000000e+00 : f32
    %68 = vector.broadcast %cst_40 : f32 to vector<32x32xf32>
    %69 = arith.maximumf %67, %68 : vector<32x32xf32>
    %70 = arith.mulf %69, %69 : vector<32x32xf32>
    %cst_41 = arith.constant dense<0.000000e+00> : vector<32xf32>
    %71 = vector.multi_reduction <add>, %70, %cst_41 [0] : vector<32x32xf32> to vector<32xf32>
    %72 = vector.shape_cast %71 : vector<32xf32> to vector<1x32xf32>
    %cst_42 = arith.constant 3.200000e+01 : f32
    %73 = vector.broadcast %cst_42 : f32 to vector<1x32xf32>
    %74 = arith.divf %72, %73 : vector<1x32xf32>
    %cst_43 = arith.constant 1.000000e-10 : f32
    %75 = vector.broadcast %cst_43 : f32 to vector<1x32xf32>
    %76 = arith.addf %74, %75 : vector<1x32xf32>
    %77 = math.rsqrt %76 : vector<1x32xf32>
    %78 = vector.broadcast %77 : vector<1x32xf32> to vector<32x32xf32>
    %79 = arith.mulf %69, %78 : vector<32x32xf32>
    %80 = arith.truncf %79 : vector<32x32xf32> to vector<32x32xbf16>
    %c0_44 = arith.constant 0 : index
    %c0_45 = arith.constant 0 : index
    %c0_46 = arith.constant 0 : index
    %81 = vector.load %arg5[%c0_44, %c0_45, %c0_46] : memref<4x32x32xbf16, #tpu.memory_space<vmem>>, vector<1x32x32xbf16>
    %82 = vector.shape_cast %81 : vector<1x32x32xbf16> to vector<32x32xbf16>
    %83 = vector.shape_cast %80 : vector<32x32xbf16> to vector<1x32x32xbf16>
    tpu.vector_store %arg5[%c0_44, %c0_45, %c0_46], %83 {strides = array<i32>} : memref<4x32x32xbf16, #tpu.memory_space<vmem>>, vector<1x32x32xbf16>,
    %84 = vector.broadcast %60 : vector<32x1xf32> to vector<32x32xf32>
    %85 = arith.mulf %18, %84 : vector<32x32xf32>
    %86 = vector.broadcast %63 : vector<32x1xf32> to vector<32x32xf32>
    %87 = arith.addf %85, %86 : vector<32x32xf32>
    %cst_47 = arith.constant 0.000000e+00 : f32
    %88 = vector.broadcast %cst_47 : f32 to vector<32x32xf32>
    %89 = arith.maximumf %87, %88 : vector<32x32xf32>
    %90 = arith.mulf %89, %89 : vector<32x32xf32>
    %cst_48 = arith.constant dense<0.000000e+00> : vector<32xf32>
    %91 = vector.multi_reduction <add>, %90, %cst_48 [0] : vector<32x32xf32> to vector<32xf32>
    %92 = vector.shape_cast %91 : vector<32xf32> to vector<1x32xf32>
    %cst_49 = arith.constant 3.200000e+01 : f32
    %93 = vector.broadcast %cst_49 : f32 to vector<1x32xf32>
    %94 = arith.divf %92, %93 : vector<1x32xf32>
    %cst_50 = arith.constant 1.000000e-10 : f32
    %95 = vector.broadcast %cst_50 : f32 to vector<1x32xf32>
    %96 = arith.addf %94, %95 : vector<1x32xf32>
    %97 = math.rsqrt %96 : vector<1x32xf32>
    %98 = vector.broadcast %97 : vector<1x32xf32> to vector<32x32xf32>
    %99 = arith.mulf %89, %98 : vector<32x32xf32>
    %100 = arith.truncf %99 : vector<32x32xf32> to vector<32x32xbf16>
    %c1_51 = arith.constant 1 : index
    %c0_52 = arith.constant 0 : index
    %c0_53 = arith.constant 0 : index
    %101 = vector.load %arg5[%c1_51, %c0_52, %c0_53] : memref<4x32x32xbf16, #tpu.memory_space<vmem>>, vector<1x32x32xbf16>
    %102 = vector.shape_cast %101 : vector<1x32x32xbf16> to vector<32x32xbf16>
    %103 = vector.shape_cast %100 : vector<32x32xbf16> to vector<1x32x32xbf16>
    tpu.vector_store %arg5[%c1_51, %c0_52, %c0_53], %103 {strides = array<i32>} : memref<4x32x32xbf16, #tpu.memory_space<vmem>>, vector<1x32x32xbf16>,
    %104 = vector.broadcast %60 : vector<32x1xf32> to vector<32x32xf32>
    %105 = arith.mulf %30, %104 : vector<32x32xf32>
    %106 = vector.broadcast %63 : vector<32x1xf32> to vector<32x32xf32>
    %107 = arith.addf %105, %106 : vector<32x32xf32>
    %cst_54 = arith.constant 0.000000e+00 : f32
    %108 = vector.broadcast %cst_54 : f32 to vector<32x32xf32>
    %109 = arith.maximumf %107, %108 : vector<32x32xf32>
    %110 = arith.mulf %109, %109 : vector<32x32xf32>
    %cst_55 = arith.constant dense<0.000000e+00> : vector<32xf32>
    %111 = vector.multi_reduction <add>, %110, %cst_55 [0] : vector<32x32xf32> to vector<32xf32>
    %112 = vector.shape_cast %111 : vector<32xf32> to vector<1x32xf32>
    %cst_56 = arith.constant 3.200000e+01 : f32
    %113 = vector.broadcast %cst_56 : f32 to vector<1x32xf32>
    %114 = arith.divf %112, %113 : vector<1x32xf32>
    %cst_57 = arith.constant 1.000000e-10 : f32
    %115 = vector.broadcast %cst_57 : f32 to vector<1x32xf32>
    %116 = arith.addf %114, %115 : vector<1x32xf32>
    %117 = math.rsqrt %116 : vector<1x32xf32>
    %118 = vector.broadcast %117 : vector<1x32xf32> to vector<32x32xf32>
    %119 = arith.mulf %109, %118 : vector<32x32xf32>
    %120 = arith.truncf %119 : vector<32x32xf32> to vector<32x32xbf16>
    %c2_58 = arith.constant 2 : index
    %c0_59 = arith.constant 0 : index
    %c0_60 = arith.constant 0 : index
    %121 = vector.load %arg5[%c2_58, %c0_59, %c0_60] : memref<4x32x32xbf16, #tpu.memory_space<vmem>>, vector<1x32x32xbf16>
    %122 = vector.shape_cast %121 : vector<1x32x32xbf16> to vector<32x32xbf16>
    %123 = vector.shape_cast %120 : vector<32x32xbf16> to vector<1x32x32xbf16>
    tpu.vector_store %arg5[%c2_58, %c0_59, %c0_60], %123 {strides = array<i32>} : memref<4x32x32xbf16, #tpu.memory_space<vmem>>, vector<1x32x32xbf16>,
    %124 = vector.broadcast %60 : vector<32x1xf32> to vector<32x32xf32>
    %125 = arith.mulf %42, %124 : vector<32x32xf32>
    %126 = vector.broadcast %63 : vector<32x1xf32> to vector<32x32xf32>
    %127 = arith.addf %125, %126 : vector<32x32xf32>
    %cst_61 = arith.constant 0.000000e+00 : f32
    %128 = vector.broadcast %cst_61 : f32 to vector<32x32xf32>
    %129 = arith.maximumf %127, %128 : vector<32x32xf32>
    %130 = arith.mulf %129, %129 : vector<32x32xf32>
    %cst_62 = arith.constant dense<0.000000e+00> : vector<32xf32>
    %131 = vector.multi_reduction <add>, %130, %cst_62 [0] : vector<32x32xf32> to vector<32xf32>
    %132 = vector.shape_cast %131 : vector<32xf32> to vector<1x32xf32>
    %cst_63 = arith.constant 3.200000e+01 : f32
    %133 = vector.broadcast %cst_63 : f32 to vector<1x32xf32>
    %134 = arith.divf %132, %133 : vector<1x32xf32>
    %cst_64 = arith.constant 1.000000e-10 : f32
    %135 = vector.broadcast %cst_64 : f32 to vector<1x32xf32>
    %136 = arith.addf %134, %135 : vector<1x32xf32>
    %137 = math.rsqrt %136 : vector<1x32xf32>
    %138 = vector.broadcast %137 : vector<1x32xf32> to vector<32x32xf32>
    %139 = arith.mulf %129, %138 : vector<32x32xf32>
    %140 = arith.truncf %139 : vector<32x32xf32> to vector<32x32xbf16>
    %c3_65 = arith.constant 3 : index
    %c0_66 = arith.constant 0 : index
    %c0_67 = arith.constant 0 : index
    %141 = vector.load %arg5[%c3_65, %c0_66, %c0_67] : memref<4x32x32xbf16, #tpu.memory_space<vmem>>, vector<1x32x32xbf16>
    %142 = vector.shape_cast %141 : vector<1x32x32xbf16> to vector<32x32xbf16>
    %143 = vector.shape_cast %140 : vector<32x32xbf16> to vector<1x32x32xbf16>
    tpu.vector_store %arg5[%c3_65, %c0_66, %c0_67], %143 {strides = array<i32>} : memref<4x32x32xbf16, #tpu.memory_space<vmem>>, vector<1x32x32xbf16>,
    return
  }
  func.func @transform_0(%arg0: i32) -> (i32, i32, i32) {
    %c0_i32 = arith.constant 0 : i32
    %c0_i32_0 = arith.constant 0 : i32
    %c0_i32_1 = arith.constant 0 : i32
    %c0_i32_2 = arith.constant 0 : i32
    return %c0_i32, %c0_i32_0, %c0_i32_1 : i32, i32, i32
  }
  func.func @transform_1(%arg0: i32) -> (i32, i32, i32) {
    %c0_i32 = arith.constant 0 : i32
    %c0_i32_0 = arith.constant 0 : i32
    %c0_i32_1 = arith.constant 0 : i32
    %c0_i32_2 = arith.constant 0 : i32
    return %c0_i32, %c0_i32_0, %c0_i32_1 : i32, i32, i32
  }
  func.func @transform_2(%arg0: i32) -> (i32, i32) {
    %c0_i32 = arith.constant 0 : i32
    %c0_i32_0 = arith.constant 0 : i32
    %c0_i32_1 = arith.constant 0 : i32
    return %c0_i32, %c0_i32_0 : i32, i32
  }
  func.func @transform_3(%arg0: i32) -> (i32, i32) {
    %c0_i32 = arith.constant 0 : i32
    %c0_i32_0 = arith.constant 0 : i32
    %c0_i32_1 = arith.constant 0 : i32
    return %c0_i32, %c0_i32_0 : i32, i32
  }
  func.func @transform_4(%arg0: i32) -> (i32, i32, i32) {
    %c0_i32 = arith.constant 0 : i32
    %c0_i32_0 = arith.constant 0 : i32
    %c0_i32_1 = arith.constant 0 : i32
    %c0_i32_2 = arith.constant 0 : i32
    return %c0_i32, %c0_i32_0, %c0_i32_1 : i32, i32, i32
  }
}

module attributes {stable_mosaic.version = 11 : i64} {
  func.func @_deconv_bn_kernel(%arg0: i32, %arg1: memref<4x128x128xbf16, #tpu.memory_space<vmem>>, %arg2: memref<4x16x128xbf16, #tpu.memory_space<vmem>>, %arg3: memref<16x1xf32, #tpu.memory_space<vmem>>, %arg4: memref<16x1xf32, #tpu.memory_space<vmem>>, %arg5: memref<4x16x128xbf16, #tpu.memory_space<vmem>>) attributes {dimension_semantics = [#tpu.dimension_semantics<arbitrary>], iteration_bounds = array<i64: 1>, scalar_prefetch = 0 : i64, scratch_operands = 0 : i64, tpu.core_type = #tpu.core_type<tc>, window_params = [{pipeline_mode = #tpu.pipeline_mode<synchronous>, transform_indices = @transform_0, window_bounds = array<i64: 4, 128, 128>}, {pipeline_mode = #tpu.pipeline_mode<synchronous>, transform_indices = @transform_1, window_bounds = array<i64: 4, 16, 128>}, {pipeline_mode = #tpu.pipeline_mode<synchronous>, transform_indices = @transform_2, window_bounds = array<i64: 16, 1>}, {pipeline_mode = #tpu.pipeline_mode<synchronous>, transform_indices = @transform_3, window_bounds = array<i64: 16, 1>}, {pipeline_mode = #tpu.pipeline_mode<synchronous>, transform_indices = @transform_4, window_bounds = array<i64: 4, 16, 128>}]} {
    %cst = arith.constant 0.000000e+00 : f32
    %0 = vector.broadcast %cst : f32 to vector<16x1xf32>
    %cst_0 = arith.constant 0.000000e+00 : f32
    %1 = vector.broadcast %cst_0 : f32 to vector<16x1xf32>
    %c0 = arith.constant 0 : index
    %c0_1 = arith.constant 0 : index
    %c0_2 = arith.constant 0 : index
    %2 = vector.load %arg2[%c0, %c0_1, %c0_2] : memref<4x16x128xbf16, #tpu.memory_space<vmem>>, vector<1x16x128xbf16>
    %3 = vector.shape_cast %2 : vector<1x16x128xbf16> to vector<16x128xbf16>
    %c0_3 = arith.constant 0 : index
    %c0_4 = arith.constant 0 : index
    %c0_5 = arith.constant 0 : index
    %4 = vector.load %arg1[%c0_3, %c0_4, %c0_5] : memref<4x128x128xbf16, #tpu.memory_space<vmem>>, vector<1x128x128xbf16>
    %5 = vector.shape_cast %4 : vector<1x128x128xbf16> to vector<128x128xbf16>
    %cst_6 = arith.constant dense<0.000000e+00> : vector<16x128xf32>
    %6 = tpu.matmul %3, %5, %cst_6 {dimension_numbers = #tpu.dot_dimension_numbers<[1], [0], [0], [1], [0, 0, 1, 1], [], []>} : vector<16x128xbf16>, vector<128x128xbf16>, vector<16x128xf32> -> vector<16x128xf32>
    %cst_7 = arith.constant dense<0.000000e+00> : vector<16xf32>
    %7 = vector.multi_reduction <add>, %6, %cst_7 [1] : vector<16x128xf32> to vector<16xf32>
    %8 = vector.shape_cast %7 : vector<16xf32> to vector<16x1xf32>
    %9 = arith.addf %0, %8 : vector<16x1xf32>
    %10 = arith.mulf %6, %6 : vector<16x128xf32>
    %cst_8 = arith.constant dense<0.000000e+00> : vector<16xf32>
    %11 = vector.multi_reduction <add>, %10, %cst_8 [1] : vector<16x128xf32> to vector<16xf32>
    %12 = vector.shape_cast %11 : vector<16xf32> to vector<16x1xf32>
    %13 = arith.addf %1, %12 : vector<16x1xf32>
    %c1 = arith.constant 1 : index
    %c0_9 = arith.constant 0 : index
    %c0_10 = arith.constant 0 : index
    %14 = vector.load %arg2[%c1, %c0_9, %c0_10] : memref<4x16x128xbf16, #tpu.memory_space<vmem>>, vector<1x16x128xbf16>
    %15 = vector.shape_cast %14 : vector<1x16x128xbf16> to vector<16x128xbf16>
    %c1_11 = arith.constant 1 : index
    %c0_12 = arith.constant 0 : index
    %c0_13 = arith.constant 0 : index
    %16 = vector.load %arg1[%c1_11, %c0_12, %c0_13] : memref<4x128x128xbf16, #tpu.memory_space<vmem>>, vector<1x128x128xbf16>
    %17 = vector.shape_cast %16 : vector<1x128x128xbf16> to vector<128x128xbf16>
    %cst_14 = arith.constant dense<0.000000e+00> : vector<16x128xf32>
    %18 = tpu.matmul %15, %17, %cst_14 {dimension_numbers = #tpu.dot_dimension_numbers<[1], [0], [0], [1], [0, 0, 1, 1], [], []>} : vector<16x128xbf16>, vector<128x128xbf16>, vector<16x128xf32> -> vector<16x128xf32>
    %cst_15 = arith.constant dense<0.000000e+00> : vector<16xf32>
    %19 = vector.multi_reduction <add>, %18, %cst_15 [1] : vector<16x128xf32> to vector<16xf32>
    %20 = vector.shape_cast %19 : vector<16xf32> to vector<16x1xf32>
    %21 = arith.addf %9, %20 : vector<16x1xf32>
    %22 = arith.mulf %18, %18 : vector<16x128xf32>
    %cst_16 = arith.constant dense<0.000000e+00> : vector<16xf32>
    %23 = vector.multi_reduction <add>, %22, %cst_16 [1] : vector<16x128xf32> to vector<16xf32>
    %24 = vector.shape_cast %23 : vector<16xf32> to vector<16x1xf32>
    %25 = arith.addf %13, %24 : vector<16x1xf32>
    %c2 = arith.constant 2 : index
    %c0_17 = arith.constant 0 : index
    %c0_18 = arith.constant 0 : index
    %26 = vector.load %arg2[%c2, %c0_17, %c0_18] : memref<4x16x128xbf16, #tpu.memory_space<vmem>>, vector<1x16x128xbf16>
    %27 = vector.shape_cast %26 : vector<1x16x128xbf16> to vector<16x128xbf16>
    %c2_19 = arith.constant 2 : index
    %c0_20 = arith.constant 0 : index
    %c0_21 = arith.constant 0 : index
    %28 = vector.load %arg1[%c2_19, %c0_20, %c0_21] : memref<4x128x128xbf16, #tpu.memory_space<vmem>>, vector<1x128x128xbf16>
    %29 = vector.shape_cast %28 : vector<1x128x128xbf16> to vector<128x128xbf16>
    %cst_22 = arith.constant dense<0.000000e+00> : vector<16x128xf32>
    %30 = tpu.matmul %27, %29, %cst_22 {dimension_numbers = #tpu.dot_dimension_numbers<[1], [0], [0], [1], [0, 0, 1, 1], [], []>} : vector<16x128xbf16>, vector<128x128xbf16>, vector<16x128xf32> -> vector<16x128xf32>
    %cst_23 = arith.constant dense<0.000000e+00> : vector<16xf32>
    %31 = vector.multi_reduction <add>, %30, %cst_23 [1] : vector<16x128xf32> to vector<16xf32>
    %32 = vector.shape_cast %31 : vector<16xf32> to vector<16x1xf32>
    %33 = arith.addf %21, %32 : vector<16x1xf32>
    %34 = arith.mulf %30, %30 : vector<16x128xf32>
    %cst_24 = arith.constant dense<0.000000e+00> : vector<16xf32>
    %35 = vector.multi_reduction <add>, %34, %cst_24 [1] : vector<16x128xf32> to vector<16xf32>
    %36 = vector.shape_cast %35 : vector<16xf32> to vector<16x1xf32>
    %37 = arith.addf %25, %36 : vector<16x1xf32>
    %c3 = arith.constant 3 : index
    %c0_25 = arith.constant 0 : index
    %c0_26 = arith.constant 0 : index
    %38 = vector.load %arg2[%c3, %c0_25, %c0_26] : memref<4x16x128xbf16, #tpu.memory_space<vmem>>, vector<1x16x128xbf16>
    %39 = vector.shape_cast %38 : vector<1x16x128xbf16> to vector<16x128xbf16>
    %c3_27 = arith.constant 3 : index
    %c0_28 = arith.constant 0 : index
    %c0_29 = arith.constant 0 : index
    %40 = vector.load %arg1[%c3_27, %c0_28, %c0_29] : memref<4x128x128xbf16, #tpu.memory_space<vmem>>, vector<1x128x128xbf16>
    %41 = vector.shape_cast %40 : vector<1x128x128xbf16> to vector<128x128xbf16>
    %cst_30 = arith.constant dense<0.000000e+00> : vector<16x128xf32>
    %42 = tpu.matmul %39, %41, %cst_30 {dimension_numbers = #tpu.dot_dimension_numbers<[1], [0], [0], [1], [0, 0, 1, 1], [], []>} : vector<16x128xbf16>, vector<128x128xbf16>, vector<16x128xf32> -> vector<16x128xf32>
    %cst_31 = arith.constant dense<0.000000e+00> : vector<16xf32>
    %43 = vector.multi_reduction <add>, %42, %cst_31 [1] : vector<16x128xf32> to vector<16xf32>
    %44 = vector.shape_cast %43 : vector<16xf32> to vector<16x1xf32>
    %45 = arith.addf %33, %44 : vector<16x1xf32>
    %46 = arith.mulf %42, %42 : vector<16x128xf32>
    %cst_32 = arith.constant dense<0.000000e+00> : vector<16xf32>
    %47 = vector.multi_reduction <add>, %46, %cst_32 [1] : vector<16x128xf32> to vector<16xf32>
    %48 = vector.shape_cast %47 : vector<16xf32> to vector<16x1xf32>
    %49 = arith.addf %37, %48 : vector<16x1xf32>
    %cst_33 = arith.constant 0.001953125 : f32
    %50 = vector.broadcast %cst_33 : f32 to vector<16x1xf32>
    %51 = arith.mulf %45, %50 : vector<16x1xf32>
    %cst_34 = arith.constant 0.001953125 : f32
    %52 = vector.broadcast %cst_34 : f32 to vector<16x1xf32>
    %53 = arith.mulf %49, %52 : vector<16x1xf32>
    %54 = arith.mulf %51, %51 : vector<16x1xf32>
    %55 = arith.subf %53, %54 : vector<16x1xf32>
    %c0_35 = arith.constant 0 : index
    %c0_36 = arith.constant 0 : index
    %56 = vector.load %arg3[%c0_35, %c0_36] : memref<16x1xf32, #tpu.memory_space<vmem>>, vector<16x1xf32>
    %cst_37 = arith.constant 9.99999974E-6 : f32
    %57 = vector.broadcast %cst_37 : f32 to vector<16x1xf32>
    %58 = arith.addf %55, %57 : vector<16x1xf32>
    %59 = math.rsqrt %58 : vector<16x1xf32>
    %60 = arith.mulf %56, %59 : vector<16x1xf32>
    %c0_38 = arith.constant 0 : index
    %c0_39 = arith.constant 0 : index
    %61 = vector.load %arg4[%c0_38, %c0_39] : memref<16x1xf32, #tpu.memory_space<vmem>>, vector<16x1xf32>
    %62 = arith.mulf %51, %60 : vector<16x1xf32>
    %63 = arith.subf %61, %62 : vector<16x1xf32>
    %64 = vector.broadcast %60 : vector<16x1xf32> to vector<16x128xf32>
    %65 = arith.mulf %6, %64 : vector<16x128xf32>
    %66 = vector.broadcast %63 : vector<16x1xf32> to vector<16x128xf32>
    %67 = arith.addf %65, %66 : vector<16x128xf32>
    %cst_40 = arith.constant 0.000000e+00 : f32
    %68 = vector.broadcast %cst_40 : f32 to vector<16x128xf32>
    %69 = arith.maximumf %67, %68 : vector<16x128xf32>
    %70 = arith.mulf %69, %69 : vector<16x128xf32>
    %cst_41 = arith.constant dense<0.000000e+00> : vector<128xf32>
    %71 = vector.multi_reduction <add>, %70, %cst_41 [0] : vector<16x128xf32> to vector<128xf32>
    %72 = vector.shape_cast %71 : vector<128xf32> to vector<1x128xf32>
    %cst_42 = arith.constant 1.600000e+01 : f32
    %73 = vector.broadcast %cst_42 : f32 to vector<1x128xf32>
    %74 = arith.divf %72, %73 : vector<1x128xf32>
    %cst_43 = arith.constant 1.000000e-10 : f32
    %75 = vector.broadcast %cst_43 : f32 to vector<1x128xf32>
    %76 = arith.addf %74, %75 : vector<1x128xf32>
    %77 = math.rsqrt %76 : vector<1x128xf32>
    %78 = vector.broadcast %77 : vector<1x128xf32> to vector<16x128xf32>
    %79 = arith.mulf %69, %78 : vector<16x128xf32>
    %80 = arith.truncf %79 : vector<16x128xf32> to vector<16x128xbf16>
    %c0_44 = arith.constant 0 : index
    %c0_45 = arith.constant 0 : index
    %c0_46 = arith.constant 0 : index
    %81 = vector.load %arg5[%c0_44, %c0_45, %c0_46] : memref<4x16x128xbf16, #tpu.memory_space<vmem>>, vector<1x16x128xbf16>
    %82 = vector.shape_cast %81 : vector<1x16x128xbf16> to vector<16x128xbf16>
    %83 = vector.shape_cast %80 : vector<16x128xbf16> to vector<1x16x128xbf16>
    tpu.vector_store %arg5[%c0_44, %c0_45, %c0_46], %83 {strides = array<i32>} : memref<4x16x128xbf16, #tpu.memory_space<vmem>>, vector<1x16x128xbf16>,
    %84 = vector.broadcast %60 : vector<16x1xf32> to vector<16x128xf32>
    %85 = arith.mulf %18, %84 : vector<16x128xf32>
    %86 = vector.broadcast %63 : vector<16x1xf32> to vector<16x128xf32>
    %87 = arith.addf %85, %86 : vector<16x128xf32>
    %cst_47 = arith.constant 0.000000e+00 : f32
    %88 = vector.broadcast %cst_47 : f32 to vector<16x128xf32>
    %89 = arith.maximumf %87, %88 : vector<16x128xf32>
    %90 = arith.mulf %89, %89 : vector<16x128xf32>
    %cst_48 = arith.constant dense<0.000000e+00> : vector<128xf32>
    %91 = vector.multi_reduction <add>, %90, %cst_48 [0] : vector<16x128xf32> to vector<128xf32>
    %92 = vector.shape_cast %91 : vector<128xf32> to vector<1x128xf32>
    %cst_49 = arith.constant 1.600000e+01 : f32
    %93 = vector.broadcast %cst_49 : f32 to vector<1x128xf32>
    %94 = arith.divf %92, %93 : vector<1x128xf32>
    %cst_50 = arith.constant 1.000000e-10 : f32
    %95 = vector.broadcast %cst_50 : f32 to vector<1x128xf32>
    %96 = arith.addf %94, %95 : vector<1x128xf32>
    %97 = math.rsqrt %96 : vector<1x128xf32>
    %98 = vector.broadcast %97 : vector<1x128xf32> to vector<16x128xf32>
    %99 = arith.mulf %89, %98 : vector<16x128xf32>
    %100 = arith.truncf %99 : vector<16x128xf32> to vector<16x128xbf16>
    %c1_51 = arith.constant 1 : index
    %c0_52 = arith.constant 0 : index
    %c0_53 = arith.constant 0 : index
    %101 = vector.load %arg5[%c1_51, %c0_52, %c0_53] : memref<4x16x128xbf16, #tpu.memory_space<vmem>>, vector<1x16x128xbf16>
    %102 = vector.shape_cast %101 : vector<1x16x128xbf16> to vector<16x128xbf16>
    %103 = vector.shape_cast %100 : vector<16x128xbf16> to vector<1x16x128xbf16>
    tpu.vector_store %arg5[%c1_51, %c0_52, %c0_53], %103 {strides = array<i32>} : memref<4x16x128xbf16, #tpu.memory_space<vmem>>, vector<1x16x128xbf16>,
    %104 = vector.broadcast %60 : vector<16x1xf32> to vector<16x128xf32>
    %105 = arith.mulf %30, %104 : vector<16x128xf32>
    %106 = vector.broadcast %63 : vector<16x1xf32> to vector<16x128xf32>
    %107 = arith.addf %105, %106 : vector<16x128xf32>
    %cst_54 = arith.constant 0.000000e+00 : f32
    %108 = vector.broadcast %cst_54 : f32 to vector<16x128xf32>
    %109 = arith.maximumf %107, %108 : vector<16x128xf32>
    %110 = arith.mulf %109, %109 : vector<16x128xf32>
    %cst_55 = arith.constant dense<0.000000e+00> : vector<128xf32>
    %111 = vector.multi_reduction <add>, %110, %cst_55 [0] : vector<16x128xf32> to vector<128xf32>
    %112 = vector.shape_cast %111 : vector<128xf32> to vector<1x128xf32>
    %cst_56 = arith.constant 1.600000e+01 : f32
    %113 = vector.broadcast %cst_56 : f32 to vector<1x128xf32>
    %114 = arith.divf %112, %113 : vector<1x128xf32>
    %cst_57 = arith.constant 1.000000e-10 : f32
    %115 = vector.broadcast %cst_57 : f32 to vector<1x128xf32>
    %116 = arith.addf %114, %115 : vector<1x128xf32>
    %117 = math.rsqrt %116 : vector<1x128xf32>
    %118 = vector.broadcast %117 : vector<1x128xf32> to vector<16x128xf32>
    %119 = arith.mulf %109, %118 : vector<16x128xf32>
    %120 = arith.truncf %119 : vector<16x128xf32> to vector<16x128xbf16>
    %c2_58 = arith.constant 2 : index
    %c0_59 = arith.constant 0 : index
    %c0_60 = arith.constant 0 : index
    %121 = vector.load %arg5[%c2_58, %c0_59, %c0_60] : memref<4x16x128xbf16, #tpu.memory_space<vmem>>, vector<1x16x128xbf16>
    %122 = vector.shape_cast %121 : vector<1x16x128xbf16> to vector<16x128xbf16>
    %123 = vector.shape_cast %120 : vector<16x128xbf16> to vector<1x16x128xbf16>
    tpu.vector_store %arg5[%c2_58, %c0_59, %c0_60], %123 {strides = array<i32>} : memref<4x16x128xbf16, #tpu.memory_space<vmem>>, vector<1x16x128xbf16>,
    %124 = vector.broadcast %60 : vector<16x1xf32> to vector<16x128xf32>
    %125 = arith.mulf %42, %124 : vector<16x128xf32>
    %126 = vector.broadcast %63 : vector<16x1xf32> to vector<16x128xf32>
    %127 = arith.addf %125, %126 : vector<16x128xf32>
    %cst_61 = arith.constant 0.000000e+00 : f32
    %128 = vector.broadcast %cst_61 : f32 to vector<16x128xf32>
    %129 = arith.maximumf %127, %128 : vector<16x128xf32>
    %130 = arith.mulf %129, %129 : vector<16x128xf32>
    %cst_62 = arith.constant dense<0.000000e+00> : vector<128xf32>
    %131 = vector.multi_reduction <add>, %130, %cst_62 [0] : vector<16x128xf32> to vector<128xf32>
    %132 = vector.shape_cast %131 : vector<128xf32> to vector<1x128xf32>
    %cst_63 = arith.constant 1.600000e+01 : f32
    %133 = vector.broadcast %cst_63 : f32 to vector<1x128xf32>
    %134 = arith.divf %132, %133 : vector<1x128xf32>
    %cst_64 = arith.constant 1.000000e-10 : f32
    %135 = vector.broadcast %cst_64 : f32 to vector<1x128xf32>
    %136 = arith.addf %134, %135 : vector<1x128xf32>
    %137 = math.rsqrt %136 : vector<1x128xf32>
    %138 = vector.broadcast %137 : vector<1x128xf32> to vector<16x128xf32>
    %139 = arith.mulf %129, %138 : vector<16x128xf32>
    %140 = arith.truncf %139 : vector<16x128xf32> to vector<16x128xbf16>
    %c3_65 = arith.constant 3 : index
    %c0_66 = arith.constant 0 : index
    %c0_67 = arith.constant 0 : index
    %141 = vector.load %arg5[%c3_65, %c0_66, %c0_67] : memref<4x16x128xbf16, #tpu.memory_space<vmem>>, vector<1x16x128xbf16>
    %142 = vector.shape_cast %141 : vector<1x16x128xbf16> to vector<16x128xbf16>
    %143 = vector.shape_cast %140 : vector<16x128xbf16> to vector<1x16x128xbf16>
    tpu.vector_store %arg5[%c3_65, %c0_66, %c0_67], %143 {strides = array<i32>} : memref<4x16x128xbf16, #tpu.memory_space<vmem>>, vector<1x16x128xbf16>,
    return
  }
  func.func @transform_0(%arg0: i32) -> (i32, i32, i32) {
    %c0_i32 = arith.constant 0 : i32
    %c0_i32_0 = arith.constant 0 : i32
    %c0_i32_1 = arith.constant 0 : i32
    %c0_i32_2 = arith.constant 0 : i32
    return %c0_i32, %c0_i32_0, %c0_i32_1 : i32, i32, i32
  }
  func.func @transform_1(%arg0: i32) -> (i32, i32, i32) {
    %c0_i32 = arith.constant 0 : i32
    %c0_i32_0 = arith.constant 0 : i32
    %c0_i32_1 = arith.constant 0 : i32
    %c0_i32_2 = arith.constant 0 : i32
    return %c0_i32, %c0_i32_0, %c0_i32_1 : i32, i32, i32
  }
  func.func @transform_2(%arg0: i32) -> (i32, i32) {
    %c0_i32 = arith.constant 0 : i32
    %c0_i32_0 = arith.constant 0 : i32
    %c0_i32_1 = arith.constant 0 : i32
    return %c0_i32, %c0_i32_0 : i32, i32
  }
  func.func @transform_3(%arg0: i32) -> (i32, i32) {
    %c0_i32 = arith.constant 0 : i32
    %c0_i32_0 = arith.constant 0 : i32
    %c0_i32_1 = arith.constant 0 : i32
    return %c0_i32, %c0_i32_0 : i32, i32
  }
  func.func @transform_4(%arg0: i32) -> (i32, i32, i32) {
    %c0_i32 = arith.constant 0 : i32
    %c0_i32_0 = arith.constant 0 : i32
    %c0_i32_1 = arith.constant 0 : i32
    %c0_i32_2 = arith.constant 0 : i32
    return %c0_i32, %c0_i32_0, %c0_i32_1 : i32, i32, i32
  }
}

module attributes {stable_mosaic.version = 11 : i64} {
  func.func @_deconv_tanh_kernel(%arg0: i32, %arg1: memref<4x64x512xbf16, #tpu.memory_space<vmem>>, %arg2: memref<4x3x64xbf16, #tpu.memory_space<vmem>>, %arg3: memref<4x3x512xf32, #tpu.memory_space<vmem>>) attributes {dimension_semantics = [#tpu.dimension_semantics<arbitrary>], iteration_bounds = array<i64: 1>, scalar_prefetch = 0 : i64, scratch_operands = 0 : i64, tpu.core_type = #tpu.core_type<tc>, window_params = [{pipeline_mode = #tpu.pipeline_mode<synchronous>, transform_indices = @transform_0, window_bounds = array<i64: 4, 64, 512>}, {pipeline_mode = #tpu.pipeline_mode<synchronous>, transform_indices = @transform_1, window_bounds = array<i64: 4, 3, 64>}, {pipeline_mode = #tpu.pipeline_mode<synchronous>, transform_indices = @transform_2, window_bounds = array<i64: 4, 3, 512>}]} {
    %c0 = arith.constant 0 : index
    %c0_0 = arith.constant 0 : index
    %c0_1 = arith.constant 0 : index
    %0 = vector.load %arg2[%c0, %c0_0, %c0_1] : memref<4x3x64xbf16, #tpu.memory_space<vmem>>, vector<1x3x64xbf16>
    %1 = vector.shape_cast %0 : vector<1x3x64xbf16> to vector<3x64xbf16>
    %c0_2 = arith.constant 0 : index
    %c0_3 = arith.constant 0 : index
    %c0_4 = arith.constant 0 : index
    %2 = vector.load %arg1[%c0_2, %c0_3, %c0_4] : memref<4x64x512xbf16, #tpu.memory_space<vmem>>, vector<1x64x512xbf16>
    %3 = vector.shape_cast %2 : vector<1x64x512xbf16> to vector<64x512xbf16>
    %cst = arith.constant dense<0.000000e+00> : vector<3x512xf32>
    %4 = tpu.matmul %1, %3, %cst {dimension_numbers = #tpu.dot_dimension_numbers<[1], [0], [0], [1], [0, 0, 1, 1], [], []>} : vector<3x64xbf16>, vector<64x512xbf16>, vector<3x512xf32> -> vector<3x512xf32>
    %5 = math.tanh %4 : vector<3x512xf32>
    %c0_5 = arith.constant 0 : index
    %c0_6 = arith.constant 0 : index
    %c0_7 = arith.constant 0 : index
    %6 = vector.load %arg3[%c0_5, %c0_6, %c0_7] : memref<4x3x512xf32, #tpu.memory_space<vmem>>, vector<1x3x512xf32>
    %7 = vector.shape_cast %6 : vector<1x3x512xf32> to vector<3x512xf32>
    %8 = vector.shape_cast %5 : vector<3x512xf32> to vector<1x3x512xf32>
    tpu.vector_store %arg3[%c0_5, %c0_6, %c0_7], %8 {strides = array<i32>} : memref<4x3x512xf32, #tpu.memory_space<vmem>>, vector<1x3x512xf32>,
    %c1 = arith.constant 1 : index
    %c0_8 = arith.constant 0 : index
    %c0_9 = arith.constant 0 : index
    %9 = vector.load %arg2[%c1, %c0_8, %c0_9] : memref<4x3x64xbf16, #tpu.memory_space<vmem>>, vector<1x3x64xbf16>
    %10 = vector.shape_cast %9 : vector<1x3x64xbf16> to vector<3x64xbf16>
    %c1_10 = arith.constant 1 : index
    %c0_11 = arith.constant 0 : index
    %c0_12 = arith.constant 0 : index
    %11 = vector.load %arg1[%c1_10, %c0_11, %c0_12] : memref<4x64x512xbf16, #tpu.memory_space<vmem>>, vector<1x64x512xbf16>
    %12 = vector.shape_cast %11 : vector<1x64x512xbf16> to vector<64x512xbf16>
    %cst_13 = arith.constant dense<0.000000e+00> : vector<3x512xf32>
    %13 = tpu.matmul %10, %12, %cst_13 {dimension_numbers = #tpu.dot_dimension_numbers<[1], [0], [0], [1], [0, 0, 1, 1], [], []>} : vector<3x64xbf16>, vector<64x512xbf16>, vector<3x512xf32> -> vector<3x512xf32>
    %14 = math.tanh %13 : vector<3x512xf32>
    %c1_14 = arith.constant 1 : index
    %c0_15 = arith.constant 0 : index
    %c0_16 = arith.constant 0 : index
    %15 = vector.load %arg3[%c1_14, %c0_15, %c0_16] : memref<4x3x512xf32, #tpu.memory_space<vmem>>, vector<1x3x512xf32>
    %16 = vector.shape_cast %15 : vector<1x3x512xf32> to vector<3x512xf32>
    %17 = vector.shape_cast %14 : vector<3x512xf32> to vector<1x3x512xf32>
    tpu.vector_store %arg3[%c1_14, %c0_15, %c0_16], %17 {strides = array<i32>} : memref<4x3x512xf32, #tpu.memory_space<vmem>>, vector<1x3x512xf32>,
    %c2 = arith.constant 2 : index
    %c0_17 = arith.constant 0 : index
    %c0_18 = arith.constant 0 : index
    %18 = vector.load %arg2[%c2, %c0_17, %c0_18] : memref<4x3x64xbf16, #tpu.memory_space<vmem>>, vector<1x3x64xbf16>
    %19 = vector.shape_cast %18 : vector<1x3x64xbf16> to vector<3x64xbf16>
    %c2_19 = arith.constant 2 : index
    %c0_20 = arith.constant 0 : index
    %c0_21 = arith.constant 0 : index
    %20 = vector.load %arg1[%c2_19, %c0_20, %c0_21] : memref<4x64x512xbf16, #tpu.memory_space<vmem>>, vector<1x64x512xbf16>
    %21 = vector.shape_cast %20 : vector<1x64x512xbf16> to vector<64x512xbf16>
    %cst_22 = arith.constant dense<0.000000e+00> : vector<3x512xf32>
    %22 = tpu.matmul %19, %21, %cst_22 {dimension_numbers = #tpu.dot_dimension_numbers<[1], [0], [0], [1], [0, 0, 1, 1], [], []>} : vector<3x64xbf16>, vector<64x512xbf16>, vector<3x512xf32> -> vector<3x512xf32>
    %23 = math.tanh %22 : vector<3x512xf32>
    %c2_23 = arith.constant 2 : index
    %c0_24 = arith.constant 0 : index
    %c0_25 = arith.constant 0 : index
    %24 = vector.load %arg3[%c2_23, %c0_24, %c0_25] : memref<4x3x512xf32, #tpu.memory_space<vmem>>, vector<1x3x512xf32>
    %25 = vector.shape_cast %24 : vector<1x3x512xf32> to vector<3x512xf32>
    %26 = vector.shape_cast %23 : vector<3x512xf32> to vector<1x3x512xf32>
    tpu.vector_store %arg3[%c2_23, %c0_24, %c0_25], %26 {strides = array<i32>} : memref<4x3x512xf32, #tpu.memory_space<vmem>>, vector<1x3x512xf32>,
    %c3 = arith.constant 3 : index
    %c0_26 = arith.constant 0 : index
    %c0_27 = arith.constant 0 : index
    %27 = vector.load %arg2[%c3, %c0_26, %c0_27] : memref<4x3x64xbf16, #tpu.memory_space<vmem>>, vector<1x3x64xbf16>
    %28 = vector.shape_cast %27 : vector<1x3x64xbf16> to vector<3x64xbf16>
    %c3_28 = arith.constant 3 : index
    %c0_29 = arith.constant 0 : index
    %c0_30 = arith.constant 0 : index
    %29 = vector.load %arg1[%c3_28, %c0_29, %c0_30] : memref<4x64x512xbf16, #tpu.memory_space<vmem>>, vector<1x64x512xbf16>
    %30 = vector.shape_cast %29 : vector<1x64x512xbf16> to vector<64x512xbf16>
    %cst_31 = arith.constant dense<0.000000e+00> : vector<3x512xf32>
    %31 = tpu.matmul %28, %30, %cst_31 {dimension_numbers = #tpu.dot_dimension_numbers<[1], [0], [0], [1], [0, 0, 1, 1], [], []>} : vector<3x64xbf16>, vector<64x512xbf16>, vector<3x512xf32> -> vector<3x512xf32>
    %32 = math.tanh %31 : vector<3x512xf32>
    %c3_32 = arith.constant 3 : index
    %c0_33 = arith.constant 0 : index
    %c0_34 = arith.constant 0 : index
    %33 = vector.load %arg3[%c3_32, %c0_33, %c0_34] : memref<4x3x512xf32, #tpu.memory_space<vmem>>, vector<1x3x512xf32>
    %34 = vector.shape_cast %33 : vector<1x3x512xf32> to vector<3x512xf32>
    %35 = vector.shape_cast %32 : vector<3x512xf32> to vector<1x3x512xf32>
    tpu.vector_store %arg3[%c3_32, %c0_33, %c0_34], %35 {strides = array<i32>} : memref<4x3x512xf32, #tpu.memory_space<vmem>>, vector<1x3x512xf32>,
    return
  }
  func.func @transform_0(%arg0: i32) -> (i32, i32, i32) {
    %c0_i32 = arith.constant 0 : i32
    %c0_i32_0 = arith.constant 0 : i32
    %c0_i32_1 = arith.constant 0 : i32
    %c0_i32_2 = arith.constant 0 : i32
    return %c0_i32, %c0_i32_0, %c0_i32_1 : i32, i32, i32
  }
  func.func @transform_1(%arg0: i32) -> (i32, i32, i32) {
    %c0_i32 = arith.constant 0 : i32
    %c0_i32_0 = arith.constant 0 : i32
    %c0_i32_1 = arith.constant 0 : i32
    %c0_i32_2 = arith.constant 0 : i32
    return %c0_i32, %c0_i32_0, %c0_i32_1 : i32, i32, i32
  }
  func.func @transform_2(%arg0: i32) -> (i32, i32, i32) {
    %c0_i32 = arith.constant 0 : i32
    %c0_i32_0 = arith.constant 0 : i32
    %c0_i32_1 = arith.constant 0 : i32
    %c0_i32_2 = arith.constant 0 : i32
    return %c0_i32, %c0_i32_0, %c0_i32_1 : i32, i32, i32
  }
}

</mosaic_0001>

<llo_original>
// kernel: generator_forward.5
$region0: #{generator_forward.5}
  #allocation0 [shape = 'u32[]', space=smem, size = 0x4, offset = 0x4, fixed_abs, tag = 'smem constant byte address 0x4 - core index']
  #allocation1 [shape = 'u32[144,128]{1,0:T(1,128)}', space=vmem, size = 0x12000, scoped, tag = 'internal scratch']
  %s0 = inlined_call_operand.vmem [shape: bf16[4,256,32], index: 0, kind: input, shape index: {}]
  %s1 = inlined_call_operand.vmem [shape: bf16[4,32,256], index: 1, kind: input, shape index: {}]
  %s2 = inlined_call_operand.vmem [shape: f32[32,1], index: 2, kind: input, shape index: {}]
  %s3 = inlined_call_operand.vmem [shape: f32[32,1], index: 3, kind: input, shape index: {}]
  %s4 = inlined_call_operand.vmem [shape: bf16[4,32,32], index: 4, kind: output, shape index: {}]
  %s5 = sld [smem:[#allocation0]]
  $region26: #{generator_forward.5} parent=0
    _
  %s7 = ssub.s32 1, %s5
  %s8 = scalar_select 0, %s7, %s5
  // Predicated region
  $region2: #{generator_forward.5} parent=0 // pred_check
    _
  $region3: #{generator_forward.5} parent=0 // pred_check_branch
    %10 = sbr.rel (0) target = $region5
  $region4: #{generator_forward.5} parent=0 // pred_region
    _
  $region5: #{generator_forward.5} parent=0 // pred_fallthru
    _
  // Predicated region
  $region6: #{generator_forward.5} parent=0 // pred_check
    _
  $region7: #{generator_forward.5} parent=0 // pred_check_branch
    %12 = sbr.rel (0) target = $region9
  $region8: #{generator_forward.5} parent=0 // pred_region
    _
  $region9: #{generator_forward.5} parent=0 // pred_fallthru
    _
  // Predicated region
  $region10: #{generator_forward.5} parent=0 // pred_check
    _
  $region11: #{generator_forward.5} parent=0 // pred_check_branch
    %14 = sbr.rel (0) target = $region13
  $region12: #{generator_forward.5} parent=0 // pred_region
    _
  $region13: #{generator_forward.5} parent=0 // pred_fallthru
    _
  // Predicated region
  $region14: #{generator_forward.5} parent=0 // pred_check
    _
  $region15: #{generator_forward.5} parent=0 // pred_check_branch
    %16 = sbr.rel (0) target = $region17
  $region16: #{generator_forward.5} parent=0 // pred_region
    _
  $region17: #{generator_forward.5} parent=0 // pred_fallthru
    _
  %v18 = vld [vmem:[%s1] sm:$0xff]
  %v19 = vld [vmem:[%s1 + $0x8] sm:$0xff]
  %v20 = vld [vmem:[%s1 + $0x10] sm:$0xff]
  %v21 = vld [vmem:[%s1 + $0x18] sm:$0xff]
  %v22 = vld [vmem:[%s0] sm:$0xf]
  %v23 = vld [vmem:[%s0 + $0x4] sm:$0xf]
  %v24 = vld [vmem:[%s0 + $0x8] sm:$0xf]
  %v25 = vld [vmem:[%s0 + $0xc] sm:$0xf]
  %v26 = vld [vmem:[%s0 + $0x10] sm:$0xf]
  %v27 = vld [vmem:[%s0 + $0x14] sm:$0xf]
  %v28 = vld [vmem:[%s0 + $0x18] sm:$0xf]
  %v29 = vld [vmem:[%s0 + $0x1c] sm:$0xf]
  %v30 = vld [vmem:[%s0 + $0x20] sm:$0xf]
  %v31 = vld [vmem:[%s0 + $0x24] sm:$0xf]
  %v32 = vld [vmem:[%s0 + $0x28] sm:$0xf]
  %v33 = vld [vmem:[%s0 + $0x2c] sm:$0xf]
  %v34 = vld [vmem:[%s0 + $0x30] sm:$0xf]
  %v35 = vld [vmem:[%s0 + $0x34] sm:$0xf]
  %v36 = vld [vmem:[%s0 + $0x38] sm:$0xf]
  %v37 = vld [vmem:[%s0 + $0x3c] sm:$0xf]
  %v38 = vld [vmem:[%s0 + $0x40] sm:$0xf]
  %v39 = vld [vmem:[%s0 + $0x44] sm:$0xf]
  %v40 = vld [vmem:[%s0 + $0x48] sm:$0xf]
  %v41 = vld [vmem:[%s0 + $0x4c] sm:$0xf]
  %v42 = vld [vmem:[%s0 + $0x50] sm:$0xf]
  %v43 = vld [vmem:[%s0 + $0x54] sm:$0xf]
  %v44 = vld [vmem:[%s0 + $0x58] sm:$0xf]
  %v45 = vld [vmem:[%s0 + $0x5c] sm:$0xf]
  %v46 = vld [vmem:[%s0 + $0x60] sm:$0xf]
  %v47 = vld [vmem:[%s0 + $0x64] sm:$0xf]
  %v48 = vld [vmem:[%s0 + $0x68] sm:$0xf]
  %v49 = vld [vmem:[%s0 + $0x6c] sm:$0xf]
  %v50 = vld [vmem:[%s0 + $0x70] sm:$0xf]
  %v51 = vld [vmem:[%s0 + $0x74] sm:$0xf]
  %v52 = vld [vmem:[%s0 + $0x78] sm:$0xf]
  %v53 = vld [vmem:[%s0 + $0x7c] sm:$0xf]
  %v58 = vunpack.c.l.b16 %v18
  %v59 = vunpack.c.h.b16 %v18
  %v60 = vunpack.c.l.b16 %v19
  %v61 = vunpack.c.h.b16 %v19
  %v62 = vunpack.c.l.b16 %v20
  %v63 = vunpack.c.h.b16 %v20
  %v64 = vunpack.c.l.b16 %v21
  %v65 = vunpack.c.h.b16 %v21
  %v66 = vpack.c.b16 %v60, %v58
  %v67 = vpack.c.b16 %v61, %v59
  %v68 = vpack.c.b16 %v64, %v62
  %v69 = vpack.c.b16 %v65, %v63
  %v106 = vunpack.c.l.b16 %v22
  %v107 = vunpack.c.l.b16 %v23
  %v108 = vunpack.c.l.b16 %v24
  %v109 = vunpack.c.l.b16 %v25
  %v110 = vunpack.c.l.b16 %v26
  %v111 = vunpack.c.l.b16 %v27
  %v112 = vunpack.c.l.b16 %v28
  %v113 = vunpack.c.l.b16 %v29
  %v114 = vunpack.c.l.b16 %v30
  %v115 = vunpack.c.l.b16 %v31
  %v116 = vunpack.c.l.b16 %v32
  %v117 = vunpack.c.l.b16 %v33
  %v118 = vunpack.c.l.b16 %v34
  %v119 = vunpack.c.l.b16 %v35
  %v120 = vunpack.c.l.b16 %v36
  %v121 = vunpack.c.l.b16 %v37
  %v122 = vunpack.c.l.b16 %v38
  %v123 = vunpack.c.l.b16 %v39
  %v124 = vunpack.c.l.b16 %v40
  %v125 = vunpack.c.l.b16 %v41
  %v126 = vunpack.c.l.b16 %v42
  %v127 = vunpack.c.l.b16 %v43
  %v128 = vunpack.c.l.b16 %v44
  %v129 = vunpack.c.l.b16 %v45
  %v130 = vunpack.c.l.b16 %v46
  %v131 = vunpack.c.l.b16 %v47
  %v132 = vunpack.c.l.b16 %v48
  %v133 = vunpack.c.l.b16 %v49
  %v134 = vunpack.c.l.b16 %v50
  %v135 = vunpack.c.l.b16 %v51
  %v136 = vunpack.c.l.b16 %v52
  %v137 = vunpack.c.l.b16 %v53
  %v138 = vpack.c.b16 %v107, %v106
  %v139 = vpack.c.b16 %v109, %v108
  %v140 = vpack.c.b16 %v111, %v110
  %v141 = vpack.c.b16 %v113, %v112
  %v142 = vpack.c.b16 %v115, %v114
  %v143 = vpack.c.b16 %v117, %v116
  %v144 = vpack.c.b16 %v119, %v118
  %v145 = vpack.c.b16 %v121, %v120
  %v146 = vpack.c.b16 %v123, %v122
  %v147 = vpack.c.b16 %v125, %v124
  %v148 = vpack.c.b16 %v127, %v126
  %v149 = vpack.c.b16 %v129, %v128
  %v150 = vpack.c.b16 %v131, %v130
  %v151 = vpack.c.b16 %v133, %v132
  %v152 = vpack.c.b16 %v135, %v134
  %v153 = vpack.c.b16 %v137, %v136
  %170 = vmatprep.subr.bf16.mxu0 0
  %171 = vmatpush1.bf16.msra.mxu0 %v138
  %172 = vmatprep.subr.bf16.mxu0 0
  %173 = vmatpush1.bf16.msra.mxu0 %v139
  %174 = vmatprep.subr.bf16.mxu0 0
  %175 = vmatpush1.bf16.msra.mxu0 %v140
  %176 = vmatprep.subr.bf16.mxu0 0
  %177 = vmatpush1.bf16.msra.mxu0 %v141
  %178 = vmatprep.subr.bf16.mxu0 0
  %179 = vmatpush1.bf16.msra.mxu0 %v142
  %180 = vmatprep.subr.bf16.mxu0 0
  %181 = vmatpush1.bf16.msra.mxu0 %v143
  %182 = vmatprep.subr.bf16.mxu0 0
  %183 = vmatpush1.bf16.msra.mxu0 %v144
  %184 = vmatprep.subr.bf16.mxu0 0
  %185 = vmatpush1.bf16.msra.mxu0 %v145
  %186 = vmatprep.subr.bf16.mxu0 0
  %187 = vmatpush1.bf16.msra.mxu0 %v146
  %188 = vmatprep.subr.bf16.mxu0 0
  %189 = vmatpush1.bf16.msra.mxu0 %v147
  %190 = vmatprep.subr.bf16.mxu0 0
  %191 = vmatpush1.bf16.msra.mxu0 %v148
  %192 = vmatprep.subr.bf16.mxu0 0
  %193 = vmatpush1.bf16.msra.mxu0 %v149
  %194 = vmatprep.subr.bf16.mxu0 0
  %195 = vmatpush1.bf16.msra.mxu0 %v150
  %196 = vmatprep.subr.bf16.mxu0 0
  %197 = vmatpush1.bf16.msra.mxu0 %v151
  %198 = vmatprep.subr.bf16.mxu0 0
  %199 = vmatpush1.bf16.msra.mxu0 %v152
  %200 = vmatprep.subr.bf16.mxu0 0
  %201 = vmatpush1.bf16.msra.mxu0 %v153
  %202 = vmatprep.mubr.bf16.mxu0 %v67
  %203 = vmatmul.mubr.bf16.gmra.mrb[0].mxu0 %v66
  %v204 = vpop.f32.mrb[0].mxu0
  %v205 = vadd.f32 0.0, %v204
  %v206 = vpop.f32.mrb[0].mxu0
  %v207 = vpop.f32.mrb[0].mxu0
  %v208 = vadd.f32 0.0, %v207
  %v209 = vpop.f32.mrb[0].mxu0
  %210 = vmatprep.mubr.bf16.mxu0 %v69
  %211 = vmatmul.mubr.bf16.gmra.mrb[0].mxu0 %v68
  %v212 = vpop.f32.mrb[0].mxu0
  %v213 = vadd.f32 0.0, %v212
  %v214 = vpop.f32.mrb[0].mxu0
  %v215 = vpop.f32.mrb[0].mxu0
  %v216 = vadd.f32 0.0, %v215
  %v217 = vpop.f32.mrb[0].mxu0
  %218 = vdwg.mxu0
  %vm219 = vcmask 261120
  %v220 = vsel %vm219, %v205, 0.0
  %221 = vadd.xlane.f32.xlu0 %v220
  %v222 = vpop.xlane.xlu0 %221
  %v223 = vsel %vm219, %v208, 0.0
  %224 = vadd.xlane.f32.xlu0 %v223
  %v225 = vpop.xlane.xlu0 %224
  %v226 = vsel %vm219, %v213, 0.0
  %227 = vadd.xlane.f32.xlu0 %v226
  %v228 = vpop.xlane.xlu0 %227
  %v229 = vsel %vm219, %v216, 0.0
  %230 = vadd.xlane.f32.xlu0 %v229
  %v231 = vpop.xlane.xlu0 %230
  %v232 = vadd.f32 %v222, 0.0
  %v233 = vadd.f32 %v225, 0.0
  %v234 = vadd.f32 %v228, 0.0
  %v235 = vadd.f32 %v231, 0.0
  %v236 = vmul.f32 %v205, %v205
  %v237 = vmul.f32 %v208, %v208
  %v238 = vmul.f32 %v213, %v213
  %v239 = vmul.f32 %v216, %v216
  %v240 = vsel %vm219, %v236, 0.0
  %241 = vadd.xlane.f32.xlu0 %v240
  %v242 = vpop.xlane.xlu0 %241
  %v243 = vsel %vm219, %v237, 0.0
  %244 = vadd.xlane.f32.xlu0 %v243
  %v245 = vpop.xlane.xlu0 %244
  %v246 = vsel %vm219, %v238, 0.0
  %247 = vadd.xlane.f32.xlu0 %v246
  %v248 = vpop.xlane.xlu0 %247
  %v249 = vsel %vm219, %v239, 0.0
  %250 = vadd.xlane.f32.xlu0 %v249
  %v251 = vpop.xlane.xlu0 %250
  %v252 = vadd.f32 %v242, 0.0
  %v253 = vadd.f32 %v245, 0.0
  %v254 = vadd.f32 %v248, 0.0
  %v255 = vadd.f32 %v251, 0.0
  %s256 = scalar_lea.vmem %s1, 32
  %v257 = vld [vmem:[%s256] sm:$0xff]
  %v258 = vld [vmem:[%s256 + $0x8] sm:$0xff]
  %v259 = vld [vmem:[%s256 + $0x10] sm:$0xff]
  %v260 = vld [vmem:[%s256 + $0x18] sm:$0xff]
  %s261 = scalar_lea.vmem %s0, 128
  %v262 = vld [vmem:[%s261] sm:$0xf]
  %v263 = vld [vmem:[%s261 + $0x4] sm:$0xf]
  %v264 = vld [vmem:[%s261 + $0x8] sm:$0xf]
  %v265 = vld [vmem:[%s261 + $0xc] sm:$0xf]
  %v266 = vld [vmem:[%s261 + $0x10] sm:$0xf]
  %v267 = vld [vmem:[%s261 + $0x14] sm:$0xf]
  %v268 = vld [vmem:[%s261 + $0x18] sm:$0xf]
  %v269 = vld [vmem:[%s261 + $0x1c] sm:$0xf]
  %v270 = vld [vmem:[%s261 + $0x20] sm:$0xf]
  %v271 = vld [vmem:[%s261 + $0x24] sm:$0xf]
  %v272 = vld [vmem:[%s261 + $0x28] sm:$0xf]
  %v273 = vld [vmem:[%s261 + $0x2c] sm:$0xf]
  %v274 = vld [vmem:[%s261 + $0x30] sm:$0xf]
  %v275 = vld [vmem:[%s261 + $0x34] sm:$0xf]
  %v276 = vld [vmem:[%s261 + $0x38] sm:$0xf]
  %v277 = vld [vmem:[%s261 + $0x3c] sm:$0xf]
  %v278 = vld [vmem:[%s261 + $0x40] sm:$0xf]
  %v279 = vld [vmem:[%s261 + $0x44] sm:$0xf]
  %v280 = vld [vmem:[%s261 + $0x48] sm:$0xf]
  %v281 = vld [vmem:[%s261 + $0x4c] sm:$0xf]
  %v282 = vld [vmem:[%s261 + $0x50] sm:$0xf]
  %v283 = vld [vmem:[%s261 + $0x54] sm:$0xf]
  %v284 = vld [vmem:[%s261 + $0x58] sm:$0xf]
  %v285 = vld [vmem:[%s261 + $0x5c] sm:$0xf]
  %v286 = vld [vmem:[%s261 + $0x60] sm:$0xf]
  %v287 = vld [vmem:[%s261 + $0x64] sm:$0xf]
  %v288 = vld [vmem:[%s261 + $0x68] sm:$0xf]
  %v289 = vld [vmem:[%s261 + $0x6c] sm:$0xf]
  %v290 = vld [vmem:[%s261 + $0x70] sm:$0xf]
  %v291 = vld [vmem:[%s261 + $0x74] sm:$0xf]
  %v292 = vld [vmem:[%s261 + $0x78] sm:$0xf]
  %v293 = vld [vmem:[%s261 + $0x7c] sm:$0xf]
  %v298 = vunpack.c.l.b16 %v257
  %v299 = vunpack.c.h.b16 %v257
  %v300 = vunpack.c.l.b16 %v258
  %v301 = vunpack.c.h.b16 %v258
  %v302 = vunpack.c.l.b16 %v259
  %v303 = vunpack.c.h.b16 %v259
  %v304 = vunpack.c.l.b16 %v260
  %v305 = vunpack.c.h.b16 %v260
  %v306 = vpack.c.b16 %v300, %v298
  %v307 = vpack.c.b16 %v301, %v299
  %v308 = vpack.c.b16 %v304, %v302
  %v309 = vpack.c.b16 %v305, %v303
  %v346 = vunpack.c.l.b16 %v262
  %v347 = vunpack.c.l.b16 %v263
  %v348 = vunpack.c.l.b16 %v264
  %v349 = vunpack.c.l.b16 %v265
  %v350 = vunpack.c.l.b16 %v266
  %v351 = vunpack.c.l.b16 %v267
  %v352 = vunpack.c.l.b16 %v268
  %v353 = vunpack.c.l.b16 %v269
  %v354 = vunpack.c.l.b16 %v270
  %v355 = vunpack.c.l.b16 %v271
  %v356 = vunpack.c.l.b16 %v272
  %v357 = vunpack.c.l.b16 %v273
  %v358 = vunpack.c.l.b16 %v274
  %v359 = vunpack.c.l.b16 %v275
  %v360 = vunpack.c.l.b16 %v276
  %v361 = vunpack.c.l.b16 %v277
  %v362 = vunpack.c.l.b16 %v278
  %v363 = vunpack.c.l.b16 %v279
  %v364 = vunpack.c.l.b16 %v280
  %v365 = vunpack.c.l.b16 %v281
  %v366 = vunpack.c.l.b16 %v282
  %v367 = vunpack.c.l.b16 %v283
  %v368 = vunpack.c.l.b16 %v284
  %v369 = vunpack.c.l.b16 %v285
  %v370 = vunpack.c.l.b16 %v286
  %v371 = vunpack.c.l.b16 %v287
  %v372 = vunpack.c.l.b16 %v288
  %v373 = vunpack.c.l.b16 %v289
  %v374 = vunpack.c.l.b16 %v290
  %v375 = vunpack.c.l.b16 %v291
  %v376 = vunpack.c.l.b16 %v292
  %v377 = vunpack.c.l.b16 %v293
  %v378 = vpack.c.b16 %v347, %v346
  %v379 = vpack.c.b16 %v349, %v348
  %v380 = vpack.c.b16 %v351, %v350
  %v381 = vpack.c.b16 %v353, %v352
  %v382 = vpack.c.b16 %v355, %v354
  %v383 = vpack.c.b16 %v357, %v356
  %v384 = vpack.c.b16 %v359, %v358
  %v385 = vpack.c.b16 %v361, %v360
  %v386 = vpack.c.b16 %v363, %v362
  %v387 = vpack.c.b16 %v365, %v364
  %v388 = vpack.c.b16 %v367, %v366
  %v389 = vpack.c.b16 %v369, %v368
  %v390 = vpack.c.b16 %v371, %v370
  %v391 = vpack.c.b16 %v373, %v372
  %v392 = vpack.c.b16 %v375, %v374
  %v393 = vpack.c.b16 %v377, %v376
  %410 = vmatprep.subr.bf16.mxu0 0
  %411 = vmatpush1.bf16.msra.mxu0 %v378
  %412 = vmatprep.subr.bf16.mxu0 0
  %413 = vmatpush1.bf16.msra.mxu0 %v379
  %414 = vmatprep.subr.bf16.mxu0 0
  %415 = vmatpush1.bf16.msra.mxu0 %v380
  %416 = vmatprep.subr.bf16.mxu0 0
  %417 = vmatpush1.bf16.msra.mxu0 %v381
  %418 = vmatprep.subr.bf16.mxu0 0
  %419 = vmatpush1.bf16.msra.mxu0 %v382
  %420 = vmatprep.subr.bf16.mxu0 0
  %421 = vmatpush1.bf16.msra.mxu0 %v383
  %422 = vmatprep.subr.bf16.mxu0 0
  %423 = vmatpush1.bf16.msra.mxu0 %v384
  %424 = vmatprep.subr.bf16.mxu0 0
  %425 = vmatpush1.bf16.msra.mxu0 %v385
  %426 = vmatprep.subr.bf16.mxu0 0
  %427 = vmatpush1.bf16.msra.mxu0 %v386
  %428 = vmatprep.subr.bf16.mxu0 0
  %429 = vmatpush1.bf16.msra.mxu0 %v387
  %430 = vmatprep.subr.bf16.mxu0 0
  %431 = vmatpush1.bf16.msra.mxu0 %v388
  %432 = vmatprep.subr.bf16.mxu0 0
  %433 = vmatpush1.bf16.msra.mxu0 %v389
  %434 = vmatprep.subr.bf16.mxu0 0
  %435 = vmatpush1.bf16.msra.mxu0 %v390
  %436 = vmatprep.subr.bf16.mxu0 0
  %437 = vmatpush1.bf16.msra.mxu0 %v391
  %438 = vmatprep.subr.bf16.mxu0 0
  %439 = vmatpush1.bf16.msra.mxu0 %v392
  %440 = vmatprep.subr.bf16.mxu0 0
  %441 = vmatpush1.bf16.msra.mxu0 %v393
  %442 = vmatprep.mubr.bf16.mxu0 %v307
  %443 = vmatmul.mubr.bf16.gmra.mrb[0].mxu0 %v306
  %v444 = vpop.f32.mrb[0].mxu0
  %v445 = vadd.f32 0.0, %v444
  %v446 = vpop.f32.mrb[0].mxu0
  %v447 = vpop.f32.mrb[0].mxu0
  %v448 = vadd.f32 0.0, %v447
  %v449 = vpop.f32.mrb[0].mxu0
  %450 = vmatprep.mubr.bf16.mxu0 %v309
  %451 = vmatmul.mubr.bf16.gmra.mrb[0].mxu0 %v308
  %v452 = vpop.f32.mrb[0].mxu0
  %v453 = vadd.f32 0.0, %v452
  %v454 = vpop.f32.mrb[0].mxu0
  %v455 = vpop.f32.mrb[0].mxu0
  %v456 = vadd.f32 0.0, %v455
  %v457 = vpop.f32.mrb[0].mxu0
  %458 = vdwg.mxu0
  %v459 = vsel %vm219, %v445, 0.0
  %460 = vadd.xlane.f32.xlu0 %v459
  %v461 = vpop.xlane.xlu0 %460
  %v462 = vsel %vm219, %v448, 0.0
  %463 = vadd.xlane.f32.xlu0 %v462
  %v464 = vpop.xlane.xlu0 %463
  %v465 = vsel %vm219, %v453, 0.0
  %466 = vadd.xlane.f32.xlu0 %v465
  %v467 = vpop.xlane.xlu0 %466
  %v468 = vsel %vm219, %v456, 0.0
  %469 = vadd.xlane.f32.xlu0 %v468
  %v470 = vpop.xlane.xlu0 %469
  %v471 = vadd.f32 %v232, %v461
  %v472 = vadd.f32 %v233, %v464
  %v473 = vadd.f32 %v234, %v467
  %v474 = vadd.f32 %v235, %v470
  %v475 = vmul.f32 %v445, %v445
  %v476 = vmul.f32 %v448, %v448
  %v477 = vmul.f32 %v453, %v453
  %v478 = vmul.f32 %v456, %v456
  %v479 = vsel %vm219, %v475, 0.0
  %480 = vadd.xlane.f32.xlu0 %v479
  %v481 = vpop.xlane.xlu0 %480
  %v482 = vsel %vm219, %v476, 0.0
  %483 = vadd.xlane.f32.xlu0 %v482
  %v484 = vpop.xlane.xlu0 %483
  %v485 = vsel %vm219, %v477, 0.0
  %486 = vadd.xlane.f32.xlu0 %v485
  %v487 = vpop.xlane.xlu0 %486
  %v488 = vsel %vm219, %v478, 0.0
  %489 = vadd.xlane.f32.xlu0 %v488
  %v490 = vpop.xlane.xlu0 %489
  %v491 = vadd.f32 %v252, %v481
  %v492 = vadd.f32 %v253, %v484
  %v493 = vadd.f32 %v254, %v487
  %v494 = vadd.f32 %v255, %v490
  %s495 = scalar_lea.vmem %s1, 64
  %v496 = vld [vmem:[%s495] sm:$0xff]
  %v497 = vld [vmem:[%s495 + $0x8] sm:$0xff]
  %v498 = vld [vmem:[%s495 + $0x10] sm:$0xff]
  %v499 = vld [vmem:[%s495 + $0x18] sm:$0xff]
  %s500 = scalar_lea.vmem %s0, 256
  %v501 = vld [vmem:[%s500] sm:$0xf]
  %v502 = vld [vmem:[%s500 + $0x4] sm:$0xf]
  %v503 = vld [vmem:[%s500 + $0x8] sm:$0xf]
  %v504 = vld [vmem:[%s500 + $0xc] sm:$0xf]
  %v505 = vld [vmem:[%s500 + $0x10] sm:$0xf]
  %v506 = vld [vmem:[%s500 + $0x14] sm:$0xf]
  %v507 = vld [vmem:[%s500 + $0x18] sm:$0xf]
  %v508 = vld [vmem:[%s500 + $0x1c] sm:$0xf]
  %v509 = vld [vmem:[%s500 + $0x20] sm:$0xf]
  %v510 = vld [vmem:[%s500 + $0x24] sm:$0xf]
  %v511 = vld [vmem:[%s500 + $0x28] sm:$0xf]
  %v512 = vld [vmem:[%s500 + $0x2c] sm:$0xf]
  %v513 = vld [vmem:[%s500 + $0x30] sm:$0xf]
  %v514 = vld [vmem:[%s500 + $0x34] sm:$0xf]
  %v515 = vld [vmem:[%s500 + $0x38] sm:$0xf]
  %v516 = vld [vmem:[%s500 + $0x3c] sm:$0xf]
  %v517 = vld [vmem:[%s500 + $0x40] sm:$0xf]
  %v518 = vld [vmem:[%s500 + $0x44] sm:$0xf]
  %v519 = vld [vmem:[%s500 + $0x48] sm:$0xf]
  %v520 = vld [vmem:[%s500 + $0x4c] sm:$0xf]
  %v521 = vld [vmem:[%s500 + $0x50] sm:$0xf]
  %v522 = vld [vmem:[%s500 + $0x54] sm:$0xf]
  %v523 = vld [vmem:[%s500 + $0x58] sm:$0xf]
  %v524 = vld [vmem:[%s500 + $0x5c] sm:$0xf]
  %v525 = vld [vmem:[%s500 + $0x60] sm:$0xf]
  %v526 = vld [vmem:[%s500 + $0x64] sm:$0xf]
  %v527 = vld [vmem:[%s500 + $0x68] sm:$0xf]
  %v528 = vld [vmem:[%s500 + $0x6c] sm:$0xf]
  %v529 = vld [vmem:[%s500 + $0x70] sm:$0xf]
  %v530 = vld [vmem:[%s500 + $0x74] sm:$0xf]
  %v531 = vld [vmem:[%s500 + $0x78] sm:$0xf]
  %v532 = vld [vmem:[%s500 + $0x7c] sm:$0xf]
  %v537 = vunpack.c.l.b16 %v496
  %v538 = vunpack.c.h.b16 %v496
  %v539 = vunpack.c.l.b16 %v497
  %v540 = vunpack.c.h.b16 %v497
  %v541 = vunpack.c.l.b16 %v498
  %v542 = vunpack.c.h.b16 %v498
  %v543 = vunpack.c.l.b16 %v499
  %v544 = vunpack.c.h.b16 %v499
  %v545 = vpack.c.b16 %v539, %v537
  %v546 = vpack.c.b16 %v540, %v538
  %v547 = vpack.c.b16 %v543, %v541
  %v548 = vpack.c.b16 %v544, %v542
  %v585 = vunpack.c.l.b16 %v501
  %v586 = vunpack.c.l.b16 %v502
  %v587 = vunpack.c.l.b16 %v503
  %v588 = vunpack.c.l.b16 %v504
  %v589 = vunpack.c.l.b16 %v505
  %v590 = vunpack.c.l.b16 %v506
  %v591 = vunpack.c.l.b16 %v507
  %v592 = vunpack.c.l.b16 %v508
  %v593 = vunpack.c.l.b16 %v509
  %v594 = vunpack.c.l.b16 %v510
  %v595 = vunpack.c.l.b16 %v511
  %v596 = vunpack.c.l.b16 %v512
  %v597 = vunpack.c.l.b16 %v513
  %v598 = vunpack.c.l.b16 %v514
  %v599 = vunpack.c.l.b16 %v515
  %v600 = vunpack.c.l.b16 %v516
  %v601 = vunpack.c.l.b16 %v517
  %v602 = vunpack.c.l.b16 %v518
  %v603 = vunpack.c.l.b16 %v519
  %v604 = vunpack.c.l.b16 %v520
  %v605 = vunpack.c.l.b16 %v521
  %v606 = vunpack.c.l.b16 %v522
  %v607 = vunpack.c.l.b16 %v523
  %v608 = vunpack.c.l.b16 %v524
  %v609 = vunpack.c.l.b16 %v525
  %v610 = vunpack.c.l.b16 %v526
  %v611 = vunpack.c.l.b16 %v527
  %v612 = vunpack.c.l.b16 %v528
  %v613 = vunpack.c.l.b16 %v529
  %v614 = vunpack.c.l.b16 %v530
  %v615 = vunpack.c.l.b16 %v531
  %v616 = vunpack.c.l.b16 %v532
  %v617 = vpack.c.b16 %v586, %v585
  %v618 = vpack.c.b16 %v588, %v587
  %v619 = vpack.c.b16 %v590, %v589
  %v620 = vpack.c.b16 %v592, %v591
  %v621 = vpack.c.b16 %v594, %v593
  %v622 = vpack.c.b16 %v596, %v595
  %v623 = vpack.c.b16 %v598, %v597
  %v624 = vpack.c.b16 %v600, %v599
  %v625 = vpack.c.b16 %v602, %v601
  %v626 = vpack.c.b16 %v604, %v603
  %v627 = vpack.c.b16 %v606, %v605
  %v628 = vpack.c.b16 %v608, %v607
  %v629 = vpack.c.b16 %v610, %v609
  %v630 = vpack.c.b16 %v612, %v611
  %v631 = vpack.c.b16 %v614, %v613
  %v632 = vpack.c.b16 %v616, %v615
  %649 = vmatprep.subr.bf16.mxu0 0
  %650 = vmatpush1.bf16.msra.mxu0 %v617
  %651 = vmatprep.subr.bf16.mxu0 0
  %652 = vmatpush1.bf16.msra.mxu0 %v618
  %653 = vmatprep.subr.bf16.mxu0 0
  %654 = vmatpush1.bf16.msra.mxu0 %v619
  %655 = vmatprep.subr.bf16.mxu0 0
  %656 = vmatpush1.bf16.msra.mxu0 %v620
  %657 = vmatprep.subr.bf16.mxu0 0
  %658 = vmatpush1.bf16.msra.mxu0 %v621
  %659 = vmatprep.subr.bf16.mxu0 0
  %660 = vmatpush1.bf16.msra.mxu0 %v622
  %661 = vmatprep.subr.bf16.mxu0 0
  %662 = vmatpush1.bf16.msra.mxu0 %v623
  %663 = vmatprep.subr.bf16.mxu0 0
  %664 = vmatpush1.bf16.msra.mxu0 %v624
  %665 = vmatprep.subr.bf16.mxu0 0
  %666 = vmatpush1.bf16.msra.mxu0 %v625
  %667 = vmatprep.subr.bf16.mxu0 0
  %668 = vmatpush1.bf16.msra.mxu0 %v626
  %669 = vmatprep.subr.bf16.mxu0 0
  %670 = vmatpush1.bf16.msra.mxu0 %v627
  %671 = vmatprep.subr.bf16.mxu0 0
  %672 = vmatpush1.bf16.msra.mxu0 %v628
  %673 = vmatprep.subr.bf16.mxu0 0
  %674 = vmatpush1.bf16.msra.mxu0 %v629
  %675 = vmatprep.subr.bf16.mxu0 0
  %676 = vmatpush1.bf16.msra.mxu0 %v630
  %677 = vmatprep.subr.bf16.mxu0 0
  %678 = vmatpush1.bf16.msra.mxu0 %v631
  %679 = vmatprep.subr.bf16.mxu0 0
  %680 = vmatpush1.bf16.msra.mxu0 %v632
  %681 = vmatprep.mubr.bf16.mxu0 %v546
  %682 = vmatmul.mubr.bf16.gmra.mrb[0].mxu0 %v545
  %v683 = vpop.f32.mrb[0].mxu0
  %v684 = vadd.f32 0.0, %v683
  %v685 = vpop.f32.mrb[0].mxu0
  %v686 = vpop.f32.mrb[0].mxu0
  %v687 = vadd.f32 0.0, %v686
  %v688 = vpop.f32.mrb[0].mxu0
  %689 = vmatprep.mubr.bf16.mxu0 %v548
  %690 = vmatmul.mubr.bf16.gmra.mrb[0].mxu0 %v547
  %v691 = vpop.f32.mrb[0].mxu0
  %v692 = vadd.f32 0.0, %v691
  %v693 = vpop.f32.mrb[0].mxu0
  %v694 = vpop.f32.mrb[0].mxu0
  %v695 = vadd.f32 0.0, %v694
  %v696 = vpop.f32.mrb[0].mxu0
  %697 = vdwg.mxu0
  %v698 = vsel %vm219, %v684, 0.0
  %699 = vadd.xlane.f32.xlu0 %v698
  %v700 = vpop.xlane.xlu0 %699
  %v701 = vsel %vm219, %v687, 0.0
  %702 = vadd.xlane.f32.xlu0 %v701
  %v703 = vpop.xlane.xlu0 %702
  %v704 = vsel %vm219, %v692, 0.0
  %705 = vadd.xlane.f32.xlu0 %v704
  %v706 = vpop.xlane.xlu0 %705
  %v707 = vsel %vm219, %v695, 0.0
  %708 = vadd.xlane.f32.xlu0 %v707
  %v709 = vpop.xlane.xlu0 %708
  %v710 = vadd.f32 %v471, %v700
  %v711 = vadd.f32 %v472, %v703
  %v712 = vadd.f32 %v473, %v706
  %v713 = vadd.f32 %v474, %v709
  %v714 = vmul.f32 %v684, %v684
  %v715 = vmul.f32 %v687, %v687
  %v716 = vmul.f32 %v692, %v692
  %v717 = vmul.f32 %v695, %v695
  %v718 = vsel %vm219, %v714, 0.0
  %719 = vadd.xlane.f32.xlu0 %v718
  %v720 = vpop.xlane.xlu0 %719
  %v721 = vsel %vm219, %v715, 0.0
  %722 = vadd.xlane.f32.xlu0 %v721
  %v723 = vpop.xlane.xlu0 %722
  %v724 = vsel %vm219, %v716, 0.0
  %725 = vadd.xlane.f32.xlu0 %v724
  %v726 = vpop.xlane.xlu0 %725
  %v727 = vsel %vm219, %v717, 0.0
  %728 = vadd.xlane.f32.xlu0 %v727
  %v729 = vpop.xlane.xlu0 %728
  %v730 = vadd.f32 %v491, %v720
  %v731 = vadd.f32 %v492, %v723
  %v732 = vadd.f32 %v493, %v726
  %v733 = vadd.f32 %v494, %v729
  %s734 = scalar_lea.vmem %s1, 96
  %v735 = vld [vmem:[%s734] sm:$0xff]
  %v736 = vld [vmem:[%s734 + $0x8] sm:$0xff]
  %v737 = vld [vmem:[%s734 + $0x10] sm:$0xff]
  %v738 = vld [vmem:[%s734 + $0x18] sm:$0xff]
  %s739 = scalar_lea.vmem %s0, 384
  %v740 = vld [vmem:[%s739] sm:$0xf]
  %v741 = vld [vmem:[%s739 + $0x4] sm:$0xf]
  %v742 = vld [vmem:[%s739 + $0x8] sm:$0xf]
  %v743 = vld [vmem:[%s739 + $0xc] sm:$0xf]
  %v744 = vld [vmem:[%s739 + $0x10] sm:$0xf]
  %v745 = vld [vmem:[%s739 + $0x14] sm:$0xf]
  %v746 = vld [vmem:[%s739 + $0x18] sm:$0xf]
  %v747 = vld [vmem:[%s739 + $0x1c] sm:$0xf]
  %v748 = vld [vmem:[%s739 + $0x20] sm:$0xf]
  %v749 = vld [vmem:[%s739 + $0x24] sm:$0xf]
  %v750 = vld [vmem:[%s739 + $0x28] sm:$0xf]
  %v751 = vld [vmem:[%s739 + $0x2c] sm:$0xf]
  %v752 = vld [vmem:[%s739 + $0x30] sm:$0xf]
  %v753 = vld [vmem:[%s739 + $0x34] sm:$0xf]
  %v754 = vld [vmem:[%s739 + $0x38] sm:$0xf]
  %v755 = vld [vmem:[%s739 + $0x3c] sm:$0xf]
  %v756 = vld [vmem:[%s739 + $0x40] sm:$0xf]
  %v757 = vld [vmem:[%s739 + $0x44] sm:$0xf]
  %v758 = vld [vmem:[%s739 + $0x48] sm:$0xf]
  %v759 = vld [vmem:[%s739 + $0x4c] sm:$0xf]
  %v760 = vld [vmem:[%s739 + $0x50] sm:$0xf]
  %v761 = vld [vmem:[%s739 + $0x54] sm:$0xf]
  %v762 = vld [vmem:[%s739 + $0x58] sm:$0xf]
  %v763 = vld [vmem:[%s739 + $0x5c] sm:$0xf]
  %v764 = vld [vmem:[%s739 + $0x60] sm:$0xf]
  %v765 = vld [vmem:[%s739 + $0x64] sm:$0xf]
  %v766 = vld [vmem:[%s739 + $0x68] sm:$0xf]
  %v767 = vld [vmem:[%s739 + $0x6c] sm:$0xf]
  %v768 = vld [vmem:[%s739 + $0x70] sm:$0xf]
  %v769 = vld [vmem:[%s739 + $0x74] sm:$0xf]
  %v770 = vld [vmem:[%s739 + $0x78] sm:$0xf]
  %v771 = vld [vmem:[%s739 + $0x7c] sm:$0xf]
  %v776 = vunpack.c.l.b16 %v735
  %v777 = vunpack.c.h.b16 %v735
  %v778 = vunpack.c.l.b16 %v736
  %v779 = vunpack.c.h.b16 %v736
  %v780 = vunpack.c.l.b16 %v737
  %v781 = vunpack.c.h.b16 %v737
  %v782 = vunpack.c.l.b16 %v738
  %v783 = vunpack.c.h.b16 %v738
  %v784 = vpack.c.b16 %v778, %v776
  %v785 = vpack.c.b16 %v779, %v777
  %v786 = vpack.c.b16 %v782, %v780
  %v787 = vpack.c.b16 %v783, %v781
  %v824 = vunpack.c.l.b16 %v740
  %v825 = vunpack.c.l.b16 %v741
  %v826 = vunpack.c.l.b16 %v742
  %v827 = vunpack.c.l.b16 %v743
  %v828 = vunpack.c.l.b16 %v744
  %v829 = vunpack.c.l.b16 %v745
  %v830 = vunpack.c.l.b16 %v746
  %v831 = vunpack.c.l.b16 %v747
  %v832 = vunpack.c.l.b16 %v748
  %v833 = vunpack.c.l.b16 %v749
  %v834 = vunpack.c.l.b16 %v750
  %v835 = vunpack.c.l.b16 %v751
  %v836 = vunpack.c.l.b16 %v752
  %v837 = vunpack.c.l.b16 %v753
  %v838 = vunpack.c.l.b16 %v754
  %v839 = vunpack.c.l.b16 %v755
  %v840 = vunpack.c.l.b16 %v756
  %v841 = vunpack.c.l.b16 %v757
  %v842 = vunpack.c.l.b16 %v758
  %v843 = vunpack.c.l.b16 %v759
  %v844 = vunpack.c.l.b16 %v760
  %v845 = vunpack.c.l.b16 %v761
  %v846 = vunpack.c.l.b16 %v762
  %v847 = vunpack.c.l.b16 %v763
  %v848 = vunpack.c.l.b16 %v764
  %v849 = vunpack.c.l.b16 %v765
  %v850 = vunpack.c.l.b16 %v766
  %v851 = vunpack.c.l.b16 %v767
  %v852 = vunpack.c.l.b16 %v768
  %v853 = vunpack.c.l.b16 %v769
  %v854 = vunpack.c.l.b16 %v770
  %v855 = vunpack.c.l.b16 %v771
  %v856 = vpack.c.b16 %v825, %v824
  %v857 = vpack.c.b16 %v827, %v826
  %v858 = vpack.c.b16 %v829, %v828
  %v859 = vpack.c.b16 %v831, %v830
  %v860 = vpack.c.b16 %v833, %v832
  %v861 = vpack.c.b16 %v835, %v834
  %v862 = vpack.c.b16 %v837, %v836
  %v863 = vpack.c.b16 %v839, %v838
  %v864 = vpack.c.b16 %v841, %v840
  %v865 = vpack.c.b16 %v843, %v842
  %v866 = vpack.c.b16 %v845, %v844
  %v867 = vpack.c.b16 %v847, %v846
  %v868 = vpack.c.b16 %v849, %v848
  %v869 = vpack.c.b16 %v851, %v850
  %v870 = vpack.c.b16 %v853, %v852
  %v871 = vpack.c.b16 %v855, %v854
  %888 = vmatprep.subr.bf16.mxu0 0
  %889 = vmatpush1.bf16.msra.mxu0 %v856
  %890 = vmatprep.subr.bf16.mxu0 0
  %891 = vmatpush1.bf16.msra.mxu0 %v857
  %892 = vmatprep.subr.bf16.mxu0 0
  %893 = vmatpush1.bf16.msra.mxu0 %v858
  %894 = vmatprep.subr.bf16.mxu0 0
  %895 = vmatpush1.bf16.msra.mxu0 %v859
  %896 = vmatprep.subr.bf16.mxu0 0
  %897 = vmatpush1.bf16.msra.mxu0 %v860
  %898 = vmatprep.subr.bf16.mxu0 0
  %899 = vmatpush1.bf16.msra.mxu0 %v861
  %900 = vmatprep.subr.bf16.mxu0 0
  %901 = vmatpush1.bf16.msra.mxu0 %v862
  %902 = vmatprep.subr.bf16.mxu0 0
  %903 = vmatpush1.bf16.msra.mxu0 %v863
  %904 = vmatprep.subr.bf16.mxu0 0
  %905 = vmatpush1.bf16.msra.mxu0 %v864
  %906 = vmatprep.subr.bf16.mxu0 0
  %907 = vmatpush1.bf16.msra.mxu0 %v865
  %908 = vmatprep.subr.bf16.mxu0 0
  %909 = vmatpush1.bf16.msra.mxu0 %v866
  %910 = vmatprep.subr.bf16.mxu0 0
  %911 = vmatpush1.bf16.msra.mxu0 %v867
  %912 = vmatprep.subr.bf16.mxu0 0
  %913 = vmatpush1.bf16.msra.mxu0 %v868
  %914 = vmatprep.subr.bf16.mxu0 0
  %915 = vmatpush1.bf16.msra.mxu0 %v869
  %916 = vmatprep.subr.bf16.mxu0 0
  %917 = vmatpush1.bf16.msra.mxu0 %v870
  %918 = vmatprep.subr.bf16.mxu0 0
  %919 = vmatpush1.bf16.msra.mxu0 %v871
  %920 = vmatprep.mubr.bf16.mxu0 %v785
  %921 = vmatmul.mubr.bf16.gmra.mrb[0].mxu0 %v784
  %v922 = vpop.f32.mrb[0].mxu0
  %v923 = vadd.f32 0.0, %v922
  %v924 = vpop.f32.mrb[0].mxu0
  %v925 = vpop.f32.mrb[0].mxu0
  %v926 = vadd.f32 0.0, %v925
  %v927 = vpop.f32.mrb[0].mxu0
  %928 = vmatprep.mubr.bf16.mxu0 %v787
  %929 = vmatmul.mubr.bf16.gmra.mrb[0].mxu0 %v786
  %v930 = vpop.f32.mrb[0].mxu0
  %v931 = vadd.f32 0.0, %v930
  %v932 = vpop.f32.mrb[0].mxu0
  %v933 = vpop.f32.mrb[0].mxu0
  %v934 = vadd.f32 0.0, %v933
  %v935 = vpop.f32.mrb[0].mxu0
  %936 = vdwg.mxu0
  %v937 = vsel %vm219, %v923, 0.0
  %938 = vadd.xlane.f32.xlu0 %v937
  %v939 = vpop.xlane.xlu0 %938
  %v940 = vsel %vm219, %v926, 0.0
  %941 = vadd.xlane.f32.xlu0 %v940
  %v942 = vpop.xlane.xlu0 %941
  %v943 = vsel %vm219, %v931, 0.0
  %944 = vadd.xlane.f32.xlu0 %v943
  %v945 = vpop.xlane.xlu0 %944
  %v946 = vsel %vm219, %v934, 0.0
  %947 = vadd.xlane.f32.xlu0 %v946
  %v948 = vpop.xlane.xlu0 %947
  %v949 = vadd.f32 %v710, %v939
  %v950 = vadd.f32 %v711, %v942
  %v951 = vadd.f32 %v712, %v945
  %v952 = vadd.f32 %v713, %v948
  %v953 = vmul.f32 %v923, %v923
  %v954 = vmul.f32 %v926, %v926
  %v955 = vmul.f32 %v931, %v931
  %v956 = vmul.f32 %v934, %v934
  %v957 = vsel %vm219, %v953, 0.0
  %958 = vadd.xlane.f32.xlu0 %v957
  %v959 = vpop.xlane.xlu0 %958
  %v960 = vsel %vm219, %v954, 0.0
  %961 = vadd.xlane.f32.xlu0 %v960
  %v962 = vpop.xlane.xlu0 %961
  %v963 = vsel %vm219, %v955, 0.0
  %964 = vadd.xlane.f32.xlu0 %v963
  %v965 = vpop.xlane.xlu0 %964
  %v966 = vsel %vm219, %v956, 0.0
  %967 = vadd.xlane.f32.xlu0 %v966
  %v968 = vpop.xlane.xlu0 %967
  %v969 = vadd.f32 %v730, %v959
  %v970 = vadd.f32 %v731, %v962
  %v971 = vadd.f32 %v732, %v965
  %v972 = vadd.f32 %v733, %v968
  %v973 = vmul.f32 %v949, 0.0078125
  %v974 = vmul.f32 %v950, 0.0078125
  %v975 = vmul.f32 %v951, 0.0078125
  %v976 = vmul.f32 %v952, 0.0078125
  %v977 = vmul.f32 %v969, 0.0078125
  %v978 = vmul.f32 %v970, 0.0078125
  %v979 = vmul.f32 %v971, 0.0078125
  %v980 = vmul.f32 %v972, 0.0078125
  %v981 = vmul.f32 %v973, %v973
  %v982 = vmul.f32 %v974, %v974
  %v983 = vmul.f32 %v975, %v975
  %v984 = vmul.f32 %v976, %v976
  %v985 = vsub.f32 %v977, %v981
  %v986 = vsub.f32 %v978, %v982
  %v987 = vsub.f32 %v979, %v983
  %v988 = vsub.f32 %v980, %v984
  %v989 = vld [vmem:[%s2] sm:$0xff]
  %v990 = vld [vmem:[%s2 + $0x8] sm:$0xff]
  %v991 = vld [vmem:[%s2 + $0x10] sm:$0xff]
  %v992 = vld [vmem:[%s2 + $0x18] sm:$0xff]
  %v993 = vadd.f32 %v985, 1e-05
  %v994 = vadd.f32 %v986, 1e-05
  %v995 = vadd.f32 %v987, 1e-05
  %v996 = vadd.f32 %v988, 1e-05
  %v997 = vrsqrt.pop %v993
  %v998 = vrsqrt.pop %v994
  %v999 = vrsqrt.pop %v995
  %v1000 = vrsqrt.pop %v996
  %v1001 = vmul.f32 %v989, %v997
  %v1002 = vmul.f32 %v990, %v998
  %v1003 = vmul.f32 %v991, %v999
  %v1004 = vmul.f32 %v992, %v1000
  %v1005 = vld [vmem:[%s3] sm:$0xff]
  %v1006 = vld [vmem:[%s3 + $0x8] sm:$0xff]
  %v1007 = vld [vmem:[%s3 + $0x10] sm:$0xff]
  %v1008 = vld [vmem:[%s3 + $0x18] sm:$0xff]
  %v1009 = vmul.f32 %v973, %v1001
  %v1010 = vmul.f32 %v974, %v1002
  %v1011 = vmul.f32 %v975, %v1003
  %v1012 = vmul.f32 %v976, %v1004
  %v1013 = vsub.f32 %v1005, %v1009
  %v1014 = vsub.f32 %v1006, %v1010
  %v1015 = vsub.f32 %v1007, %v1011
  %v1016 = vsub.f32 %v1008, %v1012
  %1018 = vset.pattern.permute.xlu0 0
  %1019 = vperm.xlu0 %1018, %v1001
  %v1020 = vpop.permute.xlu0 %1019
  %1023 = vset.pattern.permute.xlu0 0
  %1024 = vperm.xlu0 %1023, %v1002
  %v1025 = vpop.permute.xlu0 %1024
  %1028 = vset.pattern.permute.xlu0 0
  %1029 = vperm.xlu0 %1028, %v1003
  %v1030 = vpop.permute.xlu0 %1029
  %1033 = vset.pattern.permute.xlu0 0
  %1034 = vperm.xlu0 %1033, %v1004
  %v1035 = vpop.permute.xlu0 %1034
  %v1037 = vmul.f32 %v205, %v1020
  %v1038 = vmul.f32 %v208, %v1025
  %v1039 = vmul.f32 %v213, %v1030
  %v1040 = vmul.f32 %v216, %v1035
  %1042 = vset.pattern.permute.xlu0 0
  %1043 = vperm.xlu0 %1042, %v1013
  %v1044 = vpop.permute.xlu0 %1043
  %1047 = vset.pattern.permute.xlu0 0
  %1048 = vperm.xlu0 %1047, %v1014
  %v1049 = vpop.permute.xlu0 %1048
  %1052 = vset.pattern.permute.xlu0 0
  %1053 = vperm.xlu0 %1052, %v1015
  %v1054 = vpop.permute.xlu0 %1053
  %1057 = vset.pattern.permute.xlu0 0
  %1058 = vperm.xlu0 %1057, %v1016
  %v1059 = vpop.permute.xlu0 %1058
  %v1061 = vadd.f32 %v1037, %v1044
  %v1062 = vadd.f32 %v1038, %v1049
  %v1063 = vadd.f32 %v1039, %v1054
  %v1064 = vadd.f32 %v1040, %v1059
  %v1065 = vmax.f32 %v1061, 0.0
  %v1066 = vmax.f32 %v1062, 0.0
  %v1067 = vmax.f32 %v1063, 0.0
  %v1068 = vmax.f32 %v1064, 0.0
  %v1069 = vmul.f32 %v1065, %v1065
  %v1070 = vmul.f32 %v1066, %v1066
  %v1071 = vmul.f32 %v1067, %v1067
  %v1072 = vmul.f32 %v1068, %v1068
  %v1073 = vsel %vm219, %v1069, 0.0
  %v1074 = vsel %vm219, %v1070, 0.0
  %v1075 = vadd.f32 %v1073, %v1074
  %v1076 = vsel %vm219, %v1071, 0.0
  %v1077 = vadd.f32 %v1075, %v1076
  %v1078 = vsel %vm219, %v1072, 0.0
  %v1079 = vadd.f32 %v1077, %v1078
  %v1080 = vrot.slane %v1079, 4
  %v1081 = vadd.f32 %v1079, %v1080
  %v1082 = vrot.slane %v1081, 2
  %v1083 = vadd.f32 %v1081, %v1082
  %v1084 = vrot.slane %v1083, 1
  %v1085 = vadd.f32 %v1083, %v1084
  %v1086 = vrcp.pop 32.0
  %v1087 = vmul.f32 %v1085, %v1086
  %v1088 = vadd.f32 %v1087, 1e-10
  %v1089 = vrsqrt.pop %v1088
  %v1090 = vmul.f32 %v1065, %v1089
  %v1091 = vmul.f32 %v1066, %v1089
  %v1092 = vmul.f32 %v1067, %v1089
  %v1093 = vmul.f32 %v1068, %v1089
  %v1094 = vpack.c.bf16 %v1091, %v1090
  %v1095 = vpack.c.bf16 %v1093, %v1092
  %v1098 = vunpack.c.l.b16 %v1094
  %v1099 = vunpack.c.h.b16 %v1094
  %v1100 = vunpack.c.l.b16 %v1095
  %v1101 = vunpack.c.h.b16 %v1095
  %v1102 = vpack.c.b16 %v1098, %v1098
  %v1103 = vpack.c.b16 %v1099, %v1099
  %v1104 = vpack.c.b16 %v1100, %v1100
  %v1105 = vpack.c.b16 %v1101, %v1101
  %vm1110 = vcmask 257024
  %1111 = vst.msk [vmem:[%s4] sm:$0xf] %vm1110, %v1102
  %1112 = vst.msk [vmem:[%s4 + $0x4] sm:$0xf] %vm1110, %v1103
  %1113 = vst.msk [vmem:[%s4 + $0x8] sm:$0xf] %vm1110, %v1104
  %1114 = vst.msk [vmem:[%s4 + $0xc] sm:$0xf] %vm1110, %v1105
  %v1115 = vmul.f32 %v445, %v1020
  %v1116 = vmul.f32 %v448, %v1025
  %v1117 = vmul.f32 %v453, %v1030
  %v1118 = vmul.f32 %v456, %v1035
  %v1119 = vadd.f32 %v1115, %v1044
  %v1120 = vadd.f32 %v1116, %v1049
  %v1121 = vadd.f32 %v1117, %v1054
  %v1122 = vadd.f32 %v1118, %v1059
  %v1123 = vmax.f32 %v1119, 0.0
  %v1124 = vmax.f32 %v1120, 0.0
  %v1125 = vmax.f32 %v1121, 0.0
  %v1126 = vmax.f32 %v1122, 0.0
  %v1127 = vmul.f32 %v1123, %v1123
  %v1128 = vmul.f32 %v1124, %v1124
  %v1129 = vmul.f32 %v1125, %v1125
  %v1130 = vmul.f32 %v1126, %v1126
  %v1131 = vsel %vm219, %v1127, 0.0
  %v1132 = vsel %vm219, %v1128, 0.0
  %v1133 = vadd.f32 %v1131, %v1132
  %v1134 = vsel %vm219, %v1129, 0.0
  %v1135 = vadd.f32 %v1133, %v1134
  %v1136 = vsel %vm219, %v1130, 0.0
  %v1137 = vadd.f32 %v1135, %v1136
  %v1138 = vrot.slane %v1137, 4
  %v1139 = vadd.f32 %v1137, %v1138
  %v1140 = vrot.slane %v1139, 2
  %v1141 = vadd.f32 %v1139, %v1140
  %v1142 = vrot.slane %v1141, 1
  %v1143 = vadd.f32 %v1141, %v1142
  %v1144 = vmul.f32 %v1143, %v1086
  %v1145 = vadd.f32 %v1144, 1e-10
  %v1146 = vrsqrt.pop %v1145
  %v1147 = vmul.f32 %v1123, %v1146
  %v1148 = vmul.f32 %v1124, %v1146
  %v1149 = vmul.f32 %v1125, %v1146
  %v1150 = vmul.f32 %v1126, %v1146
  %v1151 = vpack.c.bf16 %v1148, %v1147
  %v1152 = vpack.c.bf16 %v1150, %v1149
  %v1155 = vunpack.c.l.b16 %v1151
  %v1156 = vunpack.c.h.b16 %v1151
  %v1157 = vunpack.c.l.b16 %v1152
  %v1158 = vunpack.c.h.b16 %v1152
  %v1159 = vpack.c.b16 %v1155, %v1155
  %v1160 = vpack.c.b16 %v1156, %v1156
  %v1161 = vpack.c.b16 %v1157, %v1157
  %v1162 = vpack.c.b16 %v1158, %v1158
  %s1167 = scalar_lea.vmem %s4, 16
  %1168 = vst.msk [vmem:[%s1167] sm:$0xf] %vm1110, %v1159
  %1169 = vst.msk [vmem:[%s1167 + $0x4] sm:$0xf] %vm1110, %v1160
  %1170 = vst.msk [vmem:[%s1167 + $0x8] sm:$0xf] %vm1110, %v1161
  %1171 = vst.msk [vmem:[%s1167 + $0xc] sm:$0xf] %vm1110, %v1162
  %v1172 = vmul.f32 %v684, %v1020
  %v1173 = vmul.f32 %v687, %v1025
  %v1174 = vmul.f32 %v692, %v1030
  %v1175 = vmul.f32 %v695, %v1035
  %v1176 = vadd.f32 %v1172, %v1044
  %v1177 = vadd.f32 %v1173, %v1049
  %v1178 = vadd.f32 %v1174, %v1054
  %v1179 = vadd.f32 %v1175, %v1059
  %v1180 = vmax.f32 %v1176, 0.0
  %v1181 = vmax.f32 %v1177, 0.0
  %v1182 = vmax.f32 %v1178, 0.0
  %v1183 = vmax.f32 %v1179, 0.0
  %v1184 = vmul.f32 %v1180, %v1180
  %v1185 = vmul.f32 %v1181, %v1181
  %v1186 = vmul.f32 %v1182, %v1182
  %v1187 = vmul.f32 %v1183, %v1183
  %v1188 = vsel %vm219, %v1184, 0.0
  %v1189 = vsel %vm219, %v1185, 0.0
  %v1190 = vadd.f32 %v1188, %v1189
  %v1191 = vsel %vm219, %v1186, 0.0
  %v1192 = vadd.f32 %v1190, %v1191
  %v1193 = vsel %vm219, %v1187, 0.0
  %v1194 = vadd.f32 %v1192, %v1193
  %v1195 = vrot.slane %v1194, 4
  %v1196 = vadd.f32 %v1194, %v1195
  %v1197 = vrot.slane %v1196, 2
  %v1198 = vadd.f32 %v1196, %v1197
  %v1199 = vrot.slane %v1198, 1
  %v1200 = vadd.f32 %v1198, %v1199
  %v1201 = vmul.f32 %v1200, %v1086
  %v1202 = vadd.f32 %v1201, 1e-10
  %v1203 = vrsqrt.pop %v1202
  %v1204 = vmul.f32 %v1180, %v1203
  %v1205 = vmul.f32 %v1181, %v1203
  %v1206 = vmul.f32 %v1182, %v1203
  %v1207 = vmul.f32 %v1183, %v1203
  %v1208 = vpack.c.bf16 %v1205, %v1204
  %v1209 = vpack.c.bf16 %v1207, %v1206
  %v1212 = vunpack.c.l.b16 %v1208
  %v1213 = vunpack.c.h.b16 %v1208
  %v1214 = vunpack.c.l.b16 %v1209
  %v1215 = vunpack.c.h.b16 %v1209
  %v1216 = vpack.c.b16 %v1212, %v1212
  %v1217 = vpack.c.b16 %v1213, %v1213
  %v1218 = vpack.c.b16 %v1214, %v1214
  %v1219 = vpack.c.b16 %v1215, %v1215
  %s1224 = scalar_lea.vmem %s4, 32
  %1225 = vst.msk [vmem:[%s1224] sm:$0xf] %vm1110, %v1216
  %1226 = vst.msk [vmem:[%s1224 + $0x4] sm:$0xf] %vm1110, %v1217
  %1227 = vst.msk [vmem:[%s1224 + $0x8] sm:$0xf] %vm1110, %v1218
  %1228 = vst.msk [vmem:[%s1224 + $0xc] sm:$0xf] %vm1110, %v1219
  %v1229 = vmul.f32 %v923, %v1020
  %v1230 = vmul.f32 %v926, %v1025
  %v1231 = vmul.f32 %v931, %v1030
  %v1232 = vmul.f32 %v934, %v1035
  %v1233 = vadd.f32 %v1229, %v1044
  %v1234 = vadd.f32 %v1230, %v1049
  %v1235 = vadd.f32 %v1231, %v1054
  %v1236 = vadd.f32 %v1232, %v1059
  %v1237 = vmax.f32 %v1233, 0.0
  %v1238 = vmax.f32 %v1234, 0.0
  %v1239 = vmax.f32 %v1235, 0.0
  %v1240 = vmax.f32 %v1236, 0.0
  %v1241 = vmul.f32 %v1237, %v1237
  %v1242 = vmul.f32 %v1238, %v1238
  %v1243 = vmul.f32 %v1239, %v1239
  %v1244 = vmul.f32 %v1240, %v1240
  %v1245 = vsel %vm219, %v1241, 0.0
  %v1246 = vsel %vm219, %v1242, 0.0
  %v1247 = vadd.f32 %v1245, %v1246
  %v1248 = vsel %vm219, %v1243, 0.0
  %v1249 = vadd.f32 %v1247, %v1248
  %v1250 = vsel %vm219, %v1244, 0.0
  %v1251 = vadd.f32 %v1249, %v1250
  %v1252 = vrot.slane %v1251, 4
  %v1253 = vadd.f32 %v1251, %v1252
  %v1254 = vrot.slane %v1253, 2
  %v1255 = vadd.f32 %v1253, %v1254
  %v1256 = vrot.slane %v1255, 1
  %v1257 = vadd.f32 %v1255, %v1256
  %v1258 = vmul.f32 %v1257, %v1086
  %v1259 = vadd.f32 %v1258, 1e-10
  %v1260 = vrsqrt.pop %v1259
  %v1261 = vmul.f32 %v1237, %v1260
  %v1262 = vmul.f32 %v1238, %v1260
  %v1263 = vmul.f32 %v1239, %v1260
  %v1264 = vmul.f32 %v1240, %v1260
  %v1265 = vpack.c.bf16 %v1262, %v1261
  %v1266 = vpack.c.bf16 %v1264, %v1263
  %v1269 = vunpack.c.l.b16 %v1265
  %v1270 = vunpack.c.h.b16 %v1265
  %v1271 = vunpack.c.l.b16 %v1266
  %v1272 = vunpack.c.h.b16 %v1266
  %v1273 = vpack.c.b16 %v1269, %v1269
  %v1274 = vpack.c.b16 %v1270, %v1270
  %v1275 = vpack.c.b16 %v1271, %v1271
  %v1276 = vpack.c.b16 %v1272, %v1272
  %s1281 = scalar_lea.vmem %s4, 48
  %1282 = vst.msk [vmem:[%s1281] sm:$0xf] %vm1110, %v1273
  %1283 = vst.msk [vmem:[%s1281 + $0x4] sm:$0xf] %vm1110, %v1274
  %1284 = vst.msk [vmem:[%s1281 + $0x8] sm:$0xf] %vm1110, %v1275
  %1285 = vst.msk [vmem:[%s1281 + $0xc] sm:$0xf] %vm1110, %v1276
  // Predicated region
  $region18: #{generator_forward.5} parent=0 // pred_check
    _
  $region19: #{generator_forward.5} parent=0 // pred_check_branch
    %1287 = sbr.rel (0) target = $region21
  $region20: #{generator_forward.5} parent=0 // pred_region
    _
  $region21: #{generator_forward.5} parent=0 // pred_fallthru
    _
  // Predicated region
  $region22: #{generator_forward.5} parent=0 // pred_check
    _
  $region23: #{generator_forward.5} parent=0 // pred_check_branch
    %1289 = sbr.rel (0) target = $region25
  $region24: #{generator_forward.5} parent=0 // pred_region
    _
  $region25: #{generator_forward.5} parent=0 // pred_fallthru
    _

// kernel: generator_forward.4
$region0: #{generator_forward.4}
  #allocation0 [shape = 'u32[]', space=smem, size = 0x4, offset = 0x4, fixed_abs, tag = 'smem constant byte address 0x4 - core index']
  #allocation1 [shape = 'u32[144,128]{1,0:T(1,128)}', space=vmem, size = 0x12000, scoped, tag = 'internal scratch']
  %s0 = inlined_call_operand.vmem [shape: f32[20,2], index: 0, kind: input, shape index: {}]
  %s1 = inlined_call_operand.vmem [shape: f32[10,20], index: 1, kind: input, shape index: {}]
  %s2 = inlined_call_operand.vmem [shape: f32[10,1], index: 2, kind: input, shape index: {}]
  %s3 = inlined_call_operand.vmem [shape: f32[1024,10], index: 3, kind: input, shape index: {}]
  %s4 = inlined_call_operand.vmem [shape: f32[64,1], index: 4, kind: input, shape index: {}]
  %s5 = inlined_call_operand.vmem [shape: f32[64,1], index: 5, kind: input, shape index: {}]
  %s6 = inlined_call_operand.vmem [shape: bf16[16,64,2], index: 6, kind: output, shape index: {}]
  %s7 = sld [smem:[#allocation0]]
  $region34: #{generator_forward.4} parent=0
    _
  %s9 = ssub.s32 1, %s7
  %s10 = scalar_select 0, %s9, %s7
  // Predicated region
  $region2: #{generator_forward.4} parent=0 // pred_check
    _
  $region3: #{generator_forward.4} parent=0 // pred_check_branch
    %12 = sbr.rel (0) target = $region5
  $region4: #{generator_forward.4} parent=0 // pred_region
    _
  $region5: #{generator_forward.4} parent=0 // pred_fallthru
    _
  // Predicated region
  $region6: #{generator_forward.4} parent=0 // pred_check
    _
  $region7: #{generator_forward.4} parent=0 // pred_check_branch
    %14 = sbr.rel (0) target = $region9
  $region8: #{generator_forward.4} parent=0 // pred_region
    _
  $region9: #{generator_forward.4} parent=0 // pred_fallthru
    _
  // Predicated region
  $region10: #{generator_forward.4} parent=0 // pred_check
    _
  $region11: #{generator_forward.4} parent=0 // pred_check_branch
    %16 = sbr.rel (0) target = $region13
  $region12: #{generator_forward.4} parent=0 // pred_region
    _
  $region13: #{generator_forward.4} parent=0 // pred_fallthru
    _
  // Predicated region
  $region14: #{generator_forward.4} parent=0 // pred_check
    _
  $region15: #{generator_forward.4} parent=0 // pred_check_branch
    %18 = sbr.rel (0) target = $region17
  $region16: #{generator_forward.4} parent=0 // pred_region
    _
  $region17: #{generator_forward.4} parent=0 // pred_fallthru
    _
  // Predicated region
  $region18: #{generator_forward.4} parent=0 // pred_check
    _
  $region19: #{generator_forward.4} parent=0 // pred_check_branch
    %20 = sbr.rel (0) target = $region21
  $region20: #{generator_forward.4} parent=0 // pred_region
    _
  $region21: #{generator_forward.4} parent=0 // pred_fallthru
    _
  // Predicated region
  $region22: #{generator_forward.4} parent=0 // pred_check
    _
  $region23: #{generator_forward.4} parent=0 // pred_check_branch
    %22 = sbr.rel (0) target = $region25
  $region24: #{generator_forward.4} parent=0 // pred_region
    _
  $region25: #{generator_forward.4} parent=0 // pred_fallthru
    _
  %v23 = vld [vmem:[%s1] sm:$0xff]
  %v24 = vld [vmem:[%s1 + $0x8] sm:$0x3]
  %v25 = vld [vmem:[%s0] sm:$0xff]
  %v26 = vld [vmem:[%s0 + $0x8] sm:$0xff]
  %v27 = vld [vmem:[%s0 + $0x10] sm:$0xf]
  %v28 = vld [vmem:[%s2] sm:$0xff]
  %v29 = vld [vmem:[%s2 + $0x8] sm:$0x3]
  %31 = vset.pattern.permute.xlu0 0
  %32 = vperm.xlu0 %31, %v28
  %v33 = vpop.permute.xlu0 %32
  %36 = vset.pattern.permute.xlu0 0
  %37 = vperm.xlu0 %36, %v29
  %v38 = vpop.permute.xlu0 %37
  %vm40 = vcmask 162816
  %v42 = vsel %vm40, %v23, 0
  %v45 = vsel %vm40, %v24, 0
  %vm47 = vcmask 1043456
  %v49 = vsel %vm47, %v27, 0
  %51 = vmatprep.subr.mxu0 0.0
  %52 = vmatpush1.msra.mxu0 %v25
  %53 = vmatprep.subr.mxu0 0.0
  %54 = vmatpush1.msra.mxu0 %v26
  %55 = vmatprep.subr.mxu0 0.0
  %56 = vmatpush1.msra.mxu0 %v49
  %57 = vmatprep.subr.mxu0 0.0
  %58 = vmatpush1.msra.mxu0 0.0
  %59 = vmatprep.subr.mxu0 0.0
  %60 = vmatpush1.msra.mxu0 0.0
  %61 = vmatprep.subr.mxu0 0.0
  %62 = vmatpush1.msra.mxu0 0.0
  %63 = vmatprep.subr.mxu0 0.0
  %64 = vmatpush1.msra.mxu0 0.0
  %65 = vmatprep.subr.mxu0 0.0
  %66 = vmatpush1.msra.mxu0 0.0
  %67 = vmatprep.subr.mxu0 0.0
  %68 = vmatpush1.msra.mxu0 0.0
  %69 = vmatprep.subr.mxu0 0.0
  %70 = vmatpush1.msra.mxu0 0.0
  %71 = vmatprep.subr.mxu0 0.0
  %72 = vmatpush1.msra.mxu0 0.0
  %73 = vmatprep.subr.mxu0 0.0
  %74 = vmatpush1.msra.mxu0 0.0
  %75 = vmatprep.subr.mxu0 0.0
  %76 = vmatpush1.msra.mxu0 0.0
  %77 = vmatprep.subr.mxu0 0.0
  %78 = vmatpush1.msra.mxu0 0.0
  %79 = vmatprep.subr.mxu0 0.0
  %80 = vmatpush1.msra.mxu0 0.0
  %81 = vmatprep.subr.mxu0 0.0
  %82 = vmatpush1.msra.mxu0 0.0
  %83 = vmatprep.subr.mxu0 0.0
  %84 = vmatpush1.msra.mxu0 0.0
  %85 = vmatprep.subr.mxu0 0.0
  %86 = vmatpush1.msra.mxu0 0.0
  %87 = vmatprep.subr.mxu0 0.0
  %88 = vmatpush1.msra.mxu0 0.0
  %89 = vmatprep.subr.mxu0 0.0
  %90 = vmatpush1.msra.mxu0 0.0
  %91 = vmatprep.subr.mxu0 0.0
  %92 = vmatpush1.msra.mxu0 0.0
  %93 = vmatprep.subr.mxu0 0.0
  %94 = vmatpush1.msra.mxu0 0.0
  %95 = vmatprep.subr.mxu0 0.0
  %96 = vmatpush1.msra.mxu0 0.0
  %97 = vmatprep.subr.mxu0 0.0
  %98 = vmatpush1.msra.mxu0 0.0
  %99 = vmatprep.subr.mxu0 0.0
  %100 = vmatpush1.msra.mxu0 0.0
  %101 = vmatprep.subr.mxu0 0.0
  %102 = vmatpush1.msra.mxu0 0.0
  %103 = vmatprep.subr.mxu0 0.0
  %104 = vmatpush1.msra.mxu0 0.0
  %105 = vmatprep.subr.mxu0 0.0
  %106 = vmatpush1.msra.mxu0 0.0
  %107 = vmatprep.subr.mxu0 0.0
  %108 = vmatpush1.msra.mxu0 0.0
  %109 = vmatprep.subr.mxu0 0.0
  %110 = vmatpush1.msra.mxu0 0.0
  %111 = vmatprep.subr.mxu0 0.0
  %112 = vmatpush1.msra.mxu0 0.0
  %113 = vmatprep.subr.mxu0 0.0
  %114 = vmatpush1.msra.mxu0 0.0
  %115 = vmatprep.mubr.f32.mxu0 0.0
  %116 = vmatmul.mubr.f32.gmra.mrb[0].mxu0 %v42
  %v117 = vpop.f32.mrb[0].mxu0
  %v118 = vadd.f32 %v33, %v117
  %v119 = vpop.f32.mrb[0].mxu0
  %120 = vmatprep.mubr.f32.mxu0 0.0
  %121 = vmatmul.mubr.f32.gmra.mrb[0].mxu0 %v45
  %v122 = vpop.f32.mrb[0].mxu0
  %v123 = vadd.f32 %v38, %v122
  %v124 = vpop.f32.mrb[0].mxu0
  %125 = vdwg.mxu0
  %v126 = vmax.f32 %v118, 0.0
  %v127 = vmax.f32 %v123, 0.0
  %v128 = vmul.f32 %v126, %v126
  %v129 = vmul.f32 %v127, %v127
  %vm130 = vcmask 15360
  %v131 = vsel %vm130, %v128, 0.0
  %vm132 = vcmask 9216
  %v133 = vsel %vm132, %v129, 0.0
  %v134 = vadd.f32 %v131, %v133
  %v135 = vrot.slane %v134, 4
  %v136 = vadd.f32 %v134, %v135
  %v137 = vrot.slane %v136, 2
  %v138 = vadd.f32 %v136, %v137
  %v139 = vrot.slane %v138, 1
  %v140 = vadd.f32 %v138, %v139
  %v141 = vrcp.pop 10.0
  %v142 = vmul.f32 %v140, %v141
  %v143 = vadd.f32 %v142, 1e-10
  %v144 = vrsqrt.pop %v143
  %v145 = vmul.f32 %v126, %v144
  %v146 = vmul.f32 %v127, %v144
  %v147 = vld [vmem:[%s3] sm:$0xff]
  %v148 = vld [vmem:[%s3 + $0x8] sm:$0xff]
  %v149 = vld [vmem:[%s3 + $0x10] sm:$0xff]
  %v150 = vld [vmem:[%s3 + $0x18] sm:$0xff]
  %v151 = vld [vmem:[%s3 + $0x20] sm:$0xff]
  %v152 = vld [vmem:[%s3 + $0x28] sm:$0xff]
  %v153 = vld [vmem:[%s3 + $0x30] sm:$0xff]
  %v154 = vld [vmem:[%s3 + $0x38] sm:$0xff]
  %v155 = vld [vmem:[%s3 + $0x40] sm:$0xff]
  %v156 = vld [vmem:[%s3 + $0x48] sm:$0xff]
  %v157 = vld [vmem:[%s3 + $0x50] sm:$0xff]
  %v158 = vld [vmem:[%s3 + $0x58] sm:$0xff]
  %v159 = vld [vmem:[%s3 + $0x60] sm:$0xff]
  %v160 = vld [vmem:[%s3 + $0x68] sm:$0xff]
  %v161 = vld [vmem:[%s3 + $0x70] sm:$0xff]
  %v162 = vld [vmem:[%s3 + $0x78] sm:$0xff]
  %v163 = vld [vmem:[%s3 + $0x80] sm:$0xff]
  %v164 = vld [vmem:[%s3 + $0x88] sm:$0xff]
  %v165 = vld [vmem:[%s3 + $0x90] sm:$0xff]
  %v166 = vld [vmem:[%s3 + $0x98] sm:$0xff]
  %v167 = vld [vmem:[%s3 + $0xa0] sm:$0xff]
  %v168 = vld [vmem:[%s3 + $0xa8] sm:$0xff]
  %v169 = vld [vmem:[%s3 + $0xb0] sm:$0xff]
  %v170 = vld [vmem:[%s3 + $0xb8] sm:$0xff]
  %v171 = vld [vmem:[%s3 + $0xc0] sm:$0xff]
  %v172 = vld [vmem:[%s3 + $0xc8] sm:$0xff]
  %v173 = vld [vmem:[%s3 + $0xd0] sm:$0xff]
  %v174 = vld [vmem:[%s3 + $0xd8] sm:$0xff]
  %v175 = vld [vmem:[%s3 + $0xe0] sm:$0xff]
  %v176 = vld [vmem:[%s3 + $0xe8] sm:$0xff]
  %v177 = vld [vmem:[%s3 + $0xf0] sm:$0xff]
  %v178 = vld [vmem:[%s3 + $0xf8] sm:$0xff]
  %v179 = vld [vmem:[%s3 + $0x100] sm:$0xff]
  %v180 = vld [vmem:[%s3 + $0x108] sm:$0xff]
  %v181 = vld [vmem:[%s3 + $0x110] sm:$0xff]
  %v182 = vld [vmem:[%s3 + $0x118] sm:$0xff]
  %v183 = vld [vmem:[%s3 + $0x120] sm:$0xff]
  %v184 = vld [vmem:[%s3 + $0x128] sm:$0xff]
  %v185 = vld [vmem:[%s3 + $0x130] sm:$0xff]
  %v186 = vld [vmem:[%s3 + $0x138] sm:$0xff]
  %v187 = vld [vmem:[%s3 + $0x140] sm:$0xff]
  %v188 = vld [vmem:[%s3 + $0x148] sm:$0xff]
  %v189 = vld [vmem:[%s3 + $0x150] sm:$0xff]
  %v190 = vld [vmem:[%s3 + $0x158] sm:$0xff]
  %v191 = vld [vmem:[%s3 + $0x160] sm:$0xff]
  %v192 = vld [vmem:[%s3 + $0x168] sm:$0xff]
  %v193 = vld [vmem:[%s3 + $0x170] sm:$0xff]
  %v194 = vld [vmem:[%s3 + $0x178] sm:$0xff]
  %v195 = vld [vmem:[%s3 + $0x180] sm:$0xff]
  %v196 = vld [vmem:[%s3 + $0x188] sm:$0xff]
  %v197 = vld [vmem:[%s3 + $0x190] sm:$0xff]
  %v198 = vld [vmem:[%s3 + $0x198] sm:$0xff]
  %v199 = vld [vmem:[%s3 + $0x1a0] sm:$0xff]
  %v200 = vld [vmem:[%s3 + $0x1a8] sm:$0xff]
  %v201 = vld [vmem:[%s3 + $0x1b0] sm:$0xff]
  %v202 = vld [vmem:[%s3 + $0x1b8] sm:$0xff]
  %v203 = vld [vmem:[%s3 + $0x1c0] sm:$0xff]
  %v204 = vld [vmem:[%s3 + $0x1c8] sm:$0xff]
  %v205 = vld [vmem:[%s3 + $0x1d0] sm:$0xff]
  %v206 = vld [vmem:[%s3 + $0x1d8] sm:$0xff]
  %v207 = vld [vmem:[%s3 + $0x1e0] sm:$0xff]
  %v208 = vld [vmem:[%s3 + $0x1e8] sm:$0xff]
  %v209 = vld [vmem:[%s3 + $0x1f0] sm:$0xff]
  %v210 = vld [vmem:[%s3 + $0x1f8] sm:$0xff]
  %v211 = vld [vmem:[%s3 + $0x200] sm:$0xff]
  %v212 = vld [vmem:[%s3 + $0x208] sm:$0xff]
  %v213 = vld [vmem:[%s3 + $0x210] sm:$0xff]
  %v214 = vld [vmem:[%s3 + $0x218] sm:$0xff]
  %v215 = vld [vmem:[%s3 + $0x220] sm:$0xff]
  %v216 = vld [vmem:[%s3 + $0x228] sm:$0xff]
  %v217 = vld [vmem:[%s3 + $0x230] sm:$0xff]
  %v218 = vld [vmem:[%s3 + $0x238] sm:$0xff]
  %v219 = vld [vmem:[%s3 + $0x240] sm:$0xff]
  %v220 = vld [vmem:[%s3 + $0x248] sm:$0xff]
  %v221 = vld [vmem:[%s3 + $0x250] sm:$0xff]
  %v222 = vld [vmem:[%s3 + $0x258] sm:$0xff]
  %v223 = vld [vmem:[%s3 + $0x260] sm:$0xff]
  %v224 = vld [vmem:[%s3 + $0x268] sm:$0xff]
  %v225 = vld [vmem:[%s3 + $0x270] sm:$0xff]
  %v226 = vld [vmem:[%s3 + $0x278] sm:$0xff]
  %v227 = vld [vmem:[%s3 + $0x280] sm:$0xff]
  %v228 = vld [vmem:[%s3 + $0x288] sm:$0xff]
  %v229 = vld [vmem:[%s3 + $0x290] sm:$0xff]
  %v230 = vld [vmem:[%s3 + $0x298] sm:$0xff]
  %v231 = vld [vmem:[%s3 + $0x2a0] sm:$0xff]
  %v232 = vld [vmem:[%s3 + $0x2a8] sm:$0xff]
  %v233 = vld [vmem:[%s3 + $0x2b0] sm:$0xff]
  %v234 = vld [vmem:[%s3 + $0x2b8] sm:$0xff]
  %v235 = vld [vmem:[%s3 + $0x2c0] sm:$0xff]
  %v236 = vld [vmem:[%s3 + $0x2c8] sm:$0xff]
  %v237 = vld [vmem:[%s3 + $0x2d0] sm:$0xff]
  %v238 = vld [vmem:[%s3 + $0x2d8] sm:$0xff]
  %v239 = vld [vmem:[%s3 + $0x2e0] sm:$0xff]
  %v240 = vld [vmem:[%s3 + $0x2e8] sm:$0xff]
  %v241 = vld [vmem:[%s3 + $0x2f0] sm:$0xff]
  %v242 = vld [vmem:[%s3 + $0x2f8] sm:$0xff]
  %v243 = vld [vmem:[%s3 + $0x300] sm:$0xff]
  %v244 = vld [vmem:[%s3 + $0x308] sm:$0xff]
  %v245 = vld [vmem:[%s3 + $0x310] sm:$0xff]
  %v246 = vld [vmem:[%s3 + $0x318] sm:$0xff]
  %v247 = vld [vmem:[%s3 + $0x320] sm:$0xff]
  %v248 = vld [vmem:[%s3 + $0x328] sm:$0xff]
  %v249 = vld [vmem:[%s3 + $0x330] sm:$0xff]
  %v250 = vld [vmem:[%s3 + $0x338] sm:$0xff]
  %v251 = vld [vmem:[%s3 + $0x340] sm:$0xff]
  %v252 = vld [vmem:[%s3 + $0x348] sm:$0xff]
  %v253 = vld [vmem:[%s3 + $0x350] sm:$0xff]
  %v254 = vld [vmem:[%s3 + $0x358] sm:$0xff]
  %v255 = vld [vmem:[%s3 + $0x360] sm:$0xff]
  %v256 = vld [vmem:[%s3 + $0x368] sm:$0xff]
  %v257 = vld [vmem:[%s3 + $0x370] sm:$0xff]
  %v258 = vld [vmem:[%s3 + $0x378] sm:$0xff]
  %v259 = vld [vmem:[%s3 + $0x380] sm:$0xff]
  %v260 = vld [vmem:[%s3 + $0x388] sm:$0xff]
  %v261 = vld [vmem:[%s3 + $0x390] sm:$0xff]
  %v262 = vld [vmem:[%s3 + $0x398] sm:$0xff]
  %v263 = vld [vmem:[%s3 + $0x3a0] sm:$0xff]
  %v264 = vld [vmem:[%s3 + $0x3a8] sm:$0xff]
  %v265 = vld [vmem:[%s3 + $0x3b0] sm:$0xff]
  %v266 = vld [vmem:[%s3 + $0x3b8] sm:$0xff]
  %v267 = vld [vmem:[%s3 + $0x3c0] sm:$0xff]
  %v268 = vld [vmem:[%s3 + $0x3c8] sm:$0xff]
  %v269 = vld [vmem:[%s3 + $0x3d0] sm:$0xff]
  %v270 = vld [vmem:[%s3 + $0x3d8] sm:$0xff]
  %v271 = vld [vmem:[%s3 + $0x3e0] sm:$0xff]
  %v272 = vld [vmem:[%s3 + $0x3e8] sm:$0xff]
  %v273 = vld [vmem:[%s3 + $0x3f0] sm:$0xff]
  %v274 = vld [vmem:[%s3 + $0x3f8] sm:$0xff]
  %vm275 = vcmask 80896
  %v277 = vsel %vm275, %v147, 0
  %v280 = vsel %vm275, %v148, 0
  %v283 = vsel %vm275, %v149, 0
  %v286 = vsel %vm275, %v150, 0
  %v289 = vsel %vm275, %v151, 0
  %v292 = vsel %vm275, %v152, 0
  %v295 = vsel %vm275, %v153, 0
  %v298 = vsel %vm275, %v154, 0
  %v301 = vsel %vm275, %v155, 0
  %v304 = vsel %vm275, %v156, 0
  %v307 = vsel %vm275, %v157, 0
  %v310 = vsel %vm275, %v158, 0
  %v313 = vsel %vm275, %v159, 0
  %v316 = vsel %vm275, %v160, 0
  %v319 = vsel %vm275, %v161, 0
  %v322 = vsel %vm275, %v162, 0
  %v325 = vsel %vm275, %v163, 0
  %v328 = vsel %vm275, %v164, 0
  %v331 = vsel %vm275, %v165, 0
  %v334 = vsel %vm275, %v166, 0
  %v337 = vsel %vm275, %v167, 0
  %v340 = vsel %vm275, %v168, 0
  %v343 = vsel %vm275, %v169, 0
  %v346 = vsel %vm275, %v170, 0
  %v349 = vsel %vm275, %v171, 0
  %v352 = vsel %vm275, %v172, 0
  %v355 = vsel %vm275, %v173, 0
  %v358 = vsel %vm275, %v174, 0
  %v361 = vsel %vm275, %v175, 0
  %v364 = vsel %vm275, %v176, 0
  %v367 = vsel %vm275, %v177, 0
  %v370 = vsel %vm275, %v178, 0
  %v373 = vsel %vm275, %v179, 0
  %v376 = vsel %vm275, %v180, 0
  %v379 = vsel %vm275, %v181, 0
  %v382 = vsel %vm275, %v182, 0
  %v385 = vsel %vm275, %v183, 0
  %v388 = vsel %vm275, %v184, 0
  %v391 = vsel %vm275, %v185, 0
  %v394 = vsel %vm275, %v186, 0
  %v397 = vsel %vm275, %v187, 0
  %v400 = vsel %vm275, %v188, 0
  %v403 = vsel %vm275, %v189, 0
  %v406 = vsel %vm275, %v190, 0
  %v409 = vsel %vm275, %v191, 0
  %v412 = vsel %vm275, %v192, 0
  %v415 = vsel %vm275, %v193, 0
  %v418 = vsel %vm275, %v194, 0
  %v421 = vsel %vm275, %v195, 0
  %v424 = vsel %vm275, %v196, 0
  %v427 = vsel %vm275, %v197, 0
  %v430 = vsel %vm275, %v198, 0
  %v433 = vsel %vm275, %v199, 0
  %v436 = vsel %vm275, %v200, 0
  %v439 = vsel %vm275, %v201, 0
  %v442 = vsel %vm275, %v202, 0
  %v445 = vsel %vm275, %v203, 0
  %v448 = vsel %vm275, %v204, 0
  %v451 = vsel %vm275, %v205, 0
  %v454 = vsel %vm275, %v206, 0
  %v457 = vsel %vm275, %v207, 0
  %v460 = vsel %vm275, %v208, 0
  %v463 = vsel %vm275, %v209, 0
  %v466 = vsel %vm275, %v210, 0
  %v469 = vsel %vm275, %v211, 0
  %v472 = vsel %vm275, %v212, 0
  %v475 = vsel %vm275, %v213, 0
  %v478 = vsel %vm275, %v214, 0
  %v481 = vsel %vm275, %v215, 0
  %v484 = vsel %vm275, %v216, 0
  %v487 = vsel %vm275, %v217, 0
  %v490 = vsel %vm275, %v218, 0
  %v493 = vsel %vm275, %v219, 0
  %v496 = vsel %vm275, %v220, 0
  %v499 = vsel %vm275, %v221, 0
  %v502 = vsel %vm275, %v222, 0
  %v505 = vsel %vm275, %v223, 0
  %v508 = vsel %vm275, %v224, 0
  %v511 = vsel %vm275, %v225, 0
  %v514 = vsel %vm275, %v226, 0
  %v517 = vsel %vm275, %v227, 0
  %v520 = vsel %vm275, %v228, 0
  %v523 = vsel %vm275, %v229, 0
  %v526 = vsel %vm275, %v230, 0
  %v529 = vsel %vm275, %v231, 0
  %v532 = vsel %vm275, %v232, 0
  %v535 = vsel %vm275, %v233, 0
  %v538 = vsel %vm275, %v234, 0
  %v541 = vsel %vm275, %v235, 0
  %v544 = vsel %vm275, %v236, 0
  %v547 = vsel %vm275, %v237, 0
  %v550 = vsel %vm275, %v238, 0
  %v553 = vsel %vm275, %v239, 0
  %v556 = vsel %vm275, %v240, 0
  %v559 = vsel %vm275, %v241, 0
  %v562 = vsel %vm275, %v242, 0
  %v565 = vsel %vm275, %v243, 0
  %v568 = vsel %vm275, %v244, 0
  %v571 = vsel %vm275, %v245, 0
  %v574 = vsel %vm275, %v246, 0
  %v577 = vsel %vm275, %v247, 0
  %v580 = vsel %vm275, %v248, 0
  %v583 = vsel %vm275, %v249, 0
  %v586 = vsel %vm275, %v250, 0
  %v589 = vsel %vm275, %v251, 0
  %v592 = vsel %vm275, %v252, 0
  %v595 = vsel %vm275, %v253, 0
  %v598 = vsel %vm275, %v254, 0
  %v601 = vsel %vm275, %v255, 0
  %v604 = vsel %vm275, %v256, 0
  %v607 = vsel %vm275, %v257, 0
  %v610 = vsel %vm275, %v258, 0
  %v613 = vsel %vm275, %v259, 0
  %v616 = vsel %vm275, %v260, 0
  %v619 = vsel %vm275, %v261, 0
  %v622 = vsel %vm275, %v262, 0
  %v625 = vsel %vm275, %v263, 0
  %v628 = vsel %vm275, %v264, 0
  %v631 = vsel %vm275, %v265, 0
  %v634 = vsel %vm275, %v266, 0
  %v637 = vsel %vm275, %v267, 0
  %v640 = vsel %vm275, %v268, 0
  %v643 = vsel %vm275, %v269, 0
  %v646 = vsel %vm275, %v270, 0
  %v649 = vsel %vm275, %v271, 0
  %v652 = vsel %vm275, %v272, 0
  %v655 = vsel %vm275, %v273, 0
  %v658 = vsel %vm275, %v274, 0
  %vm660 = vcmask 1041408
  %v662 = vsel %vm660, %v146, 0
  %664 = vmatprep.subr.mxu0 0.0
  %665 = vmatpush1.msra.mxu0 %v145
  %666 = vmatprep.subr.mxu0 0.0
  %667 = vmatpush1.msra.mxu0 %v662
  %668 = vmatprep.subr.mxu0 0.0
  %669 = vmatpush1.msra.mxu0 0.0
  %670 = vmatprep.subr.mxu0 0.0
  %671 = vmatpush1.msra.mxu0 0.0
  %672 = vmatprep.subr.mxu0 0.0
  %673 = vmatpush1.msra.mxu0 0.0
  %674 = vmatprep.subr.mxu0 0.0
  %675 = vmatpush1.msra.mxu0 0.0
  %676 = vmatprep.subr.mxu0 0.0
  %677 = vmatpush1.msra.mxu0 0.0
  %678 = vmatprep.subr.mxu0 0.0
  %679 = vmatpush1.msra.mxu0 0.0
  %680 = vmatprep.subr.mxu0 0.0
  %681 = vmatpush1.msra.mxu0 0.0
  %682 = vmatprep.subr.mxu0 0.0
  %683 = vmatpush1.msra.mxu0 0.0
  %684 = vmatprep.subr.mxu0 0.0
  %685 = vmatpush1.msra.mxu0 0.0
  %686 = vmatprep.subr.mxu0 0.0
  %687 = vmatpush1.msra.mxu0 0.0
  %688 = vmatprep.subr.mxu0 0.0
  %689 = vmatpush1.msra.mxu0 0.0
  %690 = vmatprep.subr.mxu0 0.0
  %691 = vmatpush1.msra.mxu0 0.0
  %692 = vmatprep.subr.mxu0 0.0
  %693 = vmatpush1.msra.mxu0 0.0
  %694 = vmatprep.subr.mxu0 0.0
  %695 = vmatpush1.msra.mxu0 0.0
  %696 = vmatprep.subr.mxu0 0.0
  %697 = vmatpush1.msra.mxu0 0.0
  %698 = vmatprep.subr.mxu0 0.0
  %699 = vmatpush1.msra.mxu0 0.0
  %700 = vmatprep.subr.mxu0 0.0
  %701 = vmatpush1.msra.mxu0 0.0
  %702 = vmatprep.subr.mxu0 0.0
  %703 = vmatpush1.msra.mxu0 0.0
  %704 = vmatprep.subr.mxu0 0.0
  %705 = vmatpush1.msra.mxu0 0.0
  %706 = vmatprep.subr.mxu0 0.0
  %707 = vmatpush1.msra.mxu0 0.0
  %708 = vmatprep.subr.mxu0 0.0
  %709 = vmatpush1.msra.mxu0 0.0
  %710 = vmatprep.subr.mxu0 0.0
  %711 = vmatpush1.msra.mxu0 0.0
  %712 = vmatprep.subr.mxu0 0.0
  %713 = vmatpush1.msra.mxu0 0.0
  %714 = vmatprep.subr.mxu0 0.0
  %715 = vmatpush1.msra.mxu0 0.0
  %716 = vmatprep.subr.mxu0 0.0
  %717 = vmatpush1.msra.mxu0 0.0
  %718 = vmatprep.subr.mxu0 0.0
  %719 = vmatpush1.msra.mxu0 0.0
  %720 = vmatprep.subr.mxu0 0.0
  %721 = vmatpush1.msra.mxu0 0.0
  %722 = vmatprep.subr.mxu0 0.0
  %723 = vmatpush1.msra.mxu0 0.0
  %724 = vmatprep.subr.mxu0 0.0
  %725 = vmatpush1.msra.mxu0 0.0
  %726 = vmatprep.subr.mxu0 0.0
  %727 = vmatpush1.msra.mxu0 0.0
  %728 = vmatprep.mubr.f32.mxu0 0.0
  %729 = vmatmul.mubr.f32.gmra.mrb[0].mxu0 %v277
  %v730 = vpop.f32.mrb[0].mxu0
  %v731 = vadd.f32 0.0, %v730
  %v732 = vpop.f32.mrb[0].mxu0
  %733 = vmatprep.mubr.f32.mxu0 0.0
  %734 = vmatmul.mubr.f32.gmra.mrb[0].mxu0 %v280
  %v735 = vpop.f32.mrb[0].mxu0
  %v736 = vadd.f32 0.0, %v735
  %v737 = vpop.f32.mrb[0].mxu0
  %738 = vmatprep.mubr.f32.mxu0 0.0
  %739 = vmatmul.mubr.f32.gmra.mrb[0].mxu0 %v283
  %v740 = vpop.f32.mrb[0].mxu0
  %v741 = vadd.f32 0.0, %v740
  %v742 = vpop.f32.mrb[0].mxu0
  %743 = vmatprep.mubr.f32.mxu0 0.0
  %744 = vmatmul.mubr.f32.gmra.mrb[0].mxu0 %v286
  %v745 = vpop.f32.mrb[0].mxu0
  %v746 = vadd.f32 0.0, %v745
  %v747 = vpop.f32.mrb[0].mxu0
  %748 = vmatprep.mubr.f32.mxu0 0.0
  %749 = vmatmul.mubr.f32.gmra.mrb[0].mxu0 %v289
  %v750 = vpop.f32.mrb[0].mxu0
  %v751 = vadd.f32 0.0, %v750
  %v752 = vpop.f32.mrb[0].mxu0
  %753 = vmatprep.mubr.f32.mxu0 0.0
  %754 = vmatmul.mubr.f32.gmra.mrb[0].mxu0 %v292
  %v755 = vpop.f32.mrb[0].mxu0
  %v756 = vadd.f32 0.0, %v755
  %v757 = vpop.f32.mrb[0].mxu0
  %758 = vmatprep.mubr.f32.mxu0 0.0
  %759 = vmatmul.mubr.f32.gmra.mrb[0].mxu0 %v295
  %v760 = vpop.f32.mrb[0].mxu0
  %v761 = vadd.f32 0.0, %v760
  %v762 = vpop.f32.mrb[0].mxu0
  %763 = vmatprep.mubr.f32.mxu0 0.0
  %764 = vmatmul.mubr.f32.gmra.mrb[0].mxu0 %v298
  %v765 = vpop.f32.mrb[0].mxu0
  %v766 = vadd.f32 0.0, %v765
  %v767 = vpop.f32.mrb[0].mxu0
  %768 = vmatprep.mubr.f32.mxu0 0.0
  %769 = vmatmul.mubr.f32.gmra.mrb[0].mxu0 %v301
  %v770 = vpop.f32.mrb[0].mxu0
  %v771 = vadd.f32 0.0, %v770
  %v772 = vpop.f32.mrb[0].mxu0
  %773 = vmatprep.mubr.f32.mxu0 0.0
  %774 = vmatmul.mubr.f32.gmra.mrb[0].mxu0 %v304
  %v775 = vpop.f32.mrb[0].mxu0
  %v776 = vadd.f32 0.0, %v775
  %v777 = vpop.f32.mrb[0].mxu0
  %778 = vmatprep.mubr.f32.mxu0 0.0
  %779 = vmatmul.mubr.f32.gmra.mrb[0].mxu0 %v307
  %v780 = vpop.f32.mrb[0].mxu0
  %v781 = vadd.f32 0.0, %v780
  %v782 = vpop.f32.mrb[0].mxu0
  %783 = vmatprep.mubr.f32.mxu0 0.0
  %784 = vmatmul.mubr.f32.gmra.mrb[0].mxu0 %v310
  %v785 = vpop.f32.mrb[0].mxu0
  %v786 = vadd.f32 0.0, %v785
  %v787 = vpop.f32.mrb[0].mxu0
  %788 = vmatprep.mubr.f32.mxu0 0.0
  %789 = vmatmul.mubr.f32.gmra.mrb[0].mxu0 %v313
  %v790 = vpop.f32.mrb[0].mxu0
  %v791 = vadd.f32 0.0, %v790
  %v792 = vpop.f32.mrb[0].mxu0
  %793 = vmatprep.mubr.f32.mxu0 0.0
  %794 = vmatmul.mubr.f32.gmra.mrb[0].mxu0 %v316
  %v795 = vpop.f32.mrb[0].mxu0
  %v796 = vadd.f32 0.0, %v795
  %v797 = vpop.f32.mrb[0].mxu0
  %798 = vmatprep.mubr.f32.mxu0 0.0
  %799 = vmatmul.mubr.f32.gmra.mrb[0].mxu0 %v319
  %v800 = vpop.f32.mrb[0].mxu0
  %v801 = vadd.f32 0.0, %v800
  %v802 = vpop.f32.mrb[0].mxu0
  %803 = vmatprep.mubr.f32.mxu0 0.0
  %804 = vmatmul.mubr.f32.gmra.mrb[0].mxu0 %v322
  %v805 = vpop.f32.mrb[0].mxu0
  %v806 = vadd.f32 0.0, %v805
  %v807 = vpop.f32.mrb[0].mxu0
  %808 = vmatprep.mubr.f32.mxu0 0.0
  %809 = vmatmul.mubr.f32.gmra.mrb[0].mxu0 %v325
  %v810 = vpop.f32.mrb[0].mxu0
  %v811 = vadd.f32 0.0, %v810
  %v812 = vpop.f32.mrb[0].mxu0
  %813 = vmatprep.mubr.f32.mxu0 0.0
  %814 = vmatmul.mubr.f32.gmra.mrb[0].mxu0 %v328
  %v815 = vpop.f32.mrb[0].mxu0
  %v816 = vadd.f32 0.0, %v815
  %v817 = vpop.f32.mrb[0].mxu0
  %818 = vmatprep.mubr.f32.mxu0 0.0
  %819 = vmatmul.mubr.f32.gmra.mrb[0].mxu0 %v331
  %v820 = vpop.f32.mrb[0].mxu0
  %v821 = vadd.f32 0.0, %v820
  %v822 = vpop.f32.mrb[0].mxu0
  %823 = vmatprep.mubr.f32.mxu0 0.0
  %824 = vmatmul.mubr.f32.gmra.mrb[0].mxu0 %v334
  %v825 = vpop.f32.mrb[0].mxu0
  %v826 = vadd.f32 0.0, %v825
  %v827 = vpop.f32.mrb[0].mxu0
  %828 = vmatprep.mubr.f32.mxu0 0.0
  %829 = vmatmul.mubr.f32.gmra.mrb[0].mxu0 %v337
  %v830 = vpop.f32.mrb[0].mxu0
  %v831 = vadd.f32 0.0, %v830
  %v832 = vpop.f32.mrb[0].mxu0
  %833 = vmatprep.mubr.f32.mxu0 0.0
  %834 = vmatmul.mubr.f32.gmra.mrb[0].mxu0 %v340
  %v835 = vpop.f32.mrb[0].mxu0
  %v836 = vadd.f32 0.0, %v835
  %v837 = vpop.f32.mrb[0].mxu0
  %838 = vmatprep.mubr.f32.mxu0 0.0
  %839 = vmatmul.mubr.f32.gmra.mrb[0].mxu0 %v343
  %v840 = vpop.f32.mrb[0].mxu0
  %v841 = vadd.f32 0.0, %v840
  %v842 = vpop.f32.mrb[0].mxu0
  %843 = vmatprep.mubr.f32.mxu0 0.0
  %844 = vmatmul.mubr.f32.gmra.mrb[0].mxu0 %v346
  %v845 = vpop.f32.mrb[0].mxu0
  %v846 = vadd.f32 0.0, %v845
  %v847 = vpop.f32.mrb[0].mxu0
  %848 = vmatprep.mubr.f32.mxu0 0.0
  %849 = vmatmul.mubr.f32.gmra.mrb[0].mxu0 %v349
  %v850 = vpop.f32.mrb[0].mxu0
  %v851 = vadd.f32 0.0, %v850
  %v852 = vpop.f32.mrb[0].mxu0
  %853 = vmatprep.mubr.f32.mxu0 0.0
  %854 = vmatmul.mubr.f32.gmra.mrb[0].mxu0 %v352
  %v855 = vpop.f32.mrb[0].mxu0
  %v856 = vadd.f32 0.0, %v855
  %v857 = vpop.f32.mrb[0].mxu0
  %858 = vmatprep.mubr.f32.mxu0 0.0
  %859 = vmatmul.mubr.f32.gmra.mrb[0].mxu0 %v355
  %v860 = vpop.f32.mrb[0].mxu0
  %v861 = vadd.f32 0.0, %v860
  %v862 = vpop.f32.mrb[0].mxu0
  %863 = vmatprep.mubr.f32.mxu0 0.0
  %864 = vmatmul.mubr.f32.gmra.mrb[0].mxu0 %v358
  %v865 = vpop.f32.mrb[0].mxu0
  %v866 = vadd.f32 0.0, %v865
  %v867 = vpop.f32.mrb[0].mxu0
  %868 = vmatprep.mubr.f32.mxu0 0.0
  %869 = vmatmul.mubr.f32.gmra.mrb[0].mxu0 %v361
  %v870 = vpop.f32.mrb[0].mxu0
  %v871 = vadd.f32 0.0, %v870
  %v872 = vpop.f32.mrb[0].mxu0
  %873 = vmatprep.mubr.f32.mxu0 0.0
  %874 = vmatmul.mubr.f32.gmra.mrb[0].mxu0 %v364
  %v875 = vpop.f32.mrb[0].mxu0
  %v876 = vadd.f32 0.0, %v875
  %v877 = vpop.f32.mrb[0].mxu0
  %878 = vmatprep.mubr.f32.mxu0 0.0
  %879 = vmatmul.mubr.f32.gmra.mrb[0].mxu0 %v367
  %v880 = vpop.f32.mrb[0].mxu0
  %v881 = vadd.f32 0.0, %v880
  %v882 = vpop.f32.mrb[0].mxu0
  %883 = vmatprep.mubr.f32.mxu0 0.0
  %884 = vmatmul.mubr.f32.gmra.mrb[0].mxu0 %v370
  %v885 = vpop.f32.mrb[0].mxu0
  %v886 = vadd.f32 0.0, %v885
  %v887 = vpop.f32.mrb[0].mxu0
  %888 = vmatprep.mubr.f32.mxu0 0.0
  %889 = vmatmul.mubr.f32.gmra.mrb[0].mxu0 %v373
  %v890 = vpop.f32.mrb[0].mxu0
  %v891 = vadd.f32 0.0, %v890
  %v892 = vpop.f32.mrb[0].mxu0
  %893 = vmatprep.mubr.f32.mxu0 0.0
  %894 = vmatmul.mubr.f32.gmra.mrb[0].mxu0 %v376
  %v895 = vpop.f32.mrb[0].mxu0
  %v896 = vadd.f32 0.0, %v895
  %v897 = vpop.f32.mrb[0].mxu0
  %898 = vmatprep.mubr.f32.mxu0 0.0
  %899 = vmatmul.mubr.f32.gmra.mrb[0].mxu0 %v379
  %v900 = vpop.f32.mrb[0].mxu0
  %v901 = vadd.f32 0.0, %v900
  %v902 = vpop.f32.mrb[0].mxu0
  %903 = vmatprep.mubr.f32.mxu0 0.0
  %904 = vmatmul.mubr.f32.gmra.mrb[0].mxu0 %v382
  %v905 = vpop.f32.mrb[0].mxu0
  %v906 = vadd.f32 0.0, %v905
  %v907 = vpop.f32.mrb[0].mxu0
  %908 = vmatprep.mubr.f32.mxu0 0.0
  %909 = vmatmul.mubr.f32.gmra.mrb[0].mxu0 %v385
  %v910 = vpop.f32.mrb[0].mxu0
  %v911 = vadd.f32 0.0, %v910
  %v912 = vpop.f32.mrb[0].mxu0
  %913 = vmatprep.mubr.f32.mxu0 0.0
  %914 = vmatmul.mubr.f32.gmra.mrb[0].mxu0 %v388
  %v915 = vpop.f32.mrb[0].mxu0
  %v916 = vadd.f32 0.0, %v915
  %v917 = vpop.f32.mrb[0].mxu0
  %918 = vmatprep.mubr.f32.mxu0 0.0
  %919 = vmatmul.mubr.f32.gmra.mrb[0].mxu0 %v391
  %v920 = vpop.f32.mrb[0].mxu0
  %v921 = vadd.f32 0.0, %v920
  %v922 = vpop.f32.mrb[0].mxu0
  %923 = vmatprep.mubr.f32.mxu0 0.0
  %924 = vmatmul.mubr.f32.gmra.mrb[0].mxu0 %v394
  %v925 = vpop.f32.mrb[0].mxu0
  %v926 = vadd.f32 0.0, %v925
  %v927 = vpop.f32.mrb[0].mxu0
  %928 = vmatprep.mubr.f32.mxu0 0.0
  %929 = vmatmul.mubr.f32.gmra.mrb[0].mxu0 %v397
  %v930 = vpop.f32.mrb[0].mxu0
  %v931 = vadd.f32 0.0, %v930
  %v932 = vpop.f32.mrb[0].mxu0
  %933 = vmatprep.mubr.f32.mxu0 0.0
  %934 = vmatmul.mubr.f32.gmra.mrb[0].mxu0 %v400
  %v935 = vpop.f32.mrb[0].mxu0
  %v936 = vadd.f32 0.0, %v935
  %v937 = vpop.f32.mrb[0].mxu0
  %938 = vmatprep.mubr.f32.mxu0 0.0
  %939 = vmatmul.mubr.f32.gmra.mrb[0].mxu0 %v403
  %v940 = vpop.f32.mrb[0].mxu0
  %v941 = vadd.f32 0.0, %v940
  %v942 = vpop.f32.mrb[0].mxu0
  %943 = vmatprep.mubr.f32.mxu0 0.0
  %944 = vmatmul.mubr.f32.gmra.mrb[0].mxu0 %v406
  %v945 = vpop.f32.mrb[0].mxu0
  %v946 = vadd.f32 0.0, %v945
  %v947 = vpop.f32.mrb[0].mxu0
  %948 = vmatprep.mubr.f32.mxu0 0.0
  %949 = vmatmul.mubr.f32.gmra.mrb[0].mxu0 %v409
  %v950 = vpop.f32.mrb[0].mxu0
  %v951 = vadd.f32 0.0, %v950
  %v952 = vpop.f32.mrb[0].mxu0
  %953 = vmatprep.mubr.f32.mxu0 0.0
  %954 = vmatmul.mubr.f32.gmra.mrb[0].mxu0 %v412
  %v955 = vpop.f32.mrb[0].mxu0
  %v956 = vadd.f32 0.0, %v955
  %v957 = vpop.f32.mrb[0].mxu0
  %958 = vmatprep.mubr.f32.mxu0 0.0
  %959 = vmatmul.mubr.f32.gmra.mrb[0].mxu0 %v415
  %v960 = vpop.f32.mrb[0].mxu0
  %v961 = vadd.f32 0.0, %v960
  %v962 = vpop.f32.mrb[0].mxu0
  %963 = vmatprep.mubr.f32.mxu0 0.0
  %964 = vmatmul.mubr.f32.gmra.mrb[0].mxu0 %v418
  %v965 = vpop.f32.mrb[0].mxu0
  %v966 = vadd.f32 0.0, %v965
  %v967 = vpop.f32.mrb[0].mxu0
  %968 = vmatprep.mubr.f32.mxu0 0.0
  %969 = vmatmul.mubr.f32.gmra.mrb[0].mxu0 %v421
  %v970 = vpop.f32.mrb[0].mxu0
  %v971 = vadd.f32 0.0, %v970
  %v972 = vpop.f32.mrb[0].mxu0
  %973 = vmatprep.mubr.f32.mxu0 0.0
  %974 = vmatmul.mubr.f32.gmra.mrb[0].mxu0 %v424
  %v975 = vpop.f32.mrb[0].mxu0
  %v976 = vadd.f32 0.0, %v975
  %v977 = vpop.f32.mrb[0].mxu0
  %978 = vmatprep.mubr.f32.mxu0 0.0
  %979 = vmatmul.mubr.f32.gmra.mrb[0].mxu0 %v427
  %v980 = vpop.f32.mrb[0].mxu0
  %v981 = vadd.f32 0.0, %v980
  %v982 = vpop.f32.mrb[0].mxu0
  %983 = vmatprep.mubr.f32.mxu0 0.0
  %984 = vmatmul.mubr.f32.gmra.mrb[0].mxu0 %v430
  %v985 = vpop.f32.mrb[0].mxu0
  %v986 = vadd.f32 0.0, %v985
  %v987 = vpop.f32.mrb[0].mxu0
  %988 = vmatprep.mubr.f32.mxu0 0.0
  %989 = vmatmul.mubr.f32.gmra.mrb[0].mxu0 %v433
  %v990 = vpop.f32.mrb[0].mxu0
  %v991 = vadd.f32 0.0, %v990
  %v992 = vpop.f32.mrb[0].mxu0
  %993 = vmatprep.mubr.f32.mxu0 0.0
  %994 = vmatmul.mubr.f32.gmra.mrb[0].mxu0 %v436
  %v995 = vpop.f32.mrb[0].mxu0
  %v996 = vadd.f32 0.0, %v995
  %v997 = vpop.f32.mrb[0].mxu0
  %998 = vmatprep.mubr.f32.mxu0 0.0
  %999 = vmatmul.mubr.f32.gmra.mrb[0].mxu0 %v439
  %v1000 = vpop.f32.mrb[0].mxu0
  %v1001 = vadd.f32 0.0, %v1000
  %v1002 = vpop.f32.mrb[0].mxu0
  %1003 = vmatprep.mubr.f32.mxu0 0.0
  %1004 = vmatmul.mubr.f32.gmra.mrb[0].mxu0 %v442
  %v1005 = vpop.f32.mrb[0].mxu0
  %v1006 = vadd.f32 0.0, %v1005
  %v1007 = vpop.f32.mrb[0].mxu0
  %1008 = vmatprep.mubr.f32.mxu0 0.0
  %1009 = vmatmul.mubr.f32.gmra.mrb[0].mxu0 %v445
  %v1010 = vpop.f32.mrb[0].mxu0
  %v1011 = vadd.f32 0.0, %v1010
  %v1012 = vpop.f32.mrb[0].mxu0
  %1013 = vmatprep.mubr.f32.mxu0 0.0
  %1014 = vmatmul.mubr.f32.gmra.mrb[0].mxu0 %v448
  %v1015 = vpop.f32.mrb[0].mxu0
  %v1016 = vadd.f32 0.0, %v1015
  %v1017 = vpop.f32.mrb[0].mxu0
  %1018 = vmatprep.mubr.f32.mxu0 0.0
  %1019 = vmatmul.mubr.f32.gmra.mrb[0].mxu0 %v451
  %v1020 = vpop.f32.mrb[0].mxu0
  %v1021 = vadd.f32 0.0, %v1020
  %v1022 = vpop.f32.mrb[0].mxu0
  %1023 = vmatprep.mubr.f32.mxu0 0.0
  %1024 = vmatmul.mubr.f32.gmra.mrb[0].mxu0 %v454
  %v1025 = vpop.f32.mrb[0].mxu0
  %v1026 = vadd.f32 0.0, %v1025
  %v1027 = vpop.f32.mrb[0].mxu0
  %1028 = vmatprep.mubr.f32.mxu0 0.0
  %1029 = vmatmul.mubr.f32.gmra.mrb[0].mxu0 %v457
  %v1030 = vpop.f32.mrb[0].mxu0
  %v1031 = vadd.f32 0.0, %v1030
  %v1032 = vpop.f32.mrb[0].mxu0
  %1033 = vmatprep.mubr.f32.mxu0 0.0
  %1034 = vmatmul.mubr.f32.gmra.mrb[0].mxu0 %v460
  %v1035 = vpop.f32.mrb[0].mxu0
  %v1036 = vadd.f32 0.0, %v1035
  %v1037 = vpop.f32.mrb[0].mxu0
  %1038 = vmatprep.mubr.f32.mxu0 0.0
  %1039 = vmatmul.mubr.f32.gmra.mrb[0].mxu0 %v463
  %v1040 = vpop.f32.mrb[0].mxu0
  %v1041 = vadd.f32 0.0, %v1040
  %v1042 = vpop.f32.mrb[0].mxu0
  %1043 = vmatprep.mubr.f32.mxu0 0.0
  %1044 = vmatmul.mubr.f32.gmra.mrb[0].mxu0 %v466
  %v1045 = vpop.f32.mrb[0].mxu0
  %v1046 = vadd.f32 0.0, %v1045
  %v1047 = vpop.f32.mrb[0].mxu0
  %1048 = vmatprep.mubr.f32.mxu0 0.0
  %1049 = vmatmul.mubr.f32.gmra.mrb[0].mxu0 %v469
  %v1050 = vpop.f32.mrb[0].mxu0
  %v1051 = vadd.f32 0.0, %v1050
  %v1052 = vpop.f32.mrb[0].mxu0
  %1053 = vmatprep.mubr.f32.mxu0 0.0
  %1054 = vmatmul.mubr.f32.gmra.mrb[0].mxu0 %v472
  %v1055 = vpop.f32.mrb[0].mxu0
  %v1056 = vadd.f32 0.0, %v1055
  %v1057 = vpop.f32.mrb[0].mxu0
  %1058 = vmatprep.mubr.f32.mxu0 0.0
  %1059 = vmatmul.mubr.f32.gmra.mrb[0].mxu0 %v475
  %v1060 = vpop.f32.mrb[0].mxu0
  %v1061 = vadd.f32 0.0, %v1060
  %v1062 = vpop.f32.mrb[0].mxu0
  %1063 = vmatprep.mubr.f32.mxu0 0.0
  %1064 = vmatmul.mubr.f32.gmra.mrb[0].mxu0 %v478
  %v1065 = vpop.f32.mrb[0].mxu0
  %v1066 = vadd.f32 0.0, %v1065
  %v1067 = vpop.f32.mrb[0].mxu0
  %1068 = vmatprep.mubr.f32.mxu0 0.0
  %1069 = vmatmul.mubr.f32.gmra.mrb[0].mxu0 %v481
  %v1070 = vpop.f32.mrb[0].mxu0
  %v1071 = vadd.f32 0.0, %v1070
  %v1072 = vpop.f32.mrb[0].mxu0
  %1073 = vmatprep.mubr.f32.mxu0 0.0
  %1074 = vmatmul.mubr.f32.gmra.mrb[0].mxu0 %v484
  %v1075 = vpop.f32.mrb[0].mxu0
  %v1076 = vadd.f32 0.0, %v1075
  %v1077 = vpop.f32.mrb[0].mxu0
  %1078 = vmatprep.mubr.f32.mxu0 0.0
  %1079 = vmatmul.mubr.f32.gmra.mrb[0].mxu0 %v487
  %v1080 = vpop.f32.mrb[0].mxu0
  %v1081 = vadd.f32 0.0, %v1080
  %v1082 = vpop.f32.mrb[0].mxu0
  %1083 = vmatprep.mubr.f32.mxu0 0.0
  %1084 = vmatmul.mubr.f32.gmra.mrb[0].mxu0 %v490
  %v1085 = vpop.f32.mrb[0].mxu0
  %v1086 = vadd.f32 0.0, %v1085
  %v1087 = vpop.f32.mrb[0].mxu0
  %1088 = vmatprep.mubr.f32.mxu0 0.0
  %1089 = vmatmul.mubr.f32.gmra.mrb[0].mxu0 %v493
  %v1090 = vpop.f32.mrb[0].mxu0
  %v1091 = vadd.f32 0.0, %v1090
  %v1092 = vpop.f32.mrb[0].mxu0
  %1093 = vmatprep.mubr.f32.mxu0 0.0
  %1094 = vmatmul.mubr.f32.gmra.mrb[0].mxu0 %v496
  %v1095 = vpop.f32.mrb[0].mxu0
  %v1096 = vadd.f32 0.0, %v1095
  %v1097 = vpop.f32.mrb[0].mxu0
  %1098 = vmatprep.mubr.f32.mxu0 0.0
  %1099 = vmatmul.mubr.f32.gmra.mrb[0].mxu0 %v499
  %v1100 = vpop.f32.mrb[0].mxu0
  %v1101 = vadd.f32 0.0, %v1100
  %v1102 = vpop.f32.mrb[0].mxu0
  %1103 = vmatprep.mubr.f32.mxu0 0.0
  %1104 = vmatmul.mubr.f32.gmra.mrb[0].mxu0 %v502
  %v1105 = vpop.f32.mrb[0].mxu0
  %v1106 = vadd.f32 0.0, %v1105
  %v1107 = vpop.f32.mrb[0].mxu0
  %1108 = vmatprep.mubr.f32.mxu0 0.0
  %1109 = vmatmul.mubr.f32.gmra.mrb[0].mxu0 %v505
  %v1110 = vpop.f32.mrb[0].mxu0
  %v1111 = vadd.f32 0.0, %v1110
  %v1112 = vpop.f32.mrb[0].mxu0
  %1113 = vmatprep.mubr.f32.mxu0 0.0
  %1114 = vmatmul.mubr.f32.gmra.mrb[0].mxu0 %v508
  %v1115 = vpop.f32.mrb[0].mxu0
  %v1116 = vadd.f32 0.0, %v1115
  %v1117 = vpop.f32.mrb[0].mxu0
  %1118 = vmatprep.mubr.f32.mxu0 0.0
  %1119 = vmatmul.mubr.f32.gmra.mrb[0].mxu0 %v511
  %v1120 = vpop.f32.mrb[0].mxu0
  %v1121 = vadd.f32 0.0, %v1120
  %v1122 = vpop.f32.mrb[0].mxu0
  %1123 = vmatprep.mubr.f32.mxu0 0.0
  %1124 = vmatmul.mubr.f32.gmra.mrb[0].mxu0 %v514
  %v1125 = vpop.f32.mrb[0].mxu0
  %v1126 = vadd.f32 0.0, %v1125
  %v1127 = vpop.f32.mrb[0].mxu0
  %1128 = vmatprep.mubr.f32.mxu0 0.0
  %1129 = vmatmul.mubr.f32.gmra.mrb[0].mxu0 %v517
  %v1130 = vpop.f32.mrb[0].mxu0
  %v1131 = vadd.f32 0.0, %v1130
  %v1132 = vpop.f32.mrb[0].mxu0
  %1133 = vmatprep.mubr.f32.mxu0 0.0
  %1134 = vmatmul.mubr.f32.gmra.mrb[0].mxu0 %v520
  %v1135 = vpop.f32.mrb[0].mxu0
  %v1136 = vadd.f32 0.0, %v1135
  %v1137 = vpop.f32.mrb[0].mxu0
  %1138 = vmatprep.mubr.f32.mxu0 0.0
  %1139 = vmatmul.mubr.f32.gmra.mrb[0].mxu0 %v523
  %v1140 = vpop.f32.mrb[0].mxu0
  %v1141 = vadd.f32 0.0, %v1140
  %v1142 = vpop.f32.mrb[0].mxu0
  %1143 = vmatprep.mubr.f32.mxu0 0.0
  %1144 = vmatmul.mubr.f32.gmra.mrb[0].mxu0 %v526
  %v1145 = vpop.f32.mrb[0].mxu0
  %v1146 = vadd.f32 0.0, %v1145
  %v1147 = vpop.f32.mrb[0].mxu0
  %1148 = vmatprep.mubr.f32.mxu0 0.0
  %1149 = vmatmul.mubr.f32.gmra.mrb[0].mxu0 %v529
  %v1150 = vpop.f32.mrb[0].mxu0
  %v1151 = vadd.f32 0.0, %v1150
  %v1152 = vpop.f32.mrb[0].mxu0
  %1153 = vmatprep.mubr.f32.mxu0 0.0
  %1154 = vmatmul.mubr.f32.gmra.mrb[0].mxu0 %v532
  %v1155 = vpop.f32.mrb[0].mxu0
  %v1156 = vadd.f32 0.0, %v1155
  %v1157 = vpop.f32.mrb[0].mxu0
  %1158 = vmatprep.mubr.f32.mxu0 0.0
  %1159 = vmatmul.mubr.f32.gmra.mrb[0].mxu0 %v535
  %v1160 = vpop.f32.mrb[0].mxu0
  %v1161 = vadd.f32 0.0, %v1160
  %v1162 = vpop.f32.mrb[0].mxu0
  %1163 = vmatprep.mubr.f32.mxu0 0.0
  %1164 = vmatmul.mubr.f32.gmra.mrb[0].mxu0 %v538
  %v1165 = vpop.f32.mrb[0].mxu0
  %v1166 = vadd.f32 0.0, %v1165
  %v1167 = vpop.f32.mrb[0].mxu0
  %1168 = vmatprep.mubr.f32.mxu0 0.0
  %1169 = vmatmul.mubr.f32.gmra.mrb[0].mxu0 %v541
  %v1170 = vpop.f32.mrb[0].mxu0
  %v1171 = vadd.f32 0.0, %v1170
  %v1172 = vpop.f32.mrb[0].mxu0
  %1173 = vmatprep.mubr.f32.mxu0 0.0
  %1174 = vmatmul.mubr.f32.gmra.mrb[0].mxu0 %v544
  %v1175 = vpop.f32.mrb[0].mxu0
  %v1176 = vadd.f32 0.0, %v1175
  %v1177 = vpop.f32.mrb[0].mxu0
  %1178 = vmatprep.mubr.f32.mxu0 0.0
  %1179 = vmatmul.mubr.f32.gmra.mrb[0].mxu0 %v547
  %v1180 = vpop.f32.mrb[0].mxu0
  %v1181 = vadd.f32 0.0, %v1180
  %v1182 = vpop.f32.mrb[0].mxu0
  %1183 = vmatprep.mubr.f32.mxu0 0.0
  %1184 = vmatmul.mubr.f32.gmra.mrb[0].mxu0 %v550
  %v1185 = vpop.f32.mrb[0].mxu0
  %v1186 = vadd.f32 0.0, %v1185
  %v1187 = vpop.f32.mrb[0].mxu0
  %1188 = vmatprep.mubr.f32.mxu0 0.0
  %1189 = vmatmul.mubr.f32.gmra.mrb[0].mxu0 %v553
  %v1190 = vpop.f32.mrb[0].mxu0
  %v1191 = vadd.f32 0.0, %v1190
  %v1192 = vpop.f32.mrb[0].mxu0
  %1193 = vmatprep.mubr.f32.mxu0 0.0
  %1194 = vmatmul.mubr.f32.gmra.mrb[0].mxu0 %v556
  %v1195 = vpop.f32.mrb[0].mxu0
  %v1196 = vadd.f32 0.0, %v1195
  %v1197 = vpop.f32.mrb[0].mxu0
  %1198 = vmatprep.mubr.f32.mxu0 0.0
  %1199 = vmatmul.mubr.f32.gmra.mrb[0].mxu0 %v559
  %v1200 = vpop.f32.mrb[0].mxu0
  %v1201 = vadd.f32 0.0, %v1200
  %v1202 = vpop.f32.mrb[0].mxu0
  %1203 = vmatprep.mubr.f32.mxu0 0.0
  %1204 = vmatmul.mubr.f32.gmra.mrb[0].mxu0 %v562
  %v1205 = vpop.f32.mrb[0].mxu0
  %v1206 = vadd.f32 0.0, %v1205
  %v1207 = vpop.f32.mrb[0].mxu0
  %1208 = vmatprep.mubr.f32.mxu0 0.0
  %1209 = vmatmul.mubr.f32.gmra.mrb[0].mxu0 %v565
  %v1210 = vpop.f32.mrb[0].mxu0
  %v1211 = vadd.f32 0.0, %v1210
  %v1212 = vpop.f32.mrb[0].mxu0
  %1213 = vmatprep.mubr.f32.mxu0 0.0
  %1214 = vmatmul.mubr.f32.gmra.mrb[0].mxu0 %v568
  %v1215 = vpop.f32.mrb[0].mxu0
  %v1216 = vadd.f32 0.0, %v1215
  %v1217 = vpop.f32.mrb[0].mxu0
  %1218 = vmatprep.mubr.f32.mxu0 0.0
  %1219 = vmatmul.mubr.f32.gmra.mrb[0].mxu0 %v571
  %v1220 = vpop.f32.mrb[0].mxu0
  %v1221 = vadd.f32 0.0, %v1220
  %v1222 = vpop.f32.mrb[0].mxu0
  %1223 = vmatprep.mubr.f32.mxu0 0.0
  %1224 = vmatmul.mubr.f32.gmra.mrb[0].mxu0 %v574
  %v1225 = vpop.f32.mrb[0].mxu0
  %v1226 = vadd.f32 0.0, %v1225
  %v1227 = vpop.f32.mrb[0].mxu0
  %1228 = vmatprep.mubr.f32.mxu0 0.0
  %1229 = vmatmul.mubr.f32.gmra.mrb[0].mxu0 %v577
  %v1230 = vpop.f32.mrb[0].mxu0
  %v1231 = vadd.f32 0.0, %v1230
  %v1232 = vpop.f32.mrb[0].mxu0
  %1233 = vmatprep.mubr.f32.mxu0 0.0
  %1234 = vmatmul.mubr.f32.gmra.mrb[0].mxu0 %v580
  %v1235 = vpop.f32.mrb[0].mxu0
  %v1236 = vadd.f32 0.0, %v1235
  %v1237 = vpop.f32.mrb[0].mxu0
  %1238 = vmatprep.mubr.f32.mxu0 0.0
  %1239 = vmatmul.mubr.f32.gmra.mrb[0].mxu0 %v583
  %v1240 = vpop.f32.mrb[0].mxu0
  %v1241 = vadd.f32 0.0, %v1240
  %v1242 = vpop.f32.mrb[0].mxu0
  %1243 = vmatprep.mubr.f32.mxu0 0.0
  %1244 = vmatmul.mubr.f32.gmra.mrb[0].mxu0 %v586
  %v1245 = vpop.f32.mrb[0].mxu0
  %v1246 = vadd.f32 0.0, %v1245
  %v1247 = vpop.f32.mrb[0].mxu0
  %1248 = vmatprep.mubr.f32.mxu0 0.0
  %1249 = vmatmul.mubr.f32.gmra.mrb[0].mxu0 %v589
  %v1250 = vpop.f32.mrb[0].mxu0
  %v1251 = vadd.f32 0.0, %v1250
  %v1252 = vpop.f32.mrb[0].mxu0
  %1253 = vmatprep.mubr.f32.mxu0 0.0
  %1254 = vmatmul.mubr.f32.gmra.mrb[0].mxu0 %v592
  %v1255 = vpop.f32.mrb[0].mxu0
  %v1256 = vadd.f32 0.0, %v1255
  %v1257 = vpop.f32.mrb[0].mxu0
  %1258 = vmatprep.mubr.f32.mxu0 0.0
  %1259 = vmatmul.mubr.f32.gmra.mrb[0].mxu0 %v595
  %v1260 = vpop.f32.mrb[0].mxu0
  %v1261 = vadd.f32 0.0, %v1260
  %v1262 = vpop.f32.mrb[0].mxu0
  %1263 = vmatprep.mubr.f32.mxu0 0.0
  %1264 = vmatmul.mubr.f32.gmra.mrb[0].mxu0 %v598
  %v1265 = vpop.f32.mrb[0].mxu0
  %v1266 = vadd.f32 0.0, %v1265
  %v1267 = vpop.f32.mrb[0].mxu0
  %1268 = vmatprep.mubr.f32.mxu0 0.0
  %1269 = vmatmul.mubr.f32.gmra.mrb[0].mxu0 %v601
  %v1270 = vpop.f32.mrb[0].mxu0
  %v1271 = vadd.f32 0.0, %v1270
  %v1272 = vpop.f32.mrb[0].mxu0
  %1273 = vmatprep.mubr.f32.mxu0 0.0
  %1274 = vmatmul.mubr.f32.gmra.mrb[0].mxu0 %v604
  %v1275 = vpop.f32.mrb[0].mxu0
  %v1276 = vadd.f32 0.0, %v1275
  %v1277 = vpop.f32.mrb[0].mxu0
  %1278 = vmatprep.mubr.f32.mxu0 0.0
  %1279 = vmatmul.mubr.f32.gmra.mrb[0].mxu0 %v607
  %v1280 = vpop.f32.mrb[0].mxu0
  %v1281 = vadd.f32 0.0, %v1280
  %v1282 = vpop.f32.mrb[0].mxu0
  %1283 = vmatprep.mubr.f32.mxu0 0.0
  %1284 = vmatmul.mubr.f32.gmra.mrb[0].mxu0 %v610
  %v1285 = vpop.f32.mrb[0].mxu0
  %v1286 = vadd.f32 0.0, %v1285
  %v1287 = vpop.f32.mrb[0].mxu0
  %1288 = vmatprep.mubr.f32.mxu0 0.0
  %1289 = vmatmul.mubr.f32.gmra.mrb[0].mxu0 %v613
  %v1290 = vpop.f32.mrb[0].mxu0
  %v1291 = vadd.f32 0.0, %v1290
  %v1292 = vpop.f32.mrb[0].mxu0
  %1293 = vmatprep.mubr.f32.mxu0 0.0
  %1294 = vmatmul.mubr.f32.gmra.mrb[0].mxu0 %v616
  %v1295 = vpop.f32.mrb[0].mxu0
  %v1296 = vadd.f32 0.0, %v1295
  %v1297 = vpop.f32.mrb[0].mxu0
  %1298 = vmatprep.mubr.f32.mxu0 0.0
  %1299 = vmatmul.mubr.f32.gmra.mrb[0].mxu0 %v619
  %v1300 = vpop.f32.mrb[0].mxu0
  %v1301 = vadd.f32 0.0, %v1300
  %v1302 = vpop.f32.mrb[0].mxu0
  %1303 = vmatprep.mubr.f32.mxu0 0.0
  %1304 = vmatmul.mubr.f32.gmra.mrb[0].mxu0 %v622
  %v1305 = vpop.f32.mrb[0].mxu0
  %v1306 = vadd.f32 0.0, %v1305
  %v1307 = vpop.f32.mrb[0].mxu0
  %1308 = vmatprep.mubr.f32.mxu0 0.0
  %1309 = vmatmul.mubr.f32.gmra.mrb[0].mxu0 %v625
  %v1310 = vpop.f32.mrb[0].mxu0
  %v1311 = vadd.f32 0.0, %v1310
  %v1312 = vpop.f32.mrb[0].mxu0
  %1313 = vmatprep.mubr.f32.mxu0 0.0
  %1314 = vmatmul.mubr.f32.gmra.mrb[0].mxu0 %v628
  %v1315 = vpop.f32.mrb[0].mxu0
  %v1316 = vadd.f32 0.0, %v1315
  %v1317 = vpop.f32.mrb[0].mxu0
  %1318 = vmatprep.mubr.f32.mxu0 0.0
  %1319 = vmatmul.mubr.f32.gmra.mrb[0].mxu0 %v631
  %v1320 = vpop.f32.mrb[0].mxu0
  %v1321 = vadd.f32 0.0, %v1320
  %v1322 = vpop.f32.mrb[0].mxu0
  %1323 = vmatprep.mubr.f32.mxu0 0.0
  %1324 = vmatmul.mubr.f32.gmra.mrb[0].mxu0 %v634
  %v1325 = vpop.f32.mrb[0].mxu0
  %v1326 = vadd.f32 0.0, %v1325
  %v1327 = vpop.f32.mrb[0].mxu0
  %1328 = vmatprep.mubr.f32.mxu0 0.0
  %1329 = vmatmul.mubr.f32.gmra.mrb[0].mxu0 %v637
  %v1330 = vpop.f32.mrb[0].mxu0
  %v1331 = vadd.f32 0.0, %v1330
  %v1332 = vpop.f32.mrb[0].mxu0
  %1333 = vmatprep.mubr.f32.mxu0 0.0
  %1334 = vmatmul.mubr.f32.gmra.mrb[0].mxu0 %v640
  %v1335 = vpop.f32.mrb[0].mxu0
  %v1336 = vadd.f32 0.0, %v1335
  %v1337 = vpop.f32.mrb[0].mxu0
  %1338 = vmatprep.mubr.f32.mxu0 0.0
  %1339 = vmatmul.mubr.f32.gmra.mrb[0].mxu0 %v643
  %v1340 = vpop.f32.mrb[0].mxu0
  %v1341 = vadd.f32 0.0, %v1340
  %v1342 = vpop.f32.mrb[0].mxu0
  %1343 = vmatprep.mubr.f32.mxu0 0.0
  %1344 = vmatmul.mubr.f32.gmra.mrb[0].mxu0 %v646
  %v1345 = vpop.f32.mrb[0].mxu0
  %v1346 = vadd.f32 0.0, %v1345
  %v1347 = vpop.f32.mrb[0].mxu0
  %1348 = vmatprep.mubr.f32.mxu0 0.0
  %1349 = vmatmul.mubr.f32.gmra.mrb[0].mxu0 %v649
  %v1350 = vpop.f32.mrb[0].mxu0
  %v1351 = vadd.f32 0.0, %v1350
  %v1352 = vpop.f32.mrb[0].mxu0
  %1353 = vmatprep.mubr.f32.mxu0 0.0
  %1354 = vmatmul.mubr.f32.gmra.mrb[0].mxu0 %v652
  %v1355 = vpop.f32.mrb[0].mxu0
  %v1356 = vadd.f32 0.0, %v1355
  %v1357 = vpop.f32.mrb[0].mxu0
  %1358 = vmatprep.mubr.f32.mxu0 0.0
  %1359 = vmatmul.mubr.f32.gmra.mrb[0].mxu0 %v655
  %v1360 = vpop.f32.mrb[0].mxu0
  %v1361 = vadd.f32 0.0, %v1360
  %v1362 = vpop.f32.mrb[0].mxu0
  %1363 = vmatprep.mubr.f32.mxu0 0.0
  %1364 = vmatmul.mubr.f32.gmra.mrb[0].mxu0 %v658
  %v1365 = vpop.f32.mrb[0].mxu0
  %v1366 = vadd.f32 0.0, %v1365
  %v1367 = vpop.f32.mrb[0].mxu0
  %1368 = vdwg.mxu0
  %v1369 = vsel %vm130, %v731, 0.0
  %1370 = vadd.xlane.f32.xlu0 %v1369
  %v1371 = vpop.xlane.xlu0 %1370
  %v1372 = vsel %vm130, %v736, 0.0
  %1373 = vadd.xlane.f32.xlu0 %v1372
  %v1374 = vpop.xlane.xlu0 %1373
  %v1375 = vsel %vm130, %v741, 0.0
  %1376 = vadd.xlane.f32.xlu0 %v1375
  %v1377 = vpop.xlane.xlu0 %1376
  %v1378 = vsel %vm130, %v746, 0.0
  %1379 = vadd.xlane.f32.xlu0 %v1378
  %v1380 = vpop.xlane.xlu0 %1379
  %v1381 = vsel %vm130, %v751, 0.0
  %1382 = vadd.xlane.f32.xlu0 %v1381
  %v1383 = vpop.xlane.xlu0 %1382
  %v1384 = vsel %vm130, %v756, 0.0
  %1385 = vadd.xlane.f32.xlu0 %v1384
  %v1386 = vpop.xlane.xlu0 %1385
  %v1387 = vsel %vm130, %v761, 0.0
  %1388 = vadd.xlane.f32.xlu0 %v1387
  %v1389 = vpop.xlane.xlu0 %1388
  %v1390 = vsel %vm130, %v766, 0.0
  %1391 = vadd.xlane.f32.xlu0 %v1390
  %v1392 = vpop.xlane.xlu0 %1391
  %v1393 = vadd.f32 %v1371, 0.0
  %v1394 = vadd.f32 %v1374, 0.0
  %v1395 = vadd.f32 %v1377, 0.0
  %v1396 = vadd.f32 %v1380, 0.0
  %v1397 = vadd.f32 %v1383, 0.0
  %v1398 = vadd.f32 %v1386, 0.0
  %v1399 = vadd.f32 %v1389, 0.0
  %v1400 = vadd.f32 %v1392, 0.0
  %v1401 = vmul.f32 %v731, %v731
  %v1402 = vmul.f32 %v736, %v736
  %v1403 = vmul.f32 %v741, %v741
  %v1404 = vmul.f32 %v746, %v746
  %v1405 = vmul.f32 %v751, %v751
  %v1406 = vmul.f32 %v756, %v756
  %v1407 = vmul.f32 %v761, %v761
  %v1408 = vmul.f32 %v766, %v766
  %v1409 = vsel %vm130, %v1401, 0.0
  %1410 = vadd.xlane.f32.xlu0 %v1409
  %v1411 = vpop.xlane.xlu0 %1410
  %v1412 = vsel %vm130, %v1402, 0.0
  %1413 = vadd.xlane.f32.xlu0 %v1412
  %v1414 = vpop.xlane.xlu0 %1413
  %v1415 = vsel %vm130, %v1403, 0.0
  %1416 = vadd.xlane.f32.xlu0 %v1415
  %v1417 = vpop.xlane.xlu0 %1416
  %v1418 = vsel %vm130, %v1404, 0.0
  %1419 = vadd.xlane.f32.xlu0 %v1418
  %v1420 = vpop.xlane.xlu0 %1419
  %v1421 = vsel %vm130, %v1405, 0.0
  %1422 = vadd.xlane.f32.xlu0 %v1421
  %v1423 = vpop.xlane.xlu0 %1422
  %v1424 = vsel %vm130, %v1406, 0.0
  %1425 = vadd.xlane.f32.xlu0 %v1424
  %v1426 = vpop.xlane.xlu0 %1425
  %v1427 = vsel %vm130, %v1407, 0.0
  %1428 = vadd.xlane.f32.xlu0 %v1427
  %v1429 = vpop.xlane.xlu0 %1428
  %v1430 = vsel %vm130, %v1408, 0.0
  %1431 = vadd.xlane.f32.xlu0 %v1430
  %v1432 = vpop.xlane.xlu0 %1431
  %v1433 = vadd.f32 %v1411, 0.0
  %v1434 = vadd.f32 %v1414, 0.0
  %v1435 = vadd.f32 %v1417, 0.0
  %v1436 = vadd.f32 %v1420, 0.0
  %v1437 = vadd.f32 %v1423, 0.0
  %v1438 = vadd.f32 %v1426, 0.0
  %v1439 = vadd.f32 %v1429, 0.0
  %v1440 = vadd.f32 %v1432, 0.0
  %v1441 = vsel %vm130, %v771, 0.0
  %1442 = vadd.xlane.f32.xlu0 %v1441
  %v1443 = vpop.xlane.xlu0 %1442
  %v1444 = vsel %vm130, %v776, 0.0
  %1445 = vadd.xlane.f32.xlu0 %v1444
  %v1446 = vpop.xlane.xlu0 %1445
  %v1447 = vsel %vm130, %v781, 0.0
  %1448 = vadd.xlane.f32.xlu0 %v1447
  %v1449 = vpop.xlane.xlu0 %1448
  %v1450 = vsel %vm130, %v786, 0.0
  %1451 = vadd.xlane.f32.xlu0 %v1450
  %v1452 = vpop.xlane.xlu0 %1451
  %v1453 = vsel %vm130, %v791, 0.0
  %1454 = vadd.xlane.f32.xlu0 %v1453
  %v1455 = vpop.xlane.xlu0 %1454
  %v1456 = vsel %vm130, %v796, 0.0
  %1457 = vadd.xlane.f32.xlu0 %v1456
  %v1458 = vpop.xlane.xlu0 %1457
  %v1459 = vsel %vm130, %v801, 0.0
  %1460 = vadd.xlane.f32.xlu0 %v1459
  %v1461 = vpop.xlane.xlu0 %1460
  %v1462 = vsel %vm130, %v806, 0.0
  %1463 = vadd.xlane.f32.xlu0 %v1462
  %v1464 = vpop.xlane.xlu0 %1463
  %v1465 = vadd.f32 %v1393, %v1443
  %v1466 = vadd.f32 %v1394, %v1446
  %v1467 = vadd.f32 %v1395, %v1449
  %v1468 = vadd.f32 %v1396, %v1452
  %v1469 = vadd.f32 %v1397, %v1455
  %v1470 = vadd.f32 %v1398, %v1458
  %v1471 = vadd.f32 %v1399, %v1461
  %v1472 = vadd.f32 %v1400, %v1464
  %v1473 = vmul.f32 %v771, %v771
  %v1474 = vmul.f32 %v776, %v776
  %v1475 = vmul.f32 %v781, %v781
  %v1476 = vmul.f32 %v786, %v786
  %v1477 = vmul.f32 %v791, %v791
  %v1478 = vmul.f32 %v796, %v796
  %v1479 = vmul.f32 %v801, %v801
  %v1480 = vmul.f32 %v806, %v806
  %v1481 = vsel %vm130, %v1473, 0.0
  %1482 = vadd.xlane.f32.xlu0 %v1481
  %v1483 = vpop.xlane.xlu0 %1482
  %v1484 = vsel %vm130, %v1474, 0.0
  %1485 = vadd.xlane.f32.xlu0 %v1484
  %v1486 = vpop.xlane.xlu0 %1485
  %v1487 = vsel %vm130, %v1475, 0.0
  %1488 = vadd.xlane.f32.xlu0 %v1487
  %v1489 = vpop.xlane.xlu0 %1488
  %v1490 = vsel %vm130, %v1476, 0.0
  %1491 = vadd.xlane.f32.xlu0 %v1490
  %v1492 = vpop.xlane.xlu0 %1491
  %v1493 = vsel %vm130, %v1477, 0.0
  %1494 = vadd.xlane.f32.xlu0 %v1493
  %v1495 = vpop.xlane.xlu0 %1494
  %v1496 = vsel %vm130, %v1478, 0.0
  %1497 = vadd.xlane.f32.xlu0 %v1496
  %v1498 = vpop.xlane.xlu0 %1497
  %v1499 = vsel %vm130, %v1479, 0.0
  %1500 = vadd.xlane.f32.xlu0 %v1499
  %v1501 = vpop.xlane.xlu0 %1500
  %v1502 = vsel %vm130, %v1480, 0.0
  %1503 = vadd.xlane.f32.xlu0 %v1502
  %v1504 = vpop.xlane.xlu0 %1503
  %v1505 = vadd.f32 %v1433, %v1483
  %v1506 = vadd.f32 %v1434, %v1486
  %v1507 = vadd.f32 %v1435, %v1489
  %v1508 = vadd.f32 %v1436, %v1492
  %v1509 = vadd.f32 %v1437, %v1495
  %v1510 = vadd.f32 %v1438, %v1498
  %v1511 = vadd.f32 %v1439, %v1501
  %v1512 = vadd.f32 %v1440, %v1504
  %v1513 = vsel %vm130, %v811, 0.0
  %1514 = vadd.xlane.f32.xlu0 %v1513
  %v1515 = vpop.xlane.xlu0 %1514
  %v1516 = vsel %vm130, %v816, 0.0
  %1517 = vadd.xlane.f32.xlu0 %v1516
  %v1518 = vpop.xlane.xlu0 %1517
  %v1519 = vsel %vm130, %v821, 0.0
  %1520 = vadd.xlane.f32.xlu0 %v1519
  %v1521 = vpop.xlane.xlu0 %1520
  %v1522 = vsel %vm130, %v826, 0.0
  %1523 = vadd.xlane.f32.xlu0 %v1522
  %v1524 = vpop.xlane.xlu0 %1523
  %v1525 = vsel %vm130, %v831, 0.0
  %1526 = vadd.xlane.f32.xlu0 %v1525
  %v1527 = vpop.xlane.xlu0 %1526
  %v1528 = vsel %vm130, %v836, 0.0
  %1529 = vadd.xlane.f32.xlu0 %v1528
  %v1530 = vpop.xlane.xlu0 %1529
  %v1531 = vsel %vm130, %v841, 0.0
  %1532 = vadd.xlane.f32.xlu0 %v1531
  %v1533 = vpop.xlane.xlu0 %1532
  %v1534 = vsel %vm130, %v846, 0.0
  %1535 = vadd.xlane.f32.xlu0 %v1534
  %v1536 = vpop.xlane.xlu0 %1535
  %v1537 = vadd.f32 %v1465, %v1515
  %v1538 = vadd.f32 %v1466, %v1518
  %v1539 = vadd.f32 %v1467, %v1521
  %v1540 = vadd.f32 %v1468, %v1524
  %v1541 = vadd.f32 %v1469, %v1527
  %v1542 = vadd.f32 %v1470, %v1530
  %v1543 = vadd.f32 %v1471, %v1533
  %v1544 = vadd.f32 %v1472, %v1536
  %v1545 = vmul.f32 %v811, %v811
  %v1546 = vmul.f32 %v816, %v816
  %v1547 = vmul.f32 %v821, %v821
  %v1548 = vmul.f32 %v826, %v826
  %v1549 = vmul.f32 %v831, %v831
  %v1550 = vmul.f32 %v836, %v836
  %v1551 = vmul.f32 %v841, %v841
  %v1552 = vmul.f32 %v846, %v846
  %v1553 = vsel %vm130, %v1545, 0.0
  %1554 = vadd.xlane.f32.xlu0 %v1553
  %v1555 = vpop.xlane.xlu0 %1554
  %v1556 = vsel %vm130, %v1546, 0.0
  %1557 = vadd.xlane.f32.xlu0 %v1556
  %v1558 = vpop.xlane.xlu0 %1557
  %v1559 = vsel %vm130, %v1547, 0.0
  %1560 = vadd.xlane.f32.xlu0 %v1559
  %v1561 = vpop.xlane.xlu0 %1560
  %v1562 = vsel %vm130, %v1548, 0.0
  %1563 = vadd.xlane.f32.xlu0 %v1562
  %v1564 = vpop.xlane.xlu0 %1563
  %v1565 = vsel %vm130, %v1549, 0.0
  %1566 = vadd.xlane.f32.xlu0 %v1565
  %v1567 = vpop.xlane.xlu0 %1566
  %v1568 = vsel %vm130, %v1550, 0.0
  %1569 = vadd.xlane.f32.xlu0 %v1568
  %v1570 = vpop.xlane.xlu0 %1569
  %v1571 = vsel %vm130, %v1551, 0.0
  %1572 = vadd.xlane.f32.xlu0 %v1571
  %v1573 = vpop.xlane.xlu0 %1572
  %v1574 = vsel %vm130, %v1552, 0.0
  %1575 = vadd.xlane.f32.xlu0 %v1574
  %v1576 = vpop.xlane.xlu0 %1575
  %v1577 = vadd.f32 %v1505, %v1555
  %v1578 = vadd.f32 %v1506, %v1558
  %v1579 = vadd.f32 %v1507, %v1561
  %v1580 = vadd.f32 %v1508, %v1564
  %v1581 = vadd.f32 %v1509, %v1567
  %v1582 = vadd.f32 %v1510, %v1570
  %v1583 = vadd.f32 %v1511, %v1573
  %v1584 = vadd.f32 %v1512, %v1576
  %v1585 = vsel %vm130, %v851, 0.0
  %1586 = vadd.xlane.f32.xlu0 %v1585
  %v1587 = vpop.xlane.xlu0 %1586
  %v1588 = vsel %vm130, %v856, 0.0
  %1589 = vadd.xlane.f32.xlu0 %v1588
  %v1590 = vpop.xlane.xlu0 %1589
  %v1591 = vsel %vm130, %v861, 0.0
  %1592 = vadd.xlane.f32.xlu0 %v1591
  %v1593 = vpop.xlane.xlu0 %1592
  %v1594 = vsel %vm130, %v866, 0.0
  %1595 = vadd.xlane.f32.xlu0 %v1594
  %v1596 = vpop.xlane.xlu0 %1595
  %v1597 = vsel %vm130, %v871, 0.0
  %1598 = vadd.xlane.f32.xlu0 %v1597
  %v1599 = vpop.xlane.xlu0 %1598
  %v1600 = vsel %vm130, %v876, 0.0
  %1601 = vadd.xlane.f32.xlu0 %v1600
  %v1602 = vpop.xlane.xlu0 %1601
  %v1603 = vsel %vm130, %v881, 0.0
  %1604 = vadd.xlane.f32.xlu0 %v1603
  %v1605 = vpop.xlane.xlu0 %1604
  %v1606 = vsel %vm130, %v886, 0.0
  %1607 = vadd.xlane.f32.xlu0 %v1606
  %v1608 = vpop.xlane.xlu0 %1607
  %v1609 = vadd.f32 %v1537, %v1587
  %v1610 = vadd.f32 %v1538, %v1590
  %v1611 = vadd.f32 %v1539, %v1593
  %v1612 = vadd.f32 %v1540, %v1596
  %v1613 = vadd.f32 %v1541, %v1599
  %v1614 = vadd.f32 %v1542, %v1602
  %v1615 = vadd.f32 %v1543, %v1605
  %v1616 = vadd.f32 %v1544, %v1608
  %v1617 = vmul.f32 %v851, %v851
  %v1618 = vmul.f32 %v856, %v856
  %v1619 = vmul.f32 %v861, %v861
  %v1620 = vmul.f32 %v866, %v866
  %v1621 = vmul.f32 %v871, %v871
  %v1622 = vmul.f32 %v876, %v876
  %v1623 = vmul.f32 %v881, %v881
  %v1624 = vmul.f32 %v886, %v886
  %v1625 = vsel %vm130, %v1617, 0.0
  %1626 = vadd.xlane.f32.xlu0 %v1625
  %v1627 = vpop.xlane.xlu0 %1626
  %v1628 = vsel %vm130, %v1618, 0.0
  %1629 = vadd.xlane.f32.xlu0 %v1628
  %v1630 = vpop.xlane.xlu0 %1629
  %v1631 = vsel %vm130, %v1619, 0.0
  %1632 = vadd.xlane.f32.xlu0 %v1631
  %v1633 = vpop.xlane.xlu0 %1632
  %v1634 = vsel %vm130, %v1620, 0.0
  %1635 = vadd.xlane.f32.xlu0 %v1634
  %v1636 = vpop.xlane.xlu0 %1635
  %v1637 = vsel %vm130, %v1621, 0.0
  %1638 = vadd.xlane.f32.xlu0 %v1637
  %v1639 = vpop.xlane.xlu0 %1638
  %v1640 = vsel %vm130, %v1622, 0.0
  %1641 = vadd.xlane.f32.xlu0 %v1640
  %v1642 = vpop.xlane.xlu0 %1641
  %v1643 = vsel %vm130, %v1623, 0.0
  %1644 = vadd.xlane.f32.xlu0 %v1643
  %v1645 = vpop.xlane.xlu0 %1644
  %v1646 = vsel %vm130, %v1624, 0.0
  %1647 = vadd.xlane.f32.xlu0 %v1646
  %v1648 = vpop.xlane.xlu0 %1647
  %v1649 = vadd.f32 %v1577, %v1627
  %v1650 = vadd.f32 %v1578, %v1630
  %v1651 = vadd.f32 %v1579, %v1633
  %v1652 = vadd.f32 %v1580, %v1636
  %v1653 = vadd.f32 %v1581, %v1639
  %v1654 = vadd.f32 %v1582, %v1642
  %v1655 = vadd.f32 %v1583, %v1645
  %v1656 = vadd.f32 %v1584, %v1648
  %v1657 = vsel %vm130, %v891, 0.0
  %1658 = vadd.xlane.f32.xlu0 %v1657
  %v1659 = vpop.xlane.xlu0 %1658
  %v1660 = vsel %vm130, %v896, 0.0
  %1661 = vadd.xlane.f32.xlu0 %v1660
  %v1662 = vpop.xlane.xlu0 %1661
  %v1663 = vsel %vm130, %v901, 0.0
  %1664 = vadd.xlane.f32.xlu0 %v1663
  %v1665 = vpop.xlane.xlu0 %1664
  %v1666 = vsel %vm130, %v906, 0.0
  %1667 = vadd.xlane.f32.xlu0 %v1666
  %v1668 = vpop.xlane.xlu0 %1667
  %v1669 = vsel %vm130, %v911, 0.0
  %1670 = vadd.xlane.f32.xlu0 %v1669
  %v1671 = vpop.xlane.xlu0 %1670
  %v1672 = vsel %vm130, %v916, 0.0
  %1673 = vadd.xlane.f32.xlu0 %v1672
  %v1674 = vpop.xlane.xlu0 %1673
  %v1675 = vsel %vm130, %v921, 0.0
  %1676 = vadd.xlane.f32.xlu0 %v1675
  %v1677 = vpop.xlane.xlu0 %1676
  %v1678 = vsel %vm130, %v926, 0.0
  %1679 = vadd.xlane.f32.xlu0 %v1678
  %v1680 = vpop.xlane.xlu0 %1679
  %v1681 = vadd.f32 %v1609, %v1659
  %v1682 = vadd.f32 %v1610, %v1662
  %v1683 = vadd.f32 %v1611, %v1665
  %v1684 = vadd.f32 %v1612, %v1668
  %v1685 = vadd.f32 %v1613, %v1671
  %v1686 = vadd.f32 %v1614, %v1674
  %v1687 = vadd.f32 %v1615, %v1677
  %v1688 = vadd.f32 %v1616, %v1680
  %v1689 = vmul.f32 %v891, %v891
  %v1690 = vmul.f32 %v896, %v896
  %v1691 = vmul.f32 %v901, %v901
  %v1692 = vmul.f32 %v906, %v906
  %v1693 = vmul.f32 %v911, %v911
  %v1694 = vmul.f32 %v916, %v916
  %v1695 = vmul.f32 %v921, %v921
  %v1696 = vmul.f32 %v926, %v926
  %v1697 = vsel %vm130, %v1689, 0.0
  %1698 = vadd.xlane.f32.xlu0 %v1697
  %v1699 = vpop.xlane.xlu0 %1698
  %v1700 = vsel %vm130, %v1690, 0.0
  %1701 = vadd.xlane.f32.xlu0 %v1700
  %v1702 = vpop.xlane.xlu0 %1701
  %v1703 = vsel %vm130, %v1691, 0.0
  %1704 = vadd.xlane.f32.xlu0 %v1703
  %v1705 = vpop.xlane.xlu0 %1704
  %v1706 = vsel %vm130, %v1692, 0.0
  %1707 = vadd.xlane.f32.xlu0 %v1706
  %v1708 = vpop.xlane.xlu0 %1707
  %v1709 = vsel %vm130, %v1693, 0.0
  %1710 = vadd.xlane.f32.xlu0 %v1709
  %v1711 = vpop.xlane.xlu0 %1710
  %v1712 = vsel %vm130, %v1694, 0.0
  %1713 = vadd.xlane.f32.xlu0 %v1712
  %v1714 = vpop.xlane.xlu0 %1713
  %v1715 = vsel %vm130, %v1695, 0.0
  %1716 = vadd.xlane.f32.xlu0 %v1715
  %v1717 = vpop.xlane.xlu0 %1716
  %v1718 = vsel %vm130, %v1696, 0.0
  %1719 = vadd.xlane.f32.xlu0 %v1718
  %v1720 = vpop.xlane.xlu0 %1719
  %v1721 = vadd.f32 %v1649, %v1699
  %v1722 = vadd.f32 %v1650, %v1702
  %v1723 = vadd.f32 %v1651, %v1705
  %v1724 = vadd.f32 %v1652, %v1708
  %v1725 = vadd.f32 %v1653, %v1711
  %v1726 = vadd.f32 %v1654, %v1714
  %v1727 = vadd.f32 %v1655, %v1717
  %v1728 = vadd.f32 %v1656, %v1720
  %v1729 = vsel %vm130, %v931, 0.0
  %1730 = vadd.xlane.f32.xlu0 %v1729
  %v1731 = vpop.xlane.xlu0 %1730
  %v1732 = vsel %vm130, %v936, 0.0
  %1733 = vadd.xlane.f32.xlu0 %v1732
  %v1734 = vpop.xlane.xlu0 %1733
  %v1735 = vsel %vm130, %v941, 0.0
  %1736 = vadd.xlane.f32.xlu0 %v1735
  %v1737 = vpop.xlane.xlu0 %1736
  %v1738 = vsel %vm130, %v946, 0.0
  %1739 = vadd.xlane.f32.xlu0 %v1738
  %v1740 = vpop.xlane.xlu0 %1739
  %v1741 = vsel %vm130, %v951, 0.0
  %1742 = vadd.xlane.f32.xlu0 %v1741
  %v1743 = vpop.xlane.xlu0 %1742
  %v1744 = vsel %vm130, %v956, 0.0
  %1745 = vadd.xlane.f32.xlu0 %v1744
  %v1746 = vpop.xlane.xlu0 %1745
  %v1747 = vsel %vm130, %v961, 0.0
  %1748 = vadd.xlane.f32.xlu0 %v1747
  %v1749 = vpop.xlane.xlu0 %1748
  %v1750 = vsel %vm130, %v966, 0.0
  %1751 = vadd.xlane.f32.xlu0 %v1750
  %v1752 = vpop.xlane.xlu0 %1751
  %v1753 = vadd.f32 %v1681, %v1731
  %v1754 = vadd.f32 %v1682, %v1734
  %v1755 = vadd.f32 %v1683, %v1737
  %v1756 = vadd.f32 %v1684, %v1740
  %v1757 = vadd.f32 %v1685, %v1743
  %v1758 = vadd.f32 %v1686, %v1746
  %v1759 = vadd.f32 %v1687, %v1749
  %v1760 = vadd.f32 %v1688, %v1752
  %v1761 = vmul.f32 %v931, %v931
  %v1762 = vmul.f32 %v936, %v936
  %v1763 = vmul.f32 %v941, %v941
  %v1764 = vmul.f32 %v946, %v946
  %v1765 = vmul.f32 %v951, %v951
  %v1766 = vmul.f32 %v956, %v956
  %v1767 = vmul.f32 %v961, %v961
  %v1768 = vmul.f32 %v966, %v966
  %v1769 = vsel %vm130, %v1761, 0.0
  %1770 = vadd.xlane.f32.xlu0 %v1769
  %v1771 = vpop.xlane.xlu0 %1770
  %v1772 = vsel %vm130, %v1762, 0.0
  %1773 = vadd.xlane.f32.xlu0 %v1772
  %v1774 = vpop.xlane.xlu0 %1773
  %v1775 = vsel %vm130, %v1763, 0.0
  %1776 = vadd.xlane.f32.xlu0 %v1775
  %v1777 = vpop.xlane.xlu0 %1776
  %v1778 = vsel %vm130, %v1764, 0.0
  %1779 = vadd.xlane.f32.xlu0 %v1778
  %v1780 = vpop.xlane.xlu0 %1779
  %v1781 = vsel %vm130, %v1765, 0.0
  %1782 = vadd.xlane.f32.xlu0 %v1781
  %v1783 = vpop.xlane.xlu0 %1782
  %v1784 = vsel %vm130, %v1766, 0.0
  %1785 = vadd.xlane.f32.xlu0 %v1784
  %v1786 = vpop.xlane.xlu0 %1785
  %v1787 = vsel %vm130, %v1767, 0.0
  %1788 = vadd.xlane.f32.xlu0 %v1787
  %v1789 = vpop.xlane.xlu0 %1788
  %v1790 = vsel %vm130, %v1768, 0.0
  %1791 = vadd.xlane.f32.xlu0 %v1790
  %v1792 = vpop.xlane.xlu0 %1791
  %v1793 = vadd.f32 %v1721, %v1771
  %v1794 = vadd.f32 %v1722, %v1774
  %v1795 = vadd.f32 %v1723, %v1777
  %v1796 = vadd.f32 %v1724, %v1780
  %v1797 = vadd.f32 %v1725, %v1783
  %v1798 = vadd.f32 %v1726, %v1786
  %v1799 = vadd.f32 %v1727, %v1789
  %v1800 = vadd.f32 %v1728, %v1792
  %v1801 = vsel %vm130, %v971, 0.0
  %1802 = vadd.xlane.f32.xlu0 %v1801
  %v1803 = vpop.xlane.xlu0 %1802
  %v1804 = vsel %vm130, %v976, 0.0
  %1805 = vadd.xlane.f32.xlu0 %v1804
  %v1806 = vpop.xlane.xlu0 %1805
  %v1807 = vsel %vm130, %v981, 0.0
  %1808 = vadd.xlane.f32.xlu0 %v1807
  %v1809 = vpop.xlane.xlu0 %1808
  %v1810 = vsel %vm130, %v986, 0.0
  %1811 = vadd.xlane.f32.xlu0 %v1810
  %v1812 = vpop.xlane.xlu0 %1811
  %v1813 = vsel %vm130, %v991, 0.0
  %1814 = vadd.xlane.f32.xlu0 %v1813
  %v1815 = vpop.xlane.xlu0 %1814
  %v1816 = vsel %vm130, %v996, 0.0
  %1817 = vadd.xlane.f32.xlu0 %v1816
  %v1818 = vpop.xlane.xlu0 %1817
  %v1819 = vsel %vm130, %v1001, 0.0
  %1820 = vadd.xlane.f32.xlu0 %v1819
  %v1821 = vpop.xlane.xlu0 %1820
  %v1822 = vsel %vm130, %v1006, 0.0
  %1823 = vadd.xlane.f32.xlu0 %v1822
  %v1824 = vpop.xlane.xlu0 %1823
  %v1825 = vadd.f32 %v1753, %v1803
  %v1826 = vadd.f32 %v1754, %v1806
  %v1827 = vadd.f32 %v1755, %v1809
  %v1828 = vadd.f32 %v1756, %v1812
  %v1829 = vadd.f32 %v1757, %v1815
  %v1830 = vadd.f32 %v1758, %v1818
  %v1831 = vadd.f32 %v1759, %v1821
  %v1832 = vadd.f32 %v1760, %v1824
  %v1833 = vmul.f32 %v971, %v971
  %v1834 = vmul.f32 %v976, %v976
  %v1835 = vmul.f32 %v981, %v981
  %v1836 = vmul.f32 %v986, %v986
  %v1837 = vmul.f32 %v991, %v991
  %v1838 = vmul.f32 %v996, %v996
  %v1839 = vmul.f32 %v1001, %v1001
  %v1840 = vmul.f32 %v1006, %v1006
  %v1841 = vsel %vm130, %v1833, 0.0
  %1842 = vadd.xlane.f32.xlu0 %v1841
  %v1843 = vpop.xlane.xlu0 %1842
  %v1844 = vsel %vm130, %v1834, 0.0
  %1845 = vadd.xlane.f32.xlu0 %v1844
  %v1846 = vpop.xlane.xlu0 %1845
  %v1847 = vsel %vm130, %v1835, 0.0
  %1848 = vadd.xlane.f32.xlu0 %v1847
  %v1849 = vpop.xlane.xlu0 %1848
  %v1850 = vsel %vm130, %v1836, 0.0
  %1851 = vadd.xlane.f32.xlu0 %v1850
  %v1852 = vpop.xlane.xlu0 %1851
  %v1853 = vsel %vm130, %v1837, 0.0
  %1854 = vadd.xlane.f32.xlu0 %v1853
  %v1855 = vpop.xlane.xlu0 %1854
  %v1856 = vsel %vm130, %v1838, 0.0
  %1857 = vadd.xlane.f32.xlu0 %v1856
  %v1858 = vpop.xlane.xlu0 %1857
  %v1859 = vsel %vm130, %v1839, 0.0
  %1860 = vadd.xlane.f32.xlu0 %v1859
  %v1861 = vpop.xlane.xlu0 %1860
  %v1862 = vsel %vm130, %v1840, 0.0
  %1863 = vadd.xlane.f32.xlu0 %v1862
  %v1864 = vpop.xlane.xlu0 %1863
  %v1865 = vadd.f32 %v1793, %v1843
  %v1866 = vadd.f32 %v1794, %v1846
  %v1867 = vadd.f32 %v1795, %v1849
  %v1868 = vadd.f32 %v1796, %v1852
  %v1869 = vadd.f32 %v1797, %v1855
  %v1870 = vadd.f32 %v1798, %v1858
  %v1871 = vadd.f32 %v1799, %v1861
  %v1872 = vadd.f32 %v1800, %v1864
  %v1873 = vsel %vm130, %v1011, 0.0
  %1874 = vadd.xlane.f32.xlu0 %v1873
  %v1875 = vpop.xlane.xlu0 %1874
  %v1876 = vsel %vm130, %v1016, 0.0
  %1877 = vadd.xlane.f32.xlu0 %v1876
  %v1878 = vpop.xlane.xlu0 %1877
  %v1879 = vsel %vm130, %v1021, 0.0
  %1880 = vadd.xlane.f32.xlu0 %v1879
  %v1881 = vpop.xlane.xlu0 %1880
  %v1882 = vsel %vm130, %v1026, 0.0
  %1883 = vadd.xlane.f32.xlu0 %v1882
  %v1884 = vpop.xlane.xlu0 %1883
  %v1885 = vsel %vm130, %v1031, 0.0
  %1886 = vadd.xlane.f32.xlu0 %v1885
  %v1887 = vpop.xlane.xlu0 %1886
  %v1888 = vsel %vm130, %v1036, 0.0
  %1889 = vadd.xlane.f32.xlu0 %v1888
  %v1890 = vpop.xlane.xlu0 %1889
  %v1891 = vsel %vm130, %v1041, 0.0
  %1892 = vadd.xlane.f32.xlu0 %v1891
  %v1893 = vpop.xlane.xlu0 %1892
  %v1894 = vsel %vm130, %v1046, 0.0
  %1895 = vadd.xlane.f32.xlu0 %v1894
  %v1896 = vpop.xlane.xlu0 %1895
  %v1897 = vadd.f32 %v1825, %v1875
  %v1898 = vadd.f32 %v1826, %v1878
  %v1899 = vadd.f32 %v1827, %v1881
  %v1900 = vadd.f32 %v1828, %v1884
  %v1901 = vadd.f32 %v1829, %v1887
  %v1902 = vadd.f32 %v1830, %v1890
  %v1903 = vadd.f32 %v1831, %v1893
  %v1904 = vadd.f32 %v1832, %v1896
  %v1905 = vmul.f32 %v1011, %v1011
  %v1906 = vmul.f32 %v1016, %v1016
  %v1907 = vmul.f32 %v1021, %v1021
  %v1908 = vmul.f32 %v1026, %v1026
  %v1909 = vmul.f32 %v1031, %v1031
  %v1910 = vmul.f32 %v1036, %v1036
  %v1911 = vmul.f32 %v1041, %v1041
  %v1912 = vmul.f32 %v1046, %v1046
  %v1913 = vsel %vm130, %v1905, 0.0
  %1914 = vadd.xlane.f32.xlu0 %v1913
  %v1915 = vpop.xlane.xlu0 %1914
  %v1916 = vsel %vm130, %v1906, 0.0
  %1917 = vadd.xlane.f32.xlu0 %v1916
  %v1918 = vpop.xlane.xlu0 %1917
  %v1919 = vsel %vm130, %v1907, 0.0
  %1920 = vadd.xlane.f32.xlu0 %v1919
  %v1921 = vpop.xlane.xlu0 %1920
  %v1922 = vsel %vm130, %v1908, 0.0
  %1923 = vadd.xlane.f32.xlu0 %v1922
  %v1924 = vpop.xlane.xlu0 %1923
  %v1925 = vsel %vm130, %v1909, 0.0
  %1926 = vadd.xlane.f32.xlu0 %v1925
  %v1927 = vpop.xlane.xlu0 %1926
  %v1928 = vsel %vm130, %v1910, 0.0
  %1929 = vadd.xlane.f32.xlu0 %v1928
  %v1930 = vpop.xlane.xlu0 %1929
  %v1931 = vsel %vm130, %v1911, 0.0
  %1932 = vadd.xlane.f32.xlu0 %v1931
  %v1933 = vpop.xlane.xlu0 %1932
  %v1934 = vsel %vm130, %v1912, 0.0
  %1935 = vadd.xlane.f32.xlu0 %v1934
  %v1936 = vpop.xlane.xlu0 %1935
  %v1937 = vadd.f32 %v1865, %v1915
  %v1938 = vadd.f32 %v1866, %v1918
  %v1939 = vadd.f32 %v1867, %v1921
  %v1940 = vadd.f32 %v1868, %v1924
  %v1941 = vadd.f32 %v1869, %v1927
  %v1942 = vadd.f32 %v1870, %v1930
  %v1943 = vadd.f32 %v1871, %v1933
  %v1944 = vadd.f32 %v1872, %v1936
  %v1945 = vsel %vm130, %v1051, 0.0
  %1946 = vadd.xlane.f32.xlu0 %v1945
  %v1947 = vpop.xlane.xlu0 %1946
  %v1948 = vsel %vm130, %v1056, 0.0
  %1949 = vadd.xlane.f32.xlu0 %v1948
  %v1950 = vpop.xlane.xlu0 %1949
  %v1951 = vsel %vm130, %v1061, 0.0
  %1952 = vadd.xlane.f32.xlu0 %v1951
  %v1953 = vpop.xlane.xlu0 %1952
  %v1954 = vsel %vm130, %v1066, 0.0
  %1955 = vadd.xlane.f32.xlu0 %v1954
  %v1956 = vpop.xlane.xlu0 %1955
  %v1957 = vsel %vm130, %v1071, 0.0
  %1958 = vadd.xlane.f32.xlu0 %v1957
  %v1959 = vpop.xlane.xlu0 %1958
  %v1960 = vsel %vm130, %v1076, 0.0
  %1961 = vadd.xlane.f32.xlu0 %v1960
  %v1962 = vpop.xlane.xlu0 %1961
  %v1963 = vsel %vm130, %v1081, 0.0
  %1964 = vadd.xlane.f32.xlu0 %v1963
  %v1965 = vpop.xlane.xlu0 %1964
  %v1966 = vsel %vm130, %v1086, 0.0
  %1967 = vadd.xlane.f32.xlu0 %v1966
  %v1968 = vpop.xlane.xlu0 %1967
  %v1969 = vadd.f32 %v1897, %v1947
  %v1970 = vadd.f32 %v1898, %v1950
  %v1971 = vadd.f32 %v1899, %v1953
  %v1972 = vadd.f32 %v1900, %v1956
  %v1973 = vadd.f32 %v1901, %v1959
  %v1974 = vadd.f32 %v1902, %v1962
  %v1975 = vadd.f32 %v1903, %v1965
  %v1976 = vadd.f32 %v1904, %v1968
  %v1977 = vmul.f32 %v1051, %v1051
  %v1978 = vmul.f32 %v1056, %v1056
  %v1979 = vmul.f32 %v1061, %v1061
  %v1980 = vmul.f32 %v1066, %v1066
  %v1981 = vmul.f32 %v1071, %v1071
  %v1982 = vmul.f32 %v1076, %v1076
  %v1983 = vmul.f32 %v1081, %v1081
  %v1984 = vmul.f32 %v1086, %v1086
  %v1985 = vsel %vm130, %v1977, 0.0
  %1986 = vadd.xlane.f32.xlu0 %v1985
  %v1987 = vpop.xlane.xlu0 %1986
  %v1988 = vsel %vm130, %v1978, 0.0
  %1989 = vadd.xlane.f32.xlu0 %v1988
  %v1990 = vpop.xlane.xlu0 %1989
  %v1991 = vsel %vm130, %v1979, 0.0
  %1992 = vadd.xlane.f32.xlu0 %v1991
  %v1993 = vpop.xlane.xlu0 %1992
  %v1994 = vsel %vm130, %v1980, 0.0
  %1995 = vadd.xlane.f32.xlu0 %v1994
  %v1996 = vpop.xlane.xlu0 %1995
  %v1997 = vsel %vm130, %v1981, 0.0
  %1998 = vadd.xlane.f32.xlu0 %v1997
  %v1999 = vpop.xlane.xlu0 %1998
  %v2000 = vsel %vm130, %v1982, 0.0
  %2001 = vadd.xlane.f32.xlu0 %v2000
  %v2002 = vpop.xlane.xlu0 %2001
  %v2003 = vsel %vm130, %v1983, 0.0
  %2004 = vadd.xlane.f32.xlu0 %v2003
  %v2005 = vpop.xlane.xlu0 %2004
  %v2006 = vsel %vm130, %v1984, 0.0
  %2007 = vadd.xlane.f32.xlu0 %v2006
  %v2008 = vpop.xlane.xlu0 %2007
  %v2009 = vadd.f32 %v1937, %v1987
  %v2010 = vadd.f32 %v1938, %v1990
  %v2011 = vadd.f32 %v1939, %v1993
  %v2012 = vadd.f32 %v1940, %v1996
  %v2013 = vadd.f32 %v1941, %v1999
  %v2014 = vadd.f32 %v1942, %v2002
  %v2015 = vadd.f32 %v1943, %v2005
  %v2016 = vadd.f32 %v1944, %v2008
  %v2017 = vsel %vm130, %v1091, 0.0
  %2018 = vadd.xlane.f32.xlu0 %v2017
  %v2019 = vpop.xlane.xlu0 %2018
  %v2020 = vsel %vm130, %v1096, 0.0
  %2021 = vadd.xlane.f32.xlu0 %v2020
  %v2022 = vpop.xlane.xlu0 %2021
  %v2023 = vsel %vm130, %v1101, 0.0
  %2024 = vadd.xlane.f32.xlu0 %v2023
  %v2025 = vpop.xlane.xlu0 %2024
  %v2026 = vsel %vm130, %v1106, 0.0
  %2027 = vadd.xlane.f32.xlu0 %v2026
  %v2028 = vpop.xlane.xlu0 %2027
  %v2029 = vsel %vm130, %v1111, 0.0
  %2030 = vadd.xlane.f32.xlu0 %v2029
  %v2031 = vpop.xlane.xlu0 %2030
  %v2032 = vsel %vm130, %v1116, 0.0
  %2033 = vadd.xlane.f32.xlu0 %v2032
  %v2034 = vpop.xlane.xlu0 %2033
  %v2035 = vsel %vm130, %v1121, 0.0
  %2036 = vadd.xlane.f32.xlu0 %v2035
  %v2037 = vpop.xlane.xlu0 %2036
  %v2038 = vsel %vm130, %v1126, 0.0
  %2039 = vadd.xlane.f32.xlu0 %v2038
  %v2040 = vpop.xlane.xlu0 %2039
  %v2041 = vadd.f32 %v1969, %v2019
  %v2042 = vadd.f32 %v1970, %v2022
  %v2043 = vadd.f32 %v1971, %v2025
  %v2044 = vadd.f32 %v1972, %v2028
  %v2045 = vadd.f32 %v1973, %v2031
  %v2046 = vadd.f32 %v1974, %v2034
  %v2047 = vadd.f32 %v1975, %v2037
  %v2048 = vadd.f32 %v1976, %v2040
  %v2049 = vmul.f32 %v1091, %v1091
  %v2050 = vmul.f32 %v1096, %v1096
  %v2051 = vmul.f32 %v1101, %v1101
  %v2052 = vmul.f32 %v1106, %v1106
  %v2053 = vmul.f32 %v1111, %v1111
  %v2054 = vmul.f32 %v1116, %v1116
  %v2055 = vmul.f32 %v1121, %v1121
  %v2056 = vmul.f32 %v1126, %v1126
  %v2057 = vsel %vm130, %v2049, 0.0
  %2058 = vadd.xlane.f32.xlu0 %v2057
  %v2059 = vpop.xlane.xlu0 %2058
  %v2060 = vsel %vm130, %v2050, 0.0
  %2061 = vadd.xlane.f32.xlu0 %v2060
  %v2062 = vpop.xlane.xlu0 %2061
  %v2063 = vsel %vm130, %v2051, 0.0
  %2064 = vadd.xlane.f32.xlu0 %v2063
  %v2065 = vpop.xlane.xlu0 %2064
  %v2066 = vsel %vm130, %v2052, 0.0
  %2067 = vadd.xlane.f32.xlu0 %v2066
  %v2068 = vpop.xlane.xlu0 %2067
  %v2069 = vsel %vm130, %v2053, 0.0
  %2070 = vadd.xlane.f32.xlu0 %v2069
  %v2071 = vpop.xlane.xlu0 %2070
  %v2072 = vsel %vm130, %v2054, 0.0
  %2073 = vadd.xlane.f32.xlu0 %v2072
  %v2074 = vpop.xlane.xlu0 %2073
  %v2075 = vsel %vm130, %v2055, 0.0
  %2076 = vadd.xlane.f32.xlu0 %v2075
  %v2077 = vpop.xlane.xlu0 %2076
  %v2078 = vsel %vm130, %v2056, 0.0
  %2079 = vadd.xlane.f32.xlu0 %v2078
  %v2080 = vpop.xlane.xlu0 %2079
  %v2081 = vadd.f32 %v2009, %v2059
  %v2082 = vadd.f32 %v2010, %v2062
  %v2083 = vadd.f32 %v2011, %v2065
  %v2084 = vadd.f32 %v2012, %v2068
  %v2085 = vadd.f32 %v2013, %v2071
  %v2086 = vadd.f32 %v2014, %v2074
  %v2087 = vadd.f32 %v2015, %v2077
  %v2088 = vadd.f32 %v2016, %v2080
  %v2089 = vsel %vm130, %v1131, 0.0
  %2090 = vadd.xlane.f32.xlu0 %v2089
  %v2091 = vpop.xlane.xlu0 %2090
  %v2092 = vsel %vm130, %v1136, 0.0
  %2093 = vadd.xlane.f32.xlu0 %v2092
  %v2094 = vpop.xlane.xlu0 %2093
  %v2095 = vsel %vm130, %v1141, 0.0
  %2096 = vadd.xlane.f32.xlu0 %v2095
  %v2097 = vpop.xlane.xlu0 %2096
  %v2098 = vsel %vm130, %v1146, 0.0
  %2099 = vadd.xlane.f32.xlu0 %v2098
  %v2100 = vpop.xlane.xlu0 %2099
  %v2101 = vsel %vm130, %v1151, 0.0
  %2102 = vadd.xlane.f32.xlu0 %v2101
  %v2103 = vpop.xlane.xlu0 %2102
  %v2104 = vsel %vm130, %v1156, 0.0
  %2105 = vadd.xlane.f32.xlu0 %v2104
  %v2106 = vpop.xlane.xlu0 %2105
  %v2107 = vsel %vm130, %v1161, 0.0
  %2108 = vadd.xlane.f32.xlu0 %v2107
  %v2109 = vpop.xlane.xlu0 %2108
  %v2110 = vsel %vm130, %v1166, 0.0
  %2111 = vadd.xlane.f32.xlu0 %v2110
  %v2112 = vpop.xlane.xlu0 %2111
  %v2113 = vadd.f32 %v2041, %v2091
  %v2114 = vadd.f32 %v2042, %v2094
  %v2115 = vadd.f32 %v2043, %v2097
  %v2116 = vadd.f32 %v2044, %v2100
  %v2117 = vadd.f32 %v2045, %v2103
  %v2118 = vadd.f32 %v2046, %v2106
  %v2119 = vadd.f32 %v2047, %v2109
  %v2120 = vadd.f32 %v2048, %v2112
  %v2121 = vmul.f32 %v1131, %v1131
  %v2122 = vmul.f32 %v1136, %v1136
  %v2123 = vmul.f32 %v1141, %v1141
  %v2124 = vmul.f32 %v1146, %v1146
  %v2125 = vmul.f32 %v1151, %v1151
  %v2126 = vmul.f32 %v1156, %v1156
  %v2127 = vmul.f32 %v1161, %v1161
  %v2128 = vmul.f32 %v1166, %v1166
  %v2129 = vsel %vm130, %v2121, 0.0
  %2130 = vadd.xlane.f32.xlu0 %v2129
  %v2131 = vpop.xlane.xlu0 %2130
  %v2132 = vsel %vm130, %v2122, 0.0
  %2133 = vadd.xlane.f32.xlu0 %v2132
  %v2134 = vpop.xlane.xlu0 %2133
  %v2135 = vsel %vm130, %v2123, 0.0
  %2136 = vadd.xlane.f32.xlu0 %v2135
  %v2137 = vpop.xlane.xlu0 %2136
  %v2138 = vsel %vm130, %v2124, 0.0
  %2139 = vadd.xlane.f32.xlu0 %v2138
  %v2140 = vpop.xlane.xlu0 %2139
  %v2141 = vsel %vm130, %v2125, 0.0
  %2142 = vadd.xlane.f32.xlu0 %v2141
  %v2143 = vpop.xlane.xlu0 %2142
  %v2144 = vsel %vm130, %v2126, 0.0
  %2145 = vadd.xlane.f32.xlu0 %v2144
  %v2146 = vpop.xlane.xlu0 %2145
  %v2147 = vsel %vm130, %v2127, 0.0
  %2148 = vadd.xlane.f32.xlu0 %v2147
  %v2149 = vpop.xlane.xlu0 %2148
  %v2150 = vsel %vm130, %v2128, 0.0
  %2151 = vadd.xlane.f32.xlu0 %v2150
  %v2152 = vpop.xlane.xlu0 %2151
  %v2153 = vadd.f32 %v2081, %v2131
  %v2154 = vadd.f32 %v2082, %v2134
  %v2155 = vadd.f32 %v2083, %v2137
  %v2156 = vadd.f32 %v2084, %v2140
  %v2157 = vadd.f32 %v2085, %v2143
  %v2158 = vadd.f32 %v2086, %v2146
  %v2159 = vadd.f32 %v2087, %v2149
  %v2160 = vadd.f32 %v2088, %v2152
  %v2161 = vsel %vm130, %v1171, 0.0
  %2162 = vadd.xlane.f32.xlu0 %v2161
  %v2163 = vpop.xlane.xlu0 %2162
  %v2164 = vsel %vm130, %v1176, 0.0
  %2165 = vadd.xlane.f32.xlu0 %v2164
  %v2166 = vpop.xlane.xlu0 %2165
  %v2167 = vsel %vm130, %v1181, 0.0
  %2168 = vadd.xlane.f32.xlu0 %v2167
  %v2169 = vpop.xlane.xlu0 %2168
  %v2170 = vsel %vm130, %v1186, 0.0
  %2171 = vadd.xlane.f32.xlu0 %v2170
  %v2172 = vpop.xlane.xlu0 %2171
  %v2173 = vsel %vm130, %v1191, 0.0
  %2174 = vadd.xlane.f32.xlu0 %v2173
  %v2175 = vpop.xlane.xlu0 %2174
  %v2176 = vsel %vm130, %v1196, 0.0
  %2177 = vadd.xlane.f32.xlu0 %v2176
  %v2178 = vpop.xlane.xlu0 %2177
  %v2179 = vsel %vm130, %v1201, 0.0
  %2180 = vadd.xlane.f32.xlu0 %v2179
  %v2181 = vpop.xlane.xlu0 %2180
  %v2182 = vsel %vm130, %v1206, 0.0
  %2183 = vadd.xlane.f32.xlu0 %v2182
  %v2184 = vpop.xlane.xlu0 %2183
  %v2185 = vadd.f32 %v2113, %v2163
  %v2186 = vadd.f32 %v2114, %v2166
  %v2187 = vadd.f32 %v2115, %v2169
  %v2188 = vadd.f32 %v2116, %v2172
  %v2189 = vadd.f32 %v2117, %v2175
  %v2190 = vadd.f32 %v2118, %v2178
  %v2191 = vadd.f32 %v2119, %v2181
  %v2192 = vadd.f32 %v2120, %v2184
  %v2193 = vmul.f32 %v1171, %v1171
  %v2194 = vmul.f32 %v1176, %v1176
  %v2195 = vmul.f32 %v1181, %v1181
  %v2196 = vmul.f32 %v1186, %v1186
  %v2197 = vmul.f32 %v1191, %v1191
  %v2198 = vmul.f32 %v1196, %v1196
  %v2199 = vmul.f32 %v1201, %v1201
  %v2200 = vmul.f32 %v1206, %v1206
  %v2201 = vsel %vm130, %v2193, 0.0
  %2202 = vadd.xlane.f32.xlu0 %v2201
  %v2203 = vpop.xlane.xlu0 %2202
  %v2204 = vsel %vm130, %v2194, 0.0
  %2205 = vadd.xlane.f32.xlu0 %v2204
  %v2206 = vpop.xlane.xlu0 %2205
  %v2207 = vsel %vm130, %v2195, 0.0
  %2208 = vadd.xlane.f32.xlu0 %v2207
  %v2209 = vpop.xlane.xlu0 %2208
  %v2210 = vsel %vm130, %v2196, 0.0
  %2211 = vadd.xlane.f32.xlu0 %v2210
  %v2212 = vpop.xlane.xlu0 %2211
  %v2213 = vsel %vm130, %v2197, 0.0
  %2214 = vadd.xlane.f32.xlu0 %v2213
  %v2215 = vpop.xlane.xlu0 %2214
  %v2216 = vsel %vm130, %v2198, 0.0
  %2217 = vadd.xlane.f32.xlu0 %v2216
  %v2218 = vpop.xlane.xlu0 %2217
  %v2219 = vsel %vm130, %v2199, 0.0
  %2220 = vadd.xlane.f32.xlu0 %v2219
  %v2221 = vpop.xlane.xlu0 %2220
  %v2222 = vsel %vm130, %v2200, 0.0
  %2223 = vadd.xlane.f32.xlu0 %v2222
  %v2224 = vpop.xlane.xlu0 %2223
  %v2225 = vadd.f32 %v2153, %v2203
  %v2226 = vadd.f32 %v2154, %v2206
  %v2227 = vadd.f32 %v2155, %v2209
  %v2228 = vadd.f32 %v2156, %v2212
  %v2229 = vadd.f32 %v2157, %v2215
  %v2230 = vadd.f32 %v2158, %v2218
  %v2231 = vadd.f32 %v2159, %v2221
  %v2232 = vadd.f32 %v2160, %v2224
  %v2233 = vsel %vm130, %v1211, 0.0
  %2234 = vadd.xlane.f32.xlu0 %v2233
  %v2235 = vpop.xlane.xlu0 %2234
  %v2236 = vsel %vm130, %v1216, 0.0
  %2237 = vadd.xlane.f32.xlu0 %v2236
  %v2238 = vpop.xlane.xlu0 %2237
  %v2239 = vsel %vm130, %v1221, 0.0
  %2240 = vadd.xlane.f32.xlu0 %v2239
  %v2241 = vpop.xlane.xlu0 %2240
  %v2242 = vsel %vm130, %v1226, 0.0
  %2243 = vadd.xlane.f32.xlu0 %v2242
  %v2244 = vpop.xlane.xlu0 %2243
  %v2245 = vsel %vm130, %v1231, 0.0
  %2246 = vadd.xlane.f32.xlu0 %v2245
  %v2247 = vpop.xlane.xlu0 %2246
  %v2248 = vsel %vm130, %v1236, 0.0
  %2249 = vadd.xlane.f32.xlu0 %v2248
  %v2250 = vpop.xlane.xlu0 %2249
  %v2251 = vsel %vm130, %v1241, 0.0
  %2252 = vadd.xlane.f32.xlu0 %v2251
  %v2253 = vpop.xlane.xlu0 %2252
  %v2254 = vsel %vm130, %v1246, 0.0
  %2255 = vadd.xlane.f32.xlu0 %v2254
  %v2256 = vpop.xlane.xlu0 %2255
  %v2257 = vadd.f32 %v2185, %v2235
  %v2258 = vadd.f32 %v2186, %v2238
  %v2259 = vadd.f32 %v2187, %v2241
  %v2260 = vadd.f32 %v2188, %v2244
  %v2261 = vadd.f32 %v2189, %v2247
  %v2262 = vadd.f32 %v2190, %v2250
  %v2263 = vadd.f32 %v2191, %v2253
  %v2264 = vadd.f32 %v2192, %v2256
  %v2265 = vmul.f32 %v1211, %v1211
  %v2266 = vmul.f32 %v1216, %v1216
  %v2267 = vmul.f32 %v1221, %v1221
  %v2268 = vmul.f32 %v1226, %v1226
  %v2269 = vmul.f32 %v1231, %v1231
  %v2270 = vmul.f32 %v1236, %v1236
  %v2271 = vmul.f32 %v1241, %v1241
  %v2272 = vmul.f32 %v1246, %v1246
  %v2273 = vsel %vm130, %v2265, 0.0
  %2274 = vadd.xlane.f32.xlu0 %v2273
  %v2275 = vpop.xlane.xlu0 %2274
  %v2276 = vsel %vm130, %v2266, 0.0
  %2277 = vadd.xlane.f32.xlu0 %v2276
  %v2278 = vpop.xlane.xlu0 %2277
  %v2279 = vsel %vm130, %v2267, 0.0
  %2280 = vadd.xlane.f32.xlu0 %v2279
  %v2281 = vpop.xlane.xlu0 %2280
  %v2282 = vsel %vm130, %v2268, 0.0
  %2283 = vadd.xlane.f32.xlu0 %v2282
  %v2284 = vpop.xlane.xlu0 %2283
  %v2285 = vsel %vm130, %v2269, 0.0
  %2286 = vadd.xlane.f32.xlu0 %v2285
  %v2287 = vpop.xlane.xlu0 %2286
  %v2288 = vsel %vm130, %v2270, 0.0
  %2289 = vadd.xlane.f32.xlu0 %v2288
  %v2290 = vpop.xlane.xlu0 %2289
  %v2291 = vsel %vm130, %v2271, 0.0
  %2292 = vadd.xlane.f32.xlu0 %v2291
  %v2293 = vpop.xlane.xlu0 %2292
  %v2294 = vsel %vm130, %v2272, 0.0
  %2295 = vadd.xlane.f32.xlu0 %v2294
  %v2296 = vpop.xlane.xlu0 %2295
  %v2297 = vadd.f32 %v2225, %v2275
  %v2298 = vadd.f32 %v2226, %v2278
  %v2299 = vadd.f32 %v2227, %v2281
  %v2300 = vadd.f32 %v2228, %v2284
  %v2301 = vadd.f32 %v2229, %v2287
  %v2302 = vadd.f32 %v2230, %v2290
  %v2303 = vadd.f32 %v2231, %v2293
  %v2304 = vadd.f32 %v2232, %v2296
  %v2305 = vsel %vm130, %v1251, 0.0
  %2306 = vadd.xlane.f32.xlu0 %v2305
  %v2307 = vpop.xlane.xlu0 %2306
  %v2308 = vsel %vm130, %v1256, 0.0
  %2309 = vadd.xlane.f32.xlu0 %v2308
  %v2310 = vpop.xlane.xlu0 %2309
  %v2311 = vsel %vm130, %v1261, 0.0
  %2312 = vadd.xlane.f32.xlu0 %v2311
  %v2313 = vpop.xlane.xlu0 %2312
  %v2314 = vsel %vm130, %v1266, 0.0
  %2315 = vadd.xlane.f32.xlu0 %v2314
  %v2316 = vpop.xlane.xlu0 %2315
  %v2317 = vsel %vm130, %v1271, 0.0
  %2318 = vadd.xlane.f32.xlu0 %v2317
  %v2319 = vpop.xlane.xlu0 %2318
  %v2320 = vsel %vm130, %v1276, 0.0
  %2321 = vadd.xlane.f32.xlu0 %v2320
  %v2322 = vpop.xlane.xlu0 %2321
  %v2323 = vsel %vm130, %v1281, 0.0
  %2324 = vadd.xlane.f32.xlu0 %v2323
  %v2325 = vpop.xlane.xlu0 %2324
  %v2326 = vsel %vm130, %v1286, 0.0
  %2327 = vadd.xlane.f32.xlu0 %v2326
  %v2328 = vpop.xlane.xlu0 %2327
  %v2329 = vadd.f32 %v2257, %v2307
  %v2330 = vadd.f32 %v2258, %v2310
  %v2331 = vadd.f32 %v2259, %v2313
  %v2332 = vadd.f32 %v2260, %v2316
  %v2333 = vadd.f32 %v2261, %v2319
  %v2334 = vadd.f32 %v2262, %v2322
  %v2335 = vadd.f32 %v2263, %v2325
  %v2336 = vadd.f32 %v2264, %v2328
  %v2337 = vmul.f32 %v1251, %v1251
  %v2338 = vmul.f32 %v1256, %v1256
  %v2339 = vmul.f32 %v1261, %v1261
  %v2340 = vmul.f32 %v1266, %v1266
  %v2341 = vmul.f32 %v1271, %v1271
  %v2342 = vmul.f32 %v1276, %v1276
  %v2343 = vmul.f32 %v1281, %v1281
  %v2344 = vmul.f32 %v1286, %v1286
  %v2345 = vsel %vm130, %v2337, 0.0
  %2346 = vadd.xlane.f32.xlu0 %v2345
  %v2347 = vpop.xlane.xlu0 %2346
  %v2348 = vsel %vm130, %v2338, 0.0
  %2349 = vadd.xlane.f32.xlu0 %v2348
  %v2350 = vpop.xlane.xlu0 %2349
  %v2351 = vsel %vm130, %v2339, 0.0
  %2352 = vadd.xlane.f32.xlu0 %v2351
  %v2353 = vpop.xlane.xlu0 %2352
  %v2354 = vsel %vm130, %v2340, 0.0
  %2355 = vadd.xlane.f32.xlu0 %v2354
  %v2356 = vpop.xlane.xlu0 %2355
  %v2357 = vsel %vm130, %v2341, 0.0
  %2358 = vadd.xlane.f32.xlu0 %v2357
  %v2359 = vpop.xlane.xlu0 %2358
  %v2360 = vsel %vm130, %v2342, 0.0
  %2361 = vadd.xlane.f32.xlu0 %v2360
  %v2362 = vpop.xlane.xlu0 %2361
  %v2363 = vsel %vm130, %v2343, 0.0
  %2364 = vadd.xlane.f32.xlu0 %v2363
  %v2365 = vpop.xlane.xlu0 %2364
  %v2366 = vsel %vm130, %v2344, 0.0
  %2367 = vadd.xlane.f32.xlu0 %v2366
  %v2368 = vpop.xlane.xlu0 %2367
  %v2369 = vadd.f32 %v2297, %v2347
  %v2370 = vadd.f32 %v2298, %v2350
  %v2371 = vadd.f32 %v2299, %v2353
  %v2372 = vadd.f32 %v2300, %v2356
  %v2373 = vadd.f32 %v2301, %v2359
  %v2374 = vadd.f32 %v2302, %v2362
  %v2375 = vadd.f32 %v2303, %v2365
  %v2376 = vadd.f32 %v2304, %v2368
  %v2377 = vsel %vm130, %v1291, 0.0
  %2378 = vadd.xlane.f32.xlu0 %v2377
  %v2379 = vpop.xlane.xlu0 %2378
  %v2380 = vsel %vm130, %v1296, 0.0
  %2381 = vadd.xlane.f32.xlu0 %v2380
  %v2382 = vpop.xlane.xlu0 %2381
  %v2383 = vsel %vm130, %v1301, 0.0
  %2384 = vadd.xlane.f32.xlu0 %v2383
  %v2385 = vpop.xlane.xlu0 %2384
  %v2386 = vsel %vm130, %v1306, 0.0
  %2387 = vadd.xlane.f32.xlu0 %v2386
  %v2388 = vpop.xlane.xlu0 %2387
  %v2389 = vsel %vm130, %v1311, 0.0
  %2390 = vadd.xlane.f32.xlu0 %v2389
  %v2391 = vpop.xlane.xlu0 %2390
  %v2392 = vsel %vm130, %v1316, 0.0
  %2393 = vadd.xlane.f32.xlu0 %v2392
  %v2394 = vpop.xlane.xlu0 %2393
  %v2395 = vsel %vm130, %v1321, 0.0
  %2396 = vadd.xlane.f32.xlu0 %v2395
  %v2397 = vpop.xlane.xlu0 %2396
  %v2398 = vsel %vm130, %v1326, 0.0
  %2399 = vadd.xlane.f32.xlu0 %v2398
  %v2400 = vpop.xlane.xlu0 %2399
  %v2401 = vadd.f32 %v2329, %v2379
  %v2402 = vadd.f32 %v2330, %v2382
  %v2403 = vadd.f32 %v2331, %v2385
  %v2404 = vadd.f32 %v2332, %v2388
  %v2405 = vadd.f32 %v2333, %v2391
  %v2406 = vadd.f32 %v2334, %v2394
  %v2407 = vadd.f32 %v2335, %v2397
  %v2408 = vadd.f32 %v2336, %v2400
  %v2409 = vmul.f32 %v1291, %v1291
  %v2410 = vmul.f32 %v1296, %v1296
  %v2411 = vmul.f32 %v1301, %v1301
  %v2412 = vmul.f32 %v1306, %v1306
  %v2413 = vmul.f32 %v1311, %v1311
  %v2414 = vmul.f32 %v1316, %v1316
  %v2415 = vmul.f32 %v1321, %v1321
  %v2416 = vmul.f32 %v1326, %v1326
  %v2417 = vsel %vm130, %v2409, 0.0
  %2418 = vadd.xlane.f32.xlu0 %v2417
  %v2419 = vpop.xlane.xlu0 %2418
  %v2420 = vsel %vm130, %v2410, 0.0
  %2421 = vadd.xlane.f32.xlu0 %v2420
  %v2422 = vpop.xlane.xlu0 %2421
  %v2423 = vsel %vm130, %v2411, 0.0
  %2424 = vadd.xlane.f32.xlu0 %v2423
  %v2425 = vpop.xlane.xlu0 %2424
  %v2426 = vsel %vm130, %v2412, 0.0
  %2427 = vadd.xlane.f32.xlu0 %v2426
  %v2428 = vpop.xlane.xlu0 %2427
  %v2429 = vsel %vm130, %v2413, 0.0
  %2430 = vadd.xlane.f32.xlu0 %v2429
  %v2431 = vpop.xlane.xlu0 %2430
  %v2432 = vsel %vm130, %v2414, 0.0
  %2433 = vadd.xlane.f32.xlu0 %v2432
  %v2434 = vpop.xlane.xlu0 %2433
  %v2435 = vsel %vm130, %v2415, 0.0
  %2436 = vadd.xlane.f32.xlu0 %v2435
  %v2437 = vpop.xlane.xlu0 %2436
  %v2438 = vsel %vm130, %v2416, 0.0
  %2439 = vadd.xlane.f32.xlu0 %v2438
  %v2440 = vpop.xlane.xlu0 %2439
  %v2441 = vadd.f32 %v2369, %v2419
  %v2442 = vadd.f32 %v2370, %v2422
  %v2443 = vadd.f32 %v2371, %v2425
  %v2444 = vadd.f32 %v2372, %v2428
  %v2445 = vadd.f32 %v2373, %v2431
  %v2446 = vadd.f32 %v2374, %v2434
  %v2447 = vadd.f32 %v2375, %v2437
  %v2448 = vadd.f32 %v2376, %v2440
  %v2449 = vsel %vm130, %v1331, 0.0
  %2450 = vadd.xlane.f32.xlu0 %v2449
  %v2451 = vpop.xlane.xlu0 %2450
  %v2452 = vsel %vm130, %v1336, 0.0
  %2453 = vadd.xlane.f32.xlu0 %v2452
  %v2454 = vpop.xlane.xlu0 %2453
  %v2455 = vsel %vm130, %v1341, 0.0
  %2456 = vadd.xlane.f32.xlu0 %v2455
  %v2457 = vpop.xlane.xlu0 %2456
  %v2458 = vsel %vm130, %v1346, 0.0
  %2459 = vadd.xlane.f32.xlu0 %v2458
  %v2460 = vpop.xlane.xlu0 %2459
  %v2461 = vsel %vm130, %v1351, 0.0
  %2462 = vadd.xlane.f32.xlu0 %v2461
  %v2463 = vpop.xlane.xlu0 %2462
  %v2464 = vsel %vm130, %v1356, 0.0
  %2465 = vadd.xlane.f32.xlu0 %v2464
  %v2466 = vpop.xlane.xlu0 %2465
  %v2467 = vsel %vm130, %v1361, 0.0
  %2468 = vadd.xlane.f32.xlu0 %v2467
  %v2469 = vpop.xlane.xlu0 %2468
  %v2470 = vsel %vm130, %v1366, 0.0
  %2471 = vadd.xlane.f32.xlu0 %v2470
  %v2472 = vpop.xlane.xlu0 %2471
  %v2473 = vadd.f32 %v2401, %v2451
  %v2474 = vadd.f32 %v2402, %v2454
  %v2475 = vadd.f32 %v2403, %v2457
  %v2476 = vadd.f32 %v2404, %v2460
  %v2477 = vadd.f32 %v2405, %v2463
  %v2478 = vadd.f32 %v2406, %v2466
  %v2479 = vadd.f32 %v2407, %v2469
  %v2480 = vadd.f32 %v2408, %v2472
  %v2481 = vmul.f32 %v1331, %v1331
  %v2482 = vmul.f32 %v1336, %v1336
  %v2483 = vmul.f32 %v1341, %v1341
  %v2484 = vmul.f32 %v1346, %v1346
  %v2485 = vmul.f32 %v1351, %v1351
  %v2486 = vmul.f32 %v1356, %v1356
  %v2487 = vmul.f32 %v1361, %v1361
  %v2488 = vmul.f32 %v1366, %v1366
  %v2489 = vsel %vm130, %v2481, 0.0
  %2490 = vadd.xlane.f32.xlu0 %v2489
  %v2491 = vpop.xlane.xlu0 %2490
  %v2492 = vsel %vm130, %v2482, 0.0
  %2493 = vadd.xlane.f32.xlu0 %v2492
  %v2494 = vpop.xlane.xlu0 %2493
  %v2495 = vsel %vm130, %v2483, 0.0
  %2496 = vadd.xlane.f32.xlu0 %v2495
  %v2497 = vpop.xlane.xlu0 %2496
  %v2498 = vsel %vm130, %v2484, 0.0
  %2499 = vadd.xlane.f32.xlu0 %v2498
  %v2500 = vpop.xlane.xlu0 %2499
  %v2501 = vsel %vm130, %v2485, 0.0
  %2502 = vadd.xlane.f32.xlu0 %v2501
  %v2503 = vpop.xlane.xlu0 %2502
  %v2504 = vsel %vm130, %v2486, 0.0
  %2505 = vadd.xlane.f32.xlu0 %v2504
  %v2506 = vpop.xlane.xlu0 %2505
  %v2507 = vsel %vm130, %v2487, 0.0
  %2508 = vadd.xlane.f32.xlu0 %v2507
  %v2509 = vpop.xlane.xlu0 %2508
  %v2510 = vsel %vm130, %v2488, 0.0
  %2511 = vadd.xlane.f32.xlu0 %v2510
  %v2512 = vpop.xlane.xlu0 %2511
  %v2513 = vadd.f32 %v2441, %v2491
  %v2514 = vadd.f32 %v2442, %v2494
  %v2515 = vadd.f32 %v2443, %v2497
  %v2516 = vadd.f32 %v2444, %v2500
  %v2517 = vadd.f32 %v2445, %v2503
  %v2518 = vadd.f32 %v2446, %v2506
  %v2519 = vadd.f32 %v2447, %v2509
  %v2520 = vadd.f32 %v2448, %v2512
  %v2521 = vmul.f32 %v2473, 0.03125
  %v2522 = vmul.f32 %v2474, 0.03125
  %v2523 = vmul.f32 %v2475, 0.03125
  %v2524 = vmul.f32 %v2476, 0.03125
  %v2525 = vmul.f32 %v2477, 0.03125
  %v2526 = vmul.f32 %v2478, 0.03125
  %v2527 = vmul.f32 %v2479, 0.03125
  %v2528 = vmul.f32 %v2480, 0.03125
  %v2529 = vmul.f32 %v2513, 0.03125
  %v2530 = vmul.f32 %v2514, 0.03125
  %v2531 = vmul.f32 %v2515, 0.03125
  %v2532 = vmul.f32 %v2516, 0.03125
  %v2533 = vmul.f32 %v2517, 0.03125
  %v2534 = vmul.f32 %v2518, 0.03125
  %v2535 = vmul.f32 %v2519, 0.03125
  %v2536 = vmul.f32 %v2520, 0.03125
  %v2537 = vmul.f32 %v2521, %v2521
  %v2538 = vmul.f32 %v2522, %v2522
  %v2539 = vmul.f32 %v2523, %v2523
  %v2540 = vmul.f32 %v2524, %v2524
  %v2541 = vmul.f32 %v2525, %v2525
  %v2542 = vmul.f32 %v2526, %v2526
  %v2543 = vmul.f32 %v2527, %v2527
  %v2544 = vmul.f32 %v2528, %v2528
  %v2545 = vsub.f32 %v2529, %v2537
  %v2546 = vsub.f32 %v2530, %v2538
  %v2547 = vsub.f32 %v2531, %v2539
  %v2548 = vsub.f32 %v2532, %v2540
  %v2549 = vsub.f32 %v2533, %v2541
  %v2550 = vsub.f32 %v2534, %v2542
  %v2551 = vsub.f32 %v2535, %v2543
  %v2552 = vsub.f32 %v2536, %v2544
  %v2553 = vld [vmem:[%s4] sm:$0xff]
  %v2554 = vld [vmem:[%s4 + $0x8] sm:$0xff]
  %v2555 = vld [vmem:[%s4 + $0x10] sm:$0xff]
  %v2556 = vld [vmem:[%s4 + $0x18] sm:$0xff]
  %v2557 = vld [vmem:[%s4 + $0x20] sm:$0xff]
  %v2558 = vld [vmem:[%s4 + $0x28] sm:$0xff]
  %v2559 = vld [vmem:[%s4 + $0x30] sm:$0xff]
  %v2560 = vld [vmem:[%s4 + $0x38] sm:$0xff]
  %v2561 = vadd.f32 %v2545, 1e-05
  %v2562 = vadd.f32 %v2546, 1e-05
  %v2563 = vadd.f32 %v2547, 1e-05
  %v2564 = vadd.f32 %v2548, 1e-05
  %v2565 = vadd.f32 %v2549, 1e-05
  %v2566 = vadd.f32 %v2550, 1e-05
  %v2567 = vadd.f32 %v2551, 1e-05
  %v2568 = vadd.f32 %v2552, 1e-05
  %v2569 = vrsqrt.pop %v2561
  %v2570 = vrsqrt.pop %v2562
  %v2571 = vrsqrt.pop %v2563
  %v2572 = vrsqrt.pop %v2564
  %v2573 = vrsqrt.pop %v2565
  %v2574 = vrsqrt.pop %v2566
  %v2575 = vrsqrt.pop %v2567
  %v2576 = vrsqrt.pop %v2568
  %v2577 = vmul.f32 %v2553, %v2569
  %v2578 = vmul.f32 %v2554, %v2570
  %v2579 = vmul.f32 %v2555, %v2571
  %v2580 = vmul.f32 %v2556, %v2572
  %v2581 = vmul.f32 %v2557, %v2573
  %v2582 = vmul.f32 %v2558, %v2574
  %v2583 = vmul.f32 %v2559, %v2575
  %v2584 = vmul.f32 %v2560, %v2576
  %v2585 = vld [vmem:[%s5] sm:$0xff]
  %v2586 = vld [vmem:[%s5 + $0x8] sm:$0xff]
  %v2587 = vld [vmem:[%s5 + $0x10] sm:$0xff]
  %v2588 = vld [vmem:[%s5 + $0x18] sm:$0xff]
  %v2589 = vld [vmem:[%s5 + $0x20] sm:$0xff]
  %v2590 = vld [vmem:[%s5 + $0x28] sm:$0xff]
  %v2591 = vld [vmem:[%s5 + $0x30] sm:$0xff]
  %v2592 = vld [vmem:[%s5 + $0x38] sm:$0xff]
  %v2593 = vmul.f32 %v2521, %v2577
  %v2594 = vmul.f32 %v2522, %v2578
  %v2595 = vmul.f32 %v2523, %v2579
  %v2596 = vmul.f32 %v2524, %v2580
  %v2597 = vmul.f32 %v2525, %v2581
  %v2598 = vmul.f32 %v2526, %v2582
  %v2599 = vmul.f32 %v2527, %v2583
  %v2600 = vmul.f32 %v2528, %v2584
  %v2601 = vsub.f32 %v2585, %v2593
  %v2602 = vsub.f32 %v2586, %v2594
  %v2603 = vsub.f32 %v2587, %v2595
  %v2604 = vsub.f32 %v2588, %v2596
  %v2605 = vsub.f32 %v2589, %v2597
  %v2606 = vsub.f32 %v2590, %v2598
  %v2607 = vsub.f32 %v2591, %v2599
  %v2608 = vsub.f32 %v2592, %v2600
  %2610 = vset.pattern.permute.xlu0 0
  %2611 = vperm.xlu0 %2610, %v2577
  %v2612 = vpop.permute.xlu0 %2611
  %2615 = vset.pattern.permute.xlu0 0
  %2616 = vperm.xlu0 %2615, %v2578
  %v2617 = vpop.permute.xlu0 %2616
  %2620 = vset.pattern.permute.xlu0 0
  %2621 = vperm.xlu0 %2620, %v2579
  %v2622 = vpop.permute.xlu0 %2621
  %2625 = vset.pattern.permute.xlu0 0
  %2626 = vperm.xlu0 %2625, %v2580
  %v2627 = vpop.permute.xlu0 %2626
  %2630 = vset.pattern.permute.xlu0 0
  %2631 = vperm.xlu0 %2630, %v2581
  %v2632 = vpop.permute.xlu0 %2631
  %2635 = vset.pattern.permute.xlu0 0
  %2636 = vperm.xlu0 %2635, %v2582
  %v2637 = vpop.permute.xlu0 %2636
  %2640 = vset.pattern.permute.xlu0 0
  %2641 = vperm.xlu0 %2640, %v2583
  %v2642 = vpop.permute.xlu0 %2641
  %2645 = vset.pattern.permute.xlu0 0
  %2646 = vperm.xlu0 %2645, %v2584
  %v2647 = vpop.permute.xlu0 %2646
  %v2649 = vmul.f32 %v731, %v2612
  %v2650 = vmul.f32 %v736, %v2617
  %v2651 = vmul.f32 %v741, %v2622
  %v2652 = vmul.f32 %v746, %v2627
  %v2653 = vmul.f32 %v751, %v2632
  %v2654 = vmul.f32 %v756, %v2637
  %v2655 = vmul.f32 %v761, %v2642
  %v2656 = vmul.f32 %v766, %v2647
  %2658 = vset.pattern.permute.xlu0 0
  %2659 = vperm.xlu0 %2658, %v2601
  %v2660 = vpop.permute.xlu0 %2659
  %2663 = vset.pattern.permute.xlu0 0
  %2664 = vperm.xlu0 %2663, %v2602
  %v2665 = vpop.permute.xlu0 %2664
  %2668 = vset.pattern.permute.xlu0 0
  %2669 = vperm.xlu0 %2668, %v2603
  %v2670 = vpop.permute.xlu0 %2669
  %2673 = vset.pattern.permute.xlu0 0
  %2674 = vperm.xlu0 %2673, %v2604
  %v2675 = vpop.permute.xlu0 %2674
  %2678 = vset.pattern.permute.xlu0 0
  %2679 = vperm.xlu0 %2678, %v2605
  %v2680 = vpop.permute.xlu0 %2679
  %2683 = vset.pattern.permute.xlu0 0
  %2684 = vperm.xlu0 %2683, %v2606
  %v2685 = vpop.permute.xlu0 %2684
  %2688 = vset.pattern.permute.xlu0 0
  %2689 = vperm.xlu0 %2688, %v2607
  %v2690 = vpop.permute.xlu0 %2689
  %2693 = vset.pattern.permute.xlu0 0
  %2694 = vperm.xlu0 %2693, %v2608
  %v2695 = vpop.permute.xlu0 %2694
  %v2697 = vadd.f32 %v2649, %v2660
  %v2698 = vadd.f32 %v2650, %v2665
  %v2699 = vadd.f32 %v2651, %v2670
  %v2700 = vadd.f32 %v2652, %v2675
  %v2701 = vadd.f32 %v2653, %v2680
  %v2702 = vadd.f32 %v2654, %v2685
  %v2703 = vadd.f32 %v2655, %v2690
  %v2704 = vadd.f32 %v2656, %v2695
  %v2705 = vmax.f32 %v2697, 0.0
  %v2706 = vmax.f32 %v2698, 0.0
  %v2707 = vmax.f32 %v2699, 0.0
  %v2708 = vmax.f32 %v2700, 0.0
  %v2709 = vmax.f32 %v2701, 0.0
  %v2710 = vmax.f32 %v2702, 0.0
  %v2711 = vmax.f32 %v2703, 0.0
  %v2712 = vmax.f32 %v2704, 0.0
  %v2713 = vmul.f32 %v2705, %v2705
  %v2714 = vmul.f32 %v2706, %v2706
  %v2715 = vmul.f32 %v2707, %v2707
  %v2716 = vmul.f32 %v2708, %v2708
  %v2717 = vmul.f32 %v2709, %v2709
  %v2718 = vmul.f32 %v2710, %v2710
  %v2719 = vmul.f32 %v2711, %v2711
  %v2720 = vmul.f32 %v2712, %v2712
  %v2721 = vsel %vm130, %v2713, 0.0
  %v2722 = vsel %vm130, %v2714, 0.0
  %v2723 = vadd.f32 %v2721, %v2722
  %v2724 = vsel %vm130, %v2715, 0.0
  %v2725 = vadd.f32 %v2723, %v2724
  %v2726 = vsel %vm130, %v2716, 0.0
  %v2727 = vadd.f32 %v2725, %v2726
  %v2728 = vsel %vm130, %v2717, 0.0
  %v2729 = vadd.f32 %v2727, %v2728
  %v2730 = vsel %vm130, %v2718, 0.0
  %v2731 = vadd.f32 %v2729, %v2730
  %v2732 = vsel %vm130, %v2719, 0.0
  %v2733 = vadd.f32 %v2731, %v2732
  %v2734 = vsel %vm130, %v2720, 0.0
  %v2735 = vadd.f32 %v2733, %v2734
  %v2736 = vrot.slane %v2735, 4
  %v2737 = vadd.f32 %v2735, %v2736
  %v2738 = vrot.slane %v2737, 2
  %v2739 = vadd.f32 %v2737, %v2738
  %v2740 = vrot.slane %v2739, 1
  %v2741 = vadd.f32 %v2739, %v2740
  %v2742 = vrcp.pop 64.0
  %v2743 = vmul.f32 %v2741, %v2742
  %v2744 = vadd.f32 %v2743, 1e-10
  %v2745 = vrsqrt.pop %v2744
  %v2746 = vmul.f32 %v2705, %v2745
  %v2747 = vmul.f32 %v2706, %v2745
  %v2748 = vmul.f32 %v2707, %v2745
  %v2749 = vmul.f32 %v2708, %v2745
  %v2750 = vmul.f32 %v2709, %v2745
  %v2751 = vmul.f32 %v2710, %v2745
  %v2752 = vmul.f32 %v2711, %v2745
  %v2753 = vmul.f32 %v2712, %v2745
  %v2754 = vpack.c.bf16 %v2747, %v2746
  %v2755 = vpack.c.bf16 %v2749, %v2748
  %v2756 = vpack.c.bf16 %v2751, %v2750
  %v2757 = vpack.c.bf16 %v2753, %v2752
  %v2762 = vunpack.c.l.b16 %v2754
  %v2763 = vunpack.c.h.b16 %v2754
  %v2764 = vunpack.c.l.b16 %v2755
  %v2765 = vunpack.c.h.b16 %v2755
  %v2766 = vunpack.c.l.b16 %v2756
  %v2767 = vunpack.c.h.b16 %v2756
  %v2768 = vunpack.c.l.b16 %v2757
  %v2769 = vunpack.c.h.b16 %v2757
  %v2770 = vpack.c.b16 %v2762, %v2762
  %v2771 = vpack.c.b16 %v2763, %v2763
  %v2772 = vpack.c.b16 %v2764, %v2764
  %v2773 = vpack.c.b16 %v2765, %v2765
  %v2774 = vpack.c.b16 %v2766, %v2766
  %v2775 = vpack.c.b16 %v2767, %v2767
  %v2776 = vpack.c.b16 %v2768, %v2768
  %v2777 = vpack.c.b16 %v2769, %v2769
  %vm2786 = vcmask 11264
  %2787 = vst.msk [vmem:[%s6] sm:$0xf] %vm2786, %v2770
  %2788 = vst.msk [vmem:[%s6 + $0x4] sm:$0xf] %vm2786, %v2771
  %2789 = vst.msk [vmem:[%s6 + $0x8] sm:$0xf] %vm2786, %v2772
  %2790 = vst.msk [vmem:[%s6 + $0xc] sm:$0xf] %vm2786, %v2773
  %2791 = vst.msk [vmem:[%s6 + $0x10] sm:$0xf] %vm2786, %v2774
  %2792 = vst.msk [vmem:[%s6 + $0x14] sm:$0xf] %vm2786, %v2775
  %2793 = vst.msk [vmem:[%s6 + $0x18] sm:$0xf] %vm2786, %v2776
  %2794 = vst.msk [vmem:[%s6 + $0x1c] sm:$0xf] %vm2786, %v2777
  %v2795 = vmul.f32 %v771, %v2612
  %v2796 = vmul.f32 %v776, %v2617
  %v2797 = vmul.f32 %v781, %v2622
  %v2798 = vmul.f32 %v786, %v2627
  %v2799 = vmul.f32 %v791, %v2632
  %v2800 = vmul.f32 %v796, %v2637
  %v2801 = vmul.f32 %v801, %v2642
  %v2802 = vmul.f32 %v806, %v2647
  %v2803 = vadd.f32 %v2795, %v2660
  %v2804 = vadd.f32 %v2796, %v2665
  %v2805 = vadd.f32 %v2797, %v2670
  %v2806 = vadd.f32 %v2798, %v2675
  %v2807 = vadd.f32 %v2799, %v2680
  %v2808 = vadd.f32 %v2800, %v2685
  %v2809 = vadd.f32 %v2801, %v2690
  %v2810 = vadd.f32 %v2802, %v2695
  %v2811 = vmax.f32 %v2803, 0.0
  %v2812 = vmax.f32 %v2804, 0.0
  %v2813 = vmax.f32 %v2805, 0.0
  %v2814 = vmax.f32 %v2806, 0.0
  %v2815 = vmax.f32 %v2807, 0.0
  %v2816 = vmax.f32 %v2808, 0.0
  %v2817 = vmax.f32 %v2809, 0.0
  %v2818 = vmax.f32 %v2810, 0.0
  %v2819 = vmul.f32 %v2811, %v2811
  %v2820 = vmul.f32 %v2812, %v2812
  %v2821 = vmul.f32 %v2813, %v2813
  %v2822 = vmul.f32 %v2814, %v2814
  %v2823 = vmul.f32 %v2815, %v2815
  %v2824 = vmul.f32 %v2816, %v2816
  %v2825 = vmul.f32 %v2817, %v2817
  %v2826 = vmul.f32 %v2818, %v2818
  %v2827 = vsel %vm130, %v2819, 0.0
  %v2828 = vsel %vm130, %v2820, 0.0
  %v2829 = vadd.f32 %v2827, %v2828
  %v2830 = vsel %vm130, %v2821, 0.0
  %v2831 = vadd.f32 %v2829, %v2830
  %v2832 = vsel %vm130, %v2822, 0.0
  %v2833 = vadd.f32 %v2831, %v2832
  %v2834 = vsel %vm130, %v2823, 0.0
  %v2835 = vadd.f32 %v2833, %v2834
  %v2836 = vsel %vm130, %v2824, 0.0
  %v2837 = vadd.f32 %v2835, %v2836
  %v2838 = vsel %vm130, %v2825, 0.0
  %v2839 = vadd.f32 %v2837, %v2838
  %v2840 = vsel %vm130, %v2826, 0.0
  %v2841 = vadd.f32 %v2839, %v2840
  %v2842 = vrot.slane %v2841, 4
  %v2843 = vadd.f32 %v2841, %v2842
  %v2844 = vrot.slane %v2843, 2
  %v2845 = vadd.f32 %v2843, %v2844
  %v2846 = vrot.slane %v2845, 1
  %v2847 = vadd.f32 %v2845, %v2846
  %v2848 = vmul.f32 %v2847, %v2742
  %v2849 = vadd.f32 %v2848, 1e-10
  %v2850 = vrsqrt.pop %v2849
  %v2851 = vmul.f32 %v2811, %v2850
  %v2852 = vmul.f32 %v2812, %v2850
  %v2853 = vmul.f32 %v2813, %v2850
  %v2854 = vmul.f32 %v2814, %v2850
  %v2855 = vmul.f32 %v2815, %v2850
  %v2856 = vmul.f32 %v2816, %v2850
  %v2857 = vmul.f32 %v2817, %v2850
  %v2858 = vmul.f32 %v2818, %v2850
  %v2859 = vpack.c.bf16 %v2852, %v2851
  %v2860 = vpack.c.bf16 %v2854, %v2853
  %v2861 = vpack.c.bf16 %v2856, %v2855
  %v2862 = vpack.c.bf16 %v2858, %v2857
  %v2867 = vunpack.c.l.b16 %v2859
  %v2868 = vunpack.c.h.b16 %v2859
  %v2869 = vunpack.c.l.b16 %v2860
  %v2870 = vunpack.c.h.b16 %v2860
  %v2871 = vunpack.c.l.b16 %v2861
  %v2872 = vunpack.c.h.b16 %v2861
  %v2873 = vunpack.c.l.b16 %v2862
  %v2874 = vunpack.c.h.b16 %v2862
  %v2875 = vpack.c.b16 %v2867, %v2867
  %v2876 = vpack.c.b16 %v2868, %v2868
  %v2877 = vpack.c.b16 %v2869, %v2869
  %v2878 = vpack.c.b16 %v2870, %v2870
  %v2879 = vpack.c.b16 %v2871, %v2871
  %v2880 = vpack.c.b16 %v2872, %v2872
  %v2881 = vpack.c.b16 %v2873, %v2873
  %v2882 = vpack.c.b16 %v2874, %v2874
  %s2891 = scalar_lea.vmem %s6, 32
  %2892 = vst.msk [vmem:[%s2891] sm:$0xf] %vm2786, %v2875
  %2893 = vst.msk [vmem:[%s2891 + $0x4] sm:$0xf] %vm2786, %v2876
  %2894 = vst.msk [vmem:[%s2891 + $0x8] sm:$0xf] %vm2786, %v2877
  %2895 = vst.msk [vmem:[%s2891 + $0xc] sm:$0xf] %vm2786, %v2878
  %2896 = vst.msk [vmem:[%s2891 + $0x10] sm:$0xf] %vm2786, %v2879
  %2897 = vst.msk [vmem:[%s2891 + $0x14] sm:$0xf] %vm2786, %v2880
  %2898 = vst.msk [vmem:[%s2891 + $0x18] sm:$0xf] %vm2786, %v2881
  %2899 = vst.msk [vmem:[%s2891 + $0x1c] sm:$0xf] %vm2786, %v2882
  %v2900 = vmul.f32 %v811, %v2612
  %v2901 = vmul.f32 %v816, %v2617
  %v2902 = vmul.f32 %v821, %v2622
  %v2903 = vmul.f32 %v826, %v2627
  %v2904 = vmul.f32 %v831, %v2632
  %v2905 = vmul.f32 %v836, %v2637
  %v2906 = vmul.f32 %v841, %v2642
  %v2907 = vmul.f32 %v846, %v2647
  %v2908 = vadd.f32 %v2900, %v2660
  %v2909 = vadd.f32 %v2901, %v2665
  %v2910 = vadd.f32 %v2902, %v2670
  %v2911 = vadd.f32 %v2903, %v2675
  %v2912 = vadd.f32 %v2904, %v2680
  %v2913 = vadd.f32 %v2905, %v2685
  %v2914 = vadd.f32 %v2906, %v2690
  %v2915 = vadd.f32 %v2907, %v2695
  %v2916 = vmax.f32 %v2908, 0.0
  %v2917 = vmax.f32 %v2909, 0.0
  %v2918 = vmax.f32 %v2910, 0.0
  %v2919 = vmax.f32 %v2911, 0.0
  %v2920 = vmax.f32 %v2912, 0.0
  %v2921 = vmax.f32 %v2913, 0.0
  %v2922 = vmax.f32 %v2914, 0.0
  %v2923 = vmax.f32 %v2915, 0.0
  %v2924 = vmul.f32 %v2916, %v2916
  %v2925 = vmul.f32 %v2917, %v2917
  %v2926 = vmul.f32 %v2918, %v2918
  %v2927 = vmul.f32 %v2919, %v2919
  %v2928 = vmul.f32 %v2920, %v2920
  %v2929 = vmul.f32 %v2921, %v2921
  %v2930 = vmul.f32 %v2922, %v2922
  %v2931 = vmul.f32 %v2923, %v2923
  %v2932 = vsel %vm130, %v2924, 0.0
  %v2933 = vsel %vm130, %v2925, 0.0
  %v2934 = vadd.f32 %v2932, %v2933
  %v2935 = vsel %vm130, %v2926, 0.0
  %v2936 = vadd.f32 %v2934, %v2935
  %v2937 = vsel %vm130, %v2927, 0.0
  %v2938 = vadd.f32 %v2936, %v2937
  %v2939 = vsel %vm130, %v2928, 0.0
  %v2940 = vadd.f32 %v2938, %v2939
  %v2941 = vsel %vm130, %v2929, 0.0
  %v2942 = vadd.f32 %v2940, %v2941
  %v2943 = vsel %vm130, %v2930, 0.0
  %v2944 = vadd.f32 %v2942, %v2943
  %v2945 = vsel %vm130, %v2931, 0.0
  %v2946 = vadd.f32 %v2944, %v2945
  %v2947 = vrot.slane %v2946, 4
  %v2948 = vadd.f32 %v2946, %v2947
  %v2949 = vrot.slane %v2948, 2
  %v2950 = vadd.f32 %v2948, %v2949
  %v2951 = vrot.slane %v2950, 1
  %v2952 = vadd.f32 %v2950, %v2951
  %v2953 = vmul.f32 %v2952, %v2742
  %v2954 = vadd.f32 %v2953, 1e-10
  %v2955 = vrsqrt.pop %v2954
  %v2956 = vmul.f32 %v2916, %v2955
  %v2957 = vmul.f32 %v2917, %v2955
  %v2958 = vmul.f32 %v2918, %v2955
  %v2959 = vmul.f32 %v2919, %v2955
  %v2960 = vmul.f32 %v2920, %v2955
  %v2961 = vmul.f32 %v2921, %v2955
  %v2962 = vmul.f32 %v2922, %v2955
  %v2963 = vmul.f32 %v2923, %v2955
  %v2964 = vpack.c.bf16 %v2957, %v2956
  %v2965 = vpack.c.bf16 %v2959, %v2958
  %v2966 = vpack.c.bf16 %v2961, %v2960
  %v2967 = vpack.c.bf16 %v2963, %v2962
  %v2972 = vunpack.c.l.b16 %v2964
  %v2973 = vunpack.c.h.b16 %v2964
  %v2974 = vunpack.c.l.b16 %v2965
  %v2975 = vunpack.c.h.b16 %v2965
  %v2976 = vunpack.c.l.b16 %v2966
  %v2977 = vunpack.c.h.b16 %v2966
  %v2978 = vunpack.c.l.b16 %v2967
  %v2979 = vunpack.c.h.b16 %v2967
  %v2980 = vpack.c.b16 %v2972, %v2972
  %v2981 = vpack.c.b16 %v2973, %v2973
  %v2982 = vpack.c.b16 %v2974, %v2974
  %v2983 = vpack.c.b16 %v2975, %v2975
  %v2984 = vpack.c.b16 %v2976, %v2976
  %v2985 = vpack.c.b16 %v2977, %v2977
  %v2986 = vpack.c.b16 %v2978, %v2978
  %v2987 = vpack.c.b16 %v2979, %v2979
  %s2996 = scalar_lea.vmem %s6, 64
  %2997 = vst.msk [vmem:[%s2996] sm:$0xf] %vm2786, %v2980
  %2998 = vst.msk [vmem:[%s2996 + $0x4] sm:$0xf] %vm2786, %v2981
  %2999 = vst.msk [vmem:[%s2996 + $0x8] sm:$0xf] %vm2786, %v2982
  %3000 = vst.msk [vmem:[%s2996 + $0xc] sm:$0xf] %vm2786, %v2983
  %3001 = vst.msk [vmem:[%s2996 + $0x10] sm:$0xf] %vm2786, %v2984
  %3002 = vst.msk [vmem:[%s2996 + $0x14] sm:$0xf] %vm2786, %v2985
  %3003 = vst.msk [vmem:[%s2996 + $0x18] sm:$0xf] %vm2786, %v2986
  %3004 = vst.msk [vmem:[%s2996 + $0x1c] sm:$0xf] %vm2786, %v2987
  %v3005 = vmul.f32 %v851, %v2612
  %v3006 = vmul.f32 %v856, %v2617
  %v3007 = vmul.f32 %v861, %v2622
  %v3008 = vmul.f32 %v866, %v2627
  %v3009 = vmul.f32 %v871, %v2632
  %v3010 = vmul.f32 %v876, %v2637
  %v3011 = vmul.f32 %v881, %v2642
  %v3012 = vmul.f32 %v886, %v2647
  %v3013 = vadd.f32 %v3005, %v2660
  %v3014 = vadd.f32 %v3006, %v2665
  %v3015 = vadd.f32 %v3007, %v2670
  %v3016 = vadd.f32 %v3008, %v2675
  %v3017 = vadd.f32 %v3009, %v2680
  %v3018 = vadd.f32 %v3010, %v2685
  %v3019 = vadd.f32 %v3011, %v2690
  %v3020 = vadd.f32 %v3012, %v2695
  %v3021 = vmax.f32 %v3013, 0.0
  %v3022 = vmax.f32 %v3014, 0.0
  %v3023 = vmax.f32 %v3015, 0.0
  %v3024 = vmax.f32 %v3016, 0.0
  %v3025 = vmax.f32 %v3017, 0.0
  %v3026 = vmax.f32 %v3018, 0.0
  %v3027 = vmax.f32 %v3019, 0.0
  %v3028 = vmax.f32 %v3020, 0.0
  %v3029 = vmul.f32 %v3021, %v3021
  %v3030 = vmul.f32 %v3022, %v3022
  %v3031 = vmul.f32 %v3023, %v3023
  %v3032 = vmul.f32 %v3024, %v3024
  %v3033 = vmul.f32 %v3025, %v3025
  %v3034 = vmul.f32 %v3026, %v3026
  %v3035 = vmul.f32 %v3027, %v3027
  %v3036 = vmul.f32 %v3028, %v3028
  %v3037 = vsel %vm130, %v3029, 0.0
  %v3038 = vsel %vm130, %v3030, 0.0
  %v3039 = vadd.f32 %v3037, %v3038
  %v3040 = vsel %vm130, %v3031, 0.0
  %v3041 = vadd.f32 %v3039, %v3040
  %v3042 = vsel %vm130, %v3032, 0.0
  %v3043 = vadd.f32 %v3041, %v3042
  %v3044 = vsel %vm130, %v3033, 0.0
  %v3045 = vadd.f32 %v3043, %v3044
  %v3046 = vsel %vm130, %v3034, 0.0
  %v3047 = vadd.f32 %v3045, %v3046
  %v3048 = vsel %vm130, %v3035, 0.0
  %v3049 = vadd.f32 %v3047, %v3048
  %v3050 = vsel %vm130, %v3036, 0.0
  %v3051 = vadd.f32 %v3049, %v3050
  %v3052 = vrot.slane %v3051, 4
  %v3053 = vadd.f32 %v3051, %v3052
  %v3054 = vrot.slane %v3053, 2
  %v3055 = vadd.f32 %v3053, %v3054
  %v3056 = vrot.slane %v3055, 1
  %v3057 = vadd.f32 %v3055, %v3056
  %v3058 = vmul.f32 %v3057, %v2742
  %v3059 = vadd.f32 %v3058, 1e-10
  %v3060 = vrsqrt.pop %v3059
  %v3061 = vmul.f32 %v3021, %v3060
  %v3062 = vmul.f32 %v3022, %v3060
  %v3063 = vmul.f32 %v3023, %v3060
  %v3064 = vmul.f32 %v3024, %v3060
  %v3065 = vmul.f32 %v3025, %v3060
  %v3066 = vmul.f32 %v3026, %v3060
  %v3067 = vmul.f32 %v3027, %v3060
  %v3068 = vmul.f32 %v3028, %v3060
  %v3069 = vpack.c.bf16 %v3062, %v3061
  %v3070 = vpack.c.bf16 %v3064, %v3063
  %v3071 = vpack.c.bf16 %v3066, %v3065
  %v3072 = vpack.c.bf16 %v3068, %v3067
  %v3077 = vunpack.c.l.b16 %v3069
  %v3078 = vunpack.c.h.b16 %v3069
  %v3079 = vunpack.c.l.b16 %v3070
  %v3080 = vunpack.c.h.b16 %v3070
  %v3081 = vunpack.c.l.b16 %v3071
  %v3082 = vunpack.c.h.b16 %v3071
  %v3083 = vunpack.c.l.b16 %v3072
  %v3084 = vunpack.c.h.b16 %v3072
  %v3085 = vpack.c.b16 %v3077, %v3077
  %v3086 = vpack.c.b16 %v3078, %v3078
  %v3087 = vpack.c.b16 %v3079, %v3079
  %v3088 = vpack.c.b16 %v3080, %v3080
  %v3089 = vpack.c.b16 %v3081, %v3081
  %v3090 = vpack.c.b16 %v3082, %v3082
  %v3091 = vpack.c.b16 %v3083, %v3083
  %v3092 = vpack.c.b16 %v3084, %v3084
  %s3101 = scalar_lea.vmem %s6, 96
  %3102 = vst.msk [vmem:[%s3101] sm:$0xf] %vm2786, %v3085
  %3103 = vst.msk [vmem:[%s3101 + $0x4] sm:$0xf] %vm2786, %v3086
  %3104 = vst.msk [vmem:[%s3101 + $0x8] sm:$0xf] %vm2786, %v3087
  %3105 = vst.msk [vmem:[%s3101 + $0xc] sm:$0xf] %vm2786, %v3088
  %3106 = vst.msk [vmem:[%s3101 + $0x10] sm:$0xf] %vm2786, %v3089
  %3107 = vst.msk [vmem:[%s3101 + $0x14] sm:$0xf] %vm2786, %v3090
  %3108 = vst.msk [vmem:[%s3101 + $0x18] sm:$0xf] %vm2786, %v3091
  %3109 = vst.msk [vmem:[%s3101 + $0x1c] sm:$0xf] %vm2786, %v3092
  %v3110 = vmul.f32 %v891, %v2612
  %v3111 = vmul.f32 %v896, %v2617
  %v3112 = vmul.f32 %v901, %v2622
  %v3113 = vmul.f32 %v906, %v2627
  %v3114 = vmul.f32 %v911, %v2632
  %v3115 = vmul.f32 %v916, %v2637
  %v3116 = vmul.f32 %v921, %v2642
  %v3117 = vmul.f32 %v926, %v2647
  %v3118 = vadd.f32 %v3110, %v2660
  %v3119 = vadd.f32 %v3111, %v2665
  %v3120 = vadd.f32 %v3112, %v2670
  %v3121 = vadd.f32 %v3113, %v2675
  %v3122 = vadd.f32 %v3114, %v2680
  %v3123 = vadd.f32 %v3115, %v2685
  %v3124 = vadd.f32 %v3116, %v2690
  %v3125 = vadd.f32 %v3117, %v2695
  %v3126 = vmax.f32 %v3118, 0.0
  %v3127 = vmax.f32 %v3119, 0.0
  %v3128 = vmax.f32 %v3120, 0.0
  %v3129 = vmax.f32 %v3121, 0.0
  %v3130 = vmax.f32 %v3122, 0.0
  %v3131 = vmax.f32 %v3123, 0.0
  %v3132 = vmax.f32 %v3124, 0.0
  %v3133 = vmax.f32 %v3125, 0.0
  %v3134 = vmul.f32 %v3126, %v3126
  %v3135 = vmul.f32 %v3127, %v3127
  %v3136 = vmul.f32 %v3128, %v3128
  %v3137 = vmul.f32 %v3129, %v3129
  %v3138 = vmul.f32 %v3130, %v3130
  %v3139 = vmul.f32 %v3131, %v3131
  %v3140 = vmul.f32 %v3132, %v3132
  %v3141 = vmul.f32 %v3133, %v3133
  %v3142 = vsel %vm130, %v3134, 0.0
  %v3143 = vsel %vm130, %v3135, 0.0
  %v3144 = vadd.f32 %v3142, %v3143
  %v3145 = vsel %vm130, %v3136, 0.0
  %v3146 = vadd.f32 %v3144, %v3145
  %v3147 = vsel %vm130, %v3137, 0.0
  %v3148 = vadd.f32 %v3146, %v3147
  %v3149 = vsel %vm130, %v3138, 0.0
  %v3150 = vadd.f32 %v3148, %v3149
  %v3151 = vsel %vm130, %v3139, 0.0
  %v3152 = vadd.f32 %v3150, %v3151
  %v3153 = vsel %vm130, %v3140, 0.0
  %v3154 = vadd.f32 %v3152, %v3153
  %v3155 = vsel %vm130, %v3141, 0.0
  %v3156 = vadd.f32 %v3154, %v3155
  %v3157 = vrot.slane %v3156, 4
  %v3158 = vadd.f32 %v3156, %v3157
  %v3159 = vrot.slane %v3158, 2
  %v3160 = vadd.f32 %v3158, %v3159
  %v3161 = vrot.slane %v3160, 1
  %v3162 = vadd.f32 %v3160, %v3161
  %v3163 = vmul.f32 %v3162, %v2742
  %v3164 = vadd.f32 %v3163, 1e-10
  %v3165 = vrsqrt.pop %v3164
  %v3166 = vmul.f32 %v3126, %v3165
  %v3167 = vmul.f32 %v3127, %v3165
  %v3168 = vmul.f32 %v3128, %v3165
  %v3169 = vmul.f32 %v3129, %v3165
  %v3170 = vmul.f32 %v3130, %v3165
  %v3171 = vmul.f32 %v3131, %v3165
  %v3172 = vmul.f32 %v3132, %v3165
  %v3173 = vmul.f32 %v3133, %v3165
  %v3174 = vpack.c.bf16 %v3167, %v3166
  %v3175 = vpack.c.bf16 %v3169, %v3168
  %v3176 = vpack.c.bf16 %v3171, %v3170
  %v3177 = vpack.c.bf16 %v3173, %v3172
  %v3182 = vunpack.c.l.b16 %v3174
  %v3183 = vunpack.c.h.b16 %v3174
  %v3184 = vunpack.c.l.b16 %v3175
  %v3185 = vunpack.c.h.b16 %v3175
  %v3186 = vunpack.c.l.b16 %v3176
  %v3187 = vunpack.c.h.b16 %v3176
  %v3188 = vunpack.c.l.b16 %v3177
  %v3189 = vunpack.c.h.b16 %v3177
  %v3190 = vpack.c.b16 %v3182, %v3182
  %v3191 = vpack.c.b16 %v3183, %v3183
  %v3192 = vpack.c.b16 %v3184, %v3184
  %v3193 = vpack.c.b16 %v3185, %v3185
  %v3194 = vpack.c.b16 %v3186, %v3186
  %v3195 = vpack.c.b16 %v3187, %v3187
  %v3196 = vpack.c.b16 %v3188, %v3188
  %v3197 = vpack.c.b16 %v3189, %v3189
  %s3206 = scalar_lea.vmem %s6, 128
  %3207 = vst.msk [vmem:[%s3206] sm:$0xf] %vm2786, %v3190
  %3208 = vst.msk [vmem:[%s3206 + $0x4] sm:$0xf] %vm2786, %v3191
  %3209 = vst.msk [vmem:[%s3206 + $0x8] sm:$0xf] %vm2786, %v3192
  %3210 = vst.msk [vmem:[%s3206 + $0xc] sm:$0xf] %vm2786, %v3193
  %3211 = vst.msk [vmem:[%s3206 + $0x10] sm:$0xf] %vm2786, %v3194
  %3212 = vst.msk [vmem:[%s3206 + $0x14] sm:$0xf] %vm2786, %v3195
  %3213 = vst.msk [vmem:[%s3206 + $0x18] sm:$0xf] %vm2786, %v3196
  %3214 = vst.msk [vmem:[%s3206 + $0x1c] sm:$0xf] %vm2786, %v3197
  %v3215 = vmul.f32 %v931, %v2612
  %v3216 = vmul.f32 %v936, %v2617
  %v3217 = vmul.f32 %v941, %v2622
  %v3218 = vmul.f32 %v946, %v2627
  %v3219 = vmul.f32 %v951, %v2632
  %v3220 = vmul.f32 %v956, %v2637
  %v3221 = vmul.f32 %v961, %v2642
  %v3222 = vmul.f32 %v966, %v2647
  %v3223 = vadd.f32 %v3215, %v2660
  %v3224 = vadd.f32 %v3216, %v2665
  %v3225 = vadd.f32 %v3217, %v2670
  %v3226 = vadd.f32 %v3218, %v2675
  %v3227 = vadd.f32 %v3219, %v2680
  %v3228 = vadd.f32 %v3220, %v2685
  %v3229 = vadd.f32 %v3221, %v2690
  %v3230 = vadd.f32 %v3222, %v2695
  %v3231 = vmax.f32 %v3223, 0.0
  %v3232 = vmax.f32 %v3224, 0.0
  %v3233 = vmax.f32 %v3225, 0.0
  %v3234 = vmax.f32 %v3226, 0.0
  %v3235 = vmax.f32 %v3227, 0.0
  %v3236 = vmax.f32 %v3228, 0.0
  %v3237 = vmax.f32 %v3229, 0.0
  %v3238 = vmax.f32 %v3230, 0.0
  %v3239 = vmul.f32 %v3231, %v3231
  %v3240 = vmul.f32 %v3232, %v3232
  %v3241 = vmul.f32 %v3233, %v3233
  %v3242 = vmul.f32 %v3234, %v3234
  %v3243 = vmul.f32 %v3235, %v3235
  %v3244 = vmul.f32 %v3236, %v3236
  %v3245 = vmul.f32 %v3237, %v3237
  %v3246 = vmul.f32 %v3238, %v3238
  %v3247 = vsel %vm130, %v3239, 0.0
  %v3248 = vsel %vm130, %v3240, 0.0
  %v3249 = vadd.f32 %v3247, %v3248
  %v3250 = vsel %vm130, %v3241, 0.0
  %v3251 = vadd.f32 %v3249, %v3250
  %v3252 = vsel %vm130, %v3242, 0.0
  %v3253 = vadd.f32 %v3251, %v3252
  %v3254 = vsel %vm130, %v3243, 0.0
  %v3255 = vadd.f32 %v3253, %v3254
  %v3256 = vsel %vm130, %v3244, 0.0
  %v3257 = vadd.f32 %v3255, %v3256
  %v3258 = vsel %vm130, %v3245, 0.0
  %v3259 = vadd.f32 %v3257, %v3258
  %v3260 = vsel %vm130, %v3246, 0.0
  %v3261 = vadd.f32 %v3259, %v3260
  %v3262 = vrot.slane %v3261, 4
  %v3263 = vadd.f32 %v3261, %v3262
  %v3264 = vrot.slane %v3263, 2
  %v3265 = vadd.f32 %v3263, %v3264
  %v3266 = vrot.slane %v3265, 1
  %v3267 = vadd.f32 %v3265, %v3266
  %v3268 = vmul.f32 %v3267, %v2742
  %v3269 = vadd.f32 %v3268, 1e-10
  %v3270 = vrsqrt.pop %v3269
  %v3271 = vmul.f32 %v3231, %v3270
  %v3272 = vmul.f32 %v3232, %v3270
  %v3273 = vmul.f32 %v3233, %v3270
  %v3274 = vmul.f32 %v3234, %v3270
  %v3275 = vmul.f32 %v3235, %v3270
  %v3276 = vmul.f32 %v3236, %v3270
  %v3277 = vmul.f32 %v3237, %v3270
  %v3278 = vmul.f32 %v3238, %v3270
  %v3279 = vpack.c.bf16 %v3272, %v3271
  %v3280 = vpack.c.bf16 %v3274, %v3273
  %v3281 = vpack.c.bf16 %v3276, %v3275
  %v3282 = vpack.c.bf16 %v3278, %v3277
  %v3287 = vunpack.c.l.b16 %v3279
  %v3288 = vunpack.c.h.b16 %v3279
  %v3289 = vunpack.c.l.b16 %v3280
  %v3290 = vunpack.c.h.b16 %v3280
  %v3291 = vunpack.c.l.b16 %v3281
  %v3292 = vunpack.c.h.b16 %v3281
  %v3293 = vunpack.c.l.b16 %v3282
  %v3294 = vunpack.c.h.b16 %v3282
  %v3295 = vpack.c.b16 %v3287, %v3287
  %v3296 = vpack.c.b16 %v3288, %v3288
  %v3297 = vpack.c.b16 %v3289, %v3289
  %v3298 = vpack.c.b16 %v3290, %v3290
  %v3299 = vpack.c.b16 %v3291, %v3291
  %v3300 = vpack.c.b16 %v3292, %v3292
  %v3301 = vpack.c.b16 %v3293, %v3293
  %v3302 = vpack.c.b16 %v3294, %v3294
  %s3311 = scalar_lea.vmem %s6, 160
  %3312 = vst.msk [vmem:[%s3311] sm:$0xf] %vm2786, %v3295
  %3313 = vst.msk [vmem:[%s3311 + $0x4] sm:$0xf] %vm2786, %v3296
  %3314 = vst.msk [vmem:[%s3311 + $0x8] sm:$0xf] %vm2786, %v3297
  %3315 = vst.msk [vmem:[%s3311 + $0xc] sm:$0xf] %vm2786, %v3298
  %3316 = vst.msk [vmem:[%s3311 + $0x10] sm:$0xf] %vm2786, %v3299
  %3317 = vst.msk [vmem:[%s3311 + $0x14] sm:$0xf] %vm2786, %v3300
  %3318 = vst.msk [vmem:[%s3311 + $0x18] sm:$0xf] %vm2786, %v3301
  %3319 = vst.msk [vmem:[%s3311 + $0x1c] sm:$0xf] %vm2786, %v3302
  %v3320 = vmul.f32 %v971, %v2612
  %v3321 = vmul.f32 %v976, %v2617
  %v3322 = vmul.f32 %v981, %v2622
  %v3323 = vmul.f32 %v986, %v2627
  %v3324 = vmul.f32 %v991, %v2632
  %v3325 = vmul.f32 %v996, %v2637
  %v3326 = vmul.f32 %v1001, %v2642
  %v3327 = vmul.f32 %v1006, %v2647
  %v3328 = vadd.f32 %v3320, %v2660
  %v3329 = vadd.f32 %v3321, %v2665
  %v3330 = vadd.f32 %v3322, %v2670
  %v3331 = vadd.f32 %v3323, %v2675
  %v3332 = vadd.f32 %v3324, %v2680
  %v3333 = vadd.f32 %v3325, %v2685
  %v3334 = vadd.f32 %v3326, %v2690
  %v3335 = vadd.f32 %v3327, %v2695
  %v3336 = vmax.f32 %v3328, 0.0
  %v3337 = vmax.f32 %v3329, 0.0
  %v3338 = vmax.f32 %v3330, 0.0
  %v3339 = vmax.f32 %v3331, 0.0
  %v3340 = vmax.f32 %v3332, 0.0
  %v3341 = vmax.f32 %v3333, 0.0
  %v3342 = vmax.f32 %v3334, 0.0
  %v3343 = vmax.f32 %v3335, 0.0
  %v3344 = vmul.f32 %v3336, %v3336
  %v3345 = vmul.f32 %v3337, %v3337
  %v3346 = vmul.f32 %v3338, %v3338
  %v3347 = vmul.f32 %v3339, %v3339
  %v3348 = vmul.f32 %v3340, %v3340
  %v3349 = vmul.f32 %v3341, %v3341
  %v3350 = vmul.f32 %v3342, %v3342
  %v3351 = vmul.f32 %v3343, %v3343
  %v3352 = vsel %vm130, %v3344, 0.0
  %v3353 = vsel %vm130, %v3345, 0.0
  %v3354 = vadd.f32 %v3352, %v3353
  %v3355 = vsel %vm130, %v3346, 0.0
  %v3356 = vadd.f32 %v3354, %v3355
  %v3357 = vsel %vm130, %v3347, 0.0
  %v3358 = vadd.f32 %v3356, %v3357
  %v3359 = vsel %vm130, %v3348, 0.0
  %v3360 = vadd.f32 %v3358, %v3359
  %v3361 = vsel %vm130, %v3349, 0.0
  %v3362 = vadd.f32 %v3360, %v3361
  %v3363 = vsel %vm130, %v3350, 0.0
  %v3364 = vadd.f32 %v3362, %v3363
  %v3365 = vsel %vm130, %v3351, 0.0
  %v3366 = vadd.f32 %v3364, %v3365
  %v3367 = vrot.slane %v3366, 4
  %v3368 = vadd.f32 %v3366, %v3367
  %v3369 = vrot.slane %v3368, 2
  %v3370 = vadd.f32 %v3368, %v3369
  %v3371 = vrot.slane %v3370, 1
  %v3372 = vadd.f32 %v3370, %v3371
  %v3373 = vmul.f32 %v3372, %v2742
  %v3374 = vadd.f32 %v3373, 1e-10
  %v3375 = vrsqrt.pop %v3374
  %v3376 = vmul.f32 %v3336, %v3375
  %v3377 = vmul.f32 %v3337, %v3375
  %v3378 = vmul.f32 %v3338, %v3375
  %v3379 = vmul.f32 %v3339, %v3375
  %v3380 = vmul.f32 %v3340, %v3375
  %v3381 = vmul.f32 %v3341, %v3375
  %v3382 = vmul.f32 %v3342, %v3375
  %v3383 = vmul.f32 %v3343, %v3375
  %v3384 = vpack.c.bf16 %v3377, %v3376
  %v3385 = vpack.c.bf16 %v3379, %v3378
  %v3386 = vpack.c.bf16 %v3381, %v3380
  %v3387 = vpack.c.bf16 %v3383, %v3382
  %v3392 = vunpack.c.l.b16 %v3384
  %v3393 = vunpack.c.h.b16 %v3384
  %v3394 = vunpack.c.l.b16 %v3385
  %v3395 = vunpack.c.h.b16 %v3385
  %v3396 = vunpack.c.l.b16 %v3386
  %v3397 = vunpack.c.h.b16 %v3386
  %v3398 = vunpack.c.l.b16 %v3387
  %v3399 = vunpack.c.h.b16 %v3387
  %v3400 = vpack.c.b16 %v3392, %v3392
  %v3401 = vpack.c.b16 %v3393, %v3393
  %v3402 = vpack.c.b16 %v3394, %v3394
  %v3403 = vpack.c.b16 %v3395, %v3395
  %v3404 = vpack.c.b16 %v3396, %v3396
  %v3405 = vpack.c.b16 %v3397, %v3397
  %v3406 = vpack.c.b16 %v3398, %v3398
  %v3407 = vpack.c.b16 %v3399, %v3399
  %s3416 = scalar_lea.vmem %s6, 192
  %3417 = vst.msk [vmem:[%s3416] sm:$0xf] %vm2786, %v3400
  %3418 = vst.msk [vmem:[%s3416 + $0x4] sm:$0xf] %vm2786, %v3401
  %3419 = vst.msk [vmem:[%s3416 + $0x8] sm:$0xf] %vm2786, %v3402
  %3420 = vst.msk [vmem:[%s3416 + $0xc] sm:$0xf] %vm2786, %v3403
  %3421 = vst.msk [vmem:[%s3416 + $0x10] sm:$0xf] %vm2786, %v3404
  %3422 = vst.msk [vmem:[%s3416 + $0x14] sm:$0xf] %vm2786, %v3405
  %3423 = vst.msk [vmem:[%s3416 + $0x18] sm:$0xf] %vm2786, %v3406
  %3424 = vst.msk [vmem:[%s3416 + $0x1c] sm:$0xf] %vm2786, %v3407
  %v3425 = vmul.f32 %v1011, %v2612
  %v3426 = vmul.f32 %v1016, %v2617
  %v3427 = vmul.f32 %v1021, %v2622
  %v3428 = vmul.f32 %v1026, %v2627
  %v3429 = vmul.f32 %v1031, %v2632
  %v3430 = vmul.f32 %v1036, %v2637
  %v3431 = vmul.f32 %v1041, %v2642
  %v3432 = vmul.f32 %v1046, %v2647
  %v3433 = vadd.f32 %v3425, %v2660
  %v3434 = vadd.f32 %v3426, %v2665
  %v3435 = vadd.f32 %v3427, %v2670
  %v3436 = vadd.f32 %v3428, %v2675
  %v3437 = vadd.f32 %v3429, %v2680
  %v3438 = vadd.f32 %v3430, %v2685
  %v3439 = vadd.f32 %v3431, %v2690
  %v3440 = vadd.f32 %v3432, %v2695
  %v3441 = vmax.f32 %v3433, 0.0
  %v3442 = vmax.f32 %v3434, 0.0
  %v3443 = vmax.f32 %v3435, 0.0
  %v3444 = vmax.f32 %v3436, 0.0
  %v3445 = vmax.f32 %v3437, 0.0
  %v3446 = vmax.f32 %v3438, 0.0
  %v3447 = vmax.f32 %v3439, 0.0
  %v3448 = vmax.f32 %v3440, 0.0
  %v3449 = vmul.f32 %v3441, %v3441
  %v3450 = vmul.f32 %v3442, %v3442
  %v3451 = vmul.f32 %v3443, %v3443
  %v3452 = vmul.f32 %v3444, %v3444
  %v3453 = vmul.f32 %v3445, %v3445
  %v3454 = vmul.f32 %v3446, %v3446
  %v3455 = vmul.f32 %v3447, %v3447
  %v3456 = vmul.f32 %v3448, %v3448
  %v3457 = vsel %vm130, %v3449, 0.0
  %v3458 = vsel %vm130, %v3450, 0.0
  %v3459 = vadd.f32 %v3457, %v3458
  %v3460 = vsel %vm130, %v3451, 0.0
  %v3461 = vadd.f32 %v3459, %v3460
  %v3462 = vsel %vm130, %v3452, 0.0
  %v3463 = vadd.f32 %v3461, %v3462
  %v3464 = vsel %vm130, %v3453, 0.0
  %v3465 = vadd.f32 %v3463, %v3464
  %v3466 = vsel %vm130, %v3454, 0.0
  %v3467 = vadd.f32 %v3465, %v3466
  %v3468 = vsel %vm130, %v3455, 0.0
  %v3469 = vadd.f32 %v3467, %v3468
  %v3470 = vsel %vm130, %v3456, 0.0
  %v3471 = vadd.f32 %v3469, %v3470
  %v3472 = vrot.slane %v3471, 4
  %v3473 = vadd.f32 %v3471, %v3472
  %v3474 = vrot.slane %v3473, 2
  %v3475 = vadd.f32 %v3473, %v3474
  %v3476 = vrot.slane %v3475, 1
  %v3477 = vadd.f32 %v3475, %v3476
  %v3478 = vmul.f32 %v3477, %v2742
  %v3479 = vadd.f32 %v3478, 1e-10
  %v3480 = vrsqrt.pop %v3479
  %v3481 = vmul.f32 %v3441, %v3480
  %v3482 = vmul.f32 %v3442, %v3480
  %v3483 = vmul.f32 %v3443, %v3480
  %v3484 = vmul.f32 %v3444, %v3480
  %v3485 = vmul.f32 %v3445, %v3480
  %v3486 = vmul.f32 %v3446, %v3480
  %v3487 = vmul.f32 %v3447, %v3480
  %v3488 = vmul.f32 %v3448, %v3480
  %v3489 = vpack.c.bf16 %v3482, %v3481
  %v3490 = vpack.c.bf16 %v3484, %v3483
  %v3491 = vpack.c.bf16 %v3486, %v3485
  %v3492 = vpack.c.bf16 %v3488, %v3487
  %v3497 = vunpack.c.l.b16 %v3489
  %v3498 = vunpack.c.h.b16 %v3489
  %v3499 = vunpack.c.l.b16 %v3490
  %v3500 = vunpack.c.h.b16 %v3490
  %v3501 = vunpack.c.l.b16 %v3491
  %v3502 = vunpack.c.h.b16 %v3491
  %v3503 = vunpack.c.l.b16 %v3492
  %v3504 = vunpack.c.h.b16 %v3492
  %v3505 = vpack.c.b16 %v3497, %v3497
  %v3506 = vpack.c.b16 %v3498, %v3498
  %v3507 = vpack.c.b16 %v3499, %v3499
  %v3508 = vpack.c.b16 %v3500, %v3500
  %v3509 = vpack.c.b16 %v3501, %v3501
  %v3510 = vpack.c.b16 %v3502, %v3502
  %v3511 = vpack.c.b16 %v3503, %v3503
  %v3512 = vpack.c.b16 %v3504, %v3504
  %s3521 = scalar_lea.vmem %s6, 224
  %3522 = vst.msk [vmem:[%s3521] sm:$0xf] %vm2786, %v3505
  %3523 = vst.msk [vmem:[%s3521 + $0x4] sm:$0xf] %vm2786, %v3506
  %3524 = vst.msk [vmem:[%s3521 + $0x8] sm:$0xf] %vm2786, %v3507
  %3525 = vst.msk [vmem:[%s3521 + $0xc] sm:$0xf] %vm2786, %v3508
  %3526 = vst.msk [vmem:[%s3521 + $0x10] sm:$0xf] %vm2786, %v3509
  %3527 = vst.msk [vmem:[%s3521 + $0x14] sm:$0xf] %vm2786, %v3510
  %3528 = vst.msk [vmem:[%s3521 + $0x18] sm:$0xf] %vm2786, %v3511
  %3529 = vst.msk [vmem:[%s3521 + $0x1c] sm:$0xf] %vm2786, %v3512
  %v3530 = vmul.f32 %v1051, %v2612
  %v3531 = vmul.f32 %v1056, %v2617
  %v3532 = vmul.f32 %v1061, %v2622
  %v3533 = vmul.f32 %v1066, %v2627
  %v3534 = vmul.f32 %v1071, %v2632
  %v3535 = vmul.f32 %v1076, %v2637
  %v3536 = vmul.f32 %v1081, %v2642
  %v3537 = vmul.f32 %v1086, %v2647
  %v3538 = vadd.f32 %v3530, %v2660
  %v3539 = vadd.f32 %v3531, %v2665
  %v3540 = vadd.f32 %v3532, %v2670
  %v3541 = vadd.f32 %v3533, %v2675
  %v3542 = vadd.f32 %v3534, %v2680
  %v3543 = vadd.f32 %v3535, %v2685
  %v3544 = vadd.f32 %v3536, %v2690
  %v3545 = vadd.f32 %v3537, %v2695
  %v3546 = vmax.f32 %v3538, 0.0
  %v3547 = vmax.f32 %v3539, 0.0
  %v3548 = vmax.f32 %v3540, 0.0
  %v3549 = vmax.f32 %v3541, 0.0
  %v3550 = vmax.f32 %v3542, 0.0
  %v3551 = vmax.f32 %v3543, 0.0
  %v3552 = vmax.f32 %v3544, 0.0
  %v3553 = vmax.f32 %v3545, 0.0
  %v3554 = vmul.f32 %v3546, %v3546
  %v3555 = vmul.f32 %v3547, %v3547
  %v3556 = vmul.f32 %v3548, %v3548
  %v3557 = vmul.f32 %v3549, %v3549
  %v3558 = vmul.f32 %v3550, %v3550
  %v3559 = vmul.f32 %v3551, %v3551
  %v3560 = vmul.f32 %v3552, %v3552
  %v3561 = vmul.f32 %v3553, %v3553
  %v3562 = vsel %vm130, %v3554, 0.0
  %v3563 = vsel %vm130, %v3555, 0.0
  %v3564 = vadd.f32 %v3562, %v3563
  %v3565 = vsel %vm130, %v3556, 0.0
  %v3566 = vadd.f32 %v3564, %v3565
  %v3567 = vsel %vm130, %v3557, 0.0
  %v3568 = vadd.f32 %v3566, %v3567
  %v3569 = vsel %vm130, %v3558, 0.0
  %v3570 = vadd.f32 %v3568, %v3569
  %v3571 = vsel %vm130, %v3559, 0.0
  %v3572 = vadd.f32 %v3570, %v3571
  %v3573 = vsel %vm130, %v3560, 0.0
  %v3574 = vadd.f32 %v3572, %v3573
  %v3575 = vsel %vm130, %v3561, 0.0
  %v3576 = vadd.f32 %v3574, %v3575
  %v3577 = vrot.slane %v3576, 4
  %v3578 = vadd.f32 %v3576, %v3577
  %v3579 = vrot.slane %v3578, 2
  %v3580 = vadd.f32 %v3578, %v3579
  %v3581 = vrot.slane %v3580, 1
  %v3582 = vadd.f32 %v3580, %v3581
  %v3583 = vmul.f32 %v3582, %v2742
  %v3584 = vadd.f32 %v3583, 1e-10
  %v3585 = vrsqrt.pop %v3584
  %v3586 = vmul.f32 %v3546, %v3585
  %v3587 = vmul.f32 %v3547, %v3585
  %v3588 = vmul.f32 %v3548, %v3585
  %v3589 = vmul.f32 %v3549, %v3585
  %v3590 = vmul.f32 %v3550, %v3585
  %v3591 = vmul.f32 %v3551, %v3585
  %v3592 = vmul.f32 %v3552, %v3585
  %v3593 = vmul.f32 %v3553, %v3585
  %v3594 = vpack.c.bf16 %v3587, %v3586
  %v3595 = vpack.c.bf16 %v3589, %v3588
  %v3596 = vpack.c.bf16 %v3591, %v3590
  %v3597 = vpack.c.bf16 %v3593, %v3592
  %v3602 = vunpack.c.l.b16 %v3594
  %v3603 = vunpack.c.h.b16 %v3594
  %v3604 = vunpack.c.l.b16 %v3595
  %v3605 = vunpack.c.h.b16 %v3595
  %v3606 = vunpack.c.l.b16 %v3596
  %v3607 = vunpack.c.h.b16 %v3596
  %v3608 = vunpack.c.l.b16 %v3597
  %v3609 = vunpack.c.h.b16 %v3597
  %v3610 = vpack.c.b16 %v3602, %v3602
  %v3611 = vpack.c.b16 %v3603, %v3603
  %v3612 = vpack.c.b16 %v3604, %v3604
  %v3613 = vpack.c.b16 %v3605, %v3605
  %v3614 = vpack.c.b16 %v3606, %v3606
  %v3615 = vpack.c.b16 %v3607, %v3607
  %v3616 = vpack.c.b16 %v3608, %v3608
  %v3617 = vpack.c.b16 %v3609, %v3609
  %s3626 = scalar_lea.vmem %s6, 256
  %3627 = vst.msk [vmem:[%s3626] sm:$0xf] %vm2786, %v3610
  %3628 = vst.msk [vmem:[%s3626 + $0x4] sm:$0xf] %vm2786, %v3611
  %3629 = vst.msk [vmem:[%s3626 + $0x8] sm:$0xf] %vm2786, %v3612
  %3630 = vst.msk [vmem:[%s3626 + $0xc] sm:$0xf] %vm2786, %v3613
  %3631 = vst.msk [vmem:[%s3626 + $0x10] sm:$0xf] %vm2786, %v3614
  %3632 = vst.msk [vmem:[%s3626 + $0x14] sm:$0xf] %vm2786, %v3615
  %3633 = vst.msk [vmem:[%s3626 + $0x18] sm:$0xf] %vm2786, %v3616
  %3634 = vst.msk [vmem:[%s3626 + $0x1c] sm:$0xf] %vm2786, %v3617
  %v3635 = vmul.f32 %v1091, %v2612
  %v3636 = vmul.f32 %v1096, %v2617
  %v3637 = vmul.f32 %v1101, %v2622
  %v3638 = vmul.f32 %v1106, %v2627
  %v3639 = vmul.f32 %v1111, %v2632
  %v3640 = vmul.f32 %v1116, %v2637
  %v3641 = vmul.f32 %v1121, %v2642
  %v3642 = vmul.f32 %v1126, %v2647
  %v3643 = vadd.f32 %v3635, %v2660
  %v3644 = vadd.f32 %v3636, %v2665
  %v3645 = vadd.f32 %v3637, %v2670
  %v3646 = vadd.f32 %v3638, %v2675
  %v3647 = vadd.f32 %v3639, %v2680
  %v3648 = vadd.f32 %v3640, %v2685
  %v3649 = vadd.f32 %v3641, %v2690
  %v3650 = vadd.f32 %v3642, %v2695
  %v3651 = vmax.f32 %v3643, 0.0
  %v3652 = vmax.f32 %v3644, 0.0
  %v3653 = vmax.f32 %v3645, 0.0
  %v3654 = vmax.f32 %v3646, 0.0
  %v3655 = vmax.f32 %v3647, 0.0
  %v3656 = vmax.f32 %v3648, 0.0
  %v3657 = vmax.f32 %v3649, 0.0
  %v3658 = vmax.f32 %v3650, 0.0
  %v3659 = vmul.f32 %v3651, %v3651
  %v3660 = vmul.f32 %v3652, %v3652
  %v3661 = vmul.f32 %v3653, %v3653
  %v3662 = vmul.f32 %v3654, %v3654
  %v3663 = vmul.f32 %v3655, %v3655
  %v3664 = vmul.f32 %v3656, %v3656
  %v3665 = vmul.f32 %v3657, %v3657
  %v3666 = vmul.f32 %v3658, %v3658
  %v3667 = vsel %vm130, %v3659, 0.0
  %v3668 = vsel %vm130, %v3660, 0.0
  %v3669 = vadd.f32 %v3667, %v3668
  %v3670 = vsel %vm130, %v3661, 0.0
  %v3671 = vadd.f32 %v3669, %v3670
  %v3672 = vsel %vm130, %v3662, 0.0
  %v3673 = vadd.f32 %v3671, %v3672
  %v3674 = vsel %vm130, %v3663, 0.0
  %v3675 = vadd.f32 %v3673, %v3674
  %v3676 = vsel %vm130, %v3664, 0.0
  %v3677 = vadd.f32 %v3675, %v3676
  %v3678 = vsel %vm130, %v3665, 0.0
  %v3679 = vadd.f32 %v3677, %v3678
  %v3680 = vsel %vm130, %v3666, 0.0
  %v3681 = vadd.f32 %v3679, %v3680
  %v3682 = vrot.slane %v3681, 4
  %v3683 = vadd.f32 %v3681, %v3682
  %v3684 = vrot.slane %v3683, 2
  %v3685 = vadd.f32 %v3683, %v3684
  %v3686 = vrot.slane %v3685, 1
  %v3687 = vadd.f32 %v3685, %v3686
  %v3688 = vmul.f32 %v3687, %v2742
  %v3689 = vadd.f32 %v3688, 1e-10
  %v3690 = vrsqrt.pop %v3689
  %v3691 = vmul.f32 %v3651, %v3690
  %v3692 = vmul.f32 %v3652, %v3690
  %v3693 = vmul.f32 %v3653, %v3690
  %v3694 = vmul.f32 %v3654, %v3690
  %v3695 = vmul.f32 %v3655, %v3690
  %v3696 = vmul.f32 %v3656, %v3690
  %v3697 = vmul.f32 %v3657, %v3690
  %v3698 = vmul.f32 %v3658, %v3690
  %v3699 = vpack.c.bf16 %v3692, %v3691
  %v3700 = vpack.c.bf16 %v3694, %v3693
  %v3701 = vpack.c.bf16 %v3696, %v3695
  %v3702 = vpack.c.bf16 %v3698, %v3697
  %v3707 = vunpack.c.l.b16 %v3699
  %v3708 = vunpack.c.h.b16 %v3699
  %v3709 = vunpack.c.l.b16 %v3700
  %v3710 = vunpack.c.h.b16 %v3700
  %v3711 = vunpack.c.l.b16 %v3701
  %v3712 = vunpack.c.h.b16 %v3701
  %v3713 = vunpack.c.l.b16 %v3702
  %v3714 = vunpack.c.h.b16 %v3702
  %v3715 = vpack.c.b16 %v3707, %v3707
  %v3716 = vpack.c.b16 %v3708, %v3708
  %v3717 = vpack.c.b16 %v3709, %v3709
  %v3718 = vpack.c.b16 %v3710, %v3710
  %v3719 = vpack.c.b16 %v3711, %v3711
  %v3720 = vpack.c.b16 %v3712, %v3712
  %v3721 = vpack.c.b16 %v3713, %v3713
  %v3722 = vpack.c.b16 %v3714, %v3714
  %s3731 = scalar_lea.vmem %s6, 288
  %3732 = vst.msk [vmem:[%s3731] sm:$0xf] %vm2786, %v3715
  %3733 = vst.msk [vmem:[%s3731 + $0x4] sm:$0xf] %vm2786, %v3716
  %3734 = vst.msk [vmem:[%s3731 + $0x8] sm:$0xf] %vm2786, %v3717
  %3735 = vst.msk [vmem:[%s3731 + $0xc] sm:$0xf] %vm2786, %v3718
  %3736 = vst.msk [vmem:[%s3731 + $0x10] sm:$0xf] %vm2786, %v3719
  %3737 = vst.msk [vmem:[%s3731 + $0x14] sm:$0xf] %vm2786, %v3720
  %3738 = vst.msk [vmem:[%s3731 + $0x18] sm:$0xf] %vm2786, %v3721
  %3739 = vst.msk [vmem:[%s3731 + $0x1c] sm:$0xf] %vm2786, %v3722
  %v3740 = vmul.f32 %v1131, %v2612
  %v3741 = vmul.f32 %v1136, %v2617
  %v3742 = vmul.f32 %v1141, %v2622
  %v3743 = vmul.f32 %v1146, %v2627
  %v3744 = vmul.f32 %v1151, %v2632
  %v3745 = vmul.f32 %v1156, %v2637
  %v3746 = vmul.f32 %v1161, %v2642
  %v3747 = vmul.f32 %v1166, %v2647
  %v3748 = vadd.f32 %v3740, %v2660
  %v3749 = vadd.f32 %v3741, %v2665
  %v3750 = vadd.f32 %v3742, %v2670
  %v3751 = vadd.f32 %v3743, %v2675
  %v3752 = vadd.f32 %v3744, %v2680
  %v3753 = vadd.f32 %v3745, %v2685
  %v3754 = vadd.f32 %v3746, %v2690
  %v3755 = vadd.f32 %v3747, %v2695
  %v3756 = vmax.f32 %v3748, 0.0
  %v3757 = vmax.f32 %v3749, 0.0
  %v3758 = vmax.f32 %v3750, 0.0
  %v3759 = vmax.f32 %v3751, 0.0
  %v3760 = vmax.f32 %v3752, 0.0
  %v3761 = vmax.f32 %v3753, 0.0
  %v3762 = vmax.f32 %v3754, 0.0
  %v3763 = vmax.f32 %v3755, 0.0
  %v3764 = vmul.f32 %v3756, %v3756
  %v3765 = vmul.f32 %v3757, %v3757
  %v3766 = vmul.f32 %v3758, %v3758
  %v3767 = vmul.f32 %v3759, %v3759
  %v3768 = vmul.f32 %v3760, %v3760
  %v3769 = vmul.f32 %v3761, %v3761
  %v3770 = vmul.f32 %v3762, %v3762
  %v3771 = vmul.f32 %v3763, %v3763
  %v3772 = vsel %vm130, %v3764, 0.0
  %v3773 = vsel %vm130, %v3765, 0.0
  %v3774 = vadd.f32 %v3772, %v3773
  %v3775 = vsel %vm130, %v3766, 0.0
  %v3776 = vadd.f32 %v3774, %v3775
  %v3777 = vsel %vm130, %v3767, 0.0
  %v3778 = vadd.f32 %v3776, %v3777
  %v3779 = vsel %vm130, %v3768, 0.0
  %v3780 = vadd.f32 %v3778, %v3779
  %v3781 = vsel %vm130, %v3769, 0.0
  %v3782 = vadd.f32 %v3780, %v3781
  %v3783 = vsel %vm130, %v3770, 0.0
  %v3784 = vadd.f32 %v3782, %v3783
  %v3785 = vsel %vm130, %v3771, 0.0
  %v3786 = vadd.f32 %v3784, %v3785
  %v3787 = vrot.slane %v3786, 4
  %v3788 = vadd.f32 %v3786, %v3787
  %v3789 = vrot.slane %v3788, 2
  %v3790 = vadd.f32 %v3788, %v3789
  %v3791 = vrot.slane %v3790, 1
  %v3792 = vadd.f32 %v3790, %v3791
  %v3793 = vmul.f32 %v3792, %v2742
  %v3794 = vadd.f32 %v3793, 1e-10
  %v3795 = vrsqrt.pop %v3794
  %v3796 = vmul.f32 %v3756, %v3795
  %v3797 = vmul.f32 %v3757, %v3795
  %v3798 = vmul.f32 %v3758, %v3795
  %v3799 = vmul.f32 %v3759, %v3795
  %v3800 = vmul.f32 %v3760, %v3795
  %v3801 = vmul.f32 %v3761, %v3795
  %v3802 = vmul.f32 %v3762, %v3795
  %v3803 = vmul.f32 %v3763, %v3795
  %v3804 = vpack.c.bf16 %v3797, %v3796
  %v3805 = vpack.c.bf16 %v3799, %v3798
  %v3806 = vpack.c.bf16 %v3801, %v3800
  %v3807 = vpack.c.bf16 %v3803, %v3802
  %v3812 = vunpack.c.l.b16 %v3804
  %v3813 = vunpack.c.h.b16 %v3804
  %v3814 = vunpack.c.l.b16 %v3805
  %v3815 = vunpack.c.h.b16 %v3805
  %v3816 = vunpack.c.l.b16 %v3806
  %v3817 = vunpack.c.h.b16 %v3806
  %v3818 = vunpack.c.l.b16 %v3807
  %v3819 = vunpack.c.h.b16 %v3807
  %v3820 = vpack.c.b16 %v3812, %v3812
  %v3821 = vpack.c.b16 %v3813, %v3813
  %v3822 = vpack.c.b16 %v3814, %v3814
  %v3823 = vpack.c.b16 %v3815, %v3815
  %v3824 = vpack.c.b16 %v3816, %v3816
  %v3825 = vpack.c.b16 %v3817, %v3817
  %v3826 = vpack.c.b16 %v3818, %v3818
  %v3827 = vpack.c.b16 %v3819, %v3819
  %s3836 = scalar_lea.vmem %s6, 320
  %3837 = vst.msk [vmem:[%s3836] sm:$0xf] %vm2786, %v3820
  %3838 = vst.msk [vmem:[%s3836 + $0x4] sm:$0xf] %vm2786, %v3821
  %3839 = vst.msk [vmem:[%s3836 + $0x8] sm:$0xf] %vm2786, %v3822
  %3840 = vst.msk [vmem:[%s3836 + $0xc] sm:$0xf] %vm2786, %v3823
  %3841 = vst.msk [vmem:[%s3836 + $0x10] sm:$0xf] %vm2786, %v3824
  %3842 = vst.msk [vmem:[%s3836 + $0x14] sm:$0xf] %vm2786, %v3825
  %3843 = vst.msk [vmem:[%s3836 + $0x18] sm:$0xf] %vm2786, %v3826
  %3844 = vst.msk [vmem:[%s3836 + $0x1c] sm:$0xf] %vm2786, %v3827
  %v3845 = vmul.f32 %v1171, %v2612
  %v3846 = vmul.f32 %v1176, %v2617
  %v3847 = vmul.f32 %v1181, %v2622
  %v3848 = vmul.f32 %v1186, %v2627
  %v3849 = vmul.f32 %v1191, %v2632
  %v3850 = vmul.f32 %v1196, %v2637
  %v3851 = vmul.f32 %v1201, %v2642
  %v3852 = vmul.f32 %v1206, %v2647
  %v3853 = vadd.f32 %v3845, %v2660
  %v3854 = vadd.f32 %v3846, %v2665
  %v3855 = vadd.f32 %v3847, %v2670
  %v3856 = vadd.f32 %v3848, %v2675
  %v3857 = vadd.f32 %v3849, %v2680
  %v3858 = vadd.f32 %v3850, %v2685
  %v3859 = vadd.f32 %v3851, %v2690
  %v3860 = vadd.f32 %v3852, %v2695
  %v3861 = vmax.f32 %v3853, 0.0
  %v3862 = vmax.f32 %v3854, 0.0
  %v3863 = vmax.f32 %v3855, 0.0
  %v3864 = vmax.f32 %v3856, 0.0
  %v3865 = vmax.f32 %v3857, 0.0
  %v3866 = vmax.f32 %v3858, 0.0
  %v3867 = vmax.f32 %v3859, 0.0
  %v3868 = vmax.f32 %v3860, 0.0
  %v3869 = vmul.f32 %v3861, %v3861
  %v3870 = vmul.f32 %v3862, %v3862
  %v3871 = vmul.f32 %v3863, %v3863
  %v3872 = vmul.f32 %v3864, %v3864
  %v3873 = vmul.f32 %v3865, %v3865
  %v3874 = vmul.f32 %v3866, %v3866
  %v3875 = vmul.f32 %v3867, %v3867
  %v3876 = vmul.f32 %v3868, %v3868
  %v3877 = vsel %vm130, %v3869, 0.0
  %v3878 = vsel %vm130, %v3870, 0.0
  %v3879 = vadd.f32 %v3877, %v3878
  %v3880 = vsel %vm130, %v3871, 0.0
  %v3881 = vadd.f32 %v3879, %v3880
  %v3882 = vsel %vm130, %v3872, 0.0
  %v3883 = vadd.f32 %v3881, %v3882
  %v3884 = vsel %vm130, %v3873, 0.0
  %v3885 = vadd.f32 %v3883, %v3884
  %v3886 = vsel %vm130, %v3874, 0.0
  %v3887 = vadd.f32 %v3885, %v3886
  %v3888 = vsel %vm130, %v3875, 0.0
  %v3889 = vadd.f32 %v3887, %v3888
  %v3890 = vsel %vm130, %v3876, 0.0
  %v3891 = vadd.f32 %v3889, %v3890
  %v3892 = vrot.slane %v3891, 4
  %v3893 = vadd.f32 %v3891, %v3892
  %v3894 = vrot.slane %v3893, 2
  %v3895 = vadd.f32 %v3893, %v3894
  %v3896 = vrot.slane %v3895, 1
  %v3897 = vadd.f32 %v3895, %v3896
  %v3898 = vmul.f32 %v3897, %v2742
  %v3899 = vadd.f32 %v3898, 1e-10
  %v3900 = vrsqrt.pop %v3899
  %v3901 = vmul.f32 %v3861, %v3900
  %v3902 = vmul.f32 %v3862, %v3900
  %v3903 = vmul.f32 %v3863, %v3900
  %v3904 = vmul.f32 %v3864, %v3900
  %v3905 = vmul.f32 %v3865, %v3900
  %v3906 = vmul.f32 %v3866, %v3900
  %v3907 = vmul.f32 %v3867, %v3900
  %v3908 = vmul.f32 %v3868, %v3900
  %v3909 = vpack.c.bf16 %v3902, %v3901
  %v3910 = vpack.c.bf16 %v3904, %v3903
  %v3911 = vpack.c.bf16 %v3906, %v3905
  %v3912 = vpack.c.bf16 %v3908, %v3907
  %v3917 = vunpack.c.l.b16 %v3909
  %v3918 = vunpack.c.h.b16 %v3909
  %v3919 = vunpack.c.l.b16 %v3910
  %v3920 = vunpack.c.h.b16 %v3910
  %v3921 = vunpack.c.l.b16 %v3911
  %v3922 = vunpack.c.h.b16 %v3911
  %v3923 = vunpack.c.l.b16 %v3912
  %v3924 = vunpack.c.h.b16 %v3912
  %v3925 = vpack.c.b16 %v3917, %v3917
  %v3926 = vpack.c.b16 %v3918, %v3918
  %v3927 = vpack.c.b16 %v3919, %v3919
  %v3928 = vpack.c.b16 %v3920, %v3920
  %v3929 = vpack.c.b16 %v3921, %v3921
  %v3930 = vpack.c.b16 %v3922, %v3922
  %v3931 = vpack.c.b16 %v3923, %v3923
  %v3932 = vpack.c.b16 %v3924, %v3924
  %s3941 = scalar_lea.vmem %s6, 352
  %3942 = vst.msk [vmem:[%s3941] sm:$0xf] %vm2786, %v3925
  %3943 = vst.msk [vmem:[%s3941 + $0x4] sm:$0xf] %vm2786, %v3926
  %3944 = vst.msk [vmem:[%s3941 + $0x8] sm:$0xf] %vm2786, %v3927
  %3945 = vst.msk [vmem:[%s3941 + $0xc] sm:$0xf] %vm2786, %v3928
  %3946 = vst.msk [vmem:[%s3941 + $0x10] sm:$0xf] %vm2786, %v3929
  %3947 = vst.msk [vmem:[%s3941 + $0x14] sm:$0xf] %vm2786, %v3930
  %3948 = vst.msk [vmem:[%s3941 + $0x18] sm:$0xf] %vm2786, %v3931
  %3949 = vst.msk [vmem:[%s3941 + $0x1c] sm:$0xf] %vm2786, %v3932
  %v3950 = vmul.f32 %v1211, %v2612
  %v3951 = vmul.f32 %v1216, %v2617
  %v3952 = vmul.f32 %v1221, %v2622
  %v3953 = vmul.f32 %v1226, %v2627
  %v3954 = vmul.f32 %v1231, %v2632
  %v3955 = vmul.f32 %v1236, %v2637
  %v3956 = vmul.f32 %v1241, %v2642
  %v3957 = vmul.f32 %v1246, %v2647
  %v3958 = vadd.f32 %v3950, %v2660
  %v3959 = vadd.f32 %v3951, %v2665
  %v3960 = vadd.f32 %v3952, %v2670
  %v3961 = vadd.f32 %v3953, %v2675
  %v3962 = vadd.f32 %v3954, %v2680
  %v3963 = vadd.f32 %v3955, %v2685
  %v3964 = vadd.f32 %v3956, %v2690
  %v3965 = vadd.f32 %v3957, %v2695
  %v3966 = vmax.f32 %v3958, 0.0
  %v3967 = vmax.f32 %v3959, 0.0
  %v3968 = vmax.f32 %v3960, 0.0
  %v3969 = vmax.f32 %v3961, 0.0
  %v3970 = vmax.f32 %v3962, 0.0
  %v3971 = vmax.f32 %v3963, 0.0
  %v3972 = vmax.f32 %v3964, 0.0
  %v3973 = vmax.f32 %v3965, 0.0
  %v3974 = vmul.f32 %v3966, %v3966
  %v3975 = vmul.f32 %v3967, %v3967
  %v3976 = vmul.f32 %v3968, %v3968
  %v3977 = vmul.f32 %v3969, %v3969
  %v3978 = vmul.f32 %v3970, %v3970
  %v3979 = vmul.f32 %v3971, %v3971
  %v3980 = vmul.f32 %v3972, %v3972
  %v3981 = vmul.f32 %v3973, %v3973
  %v3982 = vsel %vm130, %v3974, 0.0
  %v3983 = vsel %vm130, %v3975, 0.0
  %v3984 = vadd.f32 %v3982, %v3983
  %v3985 = vsel %vm130, %v3976, 0.0
  %v3986 = vadd.f32 %v3984, %v3985
  %v3987 = vsel %vm130, %v3977, 0.0
  %v3988 = vadd.f32 %v3986, %v3987
  %v3989 = vsel %vm130, %v3978, 0.0
  %v3990 = vadd.f32 %v3988, %v3989
  %v3991 = vsel %vm130, %v3979, 0.0
  %v3992 = vadd.f32 %v3990, %v3991
  %v3993 = vsel %vm130, %v3980, 0.0
  %v3994 = vadd.f32 %v3992, %v3993
  %v3995 = vsel %vm130, %v3981, 0.0
  %v3996 = vadd.f32 %v3994, %v3995
  %v3997 = vrot.slane %v3996, 4
  %v3998 = vadd.f32 %v3996, %v3997
  %v3999 = vrot.slane %v3998, 2
  %v4000 = vadd.f32 %v3998, %v3999
  %v4001 = vrot.slane %v4000, 1
  %v4002 = vadd.f32 %v4000, %v4001
  %v4003 = vmul.f32 %v4002, %v2742
  %v4004 = vadd.f32 %v4003, 1e-10
  %v4005 = vrsqrt.pop %v4004
  %v4006 = vmul.f32 %v3966, %v4005
  %v4007 = vmul.f32 %v3967, %v4005
  %v4008 = vmul.f32 %v3968, %v4005
  %v4009 = vmul.f32 %v3969, %v4005
  %v4010 = vmul.f32 %v3970, %v4005
  %v4011 = vmul.f32 %v3971, %v4005
  %v4012 = vmul.f32 %v3972, %v4005
  %v4013 = vmul.f32 %v3973, %v4005
  %v4014 = vpack.c.bf16 %v4007, %v4006
  %v4015 = vpack.c.bf16 %v4009, %v4008
  %v4016 = vpack.c.bf16 %v4011, %v4010
  %v4017 = vpack.c.bf16 %v4013, %v4012
  %v4022 = vunpack.c.l.b16 %v4014
  %v4023 = vunpack.c.h.b16 %v4014
  %v4024 = vunpack.c.l.b16 %v4015
  %v4025 = vunpack.c.h.b16 %v4015
  %v4026 = vunpack.c.l.b16 %v4016
  %v4027 = vunpack.c.h.b16 %v4016
  %v4028 = vunpack.c.l.b16 %v4017
  %v4029 = vunpack.c.h.b16 %v4017
  %v4030 = vpack.c.b16 %v4022, %v4022
  %v4031 = vpack.c.b16 %v4023, %v4023
  %v4032 = vpack.c.b16 %v4024, %v4024
  %v4033 = vpack.c.b16 %v4025, %v4025
  %v4034 = vpack.c.b16 %v4026, %v4026
  %v4035 = vpack.c.b16 %v4027, %v4027
  %v4036 = vpack.c.b16 %v4028, %v4028
  %v4037 = vpack.c.b16 %v4029, %v4029
  %s4046 = scalar_lea.vmem %s6, 384
  %4047 = vst.msk [vmem:[%s4046] sm:$0xf] %vm2786, %v4030
  %4048 = vst.msk [vmem:[%s4046 + $0x4] sm:$0xf] %vm2786, %v4031
  %4049 = vst.msk [vmem:[%s4046 + $0x8] sm:$0xf] %vm2786, %v4032
  %4050 = vst.msk [vmem:[%s4046 + $0xc] sm:$0xf] %vm2786, %v4033
  %4051 = vst.msk [vmem:[%s4046 + $0x10] sm:$0xf] %vm2786, %v4034
  %4052 = vst.msk [vmem:[%s4046 + $0x14] sm:$0xf] %vm2786, %v4035
  %4053 = vst.msk [vmem:[%s4046 + $0x18] sm:$0xf] %vm2786, %v4036
  %4054 = vst.msk [vmem:[%s4046 + $0x1c] sm:$0xf] %vm2786, %v4037
  %v4055 = vmul.f32 %v1251, %v2612
  %v4056 = vmul.f32 %v1256, %v2617
  %v4057 = vmul.f32 %v1261, %v2622
  %v4058 = vmul.f32 %v1266, %v2627
  %v4059 = vmul.f32 %v1271, %v2632
  %v4060 = vmul.f32 %v1276, %v2637
  %v4061 = vmul.f32 %v1281, %v2642
  %v4062 = vmul.f32 %v1286, %v2647
  %v4063 = vadd.f32 %v4055, %v2660
  %v4064 = vadd.f32 %v4056, %v2665
  %v4065 = vadd.f32 %v4057, %v2670
  %v4066 = vadd.f32 %v4058, %v2675
  %v4067 = vadd.f32 %v4059, %v2680
  %v4068 = vadd.f32 %v4060, %v2685
  %v4069 = vadd.f32 %v4061, %v2690
  %v4070 = vadd.f32 %v4062, %v2695
  %v4071 = vmax.f32 %v4063, 0.0
  %v4072 = vmax.f32 %v4064, 0.0
  %v4073 = vmax.f32 %v4065, 0.0
  %v4074 = vmax.f32 %v4066, 0.0
  %v4075 = vmax.f32 %v4067, 0.0
  %v4076 = vmax.f32 %v4068, 0.0
  %v4077 = vmax.f32 %v4069, 0.0
  %v4078 = vmax.f32 %v4070, 0.0
  %v4079 = vmul.f32 %v4071, %v4071
  %v4080 = vmul.f32 %v4072, %v4072
  %v4081 = vmul.f32 %v4073, %v4073
  %v4082 = vmul.f32 %v4074, %v4074
  %v4083 = vmul.f32 %v4075, %v4075
  %v4084 = vmul.f32 %v4076, %v4076
  %v4085 = vmul.f32 %v4077, %v4077
  %v4086 = vmul.f32 %v4078, %v4078
  %v4087 = vsel %vm130, %v4079, 0.0
  %v4088 = vsel %vm130, %v4080, 0.0
  %v4089 = vadd.f32 %v4087, %v4088
  %v4090 = vsel %vm130, %v4081, 0.0
  %v4091 = vadd.f32 %v4089, %v4090
  %v4092 = vsel %vm130, %v4082, 0.0
  %v4093 = vadd.f32 %v4091, %v4092
  %v4094 = vsel %vm130, %v4083, 0.0
  %v4095 = vadd.f32 %v4093, %v4094
  %v4096 = vsel %vm130, %v4084, 0.0
  %v4097 = vadd.f32 %v4095, %v4096
  %v4098 = vsel %vm130, %v4085, 0.0
  %v4099 = vadd.f32 %v4097, %v4098
  %v4100 = vsel %vm130, %v4086, 0.0
  %v4101 = vadd.f32 %v4099, %v4100
  %v4102 = vrot.slane %v4101, 4
  %v4103 = vadd.f32 %v4101, %v4102
  %v4104 = vrot.slane %v4103, 2
  %v4105 = vadd.f32 %v4103, %v4104
  %v4106 = vrot.slane %v4105, 1
  %v4107 = vadd.f32 %v4105, %v4106
  %v4108 = vmul.f32 %v4107, %v2742
  %v4109 = vadd.f32 %v4108, 1e-10
  %v4110 = vrsqrt.pop %v4109
  %v4111 = vmul.f32 %v4071, %v4110
  %v4112 = vmul.f32 %v4072, %v4110
  %v4113 = vmul.f32 %v4073, %v4110
  %v4114 = vmul.f32 %v4074, %v4110
  %v4115 = vmul.f32 %v4075, %v4110
  %v4116 = vmul.f32 %v4076, %v4110
  %v4117 = vmul.f32 %v4077, %v4110
  %v4118 = vmul.f32 %v4078, %v4110
  %v4119 = vpack.c.bf16 %v4112, %v4111
  %v4120 = vpack.c.bf16 %v4114, %v4113
  %v4121 = vpack.c.bf16 %v4116, %v4115
  %v4122 = vpack.c.bf16 %v4118, %v4117
  %v4127 = vunpack.c.l.b16 %v4119
  %v4128 = vunpack.c.h.b16 %v4119
  %v4129 = vunpack.c.l.b16 %v4120
  %v4130 = vunpack.c.h.b16 %v4120
  %v4131 = vunpack.c.l.b16 %v4121
  %v4132 = vunpack.c.h.b16 %v4121
  %v4133 = vunpack.c.l.b16 %v4122
  %v4134 = vunpack.c.h.b16 %v4122
  %v4135 = vpack.c.b16 %v4127, %v4127
  %v4136 = vpack.c.b16 %v4128, %v4128
  %v4137 = vpack.c.b16 %v4129, %v4129
  %v4138 = vpack.c.b16 %v4130, %v4130
  %v4139 = vpack.c.b16 %v4131, %v4131
  %v4140 = vpack.c.b16 %v4132, %v4132
  %v4141 = vpack.c.b16 %v4133, %v4133
  %v4142 = vpack.c.b16 %v4134, %v4134
  %s4151 = scalar_lea.vmem %s6, 416
  %4152 = vst.msk [vmem:[%s4151] sm:$0xf] %vm2786, %v4135
  %4153 = vst.msk [vmem:[%s4151 + $0x4] sm:$0xf] %vm2786, %v4136
  %4154 = vst.msk [vmem:[%s4151 + $0x8] sm:$0xf] %vm2786, %v4137
  %4155 = vst.msk [vmem:[%s4151 + $0xc] sm:$0xf] %vm2786, %v4138
  %4156 = vst.msk [vmem:[%s4151 + $0x10] sm:$0xf] %vm2786, %v4139
  %4157 = vst.msk [vmem:[%s4151 + $0x14] sm:$0xf] %vm2786, %v4140
  %4158 = vst.msk [vmem:[%s4151 + $0x18] sm:$0xf] %vm2786, %v4141
  %4159 = vst.msk [vmem:[%s4151 + $0x1c] sm:$0xf] %vm2786, %v4142
  %v4160 = vmul.f32 %v1291, %v2612
  %v4161 = vmul.f32 %v1296, %v2617
  %v4162 = vmul.f32 %v1301, %v2622
  %v4163 = vmul.f32 %v1306, %v2627
  %v4164 = vmul.f32 %v1311, %v2632
  %v4165 = vmul.f32 %v1316, %v2637
  %v4166 = vmul.f32 %v1321, %v2642
  %v4167 = vmul.f32 %v1326, %v2647
  %v4168 = vadd.f32 %v4160, %v2660
  %v4169 = vadd.f32 %v4161, %v2665
  %v4170 = vadd.f32 %v4162, %v2670
  %v4171 = vadd.f32 %v4163, %v2675
  %v4172 = vadd.f32 %v4164, %v2680
  %v4173 = vadd.f32 %v4165, %v2685
  %v4174 = vadd.f32 %v4166, %v2690
  %v4175 = vadd.f32 %v4167, %v2695
  %v4176 = vmax.f32 %v4168, 0.0
  %v4177 = vmax.f32 %v4169, 0.0
  %v4178 = vmax.f32 %v4170, 0.0
  %v4179 = vmax.f32 %v4171, 0.0
  %v4180 = vmax.f32 %v4172, 0.0
  %v4181 = vmax.f32 %v4173, 0.0
  %v4182 = vmax.f32 %v4174, 0.0
  %v4183 = vmax.f32 %v4175, 0.0
  %v4184 = vmul.f32 %v4176, %v4176
  %v4185 = vmul.f32 %v4177, %v4177
  %v4186 = vmul.f32 %v4178, %v4178
  %v4187 = vmul.f32 %v4179, %v4179
  %v4188 = vmul.f32 %v4180, %v4180
  %v4189 = vmul.f32 %v4181, %v4181
  %v4190 = vmul.f32 %v4182, %v4182
  %v4191 = vmul.f32 %v4183, %v4183
  %v4192 = vsel %vm130, %v4184, 0.0
  %v4193 = vsel %vm130, %v4185, 0.0
  %v4194 = vadd.f32 %v4192, %v4193
  %v4195 = vsel %vm130, %v4186, 0.0
  %v4196 = vadd.f32 %v4194, %v4195
  %v4197 = vsel %vm130, %v4187, 0.0
  %v4198 = vadd.f32 %v4196, %v4197
  %v4199 = vsel %vm130, %v4188, 0.0
  %v4200 = vadd.f32 %v4198, %v4199
  %v4201 = vsel %vm130, %v4189, 0.0
  %v4202 = vadd.f32 %v4200, %v4201
  %v4203 = vsel %vm130, %v4190, 0.0
  %v4204 = vadd.f32 %v4202, %v4203
  %v4205 = vsel %vm130, %v4191, 0.0
  %v4206 = vadd.f32 %v4204, %v4205
  %v4207 = vrot.slane %v4206, 4
  %v4208 = vadd.f32 %v4206, %v4207
  %v4209 = vrot.slane %v4208, 2
  %v4210 = vadd.f32 %v4208, %v4209
  %v4211 = vrot.slane %v4210, 1
  %v4212 = vadd.f32 %v4210, %v4211
  %v4213 = vmul.f32 %v4212, %v2742
  %v4214 = vadd.f32 %v4213, 1e-10
  %v4215 = vrsqrt.pop %v4214
  %v4216 = vmul.f32 %v4176, %v4215
  %v4217 = vmul.f32 %v4177, %v4215
  %v4218 = vmul.f32 %v4178, %v4215
  %v4219 = vmul.f32 %v4179, %v4215
  %v4220 = vmul.f32 %v4180, %v4215
  %v4221 = vmul.f32 %v4181, %v4215
  %v4222 = vmul.f32 %v4182, %v4215
  %v4223 = vmul.f32 %v4183, %v4215
  %v4224 = vpack.c.bf16 %v4217, %v4216
  %v4225 = vpack.c.bf16 %v4219, %v4218
  %v4226 = vpack.c.bf16 %v4221, %v4220
  %v4227 = vpack.c.bf16 %v4223, %v4222
  %v4232 = vunpack.c.l.b16 %v4224
  %v4233 = vunpack.c.h.b16 %v4224
  %v4234 = vunpack.c.l.b16 %v4225
  %v4235 = vunpack.c.h.b16 %v4225
  %v4236 = vunpack.c.l.b16 %v4226
  %v4237 = vunpack.c.h.b16 %v4226
  %v4238 = vunpack.c.l.b16 %v4227
  %v4239 = vunpack.c.h.b16 %v4227
  %v4240 = vpack.c.b16 %v4232, %v4232
  %v4241 = vpack.c.b16 %v4233, %v4233
  %v4242 = vpack.c.b16 %v4234, %v4234
  %v4243 = vpack.c.b16 %v4235, %v4235
  %v4244 = vpack.c.b16 %v4236, %v4236
  %v4245 = vpack.c.b16 %v4237, %v4237
  %v4246 = vpack.c.b16 %v4238, %v4238
  %v4247 = vpack.c.b16 %v4239, %v4239
  %s4256 = scalar_lea.vmem %s6, 448
  %4257 = vst.msk [vmem:[%s4256] sm:$0xf] %vm2786, %v4240
  %4258 = vst.msk [vmem:[%s4256 + $0x4] sm:$0xf] %vm2786, %v4241
  %4259 = vst.msk [vmem:[%s4256 + $0x8] sm:$0xf] %vm2786, %v4242
  %4260 = vst.msk [vmem:[%s4256 + $0xc] sm:$0xf] %vm2786, %v4243
  %4261 = vst.msk [vmem:[%s4256 + $0x10] sm:$0xf] %vm2786, %v4244
  %4262 = vst.msk [vmem:[%s4256 + $0x14] sm:$0xf] %vm2786, %v4245
  %4263 = vst.msk [vmem:[%s4256 + $0x18] sm:$0xf] %vm2786, %v4246
  %4264 = vst.msk [vmem:[%s4256 + $0x1c] sm:$0xf] %vm2786, %v4247
  %v4265 = vmul.f32 %v1331, %v2612
  %v4266 = vmul.f32 %v1336, %v2617
  %v4267 = vmul.f32 %v1341, %v2622
  %v4268 = vmul.f32 %v1346, %v2627
  %v4269 = vmul.f32 %v1351, %v2632
  %v4270 = vmul.f32 %v1356, %v2637
  %v4271 = vmul.f32 %v1361, %v2642
  %v4272 = vmul.f32 %v1366, %v2647
  %v4273 = vadd.f32 %v4265, %v2660
  %v4274 = vadd.f32 %v4266, %v2665
  %v4275 = vadd.f32 %v4267, %v2670
  %v4276 = vadd.f32 %v4268, %v2675
  %v4277 = vadd.f32 %v4269, %v2680
  %v4278 = vadd.f32 %v4270, %v2685
  %v4279 = vadd.f32 %v4271, %v2690
  %v4280 = vadd.f32 %v4272, %v2695
  %v4281 = vmax.f32 %v4273, 0.0
  %v4282 = vmax.f32 %v4274, 0.0
  %v4283 = vmax.f32 %v4275, 0.0
  %v4284 = vmax.f32 %v4276, 0.0
  %v4285 = vmax.f32 %v4277, 0.0
  %v4286 = vmax.f32 %v4278, 0.0
  %v4287 = vmax.f32 %v4279, 0.0
  %v4288 = vmax.f32 %v4280, 0.0
  %v4289 = vmul.f32 %v4281, %v4281
  %v4290 = vmul.f32 %v4282, %v4282
  %v4291 = vmul.f32 %v4283, %v4283
  %v4292 = vmul.f32 %v4284, %v4284
  %v4293 = vmul.f32 %v4285, %v4285
  %v4294 = vmul.f32 %v4286, %v4286
  %v4295 = vmul.f32 %v4287, %v4287
  %v4296 = vmul.f32 %v4288, %v4288
  %v4297 = vsel %vm130, %v4289, 0.0
  %v4298 = vsel %vm130, %v4290, 0.0
  %v4299 = vadd.f32 %v4297, %v4298
  %v4300 = vsel %vm130, %v4291, 0.0
  %v4301 = vadd.f32 %v4299, %v4300
  %v4302 = vsel %vm130, %v4292, 0.0
  %v4303 = vadd.f32 %v4301, %v4302
  %v4304 = vsel %vm130, %v4293, 0.0
  %v4305 = vadd.f32 %v4303, %v4304
  %v4306 = vsel %vm130, %v4294, 0.0
  %v4307 = vadd.f32 %v4305, %v4306
  %v4308 = vsel %vm130, %v4295, 0.0
  %v4309 = vadd.f32 %v4307, %v4308
  %v4310 = vsel %vm130, %v4296, 0.0
  %v4311 = vadd.f32 %v4309, %v4310
  %v4312 = vrot.slane %v4311, 4
  %v4313 = vadd.f32 %v4311, %v4312
  %v4314 = vrot.slane %v4313, 2
  %v4315 = vadd.f32 %v4313, %v4314
  %v4316 = vrot.slane %v4315, 1
  %v4317 = vadd.f32 %v4315, %v4316
  %v4318 = vmul.f32 %v4317, %v2742
  %v4319 = vadd.f32 %v4318, 1e-10
  %v4320 = vrsqrt.pop %v4319
  %v4321 = vmul.f32 %v4281, %v4320
  %v4322 = vmul.f32 %v4282, %v4320
  %v4323 = vmul.f32 %v4283, %v4320
  %v4324 = vmul.f32 %v4284, %v4320
  %v4325 = vmul.f32 %v4285, %v4320
  %v4326 = vmul.f32 %v4286, %v4320
  %v4327 = vmul.f32 %v4287, %v4320
  %v4328 = vmul.f32 %v4288, %v4320
  %v4329 = vpack.c.bf16 %v4322, %v4321
  %v4330 = vpack.c.bf16 %v4324, %v4323
  %v4331 = vpack.c.bf16 %v4326, %v4325
  %v4332 = vpack.c.bf16 %v4328, %v4327
  %v4337 = vunpack.c.l.b16 %v4329
  %v4338 = vunpack.c.h.b16 %v4329
  %v4339 = vunpack.c.l.b16 %v4330
  %v4340 = vunpack.c.h.b16 %v4330
  %v4341 = vunpack.c.l.b16 %v4331
  %v4342 = vunpack.c.h.b16 %v4331
  %v4343 = vunpack.c.l.b16 %v4332
  %v4344 = vunpack.c.h.b16 %v4332
  %v4345 = vpack.c.b16 %v4337, %v4337
  %v4346 = vpack.c.b16 %v4338, %v4338
  %v4347 = vpack.c.b16 %v4339, %v4339
  %v4348 = vpack.c.b16 %v4340, %v4340
  %v4349 = vpack.c.b16 %v4341, %v4341
  %v4350 = vpack.c.b16 %v4342, %v4342
  %v4351 = vpack.c.b16 %v4343, %v4343
  %v4352 = vpack.c.b16 %v4344, %v4344
  %s4361 = scalar_lea.vmem %s6, 480
  %4362 = vst.msk [vmem:[%s4361] sm:$0xf] %vm2786, %v4345
  %4363 = vst.msk [vmem:[%s4361 + $0x4] sm:$0xf] %vm2786, %v4346
  %4364 = vst.msk [vmem:[%s4361 + $0x8] sm:$0xf] %vm2786, %v4347
  %4365 = vst.msk [vmem:[%s4361 + $0xc] sm:$0xf] %vm2786, %v4348
  %4366 = vst.msk [vmem:[%s4361 + $0x10] sm:$0xf] %vm2786, %v4349
  %4367 = vst.msk [vmem:[%s4361 + $0x14] sm:$0xf] %vm2786, %v4350
  %4368 = vst.msk [vmem:[%s4361 + $0x18] sm:$0xf] %vm2786, %v4351
  %4369 = vst.msk [vmem:[%s4361 + $0x1c] sm:$0xf] %vm2786, %v4352
  // Predicated region
  $region26: #{generator_forward.4} parent=0 // pred_check
    _
  $region27: #{generator_forward.4} parent=0 // pred_check_branch
    %4371 = sbr.rel (0) target = $region29
  $region28: #{generator_forward.4} parent=0 // pred_region
    _
  $region29: #{generator_forward.4} parent=0 // pred_fallthru
    _
  // Predicated region
  $region30: #{generator_forward.4} parent=0 // pred_check
    _
  $region31: #{generator_forward.4} parent=0 // pred_check_branch
    %4373 = sbr.rel (0) target = $region33
  $region32: #{generator_forward.4} parent=0 // pred_region
    _
  $region33: #{generator_forward.4} parent=0 // pred_fallthru
    _

// kernel: generator_forward.6
$region0: #{generator_forward.6}
  #allocation0 [shape = 'u32[]', space=smem, size = 0x4, offset = 0x4, fixed_abs, tag = 'smem constant byte address 0x4 - core index']
  #allocation1 [shape = 'u32[144,128]{1,0:T(1,128)}', space=vmem, size = 0x12000, scoped, tag = 'internal scratch']
  %s0 = inlined_call_operand.vmem [shape: bf16[4,128,128], index: 0, kind: input, shape index: {}]
  %s1 = inlined_call_operand.vmem [shape: bf16[4,16,128], index: 1, kind: input, shape index: {}]
  %s2 = inlined_call_operand.vmem [shape: f32[16,1], index: 2, kind: input, shape index: {}]
  %s3 = inlined_call_operand.vmem [shape: f32[16,1], index: 3, kind: input, shape index: {}]
  %s4 = inlined_call_operand.vmem [shape: bf16[4,16,128], index: 4, kind: output, shape index: {}]
  %s5 = sld [smem:[#allocation0]]
  $region26: #{generator_forward.6} parent=0
    _
  %s7 = ssub.s32 1, %s5
  %s8 = scalar_select 0, %s7, %s5
  // Predicated region
  $region2: #{generator_forward.6} parent=0 // pred_check
    _
  $region3: #{generator_forward.6} parent=0 // pred_check_branch
    %10 = sbr.rel (0) target = $region5
  $region4: #{generator_forward.6} parent=0 // pred_region
    _
  $region5: #{generator_forward.6} parent=0 // pred_fallthru
    _
  // Predicated region
  $region6: #{generator_forward.6} parent=0 // pred_check
    _
  $region7: #{generator_forward.6} parent=0 // pred_check_branch
    %12 = sbr.rel (0) target = $region9
  $region8: #{generator_forward.6} parent=0 // pred_region
    _
  $region9: #{generator_forward.6} parent=0 // pred_fallthru
    _
  // Predicated region
  $region10: #{generator_forward.6} parent=0 // pred_check
    _
  $region11: #{generator_forward.6} parent=0 // pred_check_branch
    %14 = sbr.rel (0) target = $region13
  $region12: #{generator_forward.6} parent=0 // pred_region
    _
  $region13: #{generator_forward.6} parent=0 // pred_fallthru
    _
  // Predicated region
  $region14: #{generator_forward.6} parent=0 // pred_check
    _
  $region15: #{generator_forward.6} parent=0 // pred_check_branch
    %16 = sbr.rel (0) target = $region17
  $region16: #{generator_forward.6} parent=0 // pred_region
    _
  $region17: #{generator_forward.6} parent=0 // pred_fallthru
    _
  %v18 = vld [vmem:[%s1] sm:$0xf]
  %v19 = vld [vmem:[%s1 + $0x4] sm:$0xf]
  %v20 = vld [vmem:[%s0] sm:$0xf]
  %v21 = vld [vmem:[%s0 + $0x4] sm:$0xf]
  %v22 = vld [vmem:[%s0 + $0x8] sm:$0xf]
  %v23 = vld [vmem:[%s0 + $0xc] sm:$0xf]
  %v24 = vld [vmem:[%s0 + $0x10] sm:$0xf]
  %v25 = vld [vmem:[%s0 + $0x14] sm:$0xf]
  %v26 = vld [vmem:[%s0 + $0x18] sm:$0xf]
  %v27 = vld [vmem:[%s0 + $0x1c] sm:$0xf]
  %v28 = vld [vmem:[%s0 + $0x20] sm:$0xf]
  %v29 = vld [vmem:[%s0 + $0x24] sm:$0xf]
  %v30 = vld [vmem:[%s0 + $0x28] sm:$0xf]
  %v31 = vld [vmem:[%s0 + $0x2c] sm:$0xf]
  %v32 = vld [vmem:[%s0 + $0x30] sm:$0xf]
  %v33 = vld [vmem:[%s0 + $0x34] sm:$0xf]
  %v34 = vld [vmem:[%s0 + $0x38] sm:$0xf]
  %v35 = vld [vmem:[%s0 + $0x3c] sm:$0xf]
  %v38 = vunpack.c.l.b16 %v18
  %v39 = vunpack.c.l.b16 %v19
  %v40 = vpack.c.b16 %v39, %v38
  %v58 = vunpack.c.l.b16 %v20
  %v59 = vunpack.c.l.b16 %v21
  %v60 = vunpack.c.l.b16 %v22
  %v61 = vunpack.c.l.b16 %v23
  %v62 = vunpack.c.l.b16 %v24
  %v63 = vunpack.c.l.b16 %v25
  %v64 = vunpack.c.l.b16 %v26
  %v65 = vunpack.c.l.b16 %v27
  %v66 = vunpack.c.l.b16 %v28
  %v67 = vunpack.c.l.b16 %v29
  %v68 = vunpack.c.l.b16 %v30
  %v69 = vunpack.c.l.b16 %v31
  %v70 = vunpack.c.l.b16 %v32
  %v71 = vunpack.c.l.b16 %v33
  %v72 = vunpack.c.l.b16 %v34
  %v73 = vunpack.c.l.b16 %v35
  %v74 = vpack.c.b16 %v59, %v58
  %v75 = vpack.c.b16 %v61, %v60
  %v76 = vpack.c.b16 %v63, %v62
  %v77 = vpack.c.b16 %v65, %v64
  %v78 = vpack.c.b16 %v67, %v66
  %v79 = vpack.c.b16 %v69, %v68
  %v80 = vpack.c.b16 %v71, %v70
  %v81 = vpack.c.b16 %v73, %v72
  %90 = vmatprep.subr.bf16.mxu0 0
  %91 = vmatpush1.bf16.msra.mxu0 %v74
  %92 = vmatprep.subr.bf16.mxu0 0
  %93 = vmatpush1.bf16.msra.mxu0 %v75
  %94 = vmatprep.subr.bf16.mxu0 0
  %95 = vmatpush1.bf16.msra.mxu0 %v76
  %96 = vmatprep.subr.bf16.mxu0 0
  %97 = vmatpush1.bf16.msra.mxu0 %v77
  %98 = vmatprep.subr.bf16.mxu0 0
  %99 = vmatpush1.bf16.msra.mxu0 %v78
  %100 = vmatprep.subr.bf16.mxu0 0
  %101 = vmatpush1.bf16.msra.mxu0 %v79
  %102 = vmatprep.subr.bf16.mxu0 0
  %103 = vmatpush1.bf16.msra.mxu0 %v80
  %104 = vmatprep.subr.bf16.mxu0 0
  %105 = vmatpush1.bf16.msra.mxu0 %v81
  %106 = vmatprep.subr.bf16.mxu0 0
  %107 = vmatpush1.bf16.msra.mxu0 0
  %108 = vmatprep.subr.bf16.mxu0 0
  %109 = vmatpush1.bf16.msra.mxu0 0
  %110 = vmatprep.subr.bf16.mxu0 0
  %111 = vmatpush1.bf16.msra.mxu0 0
  %112 = vmatprep.subr.bf16.mxu0 0
  %113 = vmatpush1.bf16.msra.mxu0 0
  %114 = vmatprep.subr.bf16.mxu0 0
  %115 = vmatpush1.bf16.msra.mxu0 0
  %116 = vmatprep.subr.bf16.mxu0 0
  %117 = vmatpush1.bf16.msra.mxu0 0
  %118 = vmatprep.subr.bf16.mxu0 0
  %119 = vmatpush1.bf16.msra.mxu0 0
  %120 = vmatprep.subr.bf16.mxu0 0
  %121 = vmatpush1.bf16.msra.mxu0 0
  %122 = vmatprep.mubr.bf16.mxu0 0
  %123 = vmatmul.mubr.bf16.gmra.mrb[0].mxu0 %v40
  %v124 = vpop.f32.mrb[0].mxu0
  %v125 = vadd.f32 0.0, %v124
  %v126 = vpop.f32.mrb[0].mxu0
  %v127 = vpop.f32.mrb[0].mxu0
  %v128 = vadd.f32 0.0, %v127
  %v129 = vpop.f32.mrb[0].mxu0
  %130 = vdwg.mxu0
  %131 = vadd.xlane.f32.xlu0 %v125
  %v132 = vpop.xlane.xlu0 %131
  %133 = vadd.xlane.f32.xlu0 %v128
  %v134 = vpop.xlane.xlu0 %133
  %v135 = vadd.f32 %v132, 0.0
  %v136 = vadd.f32 %v134, 0.0
  %v137 = vmul.f32 %v125, %v125
  %v138 = vmul.f32 %v128, %v128
  %139 = vadd.xlane.f32.xlu0 %v137
  %v140 = vpop.xlane.xlu0 %139
  %141 = vadd.xlane.f32.xlu0 %v138
  %v142 = vpop.xlane.xlu0 %141
  %v143 = vadd.f32 %v140, 0.0
  %v144 = vadd.f32 %v142, 0.0
  %s145 = scalar_lea.vmem %s1, 8
  %v146 = vld [vmem:[%s145] sm:$0xf]
  %v147 = vld [vmem:[%s145 + $0x4] sm:$0xf]
  %s148 = scalar_lea.vmem %s0, 64
  %v149 = vld [vmem:[%s148] sm:$0xf]
  %v150 = vld [vmem:[%s148 + $0x4] sm:$0xf]
  %v151 = vld [vmem:[%s148 + $0x8] sm:$0xf]
  %v152 = vld [vmem:[%s148 + $0xc] sm:$0xf]
  %v153 = vld [vmem:[%s148 + $0x10] sm:$0xf]
  %v154 = vld [vmem:[%s148 + $0x14] sm:$0xf]
  %v155 = vld [vmem:[%s148 + $0x18] sm:$0xf]
  %v156 = vld [vmem:[%s148 + $0x1c] sm:$0xf]
  %v157 = vld [vmem:[%s148 + $0x20] sm:$0xf]
  %v158 = vld [vmem:[%s148 + $0x24] sm:$0xf]
  %v159 = vld [vmem:[%s148 + $0x28] sm:$0xf]
  %v160 = vld [vmem:[%s148 + $0x2c] sm:$0xf]
  %v161 = vld [vmem:[%s148 + $0x30] sm:$0xf]
  %v162 = vld [vmem:[%s148 + $0x34] sm:$0xf]
  %v163 = vld [vmem:[%s148 + $0x38] sm:$0xf]
  %v164 = vld [vmem:[%s148 + $0x3c] sm:$0xf]
  %v167 = vunpack.c.l.b16 %v146
  %v168 = vunpack.c.l.b16 %v147
  %v169 = vpack.c.b16 %v168, %v167
  %v187 = vunpack.c.l.b16 %v149
  %v188 = vunpack.c.l.b16 %v150
  %v189 = vunpack.c.l.b16 %v151
  %v190 = vunpack.c.l.b16 %v152
  %v191 = vunpack.c.l.b16 %v153
  %v192 = vunpack.c.l.b16 %v154
  %v193 = vunpack.c.l.b16 %v155
  %v194 = vunpack.c.l.b16 %v156
  %v195 = vunpack.c.l.b16 %v157
  %v196 = vunpack.c.l.b16 %v158
  %v197 = vunpack.c.l.b16 %v159
  %v198 = vunpack.c.l.b16 %v160
  %v199 = vunpack.c.l.b16 %v161
  %v200 = vunpack.c.l.b16 %v162
  %v201 = vunpack.c.l.b16 %v163
  %v202 = vunpack.c.l.b16 %v164
  %v203 = vpack.c.b16 %v188, %v187
  %v204 = vpack.c.b16 %v190, %v189
  %v205 = vpack.c.b16 %v192, %v191
  %v206 = vpack.c.b16 %v194, %v193
  %v207 = vpack.c.b16 %v196, %v195
  %v208 = vpack.c.b16 %v198, %v197
  %v209 = vpack.c.b16 %v200, %v199
  %v210 = vpack.c.b16 %v202, %v201
  %219 = vmatprep.subr.bf16.mxu0 0
  %220 = vmatpush1.bf16.msra.mxu0 %v203
  %221 = vmatprep.subr.bf16.mxu0 0
  %222 = vmatpush1.bf16.msra.mxu0 %v204
  %223 = vmatprep.subr.bf16.mxu0 0
  %224 = vmatpush1.bf16.msra.mxu0 %v205
  %225 = vmatprep.subr.bf16.mxu0 0
  %226 = vmatpush1.bf16.msra.mxu0 %v206
  %227 = vmatprep.subr.bf16.mxu0 0
  %228 = vmatpush1.bf16.msra.mxu0 %v207
  %229 = vmatprep.subr.bf16.mxu0 0
  %230 = vmatpush1.bf16.msra.mxu0 %v208
  %231 = vmatprep.subr.bf16.mxu0 0
  %232 = vmatpush1.bf16.msra.mxu0 %v209
  %233 = vmatprep.subr.bf16.mxu0 0
  %234 = vmatpush1.bf16.msra.mxu0 %v210
  %235 = vmatprep.subr.bf16.mxu0 0
  %236 = vmatpush1.bf16.msra.mxu0 0
  %237 = vmatprep.subr.bf16.mxu0 0
  %238 = vmatpush1.bf16.msra.mxu0 0
  %239 = vmatprep.subr.bf16.mxu0 0
  %240 = vmatpush1.bf16.msra.mxu0 0
  %241 = vmatprep.subr.bf16.mxu0 0
  %242 = vmatpush1.bf16.msra.mxu0 0
  %243 = vmatprep.subr.bf16.mxu0 0
  %244 = vmatpush1.bf16.msra.mxu0 0
  %245 = vmatprep.subr.bf16.mxu0 0
  %246 = vmatpush1.bf16.msra.mxu0 0
  %247 = vmatprep.subr.bf16.mxu0 0
  %248 = vmatpush1.bf16.msra.mxu0 0
  %249 = vmatprep.subr.bf16.mxu0 0
  %250 = vmatpush1.bf16.msra.mxu0 0
  %251 = vmatprep.mubr.bf16.mxu0 0
  %252 = vmatmul.mubr.bf16.gmra.mrb[0].mxu0 %v169
  %v253 = vpop.f32.mrb[0].mxu0
  %v254 = vadd.f32 0.0, %v253
  %v255 = vpop.f32.mrb[0].mxu0
  %v256 = vpop.f32.mrb[0].mxu0
  %v257 = vadd.f32 0.0, %v256
  %v258 = vpop.f32.mrb[0].mxu0
  %259 = vdwg.mxu0
  %260 = vadd.xlane.f32.xlu0 %v254
  %v261 = vpop.xlane.xlu0 %260
  %262 = vadd.xlane.f32.xlu0 %v257
  %v263 = vpop.xlane.xlu0 %262
  %v264 = vadd.f32 %v135, %v261
  %v265 = vadd.f32 %v136, %v263
  %v266 = vmul.f32 %v254, %v254
  %v267 = vmul.f32 %v257, %v257
  %268 = vadd.xlane.f32.xlu0 %v266
  %v269 = vpop.xlane.xlu0 %268
  %270 = vadd.xlane.f32.xlu0 %v267
  %v271 = vpop.xlane.xlu0 %270
  %v272 = vadd.f32 %v143, %v269
  %v273 = vadd.f32 %v144, %v271
  %s274 = scalar_lea.vmem %s1, 16
  %v275 = vld [vmem:[%s274] sm:$0xf]
  %v276 = vld [vmem:[%s274 + $0x4] sm:$0xf]
  %s277 = scalar_lea.vmem %s0, 128
  %v278 = vld [vmem:[%s277] sm:$0xf]
  %v279 = vld [vmem:[%s277 + $0x4] sm:$0xf]
  %v280 = vld [vmem:[%s277 + $0x8] sm:$0xf]
  %v281 = vld [vmem:[%s277 + $0xc] sm:$0xf]
  %v282 = vld [vmem:[%s277 + $0x10] sm:$0xf]
  %v283 = vld [vmem:[%s277 + $0x14] sm:$0xf]
  %v284 = vld [vmem:[%s277 + $0x18] sm:$0xf]
  %v285 = vld [vmem:[%s277 + $0x1c] sm:$0xf]
  %v286 = vld [vmem:[%s277 + $0x20] sm:$0xf]
  %v287 = vld [vmem:[%s277 + $0x24] sm:$0xf]
  %v288 = vld [vmem:[%s277 + $0x28] sm:$0xf]
  %v289 = vld [vmem:[%s277 + $0x2c] sm:$0xf]
  %v290 = vld [vmem:[%s277 + $0x30] sm:$0xf]
  %v291 = vld [vmem:[%s277 + $0x34] sm:$0xf]
  %v292 = vld [vmem:[%s277 + $0x38] sm:$0xf]
  %v293 = vld [vmem:[%s277 + $0x3c] sm:$0xf]
  %v296 = vunpack.c.l.b16 %v275
  %v297 = vunpack.c.l.b16 %v276
  %v298 = vpack.c.b16 %v297, %v296
  %v316 = vunpack.c.l.b16 %v278
  %v317 = vunpack.c.l.b16 %v279
  %v318 = vunpack.c.l.b16 %v280
  %v319 = vunpack.c.l.b16 %v281
  %v320 = vunpack.c.l.b16 %v282
  %v321 = vunpack.c.l.b16 %v283
  %v322 = vunpack.c.l.b16 %v284
  %v323 = vunpack.c.l.b16 %v285
  %v324 = vunpack.c.l.b16 %v286
  %v325 = vunpack.c.l.b16 %v287
  %v326 = vunpack.c.l.b16 %v288
  %v327 = vunpack.c.l.b16 %v289
  %v328 = vunpack.c.l.b16 %v290
  %v329 = vunpack.c.l.b16 %v291
  %v330 = vunpack.c.l.b16 %v292
  %v331 = vunpack.c.l.b16 %v293
  %v332 = vpack.c.b16 %v317, %v316
  %v333 = vpack.c.b16 %v319, %v318
  %v334 = vpack.c.b16 %v321, %v320
  %v335 = vpack.c.b16 %v323, %v322
  %v336 = vpack.c.b16 %v325, %v324
  %v337 = vpack.c.b16 %v327, %v326
  %v338 = vpack.c.b16 %v329, %v328
  %v339 = vpack.c.b16 %v331, %v330
  %348 = vmatprep.subr.bf16.mxu0 0
  %349 = vmatpush1.bf16.msra.mxu0 %v332
  %350 = vmatprep.subr.bf16.mxu0 0
  %351 = vmatpush1.bf16.msra.mxu0 %v333
  %352 = vmatprep.subr.bf16.mxu0 0
  %353 = vmatpush1.bf16.msra.mxu0 %v334
  %354 = vmatprep.subr.bf16.mxu0 0
  %355 = vmatpush1.bf16.msra.mxu0 %v335
  %356 = vmatprep.subr.bf16.mxu0 0
  %357 = vmatpush1.bf16.msra.mxu0 %v336
  %358 = vmatprep.subr.bf16.mxu0 0
  %359 = vmatpush1.bf16.msra.mxu0 %v337
  %360 = vmatprep.subr.bf16.mxu0 0
  %361 = vmatpush1.bf16.msra.mxu0 %v338
  %362 = vmatprep.subr.bf16.mxu0 0
  %363 = vmatpush1.bf16.msra.mxu0 %v339
  %364 = vmatprep.subr.bf16.mxu0 0
  %365 = vmatpush1.bf16.msra.mxu0 0
  %366 = vmatprep.subr.bf16.mxu0 0
  %367 = vmatpush1.bf16.msra.mxu0 0
  %368 = vmatprep.subr.bf16.mxu0 0
  %369 = vmatpush1.bf16.msra.mxu0 0
  %370 = vmatprep.subr.bf16.mxu0 0
  %371 = vmatpush1.bf16.msra.mxu0 0
  %372 = vmatprep.subr.bf16.mxu0 0
  %373 = vmatpush1.bf16.msra.mxu0 0
  %374 = vmatprep.subr.bf16.mxu0 0
  %375 = vmatpush1.bf16.msra.mxu0 0
  %376 = vmatprep.subr.bf16.mxu0 0
  %377 = vmatpush1.bf16.msra.mxu0 0
  %378 = vmatprep.subr.bf16.mxu0 0
  %379 = vmatpush1.bf16.msra.mxu0 0
  %380 = vmatprep.mubr.bf16.mxu0 0
  %381 = vmatmul.mubr.bf16.gmra.mrb[0].mxu0 %v298
  %v382 = vpop.f32.mrb[0].mxu0
  %v383 = vadd.f32 0.0, %v382
  %v384 = vpop.f32.mrb[0].mxu0
  %v385 = vpop.f32.mrb[0].mxu0
  %v386 = vadd.f32 0.0, %v385
  %v387 = vpop.f32.mrb[0].mxu0
  %388 = vdwg.mxu0
  %389 = vadd.xlane.f32.xlu0 %v383
  %v390 = vpop.xlane.xlu0 %389
  %391 = vadd.xlane.f32.xlu0 %v386
  %v392 = vpop.xlane.xlu0 %391
  %v393 = vadd.f32 %v264, %v390
  %v394 = vadd.f32 %v265, %v392
  %v395 = vmul.f32 %v383, %v383
  %v396 = vmul.f32 %v386, %v386
  %397 = vadd.xlane.f32.xlu0 %v395
  %v398 = vpop.xlane.xlu0 %397
  %399 = vadd.xlane.f32.xlu0 %v396
  %v400 = vpop.xlane.xlu0 %399
  %v401 = vadd.f32 %v272, %v398
  %v402 = vadd.f32 %v273, %v400
  %s403 = scalar_lea.vmem %s1, 24
  %v404 = vld [vmem:[%s403] sm:$0xf]
  %v405 = vld [vmem:[%s403 + $0x4] sm:$0xf]
  %s406 = scalar_lea.vmem %s0, 192
  %v407 = vld [vmem:[%s406] sm:$0xf]
  %v408 = vld [vmem:[%s406 + $0x4] sm:$0xf]
  %v409 = vld [vmem:[%s406 + $0x8] sm:$0xf]
  %v410 = vld [vmem:[%s406 + $0xc] sm:$0xf]
  %v411 = vld [vmem:[%s406 + $0x10] sm:$0xf]
  %v412 = vld [vmem:[%s406 + $0x14] sm:$0xf]
  %v413 = vld [vmem:[%s406 + $0x18] sm:$0xf]
  %v414 = vld [vmem:[%s406 + $0x1c] sm:$0xf]
  %v415 = vld [vmem:[%s406 + $0x20] sm:$0xf]
  %v416 = vld [vmem:[%s406 + $0x24] sm:$0xf]
  %v417 = vld [vmem:[%s406 + $0x28] sm:$0xf]
  %v418 = vld [vmem:[%s406 + $0x2c] sm:$0xf]
  %v419 = vld [vmem:[%s406 + $0x30] sm:$0xf]
  %v420 = vld [vmem:[%s406 + $0x34] sm:$0xf]
  %v421 = vld [vmem:[%s406 + $0x38] sm:$0xf]
  %v422 = vld [vmem:[%s406 + $0x3c] sm:$0xf]
  %v425 = vunpack.c.l.b16 %v404
  %v426 = vunpack.c.l.b16 %v405
  %v427 = vpack.c.b16 %v426, %v425
  %v445 = vunpack.c.l.b16 %v407
  %v446 = vunpack.c.l.b16 %v408
  %v447 = vunpack.c.l.b16 %v409
  %v448 = vunpack.c.l.b16 %v410
  %v449 = vunpack.c.l.b16 %v411
  %v450 = vunpack.c.l.b16 %v412
  %v451 = vunpack.c.l.b16 %v413
  %v452 = vunpack.c.l.b16 %v414
  %v453 = vunpack.c.l.b16 %v415
  %v454 = vunpack.c.l.b16 %v416
  %v455 = vunpack.c.l.b16 %v417
  %v456 = vunpack.c.l.b16 %v418
  %v457 = vunpack.c.l.b16 %v419
  %v458 = vunpack.c.l.b16 %v420
  %v459 = vunpack.c.l.b16 %v421
  %v460 = vunpack.c.l.b16 %v422
  %v461 = vpack.c.b16 %v446, %v445
  %v462 = vpack.c.b16 %v448, %v447
  %v463 = vpack.c.b16 %v450, %v449
  %v464 = vpack.c.b16 %v452, %v451
  %v465 = vpack.c.b16 %v454, %v453
  %v466 = vpack.c.b16 %v456, %v455
  %v467 = vpack.c.b16 %v458, %v457
  %v468 = vpack.c.b16 %v460, %v459
  %477 = vmatprep.subr.bf16.mxu0 0
  %478 = vmatpush1.bf16.msra.mxu0 %v461
  %479 = vmatprep.subr.bf16.mxu0 0
  %480 = vmatpush1.bf16.msra.mxu0 %v462
  %481 = vmatprep.subr.bf16.mxu0 0
  %482 = vmatpush1.bf16.msra.mxu0 %v463
  %483 = vmatprep.subr.bf16.mxu0 0
  %484 = vmatpush1.bf16.msra.mxu0 %v464
  %485 = vmatprep.subr.bf16.mxu0 0
  %486 = vmatpush1.bf16.msra.mxu0 %v465
  %487 = vmatprep.subr.bf16.mxu0 0
  %488 = vmatpush1.bf16.msra.mxu0 %v466
  %489 = vmatprep.subr.bf16.mxu0 0
  %490 = vmatpush1.bf16.msra.mxu0 %v467
  %491 = vmatprep.subr.bf16.mxu0 0
  %492 = vmatpush1.bf16.msra.mxu0 %v468
  %493 = vmatprep.subr.bf16.mxu0 0
  %494 = vmatpush1.bf16.msra.mxu0 0
  %495 = vmatprep.subr.bf16.mxu0 0
  %496 = vmatpush1.bf16.msra.mxu0 0
  %497 = vmatprep.subr.bf16.mxu0 0
  %498 = vmatpush1.bf16.msra.mxu0 0
  %499 = vmatprep.subr.bf16.mxu0 0
  %500 = vmatpush1.bf16.msra.mxu0 0
  %501 = vmatprep.subr.bf16.mxu0 0
  %502 = vmatpush1.bf16.msra.mxu0 0
  %503 = vmatprep.subr.bf16.mxu0 0
  %504 = vmatpush1.bf16.msra.mxu0 0
  %505 = vmatprep.subr.bf16.mxu0 0
  %506 = vmatpush1.bf16.msra.mxu0 0
  %507 = vmatprep.subr.bf16.mxu0 0
  %508 = vmatpush1.bf16.msra.mxu0 0
  %509 = vmatprep.mubr.bf16.mxu0 0
  %510 = vmatmul.mubr.bf16.gmra.mrb[0].mxu0 %v427
  %v511 = vpop.f32.mrb[0].mxu0
  %v512 = vadd.f32 0.0, %v511
  %v513 = vpop.f32.mrb[0].mxu0
  %v514 = vpop.f32.mrb[0].mxu0
  %v515 = vadd.f32 0.0, %v514
  %v516 = vpop.f32.mrb[0].mxu0
  %517 = vdwg.mxu0
  %518 = vadd.xlane.f32.xlu0 %v512
  %v519 = vpop.xlane.xlu0 %518
  %520 = vadd.xlane.f32.xlu0 %v515
  %v521 = vpop.xlane.xlu0 %520
  %v522 = vadd.f32 %v393, %v519
  %v523 = vadd.f32 %v394, %v521
  %v524 = vmul.f32 %v512, %v512
  %v525 = vmul.f32 %v515, %v515
  %526 = vadd.xlane.f32.xlu0 %v524
  %v527 = vpop.xlane.xlu0 %526
  %528 = vadd.xlane.f32.xlu0 %v525
  %v529 = vpop.xlane.xlu0 %528
  %v530 = vadd.f32 %v401, %v527
  %v531 = vadd.f32 %v402, %v529
  %v532 = vmul.f32 %v522, 0.001953125
  %v533 = vmul.f32 %v523, 0.001953125
  %v534 = vmul.f32 %v530, 0.001953125
  %v535 = vmul.f32 %v531, 0.001953125
  %v536 = vmul.f32 %v532, %v532
  %v537 = vmul.f32 %v533, %v533
  %v538 = vsub.f32 %v534, %v536
  %v539 = vsub.f32 %v535, %v537
  %v540 = vld [vmem:[%s2] sm:$0xff]
  %v541 = vld [vmem:[%s2 + $0x8] sm:$0xff]
  %v542 = vadd.f32 %v538, 1e-05
  %v543 = vadd.f32 %v539, 1e-05
  %v544 = vrsqrt.pop %v542
  %v545 = vrsqrt.pop %v543
  %v546 = vmul.f32 %v540, %v544
  %v547 = vmul.f32 %v541, %v545
  %v548 = vld [vmem:[%s3] sm:$0xff]
  %v549 = vld [vmem:[%s3 + $0x8] sm:$0xff]
  %v550 = vmul.f32 %v532, %v546
  %v551 = vmul.f32 %v533, %v547
  %v552 = vsub.f32 %v548, %v550
  %v553 = vsub.f32 %v549, %v551
  %555 = vset.pattern.permute.xlu0 0
  %556 = vperm.xlu0 %555, %v546
  %v557 = vpop.permute.xlu0 %556
  %560 = vset.pattern.permute.xlu0 0
  %561 = vperm.xlu0 %560, %v547
  %v562 = vpop.permute.xlu0 %561
  %v564 = vmul.f32 %v125, %v557
  %v565 = vmul.f32 %v128, %v562
  %567 = vset.pattern.permute.xlu0 0
  %568 = vperm.xlu0 %567, %v552
  %v569 = vpop.permute.xlu0 %568
  %572 = vset.pattern.permute.xlu0 0
  %573 = vperm.xlu0 %572, %v553
  %v574 = vpop.permute.xlu0 %573
  %v576 = vadd.f32 %v564, %v569
  %v577 = vadd.f32 %v565, %v574
  %v578 = vmax.f32 %v576, 0.0
  %v579 = vmax.f32 %v577, 0.0
  %v580 = vmul.f32 %v578, %v578
  %v581 = vmul.f32 %v579, %v579
  %v582 = vadd.f32 %v580, %v581
  %v583 = vrot.slane %v582, 4
  %v584 = vadd.f32 %v582, %v583
  %v585 = vrot.slane %v584, 2
  %v586 = vadd.f32 %v584, %v585
  %v587 = vrot.slane %v586, 1
  %v588 = vadd.f32 %v586, %v587
  %v589 = vrcp.pop 16.0
  %v590 = vmul.f32 %v588, %v589
  %v591 = vadd.f32 %v590, 1e-10
  %v592 = vrsqrt.pop %v591
  %v593 = vmul.f32 %v578, %v592
  %v594 = vmul.f32 %v579, %v592
  %v595 = vpack.c.bf16 %v594, %v593
  %v597 = vunpack.c.l.b16 %v595
  %v598 = vunpack.c.h.b16 %v595
  %v599 = vpack.c.b16 %v597, %v597
  %v600 = vpack.c.b16 %v598, %v598
  %603 = vst [vmem:[%s4] sm:$0xf] %v599
  %604 = vst [vmem:[%s4 + $0x4] sm:$0xf] %v600
  %v605 = vmul.f32 %v254, %v557
  %v606 = vmul.f32 %v257, %v562
  %v607 = vadd.f32 %v605, %v569
  %v608 = vadd.f32 %v606, %v574
  %v609 = vmax.f32 %v607, 0.0
  %v610 = vmax.f32 %v608, 0.0
  %v611 = vmul.f32 %v609, %v609
  %v612 = vmul.f32 %v610, %v610
  %v613 = vadd.f32 %v611, %v612
  %v614 = vrot.slane %v613, 4
  %v615 = vadd.f32 %v613, %v614
  %v616 = vrot.slane %v615, 2
  %v617 = vadd.f32 %v615, %v616
  %v618 = vrot.slane %v617, 1
  %v619 = vadd.f32 %v617, %v618
  %v620 = vmul.f32 %v619, %v589
  %v621 = vadd.f32 %v620, 1e-10
  %v622 = vrsqrt.pop %v621
  %v623 = vmul.f32 %v609, %v622
  %v624 = vmul.f32 %v610, %v622
  %v625 = vpack.c.bf16 %v624, %v623
  %v627 = vunpack.c.l.b16 %v625
  %v628 = vunpack.c.h.b16 %v625
  %v629 = vpack.c.b16 %v627, %v627
  %v630 = vpack.c.b16 %v628, %v628
  %s633 = scalar_lea.vmem %s4, 8
  %634 = vst [vmem:[%s633] sm:$0xf] %v629
  %635 = vst [vmem:[%s633 + $0x4] sm:$0xf] %v630
  %v636 = vmul.f32 %v383, %v557
  %v637 = vmul.f32 %v386, %v562
  %v638 = vadd.f32 %v636, %v569
  %v639 = vadd.f32 %v637, %v574
  %v640 = vmax.f32 %v638, 0.0
  %v641 = vmax.f32 %v639, 0.0
  %v642 = vmul.f32 %v640, %v640
  %v643 = vmul.f32 %v641, %v641
  %v644 = vadd.f32 %v642, %v643
  %v645 = vrot.slane %v644, 4
  %v646 = vadd.f32 %v644, %v645
  %v647 = vrot.slane %v646, 2
  %v648 = vadd.f32 %v646, %v647
  %v649 = vrot.slane %v648, 1
  %v650 = vadd.f32 %v648, %v649
  %v651 = vmul.f32 %v650, %v589
  %v652 = vadd.f32 %v651, 1e-10
  %v653 = vrsqrt.pop %v652
  %v654 = vmul.f32 %v640, %v653
  %v655 = vmul.f32 %v641, %v653
  %v656 = vpack.c.bf16 %v655, %v654
  %v658 = vunpack.c.l.b16 %v656
  %v659 = vunpack.c.h.b16 %v656
  %v660 = vpack.c.b16 %v658, %v658
  %v661 = vpack.c.b16 %v659, %v659
  %s664 = scalar_lea.vmem %s4, 16
  %665 = vst [vmem:[%s664] sm:$0xf] %v660
  %666 = vst [vmem:[%s664 + $0x4] sm:$0xf] %v661
  %v667 = vmul.f32 %v512, %v557
  %v668 = vmul.f32 %v515, %v562
  %v669 = vadd.f32 %v667, %v569
  %v670 = vadd.f32 %v668, %v574
  %v671 = vmax.f32 %v669, 0.0
  %v672 = vmax.f32 %v670, 0.0
  %v673 = vmul.f32 %v671, %v671
  %v674 = vmul.f32 %v672, %v672
  %v675 = vadd.f32 %v673, %v674
  %v676 = vrot.slane %v675, 4
  %v677 = vadd.f32 %v675, %v676
  %v678 = vrot.slane %v677, 2
  %v679 = vadd.f32 %v677, %v678
  %v680 = vrot.slane %v679, 1
  %v681 = vadd.f32 %v679, %v680
  %v682 = vmul.f32 %v681, %v589
  %v683 = vadd.f32 %v682, 1e-10
  %v684 = vrsqrt.pop %v683
  %v685 = vmul.f32 %v671, %v684
  %v686 = vmul.f32 %v672, %v684
  %v687 = vpack.c.bf16 %v686, %v685
  %v689 = vunpack.c.l.b16 %v687
  %v690 = vunpack.c.h.b16 %v687
  %v691 = vpack.c.b16 %v689, %v689
  %v692 = vpack.c.b16 %v690, %v690
  %s695 = scalar_lea.vmem %s4, 24
  %696 = vst [vmem:[%s695] sm:$0xf] %v691
  %697 = vst [vmem:[%s695 + $0x4] sm:$0xf] %v692
  // Predicated region
  $region18: #{generator_forward.6} parent=0 // pred_check
    _
  $region19: #{generator_forward.6} parent=0 // pred_check_branch
    %699 = sbr.rel (0) target = $region21
  $region20: #{generator_forward.6} parent=0 // pred_region
    _
  $region21: #{generator_forward.6} parent=0 // pred_fallthru
    _
  // Predicated region
  $region22: #{generator_forward.6} parent=0 // pred_check
    _
  $region23: #{generator_forward.6} parent=0 // pred_check_branch
    %701 = sbr.rel (0) target = $region25
  $region24: #{generator_forward.6} parent=0 // pred_region
    _
  $region25: #{generator_forward.6} parent=0 // pred_fallthru
    _

// kernel: generator_forward.7
$region0: #{generator_forward.7}
  #allocation0 [shape = 'u32[]', space=smem, size = 0x4, offset = 0x4, fixed_abs, tag = 'smem constant byte address 0x4 - core index']
  #allocation1 [shape = 'u32[144,128]{1,0:T(1,128)}', space=vmem, size = 0x12000, scoped, tag = 'internal scratch']
  %s0 = inlined_call_operand.vmem [shape: bf16[4,64,512], index: 0, kind: input, shape index: {}]
  %s1 = inlined_call_operand.vmem [shape: bf16[4,3,64], index: 1, kind: input, shape index: {}]
  %s2 = inlined_call_operand.vmem [shape: f32[4,3,512], index: 2, kind: output, shape index: {}]
  %s3 = sld [smem:[#allocation0]]
  $region18: #{generator_forward.7} parent=0
    _
  %s5 = ssub.s32 1, %s3
  %s6 = scalar_select 0, %s5, %s3
  // Predicated region
  $region2: #{generator_forward.7} parent=0 // pred_check
    _
  $region3: #{generator_forward.7} parent=0 // pred_check_branch
    %8 = sbr.rel (0) target = $region5
  $region4: #{generator_forward.7} parent=0 // pred_region
    _
  $region5: #{generator_forward.7} parent=0 // pred_fallthru
    _
  // Predicated region
  $region6: #{generator_forward.7} parent=0 // pred_check
    _
  $region7: #{generator_forward.7} parent=0 // pred_check_branch
    %10 = sbr.rel (0) target = $region9
  $region8: #{generator_forward.7} parent=0 // pred_region
    _
  $region9: #{generator_forward.7} parent=0 // pred_fallthru
    _
  %v12 = vld [vmem:[%s1] sm:$0x3]
  %v13 = vld [vmem:[%s0] sm:$0xff]
  %v14 = vld [vmem:[%s0 + $0x8] sm:$0xff]
  %v15 = vld [vmem:[%s0 + $0x10] sm:$0xff]
  %v16 = vld [vmem:[%s0 + $0x18] sm:$0xff]
  %v17 = vld [vmem:[%s0 + $0x20] sm:$0xff]
  %v18 = vld [vmem:[%s0 + $0x28] sm:$0xff]
  %v19 = vld [vmem:[%s0 + $0x30] sm:$0xff]
  %v20 = vld [vmem:[%s0 + $0x38] sm:$0xff]
  %v21 = vld [vmem:[%s0 + $0x40] sm:$0xff]
  %v22 = vld [vmem:[%s0 + $0x48] sm:$0xff]
  %v23 = vld [vmem:[%s0 + $0x50] sm:$0xff]
  %v24 = vld [vmem:[%s0 + $0x58] sm:$0xff]
  %v25 = vld [vmem:[%s0 + $0x60] sm:$0xff]
  %v26 = vld [vmem:[%s0 + $0x68] sm:$0xff]
  %v27 = vld [vmem:[%s0 + $0x70] sm:$0xff]
  %v28 = vld [vmem:[%s0 + $0x78] sm:$0xff]
  %v45 = vunpack.c.l.b16 %v13
  %v46 = vunpack.c.h.b16 %v13
  %v47 = vunpack.c.l.b16 %v14
  %v48 = vunpack.c.h.b16 %v14
  %v49 = vunpack.c.l.b16 %v15
  %v50 = vunpack.c.h.b16 %v15
  %v51 = vunpack.c.l.b16 %v16
  %v52 = vunpack.c.h.b16 %v16
  %v53 = vunpack.c.l.b16 %v17
  %v54 = vunpack.c.h.b16 %v17
  %v55 = vunpack.c.l.b16 %v18
  %v56 = vunpack.c.h.b16 %v18
  %v57 = vunpack.c.l.b16 %v19
  %v58 = vunpack.c.h.b16 %v19
  %v59 = vunpack.c.l.b16 %v20
  %v60 = vunpack.c.h.b16 %v20
  %v61 = vunpack.c.l.b16 %v21
  %v62 = vunpack.c.h.b16 %v21
  %v63 = vunpack.c.l.b16 %v22
  %v64 = vunpack.c.h.b16 %v22
  %v65 = vunpack.c.l.b16 %v23
  %v66 = vunpack.c.h.b16 %v23
  %v67 = vunpack.c.l.b16 %v24
  %v68 = vunpack.c.h.b16 %v24
  %v69 = vunpack.c.l.b16 %v25
  %v70 = vunpack.c.h.b16 %v25
  %v71 = vunpack.c.l.b16 %v26
  %v72 = vunpack.c.h.b16 %v26
  %v73 = vunpack.c.l.b16 %v27
  %v74 = vunpack.c.h.b16 %v27
  %v75 = vunpack.c.l.b16 %v28
  %v76 = vunpack.c.h.b16 %v28
  %v77 = vpack.c.b16 %v49, %v45
  %v78 = vpack.c.b16 %v50, %v46
  %v79 = vpack.c.b16 %v51, %v47
  %v80 = vpack.c.b16 %v52, %v48
  %v81 = vpack.c.b16 %v57, %v53
  %v82 = vpack.c.b16 %v58, %v54
  %v83 = vpack.c.b16 %v59, %v55
  %v84 = vpack.c.b16 %v60, %v56
  %v85 = vpack.c.b16 %v65, %v61
  %v86 = vpack.c.b16 %v66, %v62
  %v87 = vpack.c.b16 %v67, %v63
  %v88 = vpack.c.b16 %v68, %v64
  %v89 = vpack.c.b16 %v73, %v69
  %v90 = vpack.c.b16 %v74, %v70
  %v91 = vpack.c.b16 %v75, %v71
  %v92 = vpack.c.b16 %v76, %v72
  %vm109 = vcmask 523264
  %v111 = vsel %vm109, %v12, 0
  %113 = vmatprep.subr.bf16.mxu0 %v78
  %114 = vmatpush1.bf16.msra.mxu0 %v77
  %115 = vmatprep.subr.bf16.mxu0 %v82
  %116 = vmatpush1.bf16.msra.mxu0 %v81
  %117 = vmatprep.subr.bf16.mxu0 %v86
  %118 = vmatpush1.bf16.msra.mxu0 %v85
  %119 = vmatprep.subr.bf16.mxu0 %v90
  %120 = vmatpush1.bf16.msra.mxu0 %v89
  %121 = vmatprep.subr.bf16.mxu0 0
  %122 = vmatpush1.bf16.msra.mxu0 0
  %123 = vmatprep.subr.bf16.mxu0 0
  %124 = vmatpush1.bf16.msra.mxu0 0
  %125 = vmatprep.subr.bf16.mxu0 0
  %126 = vmatpush1.bf16.msra.mxu0 0
  %127 = vmatprep.subr.bf16.mxu0 0
  %128 = vmatpush1.bf16.msra.mxu0 0
  %129 = vmatprep.subr.bf16.mxu0 0
  %130 = vmatpush1.bf16.msra.mxu0 0
  %131 = vmatprep.subr.bf16.mxu0 0
  %132 = vmatpush1.bf16.msra.mxu0 0
  %133 = vmatprep.subr.bf16.mxu0 0
  %134 = vmatpush1.bf16.msra.mxu0 0
  %135 = vmatprep.subr.bf16.mxu0 0
  %136 = vmatpush1.bf16.msra.mxu0 0
  %137 = vmatprep.subr.bf16.mxu0 0
  %138 = vmatpush1.bf16.msra.mxu0 0
  %139 = vmatprep.subr.bf16.mxu0 0
  %140 = vmatpush1.bf16.msra.mxu0 0
  %141 = vmatprep.subr.bf16.mxu0 0
  %142 = vmatpush1.bf16.msra.mxu0 0
  %143 = vmatprep.subr.bf16.mxu0 0
  %144 = vmatpush1.bf16.msra.mxu0 0
  %145 = vmatprep.mubr.bf16.mxu0 0
  %146 = vmatmul.mubr.bf16.gmra.mrb[0].mxu0 %v111
  %v147 = vpop.f32.mrb[0].mxu0
  %v148 = vadd.f32 0.0, %v147
  %v149 = vpop.f32.mrb[0].mxu0
  %v150 = vadd.f32 0.0, %v149
  %v151 = vpop.f32.mrb[0].mxu0
  %v152 = vpop.f32.mrb[0].mxu0
  %153 = vdwg.mxu0
  %154 = vmatprep.subr.bf16.mxu0 %v80
  %155 = vmatpush1.bf16.msra.mxu0 %v79
  %156 = vmatprep.subr.bf16.mxu0 %v84
  %157 = vmatpush1.bf16.msra.mxu0 %v83
  %158 = vmatprep.subr.bf16.mxu0 %v88
  %159 = vmatpush1.bf16.msra.mxu0 %v87
  %160 = vmatprep.subr.bf16.mxu0 %v92
  %161 = vmatpush1.bf16.msra.mxu0 %v91
  %162 = vmatprep.subr.bf16.mxu0 0
  %163 = vmatpush1.bf16.msra.mxu0 0
  %164 = vmatprep.subr.bf16.mxu0 0
  %165 = vmatpush1.bf16.msra.mxu0 0
  %166 = vmatprep.subr.bf16.mxu0 0
  %167 = vmatpush1.bf16.msra.mxu0 0
  %168 = vmatprep.subr.bf16.mxu0 0
  %169 = vmatpush1.bf16.msra.mxu0 0
  %170 = vmatprep.subr.bf16.mxu0 0
  %171 = vmatpush1.bf16.msra.mxu0 0
  %172 = vmatprep.subr.bf16.mxu0 0
  %173 = vmatpush1.bf16.msra.mxu0 0
  %174 = vmatprep.subr.bf16.mxu0 0
  %175 = vmatpush1.bf16.msra.mxu0 0
  %176 = vmatprep.subr.bf16.mxu0 0
  %177 = vmatpush1.bf16.msra.mxu0 0
  %178 = vmatprep.subr.bf16.mxu0 0
  %179 = vmatpush1.bf16.msra.mxu0 0
  %180 = vmatprep.subr.bf16.mxu0 0
  %181 = vmatpush1.bf16.msra.mxu0 0
  %182 = vmatprep.subr.bf16.mxu0 0
  %183 = vmatpush1.bf16.msra.mxu0 0
  %184 = vmatprep.subr.bf16.mxu0 0
  %185 = vmatpush1.bf16.msra.mxu0 0
  %186 = vmatprep.mubr.bf16.mxu0 0
  %187 = vmatmul.mubr.bf16.gmra.mrb[0].mxu0 %v111
  %v188 = vpop.f32.mrb[0].mxu0
  %v189 = vadd.f32 0.0, %v188
  %v190 = vpop.f32.mrb[0].mxu0
  %v191 = vadd.f32 0.0, %v190
  %v192 = vpop.f32.mrb[0].mxu0
  %v193 = vpop.f32.mrb[0].mxu0
  %194 = vdwg.mxu0
  %v195 = vtanh.pop %v148
  %v196 = vtanh.pop %v150
  %v197 = vtanh.pop %v189
  %v198 = vtanh.pop %v191
  %v203 = vcombine.low %v195, %v196
  %v204 = vcombine.low %v197, %v198
  %207 = vst [vmem:[%s2] sm:$0x77] %v203
  %208 = vst [vmem:[%s2 + $0x8] sm:$0x77] %v204
  %s209 = scalar_lea.vmem %s1, 2
  %v210 = vld [vmem:[%s209] sm:$0x3]
  %s211 = scalar_lea.vmem %s0, 128
  %v212 = vld [vmem:[%s211] sm:$0xff]
  %v213 = vld [vmem:[%s211 + $0x8] sm:$0xff]
  %v214 = vld [vmem:[%s211 + $0x10] sm:$0xff]
  %v215 = vld [vmem:[%s211 + $0x18] sm:$0xff]
  %v216 = vld [vmem:[%s211 + $0x20] sm:$0xff]
  %v217 = vld [vmem:[%s211 + $0x28] sm:$0xff]
  %v218 = vld [vmem:[%s211 + $0x30] sm:$0xff]
  %v219 = vld [vmem:[%s211 + $0x38] sm:$0xff]
  %v220 = vld [vmem:[%s211 + $0x40] sm:$0xff]
  %v221 = vld [vmem:[%s211 + $0x48] sm:$0xff]
  %v222 = vld [vmem:[%s211 + $0x50] sm:$0xff]
  %v223 = vld [vmem:[%s211 + $0x58] sm:$0xff]
  %v224 = vld [vmem:[%s211 + $0x60] sm:$0xff]
  %v225 = vld [vmem:[%s211 + $0x68] sm:$0xff]
  %v226 = vld [vmem:[%s211 + $0x70] sm:$0xff]
  %v227 = vld [vmem:[%s211 + $0x78] sm:$0xff]
  %v244 = vunpack.c.l.b16 %v212
  %v245 = vunpack.c.h.b16 %v212
  %v246 = vunpack.c.l.b16 %v213
  %v247 = vunpack.c.h.b16 %v213
  %v248 = vunpack.c.l.b16 %v214
  %v249 = vunpack.c.h.b16 %v214
  %v250 = vunpack.c.l.b16 %v215
  %v251 = vunpack.c.h.b16 %v215
  %v252 = vunpack.c.l.b16 %v216
  %v253 = vunpack.c.h.b16 %v216
  %v254 = vunpack.c.l.b16 %v217
  %v255 = vunpack.c.h.b16 %v217
  %v256 = vunpack.c.l.b16 %v218
  %v257 = vunpack.c.h.b16 %v218
  %v258 = vunpack.c.l.b16 %v219
  %v259 = vunpack.c.h.b16 %v219
  %v260 = vunpack.c.l.b16 %v220
  %v261 = vunpack.c.h.b16 %v220
  %v262 = vunpack.c.l.b16 %v221
  %v263 = vunpack.c.h.b16 %v221
  %v264 = vunpack.c.l.b16 %v222
  %v265 = vunpack.c.h.b16 %v222
  %v266 = vunpack.c.l.b16 %v223
  %v267 = vunpack.c.h.b16 %v223
  %v268 = vunpack.c.l.b16 %v224
  %v269 = vunpack.c.h.b16 %v224
  %v270 = vunpack.c.l.b16 %v225
  %v271 = vunpack.c.h.b16 %v225
  %v272 = vunpack.c.l.b16 %v226
  %v273 = vunpack.c.h.b16 %v226
  %v274 = vunpack.c.l.b16 %v227
  %v275 = vunpack.c.h.b16 %v227
  %v276 = vpack.c.b16 %v248, %v244
  %v277 = vpack.c.b16 %v249, %v245
  %v278 = vpack.c.b16 %v250, %v246
  %v279 = vpack.c.b16 %v251, %v247
  %v280 = vpack.c.b16 %v256, %v252
  %v281 = vpack.c.b16 %v257, %v253
  %v282 = vpack.c.b16 %v258, %v254
  %v283 = vpack.c.b16 %v259, %v255
  %v284 = vpack.c.b16 %v264, %v260
  %v285 = vpack.c.b16 %v265, %v261
  %v286 = vpack.c.b16 %v266, %v262
  %v287 = vpack.c.b16 %v267, %v263
  %v288 = vpack.c.b16 %v272, %v268
  %v289 = vpack.c.b16 %v273, %v269
  %v290 = vpack.c.b16 %v274, %v270
  %v291 = vpack.c.b16 %v275, %v271
  %v309 = vsel %vm109, %v210, 0
  %311 = vmatprep.subr.bf16.mxu0 %v277
  %312 = vmatpush1.bf16.msra.mxu0 %v276
  %313 = vmatprep.subr.bf16.mxu0 %v281
  %314 = vmatpush1.bf16.msra.mxu0 %v280
  %315 = vmatprep.subr.bf16.mxu0 %v285
  %316 = vmatpush1.bf16.msra.mxu0 %v284
  %317 = vmatprep.subr.bf16.mxu0 %v289
  %318 = vmatpush1.bf16.msra.mxu0 %v288
  %319 = vmatprep.subr.bf16.mxu0 0
  %320 = vmatpush1.bf16.msra.mxu0 0
  %321 = vmatprep.subr.bf16.mxu0 0
  %322 = vmatpush1.bf16.msra.mxu0 0
  %323 = vmatprep.subr.bf16.mxu0 0
  %324 = vmatpush1.bf16.msra.mxu0 0
  %325 = vmatprep.subr.bf16.mxu0 0
  %326 = vmatpush1.bf16.msra.mxu0 0
  %327 = vmatprep.subr.bf16.mxu0 0
  %328 = vmatpush1.bf16.msra.mxu0 0
  %329 = vmatprep.subr.bf16.mxu0 0
  %330 = vmatpush1.bf16.msra.mxu0 0
  %331 = vmatprep.subr.bf16.mxu0 0
  %332 = vmatpush1.bf16.msra.mxu0 0
  %333 = vmatprep.subr.bf16.mxu0 0
  %334 = vmatpush1.bf16.msra.mxu0 0
  %335 = vmatprep.subr.bf16.mxu0 0
  %336 = vmatpush1.bf16.msra.mxu0 0
  %337 = vmatprep.subr.bf16.mxu0 0
  %338 = vmatpush1.bf16.msra.mxu0 0
  %339 = vmatprep.subr.bf16.mxu0 0
  %340 = vmatpush1.bf16.msra.mxu0 0
  %341 = vmatprep.subr.bf16.mxu0 0
  %342 = vmatpush1.bf16.msra.mxu0 0
  %343 = vmatprep.mubr.bf16.mxu0 0
  %344 = vmatmul.mubr.bf16.gmra.mrb[0].mxu0 %v309
  %v345 = vpop.f32.mrb[0].mxu0
  %v346 = vadd.f32 0.0, %v345
  %v347 = vpop.f32.mrb[0].mxu0
  %v348 = vadd.f32 0.0, %v347
  %v349 = vpop.f32.mrb[0].mxu0
  %v350 = vpop.f32.mrb[0].mxu0
  %351 = vdwg.mxu0
  %352 = vmatprep.subr.bf16.mxu0 %v279
  %353 = vmatpush1.bf16.msra.mxu0 %v278
  %354 = vmatprep.subr.bf16.mxu0 %v283
  %355 = vmatpush1.bf16.msra.mxu0 %v282
  %356 = vmatprep.subr.bf16.mxu0 %v287
  %357 = vmatpush1.bf16.msra.mxu0 %v286
  %358 = vmatprep.subr.bf16.mxu0 %v291
  %359 = vmatpush1.bf16.msra.mxu0 %v290
  %360 = vmatprep.subr.bf16.mxu0 0
  %361 = vmatpush1.bf16.msra.mxu0 0
  %362 = vmatprep.subr.bf16.mxu0 0
  %363 = vmatpush1.bf16.msra.mxu0 0
  %364 = vmatprep.subr.bf16.mxu0 0
  %365 = vmatpush1.bf16.msra.mxu0 0
  %366 = vmatprep.subr.bf16.mxu0 0
  %367 = vmatpush1.bf16.msra.mxu0 0
  %368 = vmatprep.subr.bf16.mxu0 0
  %369 = vmatpush1.bf16.msra.mxu0 0
  %370 = vmatprep.subr.bf16.mxu0 0
  %371 = vmatpush1.bf16.msra.mxu0 0
  %372 = vmatprep.subr.bf16.mxu0 0
  %373 = vmatpush1.bf16.msra.mxu0 0
  %374 = vmatprep.subr.bf16.mxu0 0
  %375 = vmatpush1.bf16.msra.mxu0 0
  %376 = vmatprep.subr.bf16.mxu0 0
  %377 = vmatpush1.bf16.msra.mxu0 0
  %378 = vmatprep.subr.bf16.mxu0 0
  %379 = vmatpush1.bf16.msra.mxu0 0
  %380 = vmatprep.subr.bf16.mxu0 0
  %381 = vmatpush1.bf16.msra.mxu0 0
  %382 = vmatprep.subr.bf16.mxu0 0
  %383 = vmatpush1.bf16.msra.mxu0 0
  %384 = vmatprep.mubr.bf16.mxu0 0
  %385 = vmatmul.mubr.bf16.gmra.mrb[0].mxu0 %v309
  %v386 = vpop.f32.mrb[0].mxu0
  %v387 = vadd.f32 0.0, %v386
  %v388 = vpop.f32.mrb[0].mxu0
  %v389 = vadd.f32 0.0, %v388
  %v390 = vpop.f32.mrb[0].mxu0
  %v391 = vpop.f32.mrb[0].mxu0
  %392 = vdwg.mxu0
  %v393 = vtanh.pop %v346
  %v394 = vtanh.pop %v348
  %v395 = vtanh.pop %v387
  %v396 = vtanh.pop %v389
  %v401 = vcombine.low %v393, %v394
  %v402 = vcombine.low %v395, %v396
  %s405 = scalar_lea.vmem %s2, 16
  %406 = vst [vmem:[%s405] sm:$0x77] %v401
  %407 = vst [vmem:[%s405 + $0x8] sm:$0x77] %v402
  %s408 = scalar_lea.vmem %s1, 4
  %v409 = vld [vmem:[%s408] sm:$0x3]
  %s410 = scalar_lea.vmem %s0, 256
  %v411 = vld [vmem:[%s410] sm:$0xff]
  %v412 = vld [vmem:[%s410 + $0x8] sm:$0xff]
  %v413 = vld [vmem:[%s410 + $0x10] sm:$0xff]
  %v414 = vld [vmem:[%s410 + $0x18] sm:$0xff]
  %v415 = vld [vmem:[%s410 + $0x20] sm:$0xff]
  %v416 = vld [vmem:[%s410 + $0x28] sm:$0xff]
  %v417 = vld [vmem:[%s410 + $0x30] sm:$0xff]
  %v418 = vld [vmem:[%s410 + $0x38] sm:$0xff]
  %v419 = vld [vmem:[%s410 + $0x40] sm:$0xff]
  %v420 = vld [vmem:[%s410 + $0x48] sm:$0xff]
  %v421 = vld [vmem:[%s410 + $0x50] sm:$0xff]
  %v422 = vld [vmem:[%s410 + $0x58] sm:$0xff]
  %v423 = vld [vmem:[%s410 + $0x60] sm:$0xff]
  %v424 = vld [vmem:[%s410 + $0x68] sm:$0xff]
  %v425 = vld [vmem:[%s410 + $0x70] sm:$0xff]
  %v426 = vld [vmem:[%s410 + $0x78] sm:$0xff]
  %v443 = vunpack.c.l.b16 %v411
  %v444 = vunpack.c.h.b16 %v411
  %v445 = vunpack.c.l.b16 %v412
  %v446 = vunpack.c.h.b16 %v412
  %v447 = vunpack.c.l.b16 %v413
  %v448 = vunpack.c.h.b16 %v413
  %v449 = vunpack.c.l.b16 %v414
  %v450 = vunpack.c.h.b16 %v414
  %v451 = vunpack.c.l.b16 %v415
  %v452 = vunpack.c.h.b16 %v415
  %v453 = vunpack.c.l.b16 %v416
  %v454 = vunpack.c.h.b16 %v416
  %v455 = vunpack.c.l.b16 %v417
  %v456 = vunpack.c.h.b16 %v417
  %v457 = vunpack.c.l.b16 %v418
  %v458 = vunpack.c.h.b16 %v418
  %v459 = vunpack.c.l.b16 %v419
  %v460 = vunpack.c.h.b16 %v419
  %v461 = vunpack.c.l.b16 %v420
  %v462 = vunpack.c.h.b16 %v420
  %v463 = vunpack.c.l.b16 %v421
  %v464 = vunpack.c.h.b16 %v421
  %v465 = vunpack.c.l.b16 %v422
  %v466 = vunpack.c.h.b16 %v422
  %v467 = vunpack.c.l.b16 %v423
  %v468 = vunpack.c.h.b16 %v423
  %v469 = vunpack.c.l.b16 %v424
  %v470 = vunpack.c.h.b16 %v424
  %v471 = vunpack.c.l.b16 %v425
  %v472 = vunpack.c.h.b16 %v425
  %v473 = vunpack.c.l.b16 %v426
  %v474 = vunpack.c.h.b16 %v426
  %v475 = vpack.c.b16 %v447, %v443
  %v476 = vpack.c.b16 %v448, %v444
  %v477 = vpack.c.b16 %v449, %v445
  %v478 = vpack.c.b16 %v450, %v446
  %v479 = vpack.c.b16 %v455, %v451
  %v480 = vpack.c.b16 %v456, %v452
  %v481 = vpack.c.b16 %v457, %v453
  %v482 = vpack.c.b16 %v458, %v454
  %v483 = vpack.c.b16 %v463, %v459
  %v484 = vpack.c.b16 %v464, %v460
  %v485 = vpack.c.b16 %v465, %v461
  %v486 = vpack.c.b16 %v466, %v462
  %v487 = vpack.c.b16 %v471, %v467
  %v488 = vpack.c.b16 %v472, %v468
  %v489 = vpack.c.b16 %v473, %v469
  %v490 = vpack.c.b16 %v474, %v470
  %v508 = vsel %vm109, %v409, 0
  %510 = vmatprep.subr.bf16.mxu0 %v476
  %511 = vmatpush1.bf16.msra.mxu0 %v475
  %512 = vmatprep.subr.bf16.mxu0 %v480
  %513 = vmatpush1.bf16.msra.mxu0 %v479
  %514 = vmatprep.subr.bf16.mxu0 %v484
  %515 = vmatpush1.bf16.msra.mxu0 %v483
  %516 = vmatprep.subr.bf16.mxu0 %v488
  %517 = vmatpush1.bf16.msra.mxu0 %v487
  %518 = vmatprep.subr.bf16.mxu0 0
  %519 = vmatpush1.bf16.msra.mxu0 0
  %520 = vmatprep.subr.bf16.mxu0 0
  %521 = vmatpush1.bf16.msra.mxu0 0
  %522 = vmatprep.subr.bf16.mxu0 0
  %523 = vmatpush1.bf16.msra.mxu0 0
  %524 = vmatprep.subr.bf16.mxu0 0
  %525 = vmatpush1.bf16.msra.mxu0 0
  %526 = vmatprep.subr.bf16.mxu0 0
  %527 = vmatpush1.bf16.msra.mxu0 0
  %528 = vmatprep.subr.bf16.mxu0 0
  %529 = vmatpush1.bf16.msra.mxu0 0
  %530 = vmatprep.subr.bf16.mxu0 0
  %531 = vmatpush1.bf16.msra.mxu0 0
  %532 = vmatprep.subr.bf16.mxu0 0
  %533 = vmatpush1.bf16.msra.mxu0 0
  %534 = vmatprep.subr.bf16.mxu0 0
  %535 = vmatpush1.bf16.msra.mxu0 0
  %536 = vmatprep.subr.bf16.mxu0 0
  %537 = vmatpush1.bf16.msra.mxu0 0
  %538 = vmatprep.subr.bf16.mxu0 0
  %539 = vmatpush1.bf16.msra.mxu0 0
  %540 = vmatprep.subr.bf16.mxu0 0
  %541 = vmatpush1.bf16.msra.mxu0 0
  %542 = vmatprep.mubr.bf16.mxu0 0
  %543 = vmatmul.mubr.bf16.gmra.mrb[0].mxu0 %v508
  %v544 = vpop.f32.mrb[0].mxu0
  %v545 = vadd.f32 0.0, %v544
  %v546 = vpop.f32.mrb[0].mxu0
  %v547 = vadd.f32 0.0, %v546
  %v548 = vpop.f32.mrb[0].mxu0
  %v549 = vpop.f32.mrb[0].mxu0
  %550 = vdwg.mxu0
  %551 = vmatprep.subr.bf16.mxu0 %v478
  %552 = vmatpush1.bf16.msra.mxu0 %v477
  %553 = vmatprep.subr.bf16.mxu0 %v482
  %554 = vmatpush1.bf16.msra.mxu0 %v481
  %555 = vmatprep.subr.bf16.mxu0 %v486
  %556 = vmatpush1.bf16.msra.mxu0 %v485
  %557 = vmatprep.subr.bf16.mxu0 %v490
  %558 = vmatpush1.bf16.msra.mxu0 %v489
  %559 = vmatprep.subr.bf16.mxu0 0
  %560 = vmatpush1.bf16.msra.mxu0 0
  %561 = vmatprep.subr.bf16.mxu0 0
  %562 = vmatpush1.bf16.msra.mxu0 0
  %563 = vmatprep.subr.bf16.mxu0 0
  %564 = vmatpush1.bf16.msra.mxu0 0
  %565 = vmatprep.subr.bf16.mxu0 0
  %566 = vmatpush1.bf16.msra.mxu0 0
  %567 = vmatprep.subr.bf16.mxu0 0
  %568 = vmatpush1.bf16.msra.mxu0 0
  %569 = vmatprep.subr.bf16.mxu0 0
  %570 = vmatpush1.bf16.msra.mxu0 0
  %571 = vmatprep.subr.bf16.mxu0 0
  %572 = vmatpush1.bf16.msra.mxu0 0
  %573 = vmatprep.subr.bf16.mxu0 0
  %574 = vmatpush1.bf16.msra.mxu0 0
  %575 = vmatprep.subr.bf16.mxu0 0
  %576 = vmatpush1.bf16.msra.mxu0 0
  %577 = vmatprep.subr.bf16.mxu0 0
  %578 = vmatpush1.bf16.msra.mxu0 0
  %579 = vmatprep.subr.bf16.mxu0 0
  %580 = vmatpush1.bf16.msra.mxu0 0
  %581 = vmatprep.subr.bf16.mxu0 0
  %582 = vmatpush1.bf16.msra.mxu0 0
  %583 = vmatprep.mubr.bf16.mxu0 0
  %584 = vmatmul.mubr.bf16.gmra.mrb[0].mxu0 %v508
  %v585 = vpop.f32.mrb[0].mxu0
  %v586 = vadd.f32 0.0, %v585
  %v587 = vpop.f32.mrb[0].mxu0
  %v588 = vadd.f32 0.0, %v587
  %v589 = vpop.f32.mrb[0].mxu0
  %v590 = vpop.f32.mrb[0].mxu0
  %591 = vdwg.mxu0
  %v592 = vtanh.pop %v545
  %v593 = vtanh.pop %v547
  %v594 = vtanh.pop %v586
  %v595 = vtanh.pop %v588
  %v600 = vcombine.low %v592, %v593
  %v601 = vcombine.low %v594, %v595
  %s604 = scalar_lea.vmem %s2, 32
  %605 = vst [vmem:[%s604] sm:$0x77] %v600
  %606 = vst [vmem:[%s604 + $0x8] sm:$0x77] %v601
  %s607 = scalar_lea.vmem %s1, 6
  %v608 = vld [vmem:[%s607] sm:$0x3]
  %s609 = scalar_lea.vmem %s0, 384
  %v610 = vld [vmem:[%s609] sm:$0xff]
  %v611 = vld [vmem:[%s609 + $0x8] sm:$0xff]
  %v612 = vld [vmem:[%s609 + $0x10] sm:$0xff]
  %v613 = vld [vmem:[%s609 + $0x18] sm:$0xff]
  %v614 = vld [vmem:[%s609 + $0x20] sm:$0xff]
  %v615 = vld [vmem:[%s609 + $0x28] sm:$0xff]
  %v616 = vld [vmem:[%s609 + $0x30] sm:$0xff]
  %v617 = vld [vmem:[%s609 + $0x38] sm:$0xff]
  %v618 = vld [vmem:[%s609 + $0x40] sm:$0xff]
  %v619 = vld [vmem:[%s609 + $0x48] sm:$0xff]
  %v620 = vld [vmem:[%s609 + $0x50] sm:$0xff]
  %v621 = vld [vmem:[%s609 + $0x58] sm:$0xff]
  %v622 = vld [vmem:[%s609 + $0x60] sm:$0xff]
  %v623 = vld [vmem:[%s609 + $0x68] sm:$0xff]
  %v624 = vld [vmem:[%s609 + $0x70] sm:$0xff]
  %v625 = vld [vmem:[%s609 + $0x78] sm:$0xff]
  %v642 = vunpack.c.l.b16 %v610
  %v643 = vunpack.c.h.b16 %v610
  %v644 = vunpack.c.l.b16 %v611
  %v645 = vunpack.c.h.b16 %v611
  %v646 = vunpack.c.l.b16 %v612
  %v647 = vunpack.c.h.b16 %v612
  %v648 = vunpack.c.l.b16 %v613
  %v649 = vunpack.c.h.b16 %v613
  %v650 = vunpack.c.l.b16 %v614
  %v651 = vunpack.c.h.b16 %v614
  %v652 = vunpack.c.l.b16 %v615
  %v653 = vunpack.c.h.b16 %v615
  %v654 = vunpack.c.l.b16 %v616
  %v655 = vunpack.c.h.b16 %v616
  %v656 = vunpack.c.l.b16 %v617
  %v657 = vunpack.c.h.b16 %v617
  %v658 = vunpack.c.l.b16 %v618
  %v659 = vunpack.c.h.b16 %v618
  %v660 = vunpack.c.l.b16 %v619
  %v661 = vunpack.c.h.b16 %v619
  %v662 = vunpack.c.l.b16 %v620
  %v663 = vunpack.c.h.b16 %v620
  %v664 = vunpack.c.l.b16 %v621
  %v665 = vunpack.c.h.b16 %v621
  %v666 = vunpack.c.l.b16 %v622
  %v667 = vunpack.c.h.b16 %v622
  %v668 = vunpack.c.l.b16 %v623
  %v669 = vunpack.c.h.b16 %v623
  %v670 = vunpack.c.l.b16 %v624
  %v671 = vunpack.c.h.b16 %v624
  %v672 = vunpack.c.l.b16 %v625
  %v673 = vunpack.c.h.b16 %v625
  %v674 = vpack.c.b16 %v646, %v642
  %v675 = vpack.c.b16 %v647, %v643
  %v676 = vpack.c.b16 %v648, %v644
  %v677 = vpack.c.b16 %v649, %v645
  %v678 = vpack.c.b16 %v654, %v650
  %v679 = vpack.c.b16 %v655, %v651
  %v680 = vpack.c.b16 %v656, %v652
  %v681 = vpack.c.b16 %v657, %v653
  %v682 = vpack.c.b16 %v662, %v658
  %v683 = vpack.c.b16 %v663, %v659
  %v684 = vpack.c.b16 %v664, %v660
  %v685 = vpack.c.b16 %v665, %v661
  %v686 = vpack.c.b16 %v670, %v666
  %v687 = vpack.c.b16 %v671, %v667
  %v688 = vpack.c.b16 %v672, %v668
  %v689 = vpack.c.b16 %v673, %v669
  %v707 = vsel %vm109, %v608, 0
  %709 = vmatprep.subr.bf16.mxu0 %v675
  %710 = vmatpush1.bf16.msra.mxu0 %v674
  %711 = vmatprep.subr.bf16.mxu0 %v679
  %712 = vmatpush1.bf16.msra.mxu0 %v678
  %713 = vmatprep.subr.bf16.mxu0 %v683
  %714 = vmatpush1.bf16.msra.mxu0 %v682
  %715 = vmatprep.subr.bf16.mxu0 %v687
  %716 = vmatpush1.bf16.msra.mxu0 %v686
  %717 = vmatprep.subr.bf16.mxu0 0
  %718 = vmatpush1.bf16.msra.mxu0 0
  %719 = vmatprep.subr.bf16.mxu0 0
  %720 = vmatpush1.bf16.msra.mxu0 0
  %721 = vmatprep.subr.bf16.mxu0 0
  %722 = vmatpush1.bf16.msra.mxu0 0
  %723 = vmatprep.subr.bf16.mxu0 0
  %724 = vmatpush1.bf16.msra.mxu0 0
  %725 = vmatprep.subr.bf16.mxu0 0
  %726 = vmatpush1.bf16.msra.mxu0 0
  %727 = vmatprep.subr.bf16.mxu0 0
  %728 = vmatpush1.bf16.msra.mxu0 0
  %729 = vmatprep.subr.bf16.mxu0 0
  %730 = vmatpush1.bf16.msra.mxu0 0
  %731 = vmatprep.subr.bf16.mxu0 0
  %732 = vmatpush1.bf16.msra.mxu0 0
  %733 = vmatprep.subr.bf16.mxu0 0
  %734 = vmatpush1.bf16.msra.mxu0 0
  %735 = vmatprep.subr.bf16.mxu0 0
  %736 = vmatpush1.bf16.msra.mxu0 0
  %737 = vmatprep.subr.bf16.mxu0 0
  %738 = vmatpush1.bf16.msra.mxu0 0
  %739 = vmatprep.subr.bf16.mxu0 0
  %740 = vmatpush1.bf16.msra.mxu0 0
  %741 = vmatprep.mubr.bf16.mxu0 0
  %742 = vmatmul.mubr.bf16.gmra.mrb[0].mxu0 %v707
  %v743 = vpop.f32.mrb[0].mxu0
  %v744 = vadd.f32 0.0, %v743
  %v745 = vpop.f32.mrb[0].mxu0
  %v746 = vadd.f32 0.0, %v745
  %v747 = vpop.f32.mrb[0].mxu0
  %v748 = vpop.f32.mrb[0].mxu0
  %749 = vdwg.mxu0
  %750 = vmatprep.subr.bf16.mxu0 %v677
  %751 = vmatpush1.bf16.msra.mxu0 %v676
  %752 = vmatprep.subr.bf16.mxu0 %v681
  %753 = vmatpush1.bf16.msra.mxu0 %v680
  %754 = vmatprep.subr.bf16.mxu0 %v685
  %755 = vmatpush1.bf16.msra.mxu0 %v684
  %756 = vmatprep.subr.bf16.mxu0 %v689
  %757 = vmatpush1.bf16.msra.mxu0 %v688
  %758 = vmatprep.subr.bf16.mxu0 0
  %759 = vmatpush1.bf16.msra.mxu0 0
  %760 = vmatprep.subr.bf16.mxu0 0
  %761 = vmatpush1.bf16.msra.mxu0 0
  %762 = vmatprep.subr.bf16.mxu0 0
  %763 = vmatpush1.bf16.msra.mxu0 0
  %764 = vmatprep.subr.bf16.mxu0 0
  %765 = vmatpush1.bf16.msra.mxu0 0
  %766 = vmatprep.subr.bf16.mxu0 0
  %767 = vmatpush1.bf16.msra.mxu0 0
  %768 = vmatprep.subr.bf16.mxu0 0
  %769 = vmatpush1.bf16.msra.mxu0 0
  %770 = vmatprep.subr.bf16.mxu0 0
  %771 = vmatpush1.bf16.msra.mxu0 0
  %772 = vmatprep.subr.bf16.mxu0 0
  %773 = vmatpush1.bf16.msra.mxu0 0
  %774 = vmatprep.subr.bf16.mxu0 0
  %775 = vmatpush1.bf16.msra.mxu0 0
  %776 = vmatprep.subr.bf16.mxu0 0
  %777 = vmatpush1.bf16.msra.mxu0 0
  %778 = vmatprep.subr.bf16.mxu0 0
  %779 = vmatpush1.bf16.msra.mxu0 0
  %780 = vmatprep.subr.bf16.mxu0 0
  %781 = vmatpush1.bf16.msra.mxu0 0
  %782 = vmatprep.mubr.bf16.mxu0 0
  %783 = vmatmul.mubr.bf16.gmra.mrb[0].mxu0 %v707
  %v784 = vpop.f32.mrb[0].mxu0
  %v785 = vadd.f32 0.0, %v784
  %v786 = vpop.f32.mrb[0].mxu0
  %v787 = vadd.f32 0.0, %v786
  %v788 = vpop.f32.mrb[0].mxu0
  %v789 = vpop.f32.mrb[0].mxu0
  %790 = vdwg.mxu0
  %v791 = vtanh.pop %v744
  %v792 = vtanh.pop %v746
  %v793 = vtanh.pop %v785
  %v794 = vtanh.pop %v787
  %v799 = vcombine.low %v791, %v792
  %v800 = vcombine.low %v793, %v794
  %s803 = scalar_lea.vmem %s2, 48
  %804 = vst [vmem:[%s803] sm:$0x77] %v799
  %805 = vst [vmem:[%s803 + $0x8] sm:$0x77] %v800
  // Predicated region
  $region10: #{generator_forward.7} parent=0 // pred_check
    _
  $region11: #{generator_forward.7} parent=0 // pred_check_branch
    %807 = sbr.rel (0) target = $region13
  $region12: #{generator_forward.7} parent=0 // pred_region
    _
  $region13: #{generator_forward.7} parent=0 // pred_fallthru
    _
  // Predicated region
  $region14: #{generator_forward.7} parent=0 // pred_check
    _
  $region15: #{generator_forward.7} parent=0 // pred_check_branch
    %809 = sbr.rel (0) target = $region17
  $region16: #{generator_forward.7} parent=0 // pred_region
    _
  $region17: #{generator_forward.7} parent=0 // pred_fallthru
    _

</llo_original>
